<compile_context>
chip_gen: v7x
topology: tpu7x:2x2x1
jax: 0.10.0
libtpu: 0.0.40
codegen_flags: <defaults>
</compile_context>

<pallas_src>
import functools

import jax
import jax.numpy as jnp
from jax import lax
from jax.experimental import pallas as pl
from jax.experimental.pallas import tpu as pltpu

_LANES = 128
_NUM_CLASSES = 10
_VMEM_LIMIT = 32 * 1024 * 1024


def _round_up(x, m):
    return (x + m - 1) // m * m


# ---------------------------------------------------------------------------
# Kernel 1: conv (patch matmul) + bias + fused 2x2 max-pool + ReLU.
# p0..p3 are the im2col rows of the four pool quadrants of each pooled output
# position, so the pool is just an elementwise max of four MXU results.
# ---------------------------------------------------------------------------
def _conv_pool_relu_kernel(p0_ref, p1_ref, p2_ref, p3_ref, w_ref, b_ref, o_ref):
    w = w_ref[...]
    y0 = jnp.dot(p0_ref[...], w, preferred_element_type=jnp.float32)
    y1 = jnp.dot(p1_ref[...], w, preferred_element_type=jnp.float32)
    y2 = jnp.dot(p2_ref[...], w, preferred_element_type=jnp.float32)
    y3 = jnp.dot(p3_ref[...], w, preferred_element_type=jnp.float32)
    y = jnp.maximum(jnp.maximum(y0, y1), jnp.maximum(y2, y3)) + b_ref[...]
    o_ref[...] = jnp.maximum(y, 0.0).astype(o_ref.dtype)


def conv_pool_relu(patches, wmat, bias, *, tm_max=512):
    """patches: 4 arrays (M, Kraw); wmat: (K, 128) bf16; bias: (1, 128) f32."""
    M, k_raw = patches[0].shape
    K, N = wmat.shape
    TM = min(tm_max, _round_up(M, 32))
    Mp = _round_up(M, TM)
    pp = [jnp.pad(p, ((0, Mp - M), (0, K - k_raw))).astype(jnp.bfloat16)
          for p in patches]
    out = pl.pallas_call(
        _conv_pool_relu_kernel,
        grid=(Mp // TM,),
        in_specs=[pl.BlockSpec((TM, K), lambda m: (m, 0)) for _ in range(4)]
        + [pl.BlockSpec((K, N), lambda m: (0, 0)),
           pl.BlockSpec((1, N), lambda m: (0, 0))],
        out_specs=pl.BlockSpec((TM, N), lambda m: (m, 0)),
        out_shape=jax.ShapeDtypeStruct((Mp, N), jnp.bfloat16),
        compiler_params=pltpu.CompilerParams(
            dimension_semantics=("parallel",),
            vmem_limit_bytes=_VMEM_LIMIT),
    )(*pp, wmat, bias)
    return out[:M]


# ---------------------------------------------------------------------------
# Kernel 2: fused head — fc + bias, linear + bias, CrossEntropyLoss (mean).
# Logits are lane-padded to 128 columns (padded cols are exactly 0); the loss
# masks columns >= n_classes and masks batch-padding rows via the zero one-hot.
# ---------------------------------------------------------------------------
def _head_kernel(x_ref, wfc_ref, bfc_ref, wlin_ref, blin_ref, onehot_ref,
                 logits_ref, loss_ref, *, n_classes, batch):
    h = jnp.dot(x_ref[...], wfc_ref[...],
                preferred_element_type=jnp.float32) + bfc_ref[...]
    logits = jnp.dot(h.astype(jnp.bfloat16), wlin_ref[...],
                     preferred_element_type=jnp.float32) + blin_ref[...]
    logits_ref[...] = logits

    col = lax.broadcasted_iota(jnp.int32, logits.shape, 1)
    masked = jnp.where(col < n_classes, logits, -1e30)
    m = jnp.max(masked, axis=-1, keepdims=True)
    lse = m + jnp.log(jnp.sum(jnp.exp(masked - m), axis=-1, keepdims=True))
    onehot = onehot_ref[...]
    picked = jnp.sum(logits * onehot, axis=-1, keepdims=True)
    valid = jnp.sum(onehot, axis=-1, keepdims=True)          # 0 for padded rows
    tile_loss = jnp.sum((lse - picked) * valid, keepdims=True) / batch

    @pl.when(pl.program_id(0) == 0)
    def _():
        loss_ref[...] = jnp.zeros_like(loss_ref)

    loss_ref[...] += tile_loss


def fc_linear_ce(feat, wfc, bfc, wlin, blin, target, *, batch, tb_max=256):
    B, Kfc = feat.shape
    N = wlin.shape[1]
    TB = min(tb_max, _round_up(B, 32))
    Bp = _round_up(B, TB)
    x = jnp.pad(feat, ((0, Bp - B), (0, 0))).astype(jnp.bfloat16)
    onehot = jax.nn.one_hot(target, N, dtype=jnp.float32)
    onehot = jnp.pad(onehot, ((0, Bp - B), (0, 0)))
    kernel = functools.partial(_head_kernel, n_classes=_NUM_CLASSES, batch=batch)
    logits, loss = pl.pallas_call(
        kernel,
        grid=(Bp // TB,),
        in_specs=[pl.BlockSpec((TB, Kfc), lambda m: (m, 0)),
                  pl.BlockSpec(wfc.shape, lambda m: (0, 0)),
                  pl.BlockSpec(bfc.shape, lambda m: (0, 0)),
                  pl.BlockSpec(wlin.shape, lambda m: (0, 0)),
                  pl.BlockSpec(blin.shape, lambda m: (0, 0)),
                  pl.BlockSpec((TB, N), lambda m: (m, 0))],
        out_specs=(pl.BlockSpec((TB, N), lambda m: (m, 0)),
                   pl.BlockSpec((1, 1), lambda m: (0, 0))),
        out_shape=(jax.ShapeDtypeStruct((Bp, N), jnp.float32),
                   jax.ShapeDtypeStruct((1, 1), jnp.float32)),
        compiler_params=pltpu.CompilerParams(
            dimension_semantics=("arbitrary",),
            vmem_limit_bytes=_VMEM_LIMIT),
    )(x, wfc, bfc, wlin, blin, onehot)
    return logits[:B], loss[0, 0]


# ---------------------------------------------------------------------------
# Glue: pool-quadrant im2col patch extraction (XLA; see TODO at top).
# ---------------------------------------------------------------------------
def _conv1_pool_patches(x):
    """x: (B, 28, 28) -> 4 patch matrices (B*12*12, 25), one per pool quadrant."""
    outs = []
    for p in range(2):
        for q in range(2):
            cols = [x[:, p + i:p + i + 23:2, q + j:q + j + 23:2]
                    for i in range(5) for j in range(5)]     # each (B, 12, 12)
            pat = jnp.stack(cols, axis=-1)                    # (B, 12, 12, 25)
            outs.append(pat.reshape(-1, 25))
    return outs


def _conv2_pool_patches(a):
    """a: (B, 12, 12, 20) -> 4 patch matrices (B*4*4, 500)."""
    C = a.shape[-1]
    outs = []
    for p in range(2):
        for q in range(2):
            cols = [a[:, p + i:p + i + 7:2, q + j:q + j + 7:2, :]
                    for i in range(5) for j in range(5)]      # each (B, 4, 4, C)
            pat = jnp.concatenate(cols, axis=-1)              # (B, 4, 4, 25*C)
            outs.append(pat.reshape(-1, 25 * C))
    return outs


# ---------------------------------------------------------------------------
# Parameter preparation (one-time): pad/permute/cast into kernel-ready layout.
# ---------------------------------------------------------------------------
def prepare_params(p):
    f32, bf16 = jnp.float32, jnp.bfloat16
    # conv1: (20, 1, 5, 5) -> (kh*kw*cin, cout) = (25, 20), padded to (32, 128)
    w1 = jnp.transpose(p["conv1_w"], (2, 3, 1, 0)).reshape(25, 20)
    w1 = jnp.pad(w1, ((0, 32 - 25), (0, _LANES - 20))).astype(bf16)
    b1 = jnp.pad(p["conv1_b"], (0, _LANES - 20)).reshape(1, _LANES).astype(f32)
    # conv2: (50, 20, 5, 5) -> (500, 50), padded to (512, 128)
    w2 = jnp.transpose(p["conv2_w"], (2, 3, 1, 0)).reshape(500, 50)
    w2 = jnp.pad(w2, ((0, 512 - 500), (0, _LANES - 50))).astype(bf16)
    b2 = jnp.pad(p["conv2_b"], (0, _LANES - 50)).reshape(1, _LANES).astype(f32)
    # fc: torch weight (512, 800); torch input index = c*16 + h*4 + w (NCHW
    # flatten).  Re-index to the kernel's NHWC-channel-padded flatten
    # (h*4 + w)*128 + c and pre-transpose, so no runtime activation transpose.
    wfc = p["fc_w"].reshape(512, 50, 4, 4)           # (out, c, h, w)
    wfc = jnp.transpose(wfc, (2, 3, 1, 0))           # (h, w, c, out)
    wfc = jnp.pad(wfc, ((0, 0), (0, 0), (0, _LANES - 50), (0, 0)))
    wfc = wfc.reshape(4 * 4 * _LANES, 512).astype(bf16)
    bfc = p["fc_b"].reshape(1, 512).astype(f32)
    # linear: (10, 512) -> (512, 128)
    wlin = jnp.pad(p["lin_w"].T, ((0, 0), (0, _LANES - 10))).astype(bf16)
    blin = jnp.pad(p["lin_b"], (0, _LANES - 10)).reshape(1, _LANES).astype(f32)
    return dict(w1=w1, b1=b1, w2=w2, b2=b2, wfc=wfc, bfc=bfc,
                wlin=wlin, blin=blin)


# ---------------------------------------------------------------------------
# LeNet1 forward
# ---------------------------------------------------------------------------
def lenet1_forward(kp, x_nchw, target):
    B = x_nchw.shape[0]
    x = x_nchw[:, 0].astype(jnp.float32)                     # (B, 28, 28), Cin=1

    # conv1 (5x5, 1->20) + max_pool(2,2) + relu; channels padded to 128 lanes.
    a1 = conv_pool_relu(_conv1_pool_patches(x), kp["w1"], kp["b1"])
    a1 = a1[:, :20].reshape(B, 12, 12, 20)

    # conv2 (5x5, 20->50) + max_pool(2,2) + relu; channels padded to 128 lanes.
    a2 = conv_pool_relu(_conv2_pool_patches(a1), kp["w2"], kp["b2"])
    feat = a2.reshape(B, 16 * _LANES)                        # NHWC-padded flatten
    # (torch's NCHW view(-1, 4*4*50) ordering is folded into kp["wfc"])

    logits_pad, loss = fc_linear_ce(feat, kp["wfc"], kp["bfc"],
                                    kp["wlin"], kp["blin"],
                                    target.astype(jnp.int32), batch=B)
    return logits_pad[:, :_NUM_CLASSES], loss


def init_params(key):
    # Deterministic synthetic init (uniform +/- 1/sqrt(fan_in), torch-style).
    ks = jax.random.split(key, 8)

    def u(k, shape, fan_in):
        bound = 1.0 / (fan_in ** 0.5)
        return jax.random.uniform(k, shape, jnp.float32, -bound, bound)

    return {
        "conv1_w": u(ks[0], (20, 1, 5, 5), 1 * 5 * 5),
        "conv1_b": u(ks[1], (20,), 1 * 5 * 5),
        "conv2_w": u(ks[2], (50, 20, 5, 5), 20 * 5 * 5),
        "conv2_b": u(ks[3], (50,), 20 * 5 * 5),
        "fc_w": u(ks[4], (512, 4 * 4 * 50), 4 * 4 * 50),
        "fc_b": u(ks[5], (512,), 4 * 4 * 50),
        "lin_w": u(ks[6], (10, 512), 512),
        "lin_b": u(ks[7], (10,), 512),
    }


if __name__ == "__main__":
    key = jax.random.PRNGKey(0)
    pkey, xkey, tkey = jax.random.split(key, 3)
    raw_params = init_params(pkey)
    kp = prepare_params(raw_params)   # one-time pad / permute / bf16 cast
    # 28x28 single-channel input is required by x.view(-1, 4*4*50) in the module.
    x = jax.random.normal(xkey, (2, 1, 28, 28), jnp.float32)
    target = jax.random.randint(tkey, (2,), 0, 10, jnp.int32)

    logits, loss = jax.jit(lenet1_forward)(kp, x, target)
    jax.block_until_ready((logits, loss))
    assert logits.shape == (2, 10) and loss.shape == ()
    assert bool(jnp.isfinite(loss))
    print("KERNEL_OK")
</pallas_src>

<mosaic_0001>
module attributes {stable_mosaic.version = 11 : i64} {
  func.func @_conv_pool_relu_kernel(%arg0: i32, %arg1: memref<288x32xbf16, #tpu.memory_space<vmem>>, %arg2: memref<288x32xbf16, #tpu.memory_space<vmem>>, %arg3: memref<288x32xbf16, #tpu.memory_space<vmem>>, %arg4: memref<288x32xbf16, #tpu.memory_space<vmem>>, %arg5: memref<32x128xbf16, #tpu.memory_space<vmem>>, %arg6: memref<1x128xf32, #tpu.memory_space<vmem>>, %arg7: memref<288x128xbf16, #tpu.memory_space<vmem>>) attributes {dimension_semantics = [#tpu.dimension_semantics<parallel>], iteration_bounds = array<i64: 1>, scalar_prefetch = 0 : i64, scratch_operands = 0 : i64, tpu.core_type = #tpu.core_type<tc>, window_params = [{transform_indices = @transform_0, window_bounds = array<i64: 288, 32>}, {transform_indices = @transform_1, window_bounds = array<i64: 288, 32>}, {transform_indices = @transform_2, window_bounds = array<i64: 288, 32>}, {transform_indices = @transform_3, window_bounds = array<i64: 288, 32>}, {pipeline_mode = #tpu.pipeline_mode<synchronous>, transform_indices = @transform_4, window_bounds = array<i64: 32, 128>}, {pipeline_mode = #tpu.pipeline_mode<synchronous>, transform_indices = @transform_5, window_bounds = array<i64: 1, 128>}, {transform_indices = @transform_6, window_bounds = array<i64: 288, 128>}]} {
    %c0 = arith.constant 0 : index
    %c0_0 = arith.constant 0 : index
    %0 = vector.load %arg5[%c0, %c0_0] : memref<32x128xbf16, #tpu.memory_space<vmem>>, vector<32x128xbf16>
    %c0_1 = arith.constant 0 : index
    %c0_2 = arith.constant 0 : index
    %1 = vector.load %arg1[%c0_1, %c0_2] : memref<288x32xbf16, #tpu.memory_space<vmem>>, vector<288x32xbf16>
    %cst = arith.constant dense<0.000000e+00> : vector<288x128xf32>
    %2 = tpu.matmul %1, %0, %cst {dimension_numbers = #tpu.dot_dimension_numbers<[1], [0], [0], [1], [0, 0, 1, 1], [], []>} : vector<288x32xbf16>, vector<32x128xbf16>, vector<288x128xf32> -> vector<288x128xf32>
    %c0_3 = arith.constant 0 : index
    %c0_4 = arith.constant 0 : index
    %3 = vector.load %arg2[%c0_3, %c0_4] : memref<288x32xbf16, #tpu.memory_space<vmem>>, vector<288x32xbf16>
    %cst_5 = arith.constant dense<0.000000e+00> : vector<288x128xf32>
    %4 = tpu.matmul %3, %0, %cst_5 {dimension_numbers = #tpu.dot_dimension_numbers<[1], [0], [0], [1], [0, 0, 1, 1], [], []>} : vector<288x32xbf16>, vector<32x128xbf16>, vector<288x128xf32> -> vector<288x128xf32>
    %c0_6 = arith.constant 0 : index
    %c0_7 = arith.constant 0 : index
    %5 = vector.load %arg3[%c0_6, %c0_7] : memref<288x32xbf16, #tpu.memory_space<vmem>>, vector<288x32xbf16>
    %cst_8 = arith.constant dense<0.000000e+00> : vector<288x128xf32>
    %6 = tpu.matmul %5, %0, %cst_8 {dimension_numbers = #tpu.dot_dimension_numbers<[1], [0], [0], [1], [0, 0, 1, 1], [], []>} : vector<288x32xbf16>, vector<32x128xbf16>, vector<288x128xf32> -> vector<288x128xf32>
    %c0_9 = arith.constant 0 : index
    %c0_10 = arith.constant 0 : index
    %7 = vector.load %arg4[%c0_9, %c0_10] : memref<288x32xbf16, #tpu.memory_space<vmem>>, vector<288x32xbf16>
    %cst_11 = arith.constant dense<0.000000e+00> : vector<288x128xf32>
    %8 = tpu.matmul %7, %0, %cst_11 {dimension_numbers = #tpu.dot_dimension_numbers<[1], [0], [0], [1], [0, 0, 1, 1], [], []>} : vector<288x32xbf16>, vector<32x128xbf16>, vector<288x128xf32> -> vector<288x128xf32>
    %9 = arith.maximumf %2, %4 : vector<288x128xf32>
    %10 = arith.maximumf %6, %8 : vector<288x128xf32>
    %11 = arith.maximumf %9, %10 : vector<288x128xf32>
    %c0_12 = arith.constant 0 : index
    %c0_13 = arith.constant 0 : index
    %12 = vector.load %arg6[%c0_12, %c0_13] : memref<1x128xf32, #tpu.memory_space<vmem>>, vector<1x128xf32>
    %13 = vector.broadcast %12 : vector<1x128xf32> to vector<288x128xf32>
    %14 = arith.addf %11, %13 : vector<288x128xf32>
    %cst_14 = arith.constant 0.000000e+00 : f32
    %15 = vector.broadcast %cst_14 : f32 to vector<288x128xf32>
    %16 = arith.maximumf %14, %15 : vector<288x128xf32>
    %17 = arith.truncf %16 : vector<288x128xf32> to vector<288x128xbf16>
    %c0_15 = arith.constant 0 : index
    %c0_16 = arith.constant 0 : index
    %18 = vector.load %arg7[%c0_15, %c0_16] : memref<288x128xbf16, #tpu.memory_space<vmem>>, vector<288x128xbf16>
    tpu.vector_store %arg7[%c0_15, %c0_16], %17 {strides = array<i32>} : memref<288x128xbf16, #tpu.memory_space<vmem>>, vector<288x128xbf16>,
    return
  }
  func.func @transform_0(%arg0: i32) -> (i32, i32) {
    %c0_i32 = arith.constant 0 : i32
    %c0_i32_0 = arith.constant 0 : i32
    return %arg0, %c0_i32 : i32, i32
  }
  func.func @transform_1(%arg0: i32) -> (i32, i32) {
    %c0_i32 = arith.constant 0 : i32
    %c0_i32_0 = arith.constant 0 : i32
    return %arg0, %c0_i32 : i32, i32
  }
  func.func @transform_2(%arg0: i32) -> (i32, i32) {
    %c0_i32 = arith.constant 0 : i32
    %c0_i32_0 = arith.constant 0 : i32
    return %arg0, %c0_i32 : i32, i32
  }
  func.func @transform_3(%arg0: i32) -> (i32, i32) {
    %c0_i32 = arith.constant 0 : i32
    %c0_i32_0 = arith.constant 0 : i32
    return %arg0, %c0_i32 : i32, i32
  }
  func.func @transform_4(%arg0: i32) -> (i32, i32) {
    %c0_i32 = arith.constant 0 : i32
    %c0_i32_0 = arith.constant 0 : i32
    %c0_i32_1 = arith.constant 0 : i32
    return %c0_i32, %c0_i32_0 : i32, i32
  }
  func.func @transform_5(%arg0: i32) -> (i32, i32) {
    %c0_i32 = arith.constant 0 : i32
    %c0_i32_0 = arith.constant 0 : i32
    %c0_i32_1 = arith.constant 0 : i32
    return %c0_i32, %c0_i32_0 : i32, i32
  }
  func.func @transform_6(%arg0: i32) -> (i32, i32) {
    %c0_i32 = arith.constant 0 : i32
    %c0_i32_0 = arith.constant 0 : i32
    return %arg0, %c0_i32 : i32, i32
  }
}

module attributes {stable_mosaic.version = 11 : i64} {
  func.func @_conv_pool_relu_kernel(%arg0: i32, %arg1: memref<32x512xbf16, #tpu.memory_space<vmem>>, %arg2: memref<32x512xbf16, #tpu.memory_space<vmem>>, %arg3: memref<32x512xbf16, #tpu.memory_space<vmem>>, %arg4: memref<32x512xbf16, #tpu.memory_space<vmem>>, %arg5: memref<512x128xbf16, #tpu.memory_space<vmem>>, %arg6: memref<1x128xf32, #tpu.memory_space<vmem>>, %arg7: memref<32x128xbf16, #tpu.memory_space<vmem>>) attributes {dimension_semantics = [#tpu.dimension_semantics<parallel>], iteration_bounds = array<i64: 1>, scalar_prefetch = 0 : i64, scratch_operands = 0 : i64, tpu.core_type = #tpu.core_type<tc>, window_params = [{transform_indices = @transform_0, window_bounds = array<i64: 32, 512>}, {transform_indices = @transform_1, window_bounds = array<i64: 32, 512>}, {transform_indices = @transform_2, window_bounds = array<i64: 32, 512>}, {transform_indices = @transform_3, window_bounds = array<i64: 32, 512>}, {pipeline_mode = #tpu.pipeline_mode<synchronous>, transform_indices = @transform_4, window_bounds = array<i64: 512, 128>}, {pipeline_mode = #tpu.pipeline_mode<synchronous>, transform_indices = @transform_5, window_bounds = array<i64: 1, 128>}, {transform_indices = @transform_6, window_bounds = array<i64: 32, 128>}]} {
    %c0 = arith.constant 0 : index
    %c0_0 = arith.constant 0 : index
    %0 = vector.load %arg5[%c0, %c0_0] : memref<512x128xbf16, #tpu.memory_space<vmem>>, vector<512x128xbf16>
    %c0_1 = arith.constant 0 : index
    %c0_2 = arith.constant 0 : index
    %1 = vector.load %arg1[%c0_1, %c0_2] : memref<32x512xbf16, #tpu.memory_space<vmem>>, vector<32x512xbf16>
    %cst = arith.constant dense<0.000000e+00> : vector<32x128xf32>
    %2 = tpu.matmul %1, %0, %cst {dimension_numbers = #tpu.dot_dimension_numbers<[1], [0], [0], [1], [0, 0, 1, 1], [], []>} : vector<32x512xbf16>, vector<512x128xbf16>, vector<32x128xf32> -> vector<32x128xf32>
    %c0_3 = arith.constant 0 : index
    %c0_4 = arith.constant 0 : index
    %3 = vector.load %arg2[%c0_3, %c0_4] : memref<32x512xbf16, #tpu.memory_space<vmem>>, vector<32x512xbf16>
    %cst_5 = arith.constant dense<0.000000e+00> : vector<32x128xf32>
    %4 = tpu.matmul %3, %0, %cst_5 {dimension_numbers = #tpu.dot_dimension_numbers<[1], [0], [0], [1], [0, 0, 1, 1], [], []>} : vector<32x512xbf16>, vector<512x128xbf16>, vector<32x128xf32> -> vector<32x128xf32>
    %c0_6 = arith.constant 0 : index
    %c0_7 = arith.constant 0 : index
    %5 = vector.load %arg3[%c0_6, %c0_7] : memref<32x512xbf16, #tpu.memory_space<vmem>>, vector<32x512xbf16>
    %cst_8 = arith.constant dense<0.000000e+00> : vector<32x128xf32>
    %6 = tpu.matmul %5, %0, %cst_8 {dimension_numbers = #tpu.dot_dimension_numbers<[1], [0], [0], [1], [0, 0, 1, 1], [], []>} : vector<32x512xbf16>, vector<512x128xbf16>, vector<32x128xf32> -> vector<32x128xf32>
    %c0_9 = arith.constant 0 : index
    %c0_10 = arith.constant 0 : index
    %7 = vector.load %arg4[%c0_9, %c0_10] : memref<32x512xbf16, #tpu.memory_space<vmem>>, vector<32x512xbf16>
    %cst_11 = arith.constant dense<0.000000e+00> : vector<32x128xf32>
    %8 = tpu.matmul %7, %0, %cst_11 {dimension_numbers = #tpu.dot_dimension_numbers<[1], [0], [0], [1], [0, 0, 1, 1], [], []>} : vector<32x512xbf16>, vector<512x128xbf16>, vector<32x128xf32> -> vector<32x128xf32>
    %9 = arith.maximumf %2, %4 : vector<32x128xf32>
    %10 = arith.maximumf %6, %8 : vector<32x128xf32>
    %11 = arith.maximumf %9, %10 : vector<32x128xf32>
    %c0_12 = arith.constant 0 : index
    %c0_13 = arith.constant 0 : index
    %12 = vector.load %arg6[%c0_12, %c0_13] : memref<1x128xf32, #tpu.memory_space<vmem>>, vector<1x128xf32>
    %13 = vector.broadcast %12 : vector<1x128xf32> to vector<32x128xf32>
    %14 = arith.addf %11, %13 : vector<32x128xf32>
    %cst_14 = arith.constant 0.000000e+00 : f32
    %15 = vector.broadcast %cst_14 : f32 to vector<32x128xf32>
    %16 = arith.maximumf %14, %15 : vector<32x128xf32>
    %17 = arith.truncf %16 : vector<32x128xf32> to vector<32x128xbf16>
    %c0_15 = arith.constant 0 : index
    %c0_16 = arith.constant 0 : index
    %18 = vector.load %arg7[%c0_15, %c0_16] : memref<32x128xbf16, #tpu.memory_space<vmem>>, vector<32x128xbf16>
    tpu.vector_store %arg7[%c0_15, %c0_16], %17 {strides = array<i32>} : memref<32x128xbf16, #tpu.memory_space<vmem>>, vector<32x128xbf16>,
    return
  }
  func.func @transform_0(%arg0: i32) -> (i32, i32) {
    %c0_i32 = arith.constant 0 : i32
    %c0_i32_0 = arith.constant 0 : i32
    return %arg0, %c0_i32 : i32, i32
  }
  func.func @transform_1(%arg0: i32) -> (i32, i32) {
    %c0_i32 = arith.constant 0 : i32
    %c0_i32_0 = arith.constant 0 : i32
    return %arg0, %c0_i32 : i32, i32
  }
  func.func @transform_2(%arg0: i32) -> (i32, i32) {
    %c0_i32 = arith.constant 0 : i32
    %c0_i32_0 = arith.constant 0 : i32
    return %arg0, %c0_i32 : i32, i32
  }
  func.func @transform_3(%arg0: i32) -> (i32, i32) {
    %c0_i32 = arith.constant 0 : i32
    %c0_i32_0 = arith.constant 0 : i32
    return %arg0, %c0_i32 : i32, i32
  }
  func.func @transform_4(%arg0: i32) -> (i32, i32) {
    %c0_i32 = arith.constant 0 : i32
    %c0_i32_0 = arith.constant 0 : i32
    %c0_i32_1 = arith.constant 0 : i32
    return %c0_i32, %c0_i32_0 : i32, i32
  }
  func.func @transform_5(%arg0: i32) -> (i32, i32) {
    %c0_i32 = arith.constant 0 : i32
    %c0_i32_0 = arith.constant 0 : i32
    %c0_i32_1 = arith.constant 0 : i32
    return %c0_i32, %c0_i32_0 : i32, i32
  }
  func.func @transform_6(%arg0: i32) -> (i32, i32) {
    %c0_i32 = arith.constant 0 : i32
    %c0_i32_0 = arith.constant 0 : i32
    return %arg0, %c0_i32 : i32, i32
  }
}

module attributes {stable_mosaic.version = 11 : i64} {
  func.func @_head_kernel(%arg0: i32, %arg1: memref<32x2048xbf16, #tpu.memory_space<vmem>>, %arg2: memref<2048x512xbf16, #tpu.memory_space<vmem>>, %arg3: memref<1x512xf32, #tpu.memory_space<vmem>>, %arg4: memref<512x128xbf16, #tpu.memory_space<vmem>>, %arg5: memref<1x128xf32, #tpu.memory_space<vmem>>, %arg6: memref<32x128xf32, #tpu.memory_space<vmem>>, %arg7: memref<32x128xf32, #tpu.memory_space<vmem>>, %arg8: memref<1x1xf32, #tpu.memory_space<vmem>>) attributes {dimension_semantics = [#tpu.dimension_semantics<arbitrary>], iteration_bounds = array<i64: 1>, scalar_prefetch = 0 : i64, scratch_operands = 0 : i64, tpu.core_type = #tpu.core_type<tc>, window_params = [{transform_indices = @transform_0, window_bounds = array<i64: 32, 2048>}, {pipeline_mode = #tpu.pipeline_mode<synchronous>, transform_indices = @transform_1, window_bounds = array<i64: 2048, 512>}, {pipeline_mode = #tpu.pipeline_mode<synchronous>, transform_indices = @transform_2, window_bounds = array<i64: 1, 512>}, {pipeline_mode = #tpu.pipeline_mode<synchronous>, transform_indices = @transform_3, window_bounds = array<i64: 512, 128>}, {pipeline_mode = #tpu.pipeline_mode<synchronous>, transform_indices = @transform_4, window_bounds = array<i64: 1, 128>}, {transform_indices = @transform_5, window_bounds = array<i64: 32, 128>}, {transform_indices = @transform_6, window_bounds = array<i64: 32, 128>}, {pipeline_mode = #tpu.pipeline_mode<synchronous>, transform_indices = @transform_7, window_bounds = array<i64: 1, 1>}]} {
    %c0 = arith.constant 0 : index
    %c0_0 = arith.constant 0 : index
    %0 = vector.load %arg1[%c0, %c0_0] : memref<32x2048xbf16, #tpu.memory_space<vmem>>, vector<32x2048xbf16>
    %c0_1 = arith.constant 0 : index
    %c0_2 = arith.constant 0 : index
    %1 = vector.load %arg2[%c0_1, %c0_2] : memref<2048x512xbf16, #tpu.memory_space<vmem>>, vector<2048x512xbf16>
    %cst = arith.constant dense<0.000000e+00> : vector<32x512xf32>
    %2 = tpu.matmul %0, %1, %cst {dimension_numbers = #tpu.dot_dimension_numbers<[1], [0], [0], [1], [0, 0, 1, 1], [], []>} : vector<32x2048xbf16>, vector<2048x512xbf16>, vector<32x512xf32> -> vector<32x512xf32>
    %c0_3 = arith.constant 0 : index
    %c0_4 = arith.constant 0 : index
    %3 = vector.load %arg3[%c0_3, %c0_4] : memref<1x512xf32, #tpu.memory_space<vmem>>, vector<1x512xf32>
    %4 = vector.broadcast %3 : vector<1x512xf32> to vector<32x512xf32>
    %5 = arith.addf %2, %4 : vector<32x512xf32>
    %6 = arith.truncf %5 : vector<32x512xf32> to vector<32x512xbf16>
    %c0_5 = arith.constant 0 : index
    %c0_6 = arith.constant 0 : index
    %7 = vector.load %arg4[%c0_5, %c0_6] : memref<512x128xbf16, #tpu.memory_space<vmem>>, vector<512x128xbf16>
    %cst_7 = arith.constant dense<0.000000e+00> : vector<32x128xf32>
    %8 = tpu.matmul %6, %7, %cst_7 {dimension_numbers = #tpu.dot_dimension_numbers<[1], [0], [0], [1], [0, 0, 1, 1], [], []>} : vector<32x512xbf16>, vector<512x128xbf16>, vector<32x128xf32> -> vector<32x128xf32>
    %c0_8 = arith.constant 0 : index
    %c0_9 = arith.constant 0 : index
    %9 = vector.load %arg5[%c0_8, %c0_9] : memref<1x128xf32, #tpu.memory_space<vmem>>, vector<1x128xf32>
    %10 = vector.broadcast %9 : vector<1x128xf32> to vector<32x128xf32>
    %11 = arith.addf %8, %10 : vector<32x128xf32>
    %c0_10 = arith.constant 0 : index
    %c0_11 = arith.constant 0 : index
    %12 = vector.load %arg7[%c0_10, %c0_11] : memref<32x128xf32, #tpu.memory_space<vmem>>, vector<32x128xf32>
    tpu.vector_store %arg7[%c0_10, %c0_11], %11 {strides = array<i32>} : memref<32x128xf32, #tpu.memory_space<vmem>>, vector<32x128xf32>,
    %13 = tpu.iota {dimensions = array<i32: 1>} : vector<32x128xi32>
    %c10_i32 = arith.constant 10 : i32
    %14 = vector.broadcast %c10_i32 : i32 to vector<32x128xi32>
    %15 = arith.cmpi slt, %13, %14 : vector<32x128xi32>
    %cst_12 = arith.constant -1.000000e+30 : f32
    %16 = vector.broadcast %cst_12 : f32 to vector<32x128xf32>
    %17 = arith.select %15, %11, %16 : vector<32x128xi1>, vector<32x128xf32>
    %cst_13 = arith.constant dense<0xFF800000> : vector<32xf32>
    %18 = vector.multi_reduction <maximumf>, %17, %cst_13 [1] : vector<32x128xf32> to vector<32xf32>
    %19 = vector.shape_cast %18 : vector<32xf32> to vector<32x1xf32>
    %20 = vector.broadcast %19 : vector<32x1xf32> to vector<32x128xf32>
    %21 = arith.subf %17, %20 : vector<32x128xf32>
    %22 = math.exp %21 : vector<32x128xf32>
    %cst_14 = arith.constant dense<0.000000e+00> : vector<32xf32>
    %23 = vector.multi_reduction <add>, %22, %cst_14 [1] : vector<32x128xf32> to vector<32xf32>
    %24 = vector.shape_cast %23 : vector<32xf32> to vector<32x1xf32>
    %25 = math.log %24 : vector<32x1xf32>
    %26 = arith.addf %19, %25 : vector<32x1xf32>
    %c0_15 = arith.constant 0 : index
    %c0_16 = arith.constant 0 : index
    %27 = vector.load %arg6[%c0_15, %c0_16] : memref<32x128xf32, #tpu.memory_space<vmem>>, vector<32x128xf32>
    %28 = arith.mulf %11, %27 : vector<32x128xf32>
    %cst_17 = arith.constant dense<0.000000e+00> : vector<32xf32>
    %29 = vector.multi_reduction <add>, %28, %cst_17 [1] : vector<32x128xf32> to vector<32xf32>
    %30 = vector.shape_cast %29 : vector<32xf32> to vector<32x1xf32>
    %cst_18 = arith.constant dense<0.000000e+00> : vector<32xf32>
    %31 = vector.multi_reduction <add>, %27, %cst_18 [1] : vector<32x128xf32> to vector<32xf32>
    %32 = vector.shape_cast %31 : vector<32xf32> to vector<32x1xf32>
    %33 = arith.subf %26, %30 : vector<32x1xf32>
    %34 = arith.mulf %33, %32 : vector<32x1xf32>
    %35 = vector.shape_cast %34 : vector<32x1xf32> to vector<1x32x1xf32>
    %cst_19 = arith.constant dense<0.000000e+00> : vector<1xf32>
    %36 = vector.multi_reduction <add>, %35, %cst_19 [1, 2] : vector<1x32x1xf32> to vector<1xf32>
    %37 = vector.shape_cast %36 : vector<1xf32> to vector<1x1x1xf32>
    %38 = vector.extract %37[0, 0, 0] : f32 from vector<1x1x1xf32>
    %39 = vector.broadcast %38 : f32 to vector<1x1xf32>
    %cst_20 = arith.constant 2.000000e+00 : f32
    %40 = vector.broadcast %cst_20 : f32 to vector<1x1xf32>
    %41 = arith.divf %39, %40 : vector<1x1xf32>
    %c0_i32 = arith.constant 0 : i32
    %42 = arith.cmpi eq, %arg0, %c0_i32 : i32
    %43 = arith.extui %42 : i1 to i32
    %c0_i32_21 = arith.constant 0 : i32
    %44 = arith.cmpi ne, %43, %c0_i32_21 : i32
    scf.if %44 {
      %cst_26 = arith.constant 0.000000e+00 : f32
      %48 = vector.broadcast %cst_26 : f32 to vector<1x1xf32>
      %c0_27 = arith.constant 0 : index
      %c0_28 = arith.constant 0 : index
      %49 = vector.load %arg8[%c0_27, %c0_28] : memref<1x1xf32, #tpu.memory_space<vmem>>, vector<1x1xf32>
      tpu.vector_store %arg8[%c0_27, %c0_28], %48 {strides = array<i32>} : memref<1x1xf32, #tpu.memory_space<vmem>>, vector<1x1xf32>,
    } else {
    }
    %c0_22 = arith.constant 0 : index
    %c0_23 = arith.constant 0 : index
    %45 = vector.load %arg8[%c0_22, %c0_23] : memref<1x1xf32, #tpu.memory_space<vmem>>, vector<1x1xf32>
    %46 = arith.addf %45, %41 : vector<1x1xf32>
    %c0_24 = arith.constant 0 : index
    %c0_25 = arith.constant 0 : index
    %47 = vector.load %arg8[%c0_24, %c0_25] : memref<1x1xf32, #tpu.memory_space<vmem>>, vector<1x1xf32>
    tpu.vector_store %arg8[%c0_24, %c0_25], %46 {strides = array<i32>} : memref<1x1xf32, #tpu.memory_space<vmem>>, vector<1x1xf32>,
    return
  }
  func.func @transform_0(%arg0: i32) -> (i32, i32) {
    %c0_i32 = arith.constant 0 : i32
    %c0_i32_0 = arith.constant 0 : i32
    return %arg0, %c0_i32 : i32, i32
  }
  func.func @transform_1(%arg0: i32) -> (i32, i32) {
    %c0_i32 = arith.constant 0 : i32
    %c0_i32_0 = arith.constant 0 : i32
    %c0_i32_1 = arith.constant 0 : i32
    return %c0_i32, %c0_i32_0 : i32, i32
  }
  func.func @transform_2(%arg0: i32) -> (i32, i32) {
    %c0_i32 = arith.constant 0 : i32
    %c0_i32_0 = arith.constant 0 : i32
    %c0_i32_1 = arith.constant 0 : i32
    return %c0_i32, %c0_i32_0 : i32, i32
  }
  func.func @transform_3(%arg0: i32) -> (i32, i32) {
    %c0_i32 = arith.constant 0 : i32
    %c0_i32_0 = arith.constant 0 : i32
    %c0_i32_1 = arith.constant 0 : i32
    return %c0_i32, %c0_i32_0 : i32, i32
  }
  func.func @transform_4(%arg0: i32) -> (i32, i32) {
    %c0_i32 = arith.constant 0 : i32
    %c0_i32_0 = arith.constant 0 : i32
    %c0_i32_1 = arith.constant 0 : i32
    return %c0_i32, %c0_i32_0 : i32, i32
  }
  func.func @transform_5(%arg0: i32) -> (i32, i32) {
    %c0_i32 = arith.constant 0 : i32
    %c0_i32_0 = arith.constant 0 : i32
    return %arg0, %c0_i32 : i32, i32
  }
  func.func @transform_6(%arg0: i32) -> (i32, i32) {
    %c0_i32 = arith.constant 0 : i32
    %c0_i32_0 = arith.constant 0 : i32
    return %arg0, %c0_i32 : i32, i32
  }
  func.func @transform_7(%arg0: i32) -> (i32, i32) {
    %c0_i32 = arith.constant 0 : i32
    %c0_i32_0 = arith.constant 0 : i32
    %c0_i32_1 = arith.constant 0 : i32
    return %c0_i32, %c0_i32_0 : i32, i32
  }
}

</mosaic_0001>

<llo_original>
// kernel: lenet1_forward.3
$region0: #{lenet1_forward.3}
  #allocation0 [shape = 'u32[]', space=smem, size = 0x4, offset = 0x4, fixed_abs, tag = 'smem constant byte address 0x4 - core index']
  #allocation1 [shape = 'u32[144,128]{1,0:T(1,128)}', space=vmem, size = 0x12000, scoped, tag = 'internal scratch']
  %s0 = inlined_call_operand.vmem [shape: bf16[288,32], index: 0, kind: input, shape index: {}]
  %s1 = inlined_call_operand.vmem [shape: bf16[288,32], index: 1, kind: input, shape index: {}]
  %s2 = inlined_call_operand.vmem [shape: bf16[288,32], index: 2, kind: input, shape index: {}]
  %s3 = inlined_call_operand.vmem [shape: bf16[288,32], index: 3, kind: input, shape index: {}]
  %s4 = inlined_call_operand.vmem [shape: bf16[32,128], index: 4, kind: input, shape index: {}]
  %s5 = inlined_call_operand.vmem [shape: f32[1,128], index: 5, kind: input, shape index: {}]
  %s6 = inlined_call_operand.vmem [shape: bf16[288,128], index: 6, kind: output, shape index: {}]
  %s7 = sld [smem:[#allocation0]]
  $region34: #{lenet1_forward.3} parent=0
    _
  %s9 = ssub.s32 1, %s7
  %s10 = scalar_select 0, %s9, %s7
  // Predicated region
  $region2: #{lenet1_forward.3} parent=0 // pred_check
    _
  $region3: #{lenet1_forward.3} parent=0 // pred_check_branch
    %12 = sbr.rel (0) target = $region5
  $region4: #{lenet1_forward.3} parent=0 // pred_region
    _
  $region5: #{lenet1_forward.3} parent=0 // pred_fallthru
    _
  // Predicated region
  $region6: #{lenet1_forward.3} parent=0 // pred_check
    _
  $region7: #{lenet1_forward.3} parent=0 // pred_check_branch
    %14 = sbr.rel (0) target = $region9
  $region8: #{lenet1_forward.3} parent=0 // pred_region
    _
  $region9: #{lenet1_forward.3} parent=0 // pred_fallthru
    _
  // Predicated region
  $region10: #{lenet1_forward.3} parent=0 // pred_check
    _
  $region11: #{lenet1_forward.3} parent=0 // pred_check_branch
    %16 = sbr.rel (0) target = $region13
  $region12: #{lenet1_forward.3} parent=0 // pred_region
    _
  $region13: #{lenet1_forward.3} parent=0 // pred_fallthru
    _
  // Predicated region
  $region14: #{lenet1_forward.3} parent=0 // pred_check
    _
  $region15: #{lenet1_forward.3} parent=0 // pred_check_branch
    %18 = sbr.rel (0) target = $region17
  $region16: #{lenet1_forward.3} parent=0 // pred_region
    _
  $region17: #{lenet1_forward.3} parent=0 // pred_fallthru
    _
  // Predicated region
  $region18: #{lenet1_forward.3} parent=0 // pred_check
    _
  $region19: #{lenet1_forward.3} parent=0 // pred_check_branch
    %20 = sbr.rel (0) target = $region21
  $region20: #{lenet1_forward.3} parent=0 // pred_region
    _
  $region21: #{lenet1_forward.3} parent=0 // pred_fallthru
    _
  // Predicated region
  $region22: #{lenet1_forward.3} parent=0 // pred_check
    _
  $region23: #{lenet1_forward.3} parent=0 // pred_check_branch
    %22 = sbr.rel (0) target = $region25
  $region24: #{lenet1_forward.3} parent=0 // pred_region
    _
  $region25: #{lenet1_forward.3} parent=0 // pred_fallthru
    _
  %v24 = vld [vmem:[%s4] sm:$0xf]
  %v25 = vld [vmem:[%s4 + $0x4] sm:$0xf]
  %v26 = vld [vmem:[%s4 + $0x8] sm:$0xf]
  %v27 = vld [vmem:[%s4 + $0xc] sm:$0xf]
  %v28 = vld [vmem:[%s0] sm:$0xf]
  %v29 = vld [vmem:[%s0 + $0x4] sm:$0xf]
  %v30 = vld [vmem:[%s0 + $0x8] sm:$0xf]
  %v31 = vld [vmem:[%s0 + $0xc] sm:$0xf]
  %v32 = vld [vmem:[%s0 + $0x10] sm:$0xf]
  %v33 = vld [vmem:[%s0 + $0x14] sm:$0xf]
  %v34 = vld [vmem:[%s0 + $0x18] sm:$0xf]
  %v35 = vld [vmem:[%s0 + $0x1c] sm:$0xf]
  %v36 = vld [vmem:[%s0 + $0x20] sm:$0xf]
  %v37 = vld [vmem:[%s0 + $0x24] sm:$0xf]
  %v38 = vld [vmem:[%s0 + $0x28] sm:$0xf]
  %v39 = vld [vmem:[%s0 + $0x2c] sm:$0xf]
  %v40 = vld [vmem:[%s0 + $0x30] sm:$0xf]
  %v41 = vld [vmem:[%s0 + $0x34] sm:$0xf]
  %v42 = vld [vmem:[%s0 + $0x38] sm:$0xf]
  %v43 = vld [vmem:[%s0 + $0x3c] sm:$0xf]
  %v44 = vld [vmem:[%s0 + $0x40] sm:$0xf]
  %v45 = vld [vmem:[%s0 + $0x44] sm:$0xf]
  %v46 = vld [vmem:[%s0 + $0x48] sm:$0xf]
  %v47 = vld [vmem:[%s0 + $0x4c] sm:$0xf]
  %v48 = vld [vmem:[%s0 + $0x50] sm:$0xf]
  %v49 = vld [vmem:[%s0 + $0x54] sm:$0xf]
  %v50 = vld [vmem:[%s0 + $0x58] sm:$0xf]
  %v51 = vld [vmem:[%s0 + $0x5c] sm:$0xf]
  %v52 = vld [vmem:[%s0 + $0x60] sm:$0xf]
  %v53 = vld [vmem:[%s0 + $0x64] sm:$0xf]
  %v54 = vld [vmem:[%s0 + $0x68] sm:$0xf]
  %v55 = vld [vmem:[%s0 + $0x6c] sm:$0xf]
  %v56 = vld [vmem:[%s0 + $0x70] sm:$0xf]
  %v57 = vld [vmem:[%s0 + $0x74] sm:$0xf]
  %v58 = vld [vmem:[%s0 + $0x78] sm:$0xf]
  %v59 = vld [vmem:[%s0 + $0x7c] sm:$0xf]
  %v60 = vld [vmem:[%s0 + $0x80] sm:$0xf]
  %v61 = vld [vmem:[%s0 + $0x84] sm:$0xf]
  %v62 = vld [vmem:[%s0 + $0x88] sm:$0xf]
  %v63 = vld [vmem:[%s0 + $0x8c] sm:$0xf]
  %v100 = vunpack.c.l.b16 %v28
  %v101 = vunpack.c.l.b16 %v29
  %v102 = vunpack.c.l.b16 %v30
  %v103 = vunpack.c.l.b16 %v31
  %v104 = vunpack.c.l.b16 %v32
  %v105 = vunpack.c.l.b16 %v33
  %v106 = vunpack.c.l.b16 %v34
  %v107 = vunpack.c.l.b16 %v35
  %v108 = vunpack.c.l.b16 %v36
  %v109 = vunpack.c.l.b16 %v37
  %v110 = vunpack.c.l.b16 %v38
  %v111 = vunpack.c.l.b16 %v39
  %v112 = vunpack.c.l.b16 %v40
  %v113 = vunpack.c.l.b16 %v41
  %v114 = vunpack.c.l.b16 %v42
  %v115 = vunpack.c.l.b16 %v43
  %v116 = vunpack.c.l.b16 %v44
  %v117 = vunpack.c.l.b16 %v45
  %v118 = vunpack.c.l.b16 %v46
  %v119 = vunpack.c.l.b16 %v47
  %v120 = vunpack.c.l.b16 %v48
  %v121 = vunpack.c.l.b16 %v49
  %v122 = vunpack.c.l.b16 %v50
  %v123 = vunpack.c.l.b16 %v51
  %v124 = vunpack.c.l.b16 %v52
  %v125 = vunpack.c.l.b16 %v53
  %v126 = vunpack.c.l.b16 %v54
  %v127 = vunpack.c.l.b16 %v55
  %v128 = vunpack.c.l.b16 %v56
  %v129 = vunpack.c.l.b16 %v57
  %v130 = vunpack.c.l.b16 %v58
  %v131 = vunpack.c.l.b16 %v59
  %v132 = vunpack.c.l.b16 %v60
  %v133 = vunpack.c.l.b16 %v61
  %v134 = vunpack.c.l.b16 %v62
  %v135 = vunpack.c.l.b16 %v63
  %v136 = vpack.c.b16 %v101, %v100
  %v137 = vpack.c.b16 %v103, %v102
  %v138 = vpack.c.b16 %v105, %v104
  %v139 = vpack.c.b16 %v107, %v106
  %v140 = vpack.c.b16 %v109, %v108
  %v141 = vpack.c.b16 %v111, %v110
  %v142 = vpack.c.b16 %v113, %v112
  %v143 = vpack.c.b16 %v115, %v114
  %v144 = vpack.c.b16 %v117, %v116
  %v145 = vpack.c.b16 %v119, %v118
  %v146 = vpack.c.b16 %v121, %v120
  %v147 = vpack.c.b16 %v123, %v122
  %v148 = vpack.c.b16 %v125, %v124
  %v149 = vpack.c.b16 %v127, %v126
  %v150 = vpack.c.b16 %v129, %v128
  %v151 = vpack.c.b16 %v131, %v130
  %v152 = vpack.c.b16 %v133, %v132
  %v153 = vpack.c.b16 %v135, %v134
  %v158 = vunpack.c.l.b16 %v24
  %v159 = vunpack.c.l.b16 %v25
  %v160 = vunpack.c.l.b16 %v26
  %v161 = vunpack.c.l.b16 %v27
  %v162 = vpack.c.b16 %v159, %v158
  %v163 = vpack.c.b16 %v161, %v160
  %vm166 = vcmask 261120
  %v168 = vsel %vm166, %v136, 0
  %v171 = vsel %vm166, %v137, 0
  %v174 = vsel %vm166, %v138, 0
  %v177 = vsel %vm166, %v139, 0
  %v180 = vsel %vm166, %v140, 0
  %v183 = vsel %vm166, %v141, 0
  %v186 = vsel %vm166, %v142, 0
  %v189 = vsel %vm166, %v143, 0
  %v192 = vsel %vm166, %v144, 0
  %v195 = vsel %vm166, %v145, 0
  %v198 = vsel %vm166, %v146, 0
  %v201 = vsel %vm166, %v147, 0
  %v204 = vsel %vm166, %v148, 0
  %v207 = vsel %vm166, %v149, 0
  %v210 = vsel %vm166, %v150, 0
  %v213 = vsel %vm166, %v151, 0
  %v216 = vsel %vm166, %v152, 0
  %v219 = vsel %vm166, %v153, 0
  %221 = vmatprep.subr.bf16.mxu0 0
  %222 = vmatpush1.bf16.msra.mxu0 %v162
  %223 = vmatprep.subr.bf16.mxu0 0
  %224 = vmatpush1.bf16.msra.mxu0 %v163
  %225 = vmatprep.subr.bf16.mxu0 0
  %226 = vmatpush1.bf16.msra.mxu0 0
  %227 = vmatprep.subr.bf16.mxu0 0
  %228 = vmatpush1.bf16.msra.mxu0 0
  %229 = vmatprep.subr.bf16.mxu0 0
  %230 = vmatpush1.bf16.msra.mxu0 0
  %231 = vmatprep.subr.bf16.mxu0 0
  %232 = vmatpush1.bf16.msra.mxu0 0
  %233 = vmatprep.subr.bf16.mxu0 0
  %234 = vmatpush1.bf16.msra.mxu0 0
  %235 = vmatprep.subr.bf16.mxu0 0
  %236 = vmatpush1.bf16.msra.mxu0 0
  %237 = vmatprep.subr.bf16.mxu0 0
  %238 = vmatpush1.bf16.msra.mxu0 0
  %239 = vmatprep.subr.bf16.mxu0 0
  %240 = vmatpush1.bf16.msra.mxu0 0
  %241 = vmatprep.subr.bf16.mxu0 0
  %242 = vmatpush1.bf16.msra.mxu0 0
  %243 = vmatprep.subr.bf16.mxu0 0
  %244 = vmatpush1.bf16.msra.mxu0 0
  %245 = vmatprep.subr.bf16.mxu0 0
  %246 = vmatpush1.bf16.msra.mxu0 0
  %247 = vmatprep.subr.bf16.mxu0 0
  %248 = vmatpush1.bf16.msra.mxu0 0
  %249 = vmatprep.subr.bf16.mxu0 0
  %250 = vmatpush1.bf16.msra.mxu0 0
  %251 = vmatprep.subr.bf16.mxu0 0
  %252 = vmatpush1.bf16.msra.mxu0 0
  %253 = vmatprep.mubr.bf16.mxu0 0
  %254 = vmatmul.mubr.bf16.gmra.mrb[0].mxu0 %v168
  %v255 = vpop.f32.mrb[0].mxu0
  %v256 = vadd.f32 0.0, %v255
  %v257 = vpop.f32.mrb[0].mxu0
  %v258 = vpop.f32.mrb[0].mxu0
  %v259 = vadd.f32 0.0, %v258
  %v260 = vpop.f32.mrb[0].mxu0
  %261 = vmatprep.mubr.bf16.mxu0 0
  %262 = vmatmul.mubr.bf16.gmra.mrb[0].mxu0 %v171
  %v263 = vpop.f32.mrb[0].mxu0
  %v264 = vadd.f32 0.0, %v263
  %v265 = vpop.f32.mrb[0].mxu0
  %v266 = vpop.f32.mrb[0].mxu0
  %v267 = vadd.f32 0.0, %v266
  %v268 = vpop.f32.mrb[0].mxu0
  %269 = vmatprep.mubr.bf16.mxu0 0
  %270 = vmatmul.mubr.bf16.gmra.mrb[0].mxu0 %v174
  %v271 = vpop.f32.mrb[0].mxu0
  %v272 = vadd.f32 0.0, %v271
  %v273 = vpop.f32.mrb[0].mxu0
  %v274 = vpop.f32.mrb[0].mxu0
  %v275 = vadd.f32 0.0, %v274
  %v276 = vpop.f32.mrb[0].mxu0
  %277 = vmatprep.mubr.bf16.mxu0 0
  %278 = vmatmul.mubr.bf16.gmra.mrb[0].mxu0 %v177
  %v279 = vpop.f32.mrb[0].mxu0
  %v280 = vadd.f32 0.0, %v279
  %v281 = vpop.f32.mrb[0].mxu0
  %v282 = vpop.f32.mrb[0].mxu0
  %v283 = vadd.f32 0.0, %v282
  %v284 = vpop.f32.mrb[0].mxu0
  %285 = vmatprep.mubr.bf16.mxu0 0
  %286 = vmatmul.mubr.bf16.gmra.mrb[0].mxu0 %v180
  %v287 = vpop.f32.mrb[0].mxu0
  %v288 = vadd.f32 0.0, %v287
  %v289 = vpop.f32.mrb[0].mxu0
  %v290 = vpop.f32.mrb[0].mxu0
  %v291 = vadd.f32 0.0, %v290
  %v292 = vpop.f32.mrb[0].mxu0
  %293 = vmatprep.mubr.bf16.mxu0 0
  %294 = vmatmul.mubr.bf16.gmra.mrb[0].mxu0 %v183
  %v295 = vpop.f32.mrb[0].mxu0
  %v296 = vadd.f32 0.0, %v295
  %v297 = vpop.f32.mrb[0].mxu0
  %v298 = vpop.f32.mrb[0].mxu0
  %v299 = vadd.f32 0.0, %v298
  %v300 = vpop.f32.mrb[0].mxu0
  %301 = vmatprep.mubr.bf16.mxu0 0
  %302 = vmatmul.mubr.bf16.gmra.mrb[0].mxu0 %v186
  %v303 = vpop.f32.mrb[0].mxu0
  %v304 = vadd.f32 0.0, %v303
  %v305 = vpop.f32.mrb[0].mxu0
  %v306 = vpop.f32.mrb[0].mxu0
  %v307 = vadd.f32 0.0, %v306
  %v308 = vpop.f32.mrb[0].mxu0
  %309 = vmatprep.mubr.bf16.mxu0 0
  %310 = vmatmul.mubr.bf16.gmra.mrb[0].mxu0 %v189
  %v311 = vpop.f32.mrb[0].mxu0
  %v312 = vadd.f32 0.0, %v311
  %v313 = vpop.f32.mrb[0].mxu0
  %v314 = vpop.f32.mrb[0].mxu0
  %v315 = vadd.f32 0.0, %v314
  %v316 = vpop.f32.mrb[0].mxu0
  %317 = vmatprep.mubr.bf16.mxu0 0
  %318 = vmatmul.mubr.bf16.gmra.mrb[0].mxu0 %v192
  %v319 = vpop.f32.mrb[0].mxu0
  %v320 = vadd.f32 0.0, %v319
  %v321 = vpop.f32.mrb[0].mxu0
  %v322 = vpop.f32.mrb[0].mxu0
  %v323 = vadd.f32 0.0, %v322
  %v324 = vpop.f32.mrb[0].mxu0
  %325 = vmatprep.mubr.bf16.mxu0 0
  %326 = vmatmul.mubr.bf16.gmra.mrb[0].mxu0 %v195
  %v327 = vpop.f32.mrb[0].mxu0
  %v328 = vadd.f32 0.0, %v327
  %v329 = vpop.f32.mrb[0].mxu0
  %v330 = vpop.f32.mrb[0].mxu0
  %v331 = vadd.f32 0.0, %v330
  %v332 = vpop.f32.mrb[0].mxu0
  %333 = vmatprep.mubr.bf16.mxu0 0
  %334 = vmatmul.mubr.bf16.gmra.mrb[0].mxu0 %v198
  %v335 = vpop.f32.mrb[0].mxu0
  %v336 = vadd.f32 0.0, %v335
  %v337 = vpop.f32.mrb[0].mxu0
  %v338 = vpop.f32.mrb[0].mxu0
  %v339 = vadd.f32 0.0, %v338
  %v340 = vpop.f32.mrb[0].mxu0
  %341 = vmatprep.mubr.bf16.mxu0 0
  %342 = vmatmul.mubr.bf16.gmra.mrb[0].mxu0 %v201
  %v343 = vpop.f32.mrb[0].mxu0
  %v344 = vadd.f32 0.0, %v343
  %v345 = vpop.f32.mrb[0].mxu0
  %v346 = vpop.f32.mrb[0].mxu0
  %v347 = vadd.f32 0.0, %v346
  %v348 = vpop.f32.mrb[0].mxu0
  %349 = vmatprep.mubr.bf16.mxu0 0
  %350 = vmatmul.mubr.bf16.gmra.mrb[0].mxu0 %v204
  %v351 = vpop.f32.mrb[0].mxu0
  %v352 = vadd.f32 0.0, %v351
  %v353 = vpop.f32.mrb[0].mxu0
  %v354 = vpop.f32.mrb[0].mxu0
  %v355 = vadd.f32 0.0, %v354
  %v356 = vpop.f32.mrb[0].mxu0
  %357 = vmatprep.mubr.bf16.mxu0 0
  %358 = vmatmul.mubr.bf16.gmra.mrb[0].mxu0 %v207
  %v359 = vpop.f32.mrb[0].mxu0
  %v360 = vadd.f32 0.0, %v359
  %v361 = vpop.f32.mrb[0].mxu0
  %v362 = vpop.f32.mrb[0].mxu0
  %v363 = vadd.f32 0.0, %v362
  %v364 = vpop.f32.mrb[0].mxu0
  %365 = vmatprep.mubr.bf16.mxu0 0
  %366 = vmatmul.mubr.bf16.gmra.mrb[0].mxu0 %v210
  %v367 = vpop.f32.mrb[0].mxu0
  %v368 = vadd.f32 0.0, %v367
  %v369 = vpop.f32.mrb[0].mxu0
  %v370 = vpop.f32.mrb[0].mxu0
  %v371 = vadd.f32 0.0, %v370
  %v372 = vpop.f32.mrb[0].mxu0
  %373 = vmatprep.mubr.bf16.mxu0 0
  %374 = vmatmul.mubr.bf16.gmra.mrb[0].mxu0 %v213
  %v375 = vpop.f32.mrb[0].mxu0
  %v376 = vadd.f32 0.0, %v375
  %v377 = vpop.f32.mrb[0].mxu0
  %v378 = vpop.f32.mrb[0].mxu0
  %v379 = vadd.f32 0.0, %v378
  %v380 = vpop.f32.mrb[0].mxu0
  %381 = vmatprep.mubr.bf16.mxu0 0
  %382 = vmatmul.mubr.bf16.gmra.mrb[0].mxu0 %v216
  %v383 = vpop.f32.mrb[0].mxu0
  %v384 = vadd.f32 0.0, %v383
  %v385 = vpop.f32.mrb[0].mxu0
  %v386 = vpop.f32.mrb[0].mxu0
  %v387 = vadd.f32 0.0, %v386
  %v388 = vpop.f32.mrb[0].mxu0
  %389 = vmatprep.mubr.bf16.mxu0 0
  %390 = vmatmul.mubr.bf16.gmra.mrb[0].mxu0 %v219
  %v391 = vpop.f32.mrb[0].mxu0
  %v392 = vadd.f32 0.0, %v391
  %v393 = vpop.f32.mrb[0].mxu0
  %v394 = vpop.f32.mrb[0].mxu0
  %v395 = vadd.f32 0.0, %v394
  %v396 = vpop.f32.mrb[0].mxu0
  %397 = vdwg.mxu0
  %v398 = vld [vmem:[%s1] sm:$0xf]
  %v399 = vld [vmem:[%s1 + $0x4] sm:$0xf]
  %v400 = vld [vmem:[%s1 + $0x8] sm:$0xf]
  %v401 = vld [vmem:[%s1 + $0xc] sm:$0xf]
  %v402 = vld [vmem:[%s1 + $0x10] sm:$0xf]
  %v403 = vld [vmem:[%s1 + $0x14] sm:$0xf]
  %v404 = vld [vmem:[%s1 + $0x18] sm:$0xf]
  %v405 = vld [vmem:[%s1 + $0x1c] sm:$0xf]
  %v406 = vld [vmem:[%s1 + $0x20] sm:$0xf]
  %v407 = vld [vmem:[%s1 + $0x24] sm:$0xf]
  %v408 = vld [vmem:[%s1 + $0x28] sm:$0xf]
  %v409 = vld [vmem:[%s1 + $0x2c] sm:$0xf]
  %v410 = vld [vmem:[%s1 + $0x30] sm:$0xf]
  %v411 = vld [vmem:[%s1 + $0x34] sm:$0xf]
  %v412 = vld [vmem:[%s1 + $0x38] sm:$0xf]
  %v413 = vld [vmem:[%s1 + $0x3c] sm:$0xf]
  %v414 = vld [vmem:[%s1 + $0x40] sm:$0xf]
  %v415 = vld [vmem:[%s1 + $0x44] sm:$0xf]
  %v416 = vld [vmem:[%s1 + $0x48] sm:$0xf]
  %v417 = vld [vmem:[%s1 + $0x4c] sm:$0xf]
  %v418 = vld [vmem:[%s1 + $0x50] sm:$0xf]
  %v419 = vld [vmem:[%s1 + $0x54] sm:$0xf]
  %v420 = vld [vmem:[%s1 + $0x58] sm:$0xf]
  %v421 = vld [vmem:[%s1 + $0x5c] sm:$0xf]
  %v422 = vld [vmem:[%s1 + $0x60] sm:$0xf]
  %v423 = vld [vmem:[%s1 + $0x64] sm:$0xf]
  %v424 = vld [vmem:[%s1 + $0x68] sm:$0xf]
  %v425 = vld [vmem:[%s1 + $0x6c] sm:$0xf]
  %v426 = vld [vmem:[%s1 + $0x70] sm:$0xf]
  %v427 = vld [vmem:[%s1 + $0x74] sm:$0xf]
  %v428 = vld [vmem:[%s1 + $0x78] sm:$0xf]
  %v429 = vld [vmem:[%s1 + $0x7c] sm:$0xf]
  %v430 = vld [vmem:[%s1 + $0x80] sm:$0xf]
  %v431 = vld [vmem:[%s1 + $0x84] sm:$0xf]
  %v432 = vld [vmem:[%s1 + $0x88] sm:$0xf]
  %v433 = vld [vmem:[%s1 + $0x8c] sm:$0xf]
  %v470 = vunpack.c.l.b16 %v398
  %v471 = vunpack.c.l.b16 %v399
  %v472 = vunpack.c.l.b16 %v400
  %v473 = vunpack.c.l.b16 %v401
  %v474 = vunpack.c.l.b16 %v402
  %v475 = vunpack.c.l.b16 %v403
  %v476 = vunpack.c.l.b16 %v404
  %v477 = vunpack.c.l.b16 %v405
  %v478 = vunpack.c.l.b16 %v406
  %v479 = vunpack.c.l.b16 %v407
  %v480 = vunpack.c.l.b16 %v408
  %v481 = vunpack.c.l.b16 %v409
  %v482 = vunpack.c.l.b16 %v410
  %v483 = vunpack.c.l.b16 %v411
  %v484 = vunpack.c.l.b16 %v412
  %v485 = vunpack.c.l.b16 %v413
  %v486 = vunpack.c.l.b16 %v414
  %v487 = vunpack.c.l.b16 %v415
  %v488 = vunpack.c.l.b16 %v416
  %v489 = vunpack.c.l.b16 %v417
  %v490 = vunpack.c.l.b16 %v418
  %v491 = vunpack.c.l.b16 %v419
  %v492 = vunpack.c.l.b16 %v420
  %v493 = vunpack.c.l.b16 %v421
  %v494 = vunpack.c.l.b16 %v422
  %v495 = vunpack.c.l.b16 %v423
  %v496 = vunpack.c.l.b16 %v424
  %v497 = vunpack.c.l.b16 %v425
  %v498 = vunpack.c.l.b16 %v426
  %v499 = vunpack.c.l.b16 %v427
  %v500 = vunpack.c.l.b16 %v428
  %v501 = vunpack.c.l.b16 %v429
  %v502 = vunpack.c.l.b16 %v430
  %v503 = vunpack.c.l.b16 %v431
  %v504 = vunpack.c.l.b16 %v432
  %v505 = vunpack.c.l.b16 %v433
  %v506 = vpack.c.b16 %v471, %v470
  %v507 = vpack.c.b16 %v473, %v472
  %v508 = vpack.c.b16 %v475, %v474
  %v509 = vpack.c.b16 %v477, %v476
  %v510 = vpack.c.b16 %v479, %v478
  %v511 = vpack.c.b16 %v481, %v480
  %v512 = vpack.c.b16 %v483, %v482
  %v513 = vpack.c.b16 %v485, %v484
  %v514 = vpack.c.b16 %v487, %v486
  %v515 = vpack.c.b16 %v489, %v488
  %v516 = vpack.c.b16 %v491, %v490
  %v517 = vpack.c.b16 %v493, %v492
  %v518 = vpack.c.b16 %v495, %v494
  %v519 = vpack.c.b16 %v497, %v496
  %v520 = vpack.c.b16 %v499, %v498
  %v521 = vpack.c.b16 %v501, %v500
  %v522 = vpack.c.b16 %v503, %v502
  %v523 = vpack.c.b16 %v505, %v504
  %v525 = vsel %vm166, %v506, 0
  %v528 = vsel %vm166, %v507, 0
  %v531 = vsel %vm166, %v508, 0
  %v534 = vsel %vm166, %v509, 0
  %v537 = vsel %vm166, %v510, 0
  %v540 = vsel %vm166, %v511, 0
  %v543 = vsel %vm166, %v512, 0
  %v546 = vsel %vm166, %v513, 0
  %v549 = vsel %vm166, %v514, 0
  %v552 = vsel %vm166, %v515, 0
  %v555 = vsel %vm166, %v516, 0
  %v558 = vsel %vm166, %v517, 0
  %v561 = vsel %vm166, %v518, 0
  %v564 = vsel %vm166, %v519, 0
  %v567 = vsel %vm166, %v520, 0
  %v570 = vsel %vm166, %v521, 0
  %v573 = vsel %vm166, %v522, 0
  %v576 = vsel %vm166, %v523, 0
  %578 = vmatprep.subr.bf16.mxu0 0
  %579 = vmatpush1.bf16.msra.mxu0 %v162
  %580 = vmatprep.subr.bf16.mxu0 0
  %581 = vmatpush1.bf16.msra.mxu0 %v163
  %582 = vmatprep.subr.bf16.mxu0 0
  %583 = vmatpush1.bf16.msra.mxu0 0
  %584 = vmatprep.subr.bf16.mxu0 0
  %585 = vmatpush1.bf16.msra.mxu0 0
  %586 = vmatprep.subr.bf16.mxu0 0
  %587 = vmatpush1.bf16.msra.mxu0 0
  %588 = vmatprep.subr.bf16.mxu0 0
  %589 = vmatpush1.bf16.msra.mxu0 0
  %590 = vmatprep.subr.bf16.mxu0 0
  %591 = vmatpush1.bf16.msra.mxu0 0
  %592 = vmatprep.subr.bf16.mxu0 0
  %593 = vmatpush1.bf16.msra.mxu0 0
  %594 = vmatprep.subr.bf16.mxu0 0
  %595 = vmatpush1.bf16.msra.mxu0 0
  %596 = vmatprep.subr.bf16.mxu0 0
  %597 = vmatpush1.bf16.msra.mxu0 0
  %598 = vmatprep.subr.bf16.mxu0 0
  %599 = vmatpush1.bf16.msra.mxu0 0
  %600 = vmatprep.subr.bf16.mxu0 0
  %601 = vmatpush1.bf16.msra.mxu0 0
  %602 = vmatprep.subr.bf16.mxu0 0
  %603 = vmatpush1.bf16.msra.mxu0 0
  %604 = vmatprep.subr.bf16.mxu0 0
  %605 = vmatpush1.bf16.msra.mxu0 0
  %606 = vmatprep.subr.bf16.mxu0 0
  %607 = vmatpush1.bf16.msra.mxu0 0
  %608 = vmatprep.subr.bf16.mxu0 0
  %609 = vmatpush1.bf16.msra.mxu0 0
  %610 = vmatprep.mubr.bf16.mxu0 0
  %611 = vmatmul.mubr.bf16.gmra.mrb[0].mxu0 %v525
  %v612 = vpop.f32.mrb[0].mxu0
  %v613 = vadd.f32 0.0, %v612
  %v614 = vpop.f32.mrb[0].mxu0
  %v615 = vpop.f32.mrb[0].mxu0
  %v616 = vadd.f32 0.0, %v615
  %v617 = vpop.f32.mrb[0].mxu0
  %618 = vmatprep.mubr.bf16.mxu0 0
  %619 = vmatmul.mubr.bf16.gmra.mrb[0].mxu0 %v528
  %v620 = vpop.f32.mrb[0].mxu0
  %v621 = vadd.f32 0.0, %v620
  %v622 = vpop.f32.mrb[0].mxu0
  %v623 = vpop.f32.mrb[0].mxu0
  %v624 = vadd.f32 0.0, %v623
  %v625 = vpop.f32.mrb[0].mxu0
  %626 = vmatprep.mubr.bf16.mxu0 0
  %627 = vmatmul.mubr.bf16.gmra.mrb[0].mxu0 %v531
  %v628 = vpop.f32.mrb[0].mxu0
  %v629 = vadd.f32 0.0, %v628
  %v630 = vpop.f32.mrb[0].mxu0
  %v631 = vpop.f32.mrb[0].mxu0
  %v632 = vadd.f32 0.0, %v631
  %v633 = vpop.f32.mrb[0].mxu0
  %634 = vmatprep.mubr.bf16.mxu0 0
  %635 = vmatmul.mubr.bf16.gmra.mrb[0].mxu0 %v534
  %v636 = vpop.f32.mrb[0].mxu0
  %v637 = vadd.f32 0.0, %v636
  %v638 = vpop.f32.mrb[0].mxu0
  %v639 = vpop.f32.mrb[0].mxu0
  %v640 = vadd.f32 0.0, %v639
  %v641 = vpop.f32.mrb[0].mxu0
  %642 = vmatprep.mubr.bf16.mxu0 0
  %643 = vmatmul.mubr.bf16.gmra.mrb[0].mxu0 %v537
  %v644 = vpop.f32.mrb[0].mxu0
  %v645 = vadd.f32 0.0, %v644
  %v646 = vpop.f32.mrb[0].mxu0
  %v647 = vpop.f32.mrb[0].mxu0
  %v648 = vadd.f32 0.0, %v647
  %v649 = vpop.f32.mrb[0].mxu0
  %650 = vmatprep.mubr.bf16.mxu0 0
  %651 = vmatmul.mubr.bf16.gmra.mrb[0].mxu0 %v540
  %v652 = vpop.f32.mrb[0].mxu0
  %v653 = vadd.f32 0.0, %v652
  %v654 = vpop.f32.mrb[0].mxu0
  %v655 = vpop.f32.mrb[0].mxu0
  %v656 = vadd.f32 0.0, %v655
  %v657 = vpop.f32.mrb[0].mxu0
  %658 = vmatprep.mubr.bf16.mxu0 0
  %659 = vmatmul.mubr.bf16.gmra.mrb[0].mxu0 %v543
  %v660 = vpop.f32.mrb[0].mxu0
  %v661 = vadd.f32 0.0, %v660
  %v662 = vpop.f32.mrb[0].mxu0
  %v663 = vpop.f32.mrb[0].mxu0
  %v664 = vadd.f32 0.0, %v663
  %v665 = vpop.f32.mrb[0].mxu0
  %666 = vmatprep.mubr.bf16.mxu0 0
  %667 = vmatmul.mubr.bf16.gmra.mrb[0].mxu0 %v546
  %v668 = vpop.f32.mrb[0].mxu0
  %v669 = vadd.f32 0.0, %v668
  %v670 = vpop.f32.mrb[0].mxu0
  %v671 = vpop.f32.mrb[0].mxu0
  %v672 = vadd.f32 0.0, %v671
  %v673 = vpop.f32.mrb[0].mxu0
  %674 = vmatprep.mubr.bf16.mxu0 0
  %675 = vmatmul.mubr.bf16.gmra.mrb[0].mxu0 %v549
  %v676 = vpop.f32.mrb[0].mxu0
  %v677 = vadd.f32 0.0, %v676
  %v678 = vpop.f32.mrb[0].mxu0
  %v679 = vpop.f32.mrb[0].mxu0
  %v680 = vadd.f32 0.0, %v679
  %v681 = vpop.f32.mrb[0].mxu0
  %682 = vmatprep.mubr.bf16.mxu0 0
  %683 = vmatmul.mubr.bf16.gmra.mrb[0].mxu0 %v552
  %v684 = vpop.f32.mrb[0].mxu0
  %v685 = vadd.f32 0.0, %v684
  %v686 = vpop.f32.mrb[0].mxu0
  %v687 = vpop.f32.mrb[0].mxu0
  %v688 = vadd.f32 0.0, %v687
  %v689 = vpop.f32.mrb[0].mxu0
  %690 = vmatprep.mubr.bf16.mxu0 0
  %691 = vmatmul.mubr.bf16.gmra.mrb[0].mxu0 %v555
  %v692 = vpop.f32.mrb[0].mxu0
  %v693 = vadd.f32 0.0, %v692
  %v694 = vpop.f32.mrb[0].mxu0
  %v695 = vpop.f32.mrb[0].mxu0
  %v696 = vadd.f32 0.0, %v695
  %v697 = vpop.f32.mrb[0].mxu0
  %698 = vmatprep.mubr.bf16.mxu0 0
  %699 = vmatmul.mubr.bf16.gmra.mrb[0].mxu0 %v558
  %v700 = vpop.f32.mrb[0].mxu0
  %v701 = vadd.f32 0.0, %v700
  %v702 = vpop.f32.mrb[0].mxu0
  %v703 = vpop.f32.mrb[0].mxu0
  %v704 = vadd.f32 0.0, %v703
  %v705 = vpop.f32.mrb[0].mxu0
  %706 = vmatprep.mubr.bf16.mxu0 0
  %707 = vmatmul.mubr.bf16.gmra.mrb[0].mxu0 %v561
  %v708 = vpop.f32.mrb[0].mxu0
  %v709 = vadd.f32 0.0, %v708
  %v710 = vpop.f32.mrb[0].mxu0
  %v711 = vpop.f32.mrb[0].mxu0
  %v712 = vadd.f32 0.0, %v711
  %v713 = vpop.f32.mrb[0].mxu0
  %714 = vmatprep.mubr.bf16.mxu0 0
  %715 = vmatmul.mubr.bf16.gmra.mrb[0].mxu0 %v564
  %v716 = vpop.f32.mrb[0].mxu0
  %v717 = vadd.f32 0.0, %v716
  %v718 = vpop.f32.mrb[0].mxu0
  %v719 = vpop.f32.mrb[0].mxu0
  %v720 = vadd.f32 0.0, %v719
  %v721 = vpop.f32.mrb[0].mxu0
  %722 = vmatprep.mubr.bf16.mxu0 0
  %723 = vmatmul.mubr.bf16.gmra.mrb[0].mxu0 %v567
  %v724 = vpop.f32.mrb[0].mxu0
  %v725 = vadd.f32 0.0, %v724
  %v726 = vpop.f32.mrb[0].mxu0
  %v727 = vpop.f32.mrb[0].mxu0
  %v728 = vadd.f32 0.0, %v727
  %v729 = vpop.f32.mrb[0].mxu0
  %730 = vmatprep.mubr.bf16.mxu0 0
  %731 = vmatmul.mubr.bf16.gmra.mrb[0].mxu0 %v570
  %v732 = vpop.f32.mrb[0].mxu0
  %v733 = vadd.f32 0.0, %v732
  %v734 = vpop.f32.mrb[0].mxu0
  %v735 = vpop.f32.mrb[0].mxu0
  %v736 = vadd.f32 0.0, %v735
  %v737 = vpop.f32.mrb[0].mxu0
  %738 = vmatprep.mubr.bf16.mxu0 0
  %739 = vmatmul.mubr.bf16.gmra.mrb[0].mxu0 %v573
  %v740 = vpop.f32.mrb[0].mxu0
  %v741 = vadd.f32 0.0, %v740
  %v742 = vpop.f32.mrb[0].mxu0
  %v743 = vpop.f32.mrb[0].mxu0
  %v744 = vadd.f32 0.0, %v743
  %v745 = vpop.f32.mrb[0].mxu0
  %746 = vmatprep.mubr.bf16.mxu0 0
  %747 = vmatmul.mubr.bf16.gmra.mrb[0].mxu0 %v576
  %v748 = vpop.f32.mrb[0].mxu0
  %v749 = vadd.f32 0.0, %v748
  %v750 = vpop.f32.mrb[0].mxu0
  %v751 = vpop.f32.mrb[0].mxu0
  %v752 = vadd.f32 0.0, %v751
  %v753 = vpop.f32.mrb[0].mxu0
  %754 = vdwg.mxu0
  %v755 = vld [vmem:[%s2] sm:$0xf]
  %v756 = vld [vmem:[%s2 + $0x4] sm:$0xf]
  %v757 = vld [vmem:[%s2 + $0x8] sm:$0xf]
  %v758 = vld [vmem:[%s2 + $0xc] sm:$0xf]
  %v759 = vld [vmem:[%s2 + $0x10] sm:$0xf]
  %v760 = vld [vmem:[%s2 + $0x14] sm:$0xf]
  %v761 = vld [vmem:[%s2 + $0x18] sm:$0xf]
  %v762 = vld [vmem:[%s2 + $0x1c] sm:$0xf]
  %v763 = vld [vmem:[%s2 + $0x20] sm:$0xf]
  %v764 = vld [vmem:[%s2 + $0x24] sm:$0xf]
  %v765 = vld [vmem:[%s2 + $0x28] sm:$0xf]
  %v766 = vld [vmem:[%s2 + $0x2c] sm:$0xf]
  %v767 = vld [vmem:[%s2 + $0x30] sm:$0xf]
  %v768 = vld [vmem:[%s2 + $0x34] sm:$0xf]
  %v769 = vld [vmem:[%s2 + $0x38] sm:$0xf]
  %v770 = vld [vmem:[%s2 + $0x3c] sm:$0xf]
  %v771 = vld [vmem:[%s2 + $0x40] sm:$0xf]
  %v772 = vld [vmem:[%s2 + $0x44] sm:$0xf]
  %v773 = vld [vmem:[%s2 + $0x48] sm:$0xf]
  %v774 = vld [vmem:[%s2 + $0x4c] sm:$0xf]
  %v775 = vld [vmem:[%s2 + $0x50] sm:$0xf]
  %v776 = vld [vmem:[%s2 + $0x54] sm:$0xf]
  %v777 = vld [vmem:[%s2 + $0x58] sm:$0xf]
  %v778 = vld [vmem:[%s2 + $0x5c] sm:$0xf]
  %v779 = vld [vmem:[%s2 + $0x60] sm:$0xf]
  %v780 = vld [vmem:[%s2 + $0x64] sm:$0xf]
  %v781 = vld [vmem:[%s2 + $0x68] sm:$0xf]
  %v782 = vld [vmem:[%s2 + $0x6c] sm:$0xf]
  %v783 = vld [vmem:[%s2 + $0x70] sm:$0xf]
  %v784 = vld [vmem:[%s2 + $0x74] sm:$0xf]
  %v785 = vld [vmem:[%s2 + $0x78] sm:$0xf]
  %v786 = vld [vmem:[%s2 + $0x7c] sm:$0xf]
  %v787 = vld [vmem:[%s2 + $0x80] sm:$0xf]
  %v788 = vld [vmem:[%s2 + $0x84] sm:$0xf]
  %v789 = vld [vmem:[%s2 + $0x88] sm:$0xf]
  %v790 = vld [vmem:[%s2 + $0x8c] sm:$0xf]
  %v827 = vunpack.c.l.b16 %v755
  %v828 = vunpack.c.l.b16 %v756
  %v829 = vunpack.c.l.b16 %v757
  %v830 = vunpack.c.l.b16 %v758
  %v831 = vunpack.c.l.b16 %v759
  %v832 = vunpack.c.l.b16 %v760
  %v833 = vunpack.c.l.b16 %v761
  %v834 = vunpack.c.l.b16 %v762
  %v835 = vunpack.c.l.b16 %v763
  %v836 = vunpack.c.l.b16 %v764
  %v837 = vunpack.c.l.b16 %v765
  %v838 = vunpack.c.l.b16 %v766
  %v839 = vunpack.c.l.b16 %v767
  %v840 = vunpack.c.l.b16 %v768
  %v841 = vunpack.c.l.b16 %v769
  %v842 = vunpack.c.l.b16 %v770
  %v843 = vunpack.c.l.b16 %v771
  %v844 = vunpack.c.l.b16 %v772
  %v845 = vunpack.c.l.b16 %v773
  %v846 = vunpack.c.l.b16 %v774
  %v847 = vunpack.c.l.b16 %v775
  %v848 = vunpack.c.l.b16 %v776
  %v849 = vunpack.c.l.b16 %v777
  %v850 = vunpack.c.l.b16 %v778
  %v851 = vunpack.c.l.b16 %v779
  %v852 = vunpack.c.l.b16 %v780
  %v853 = vunpack.c.l.b16 %v781
  %v854 = vunpack.c.l.b16 %v782
  %v855 = vunpack.c.l.b16 %v783
  %v856 = vunpack.c.l.b16 %v784
  %v857 = vunpack.c.l.b16 %v785
  %v858 = vunpack.c.l.b16 %v786
  %v859 = vunpack.c.l.b16 %v787
  %v860 = vunpack.c.l.b16 %v788
  %v861 = vunpack.c.l.b16 %v789
  %v862 = vunpack.c.l.b16 %v790
  %v863 = vpack.c.b16 %v828, %v827
  %v864 = vpack.c.b16 %v830, %v829
  %v865 = vpack.c.b16 %v832, %v831
  %v866 = vpack.c.b16 %v834, %v833
  %v867 = vpack.c.b16 %v836, %v835
  %v868 = vpack.c.b16 %v838, %v837
  %v869 = vpack.c.b16 %v840, %v839
  %v870 = vpack.c.b16 %v842, %v841
  %v871 = vpack.c.b16 %v844, %v843
  %v872 = vpack.c.b16 %v846, %v845
  %v873 = vpack.c.b16 %v848, %v847
  %v874 = vpack.c.b16 %v850, %v849
  %v875 = vpack.c.b16 %v852, %v851
  %v876 = vpack.c.b16 %v854, %v853
  %v877 = vpack.c.b16 %v856, %v855
  %v878 = vpack.c.b16 %v858, %v857
  %v879 = vpack.c.b16 %v860, %v859
  %v880 = vpack.c.b16 %v862, %v861
  %v882 = vsel %vm166, %v863, 0
  %v885 = vsel %vm166, %v864, 0
  %v888 = vsel %vm166, %v865, 0
  %v891 = vsel %vm166, %v866, 0
  %v894 = vsel %vm166, %v867, 0
  %v897 = vsel %vm166, %v868, 0
  %v900 = vsel %vm166, %v869, 0
  %v903 = vsel %vm166, %v870, 0
  %v906 = vsel %vm166, %v871, 0
  %v909 = vsel %vm166, %v872, 0
  %v912 = vsel %vm166, %v873, 0
  %v915 = vsel %vm166, %v874, 0
  %v918 = vsel %vm166, %v875, 0
  %v921 = vsel %vm166, %v876, 0
  %v924 = vsel %vm166, %v877, 0
  %v927 = vsel %vm166, %v878, 0
  %v930 = vsel %vm166, %v879, 0
  %v933 = vsel %vm166, %v880, 0
  %935 = vmatprep.subr.bf16.mxu0 0
  %936 = vmatpush1.bf16.msra.mxu0 %v162
  %937 = vmatprep.subr.bf16.mxu0 0
  %938 = vmatpush1.bf16.msra.mxu0 %v163
  %939 = vmatprep.subr.bf16.mxu0 0
  %940 = vmatpush1.bf16.msra.mxu0 0
  %941 = vmatprep.subr.bf16.mxu0 0
  %942 = vmatpush1.bf16.msra.mxu0 0
  %943 = vmatprep.subr.bf16.mxu0 0
  %944 = vmatpush1.bf16.msra.mxu0 0
  %945 = vmatprep.subr.bf16.mxu0 0
  %946 = vmatpush1.bf16.msra.mxu0 0
  %947 = vmatprep.subr.bf16.mxu0 0
  %948 = vmatpush1.bf16.msra.mxu0 0
  %949 = vmatprep.subr.bf16.mxu0 0
  %950 = vmatpush1.bf16.msra.mxu0 0
  %951 = vmatprep.subr.bf16.mxu0 0
  %952 = vmatpush1.bf16.msra.mxu0 0
  %953 = vmatprep.subr.bf16.mxu0 0
  %954 = vmatpush1.bf16.msra.mxu0 0
  %955 = vmatprep.subr.bf16.mxu0 0
  %956 = vmatpush1.bf16.msra.mxu0 0
  %957 = vmatprep.subr.bf16.mxu0 0
  %958 = vmatpush1.bf16.msra.mxu0 0
  %959 = vmatprep.subr.bf16.mxu0 0
  %960 = vmatpush1.bf16.msra.mxu0 0
  %961 = vmatprep.subr.bf16.mxu0 0
  %962 = vmatpush1.bf16.msra.mxu0 0
  %963 = vmatprep.subr.bf16.mxu0 0
  %964 = vmatpush1.bf16.msra.mxu0 0
  %965 = vmatprep.subr.bf16.mxu0 0
  %966 = vmatpush1.bf16.msra.mxu0 0
  %967 = vmatprep.mubr.bf16.mxu0 0
  %968 = vmatmul.mubr.bf16.gmra.mrb[0].mxu0 %v882
  %v969 = vpop.f32.mrb[0].mxu0
  %v970 = vadd.f32 0.0, %v969
  %v971 = vpop.f32.mrb[0].mxu0
  %v972 = vpop.f32.mrb[0].mxu0
  %v973 = vadd.f32 0.0, %v972
  %v974 = vpop.f32.mrb[0].mxu0
  %975 = vmatprep.mubr.bf16.mxu0 0
  %976 = vmatmul.mubr.bf16.gmra.mrb[0].mxu0 %v885
  %v977 = vpop.f32.mrb[0].mxu0
  %v978 = vadd.f32 0.0, %v977
  %v979 = vpop.f32.mrb[0].mxu0
  %v980 = vpop.f32.mrb[0].mxu0
  %v981 = vadd.f32 0.0, %v980
  %v982 = vpop.f32.mrb[0].mxu0
  %983 = vmatprep.mubr.bf16.mxu0 0
  %984 = vmatmul.mubr.bf16.gmra.mrb[0].mxu0 %v888
  %v985 = vpop.f32.mrb[0].mxu0
  %v986 = vadd.f32 0.0, %v985
  %v987 = vpop.f32.mrb[0].mxu0
  %v988 = vpop.f32.mrb[0].mxu0
  %v989 = vadd.f32 0.0, %v988
  %v990 = vpop.f32.mrb[0].mxu0
  %991 = vmatprep.mubr.bf16.mxu0 0
  %992 = vmatmul.mubr.bf16.gmra.mrb[0].mxu0 %v891
  %v993 = vpop.f32.mrb[0].mxu0
  %v994 = vadd.f32 0.0, %v993
  %v995 = vpop.f32.mrb[0].mxu0
  %v996 = vpop.f32.mrb[0].mxu0
  %v997 = vadd.f32 0.0, %v996
  %v998 = vpop.f32.mrb[0].mxu0
  %999 = vmatprep.mubr.bf16.mxu0 0
  %1000 = vmatmul.mubr.bf16.gmra.mrb[0].mxu0 %v894
  %v1001 = vpop.f32.mrb[0].mxu0
  %v1002 = vadd.f32 0.0, %v1001
  %v1003 = vpop.f32.mrb[0].mxu0
  %v1004 = vpop.f32.mrb[0].mxu0
  %v1005 = vadd.f32 0.0, %v1004
  %v1006 = vpop.f32.mrb[0].mxu0
  %1007 = vmatprep.mubr.bf16.mxu0 0
  %1008 = vmatmul.mubr.bf16.gmra.mrb[0].mxu0 %v897
  %v1009 = vpop.f32.mrb[0].mxu0
  %v1010 = vadd.f32 0.0, %v1009
  %v1011 = vpop.f32.mrb[0].mxu0
  %v1012 = vpop.f32.mrb[0].mxu0
  %v1013 = vadd.f32 0.0, %v1012
  %v1014 = vpop.f32.mrb[0].mxu0
  %1015 = vmatprep.mubr.bf16.mxu0 0
  %1016 = vmatmul.mubr.bf16.gmra.mrb[0].mxu0 %v900
  %v1017 = vpop.f32.mrb[0].mxu0
  %v1018 = vadd.f32 0.0, %v1017
  %v1019 = vpop.f32.mrb[0].mxu0
  %v1020 = vpop.f32.mrb[0].mxu0
  %v1021 = vadd.f32 0.0, %v1020
  %v1022 = vpop.f32.mrb[0].mxu0
  %1023 = vmatprep.mubr.bf16.mxu0 0
  %1024 = vmatmul.mubr.bf16.gmra.mrb[0].mxu0 %v903
  %v1025 = vpop.f32.mrb[0].mxu0
  %v1026 = vadd.f32 0.0, %v1025
  %v1027 = vpop.f32.mrb[0].mxu0
  %v1028 = vpop.f32.mrb[0].mxu0
  %v1029 = vadd.f32 0.0, %v1028
  %v1030 = vpop.f32.mrb[0].mxu0
  %1031 = vmatprep.mubr.bf16.mxu0 0
  %1032 = vmatmul.mubr.bf16.gmra.mrb[0].mxu0 %v906
  %v1033 = vpop.f32.mrb[0].mxu0
  %v1034 = vadd.f32 0.0, %v1033
  %v1035 = vpop.f32.mrb[0].mxu0
  %v1036 = vpop.f32.mrb[0].mxu0
  %v1037 = vadd.f32 0.0, %v1036
  %v1038 = vpop.f32.mrb[0].mxu0
  %1039 = vmatprep.mubr.bf16.mxu0 0
  %1040 = vmatmul.mubr.bf16.gmra.mrb[0].mxu0 %v909
  %v1041 = vpop.f32.mrb[0].mxu0
  %v1042 = vadd.f32 0.0, %v1041
  %v1043 = vpop.f32.mrb[0].mxu0
  %v1044 = vpop.f32.mrb[0].mxu0
  %v1045 = vadd.f32 0.0, %v1044
  %v1046 = vpop.f32.mrb[0].mxu0
  %1047 = vmatprep.mubr.bf16.mxu0 0
  %1048 = vmatmul.mubr.bf16.gmra.mrb[0].mxu0 %v912
  %v1049 = vpop.f32.mrb[0].mxu0
  %v1050 = vadd.f32 0.0, %v1049
  %v1051 = vpop.f32.mrb[0].mxu0
  %v1052 = vpop.f32.mrb[0].mxu0
  %v1053 = vadd.f32 0.0, %v1052
  %v1054 = vpop.f32.mrb[0].mxu0
  %1055 = vmatprep.mubr.bf16.mxu0 0
  %1056 = vmatmul.mubr.bf16.gmra.mrb[0].mxu0 %v915
  %v1057 = vpop.f32.mrb[0].mxu0
  %v1058 = vadd.f32 0.0, %v1057
  %v1059 = vpop.f32.mrb[0].mxu0
  %v1060 = vpop.f32.mrb[0].mxu0
  %v1061 = vadd.f32 0.0, %v1060
  %v1062 = vpop.f32.mrb[0].mxu0
  %1063 = vmatprep.mubr.bf16.mxu0 0
  %1064 = vmatmul.mubr.bf16.gmra.mrb[0].mxu0 %v918
  %v1065 = vpop.f32.mrb[0].mxu0
  %v1066 = vadd.f32 0.0, %v1065
  %v1067 = vpop.f32.mrb[0].mxu0
  %v1068 = vpop.f32.mrb[0].mxu0
  %v1069 = vadd.f32 0.0, %v1068
  %v1070 = vpop.f32.mrb[0].mxu0
  %1071 = vmatprep.mubr.bf16.mxu0 0
  %1072 = vmatmul.mubr.bf16.gmra.mrb[0].mxu0 %v921
  %v1073 = vpop.f32.mrb[0].mxu0
  %v1074 = vadd.f32 0.0, %v1073
  %v1075 = vpop.f32.mrb[0].mxu0
  %v1076 = vpop.f32.mrb[0].mxu0
  %v1077 = vadd.f32 0.0, %v1076
  %v1078 = vpop.f32.mrb[0].mxu0
  %1079 = vmatprep.mubr.bf16.mxu0 0
  %1080 = vmatmul.mubr.bf16.gmra.mrb[0].mxu0 %v924
  %v1081 = vpop.f32.mrb[0].mxu0
  %v1082 = vadd.f32 0.0, %v1081
  %v1083 = vpop.f32.mrb[0].mxu0
  %v1084 = vpop.f32.mrb[0].mxu0
  %v1085 = vadd.f32 0.0, %v1084
  %v1086 = vpop.f32.mrb[0].mxu0
  %1087 = vmatprep.mubr.bf16.mxu0 0
  %1088 = vmatmul.mubr.bf16.gmra.mrb[0].mxu0 %v927
  %v1089 = vpop.f32.mrb[0].mxu0
  %v1090 = vadd.f32 0.0, %v1089
  %v1091 = vpop.f32.mrb[0].mxu0
  %v1092 = vpop.f32.mrb[0].mxu0
  %v1093 = vadd.f32 0.0, %v1092
  %v1094 = vpop.f32.mrb[0].mxu0
  %1095 = vmatprep.mubr.bf16.mxu0 0
  %1096 = vmatmul.mubr.bf16.gmra.mrb[0].mxu0 %v930
  %v1097 = vpop.f32.mrb[0].mxu0
  %v1098 = vadd.f32 0.0, %v1097
  %v1099 = vpop.f32.mrb[0].mxu0
  %v1100 = vpop.f32.mrb[0].mxu0
  %v1101 = vadd.f32 0.0, %v1100
  %v1102 = vpop.f32.mrb[0].mxu0
  %1103 = vmatprep.mubr.bf16.mxu0 0
  %1104 = vmatmul.mubr.bf16.gmra.mrb[0].mxu0 %v933
  %v1105 = vpop.f32.mrb[0].mxu0
  %v1106 = vadd.f32 0.0, %v1105
  %v1107 = vpop.f32.mrb[0].mxu0
  %v1108 = vpop.f32.mrb[0].mxu0
  %v1109 = vadd.f32 0.0, %v1108
  %v1110 = vpop.f32.mrb[0].mxu0
  %1111 = vdwg.mxu0
  %v1112 = vld [vmem:[%s3] sm:$0xf]
  %v1113 = vld [vmem:[%s3 + $0x4] sm:$0xf]
  %v1114 = vld [vmem:[%s3 + $0x8] sm:$0xf]
  %v1115 = vld [vmem:[%s3 + $0xc] sm:$0xf]
  %v1116 = vld [vmem:[%s3 + $0x10] sm:$0xf]
  %v1117 = vld [vmem:[%s3 + $0x14] sm:$0xf]
  %v1118 = vld [vmem:[%s3 + $0x18] sm:$0xf]
  %v1119 = vld [vmem:[%s3 + $0x1c] sm:$0xf]
  %v1120 = vld [vmem:[%s3 + $0x20] sm:$0xf]
  %v1121 = vld [vmem:[%s3 + $0x24] sm:$0xf]
  %v1122 = vld [vmem:[%s3 + $0x28] sm:$0xf]
  %v1123 = vld [vmem:[%s3 + $0x2c] sm:$0xf]
  %v1124 = vld [vmem:[%s3 + $0x30] sm:$0xf]
  %v1125 = vld [vmem:[%s3 + $0x34] sm:$0xf]
  %v1126 = vld [vmem:[%s3 + $0x38] sm:$0xf]
  %v1127 = vld [vmem:[%s3 + $0x3c] sm:$0xf]
  %v1128 = vld [vmem:[%s3 + $0x40] sm:$0xf]
  %v1129 = vld [vmem:[%s3 + $0x44] sm:$0xf]
  %v1130 = vld [vmem:[%s3 + $0x48] sm:$0xf]
  %v1131 = vld [vmem:[%s3 + $0x4c] sm:$0xf]
  %v1132 = vld [vmem:[%s3 + $0x50] sm:$0xf]
  %v1133 = vld [vmem:[%s3 + $0x54] sm:$0xf]
  %v1134 = vld [vmem:[%s3 + $0x58] sm:$0xf]
  %v1135 = vld [vmem:[%s3 + $0x5c] sm:$0xf]
  %v1136 = vld [vmem:[%s3 + $0x60] sm:$0xf]
  %v1137 = vld [vmem:[%s3 + $0x64] sm:$0xf]
  %v1138 = vld [vmem:[%s3 + $0x68] sm:$0xf]
  %v1139 = vld [vmem:[%s3 + $0x6c] sm:$0xf]
  %v1140 = vld [vmem:[%s3 + $0x70] sm:$0xf]
  %v1141 = vld [vmem:[%s3 + $0x74] sm:$0xf]
  %v1142 = vld [vmem:[%s3 + $0x78] sm:$0xf]
  %v1143 = vld [vmem:[%s3 + $0x7c] sm:$0xf]
  %v1144 = vld [vmem:[%s3 + $0x80] sm:$0xf]
  %v1145 = vld [vmem:[%s3 + $0x84] sm:$0xf]
  %v1146 = vld [vmem:[%s3 + $0x88] sm:$0xf]
  %v1147 = vld [vmem:[%s3 + $0x8c] sm:$0xf]
  %v1184 = vunpack.c.l.b16 %v1112
  %v1185 = vunpack.c.l.b16 %v1113
  %v1186 = vunpack.c.l.b16 %v1114
  %v1187 = vunpack.c.l.b16 %v1115
  %v1188 = vunpack.c.l.b16 %v1116
  %v1189 = vunpack.c.l.b16 %v1117
  %v1190 = vunpack.c.l.b16 %v1118
  %v1191 = vunpack.c.l.b16 %v1119
  %v1192 = vunpack.c.l.b16 %v1120
  %v1193 = vunpack.c.l.b16 %v1121
  %v1194 = vunpack.c.l.b16 %v1122
  %v1195 = vunpack.c.l.b16 %v1123
  %v1196 = vunpack.c.l.b16 %v1124
  %v1197 = vunpack.c.l.b16 %v1125
  %v1198 = vunpack.c.l.b16 %v1126
  %v1199 = vunpack.c.l.b16 %v1127
  %v1200 = vunpack.c.l.b16 %v1128
  %v1201 = vunpack.c.l.b16 %v1129
  %v1202 = vunpack.c.l.b16 %v1130
  %v1203 = vunpack.c.l.b16 %v1131
  %v1204 = vunpack.c.l.b16 %v1132
  %v1205 = vunpack.c.l.b16 %v1133
  %v1206 = vunpack.c.l.b16 %v1134
  %v1207 = vunpack.c.l.b16 %v1135
  %v1208 = vunpack.c.l.b16 %v1136
  %v1209 = vunpack.c.l.b16 %v1137
  %v1210 = vunpack.c.l.b16 %v1138
  %v1211 = vunpack.c.l.b16 %v1139
  %v1212 = vunpack.c.l.b16 %v1140
  %v1213 = vunpack.c.l.b16 %v1141
  %v1214 = vunpack.c.l.b16 %v1142
  %v1215 = vunpack.c.l.b16 %v1143
  %v1216 = vunpack.c.l.b16 %v1144
  %v1217 = vunpack.c.l.b16 %v1145
  %v1218 = vunpack.c.l.b16 %v1146
  %v1219 = vunpack.c.l.b16 %v1147
  %v1220 = vpack.c.b16 %v1185, %v1184
  %v1221 = vpack.c.b16 %v1187, %v1186
  %v1222 = vpack.c.b16 %v1189, %v1188
  %v1223 = vpack.c.b16 %v1191, %v1190
  %v1224 = vpack.c.b16 %v1193, %v1192
  %v1225 = vpack.c.b16 %v1195, %v1194
  %v1226 = vpack.c.b16 %v1197, %v1196
  %v1227 = vpack.c.b16 %v1199, %v1198
  %v1228 = vpack.c.b16 %v1201, %v1200
  %v1229 = vpack.c.b16 %v1203, %v1202
  %v1230 = vpack.c.b16 %v1205, %v1204
  %v1231 = vpack.c.b16 %v1207, %v1206
  %v1232 = vpack.c.b16 %v1209, %v1208
  %v1233 = vpack.c.b16 %v1211, %v1210
  %v1234 = vpack.c.b16 %v1213, %v1212
  %v1235 = vpack.c.b16 %v1215, %v1214
  %v1236 = vpack.c.b16 %v1217, %v1216
  %v1237 = vpack.c.b16 %v1219, %v1218
  %v1239 = vsel %vm166, %v1220, 0
  %v1242 = vsel %vm166, %v1221, 0
  %v1245 = vsel %vm166, %v1222, 0
  %v1248 = vsel %vm166, %v1223, 0
  %v1251 = vsel %vm166, %v1224, 0
  %v1254 = vsel %vm166, %v1225, 0
  %v1257 = vsel %vm166, %v1226, 0
  %v1260 = vsel %vm166, %v1227, 0
  %v1263 = vsel %vm166, %v1228, 0
  %v1266 = vsel %vm166, %v1229, 0
  %v1269 = vsel %vm166, %v1230, 0
  %v1272 = vsel %vm166, %v1231, 0
  %v1275 = vsel %vm166, %v1232, 0
  %v1278 = vsel %vm166, %v1233, 0
  %v1281 = vsel %vm166, %v1234, 0
  %v1284 = vsel %vm166, %v1235, 0
  %v1287 = vsel %vm166, %v1236, 0
  %v1290 = vsel %vm166, %v1237, 0
  %1292 = vmatprep.subr.bf16.mxu0 0
  %1293 = vmatpush1.bf16.msra.mxu0 %v162
  %1294 = vmatprep.subr.bf16.mxu0 0
  %1295 = vmatpush1.bf16.msra.mxu0 %v163
  %1296 = vmatprep.subr.bf16.mxu0 0
  %1297 = vmatpush1.bf16.msra.mxu0 0
  %1298 = vmatprep.subr.bf16.mxu0 0
  %1299 = vmatpush1.bf16.msra.mxu0 0
  %1300 = vmatprep.subr.bf16.mxu0 0
  %1301 = vmatpush1.bf16.msra.mxu0 0
  %1302 = vmatprep.subr.bf16.mxu0 0
  %1303 = vmatpush1.bf16.msra.mxu0 0
  %1304 = vmatprep.subr.bf16.mxu0 0
  %1305 = vmatpush1.bf16.msra.mxu0 0
  %1306 = vmatprep.subr.bf16.mxu0 0
  %1307 = vmatpush1.bf16.msra.mxu0 0
  %1308 = vmatprep.subr.bf16.mxu0 0
  %1309 = vmatpush1.bf16.msra.mxu0 0
  %1310 = vmatprep.subr.bf16.mxu0 0
  %1311 = vmatpush1.bf16.msra.mxu0 0
  %1312 = vmatprep.subr.bf16.mxu0 0
  %1313 = vmatpush1.bf16.msra.mxu0 0
  %1314 = vmatprep.subr.bf16.mxu0 0
  %1315 = vmatpush1.bf16.msra.mxu0 0
  %1316 = vmatprep.subr.bf16.mxu0 0
  %1317 = vmatpush1.bf16.msra.mxu0 0
  %1318 = vmatprep.subr.bf16.mxu0 0
  %1319 = vmatpush1.bf16.msra.mxu0 0
  %1320 = vmatprep.subr.bf16.mxu0 0
  %1321 = vmatpush1.bf16.msra.mxu0 0
  %1322 = vmatprep.subr.bf16.mxu0 0
  %1323 = vmatpush1.bf16.msra.mxu0 0
  %1324 = vmatprep.mubr.bf16.mxu0 0
  %1325 = vmatmul.mubr.bf16.gmra.mrb[0].mxu0 %v1239
  %v1326 = vpop.f32.mrb[0].mxu0
  %v1327 = vadd.f32 0.0, %v1326
  %v1328 = vpop.f32.mrb[0].mxu0
  %v1329 = vpop.f32.mrb[0].mxu0
  %v1330 = vadd.f32 0.0, %v1329
  %v1331 = vpop.f32.mrb[0].mxu0
  %1332 = vmatprep.mubr.bf16.mxu0 0
  %1333 = vmatmul.mubr.bf16.gmra.mrb[0].mxu0 %v1242
  %v1334 = vpop.f32.mrb[0].mxu0
  %v1335 = vadd.f32 0.0, %v1334
  %v1336 = vpop.f32.mrb[0].mxu0
  %v1337 = vpop.f32.mrb[0].mxu0
  %v1338 = vadd.f32 0.0, %v1337
  %v1339 = vpop.f32.mrb[0].mxu0
  %1340 = vmatprep.mubr.bf16.mxu0 0
  %1341 = vmatmul.mubr.bf16.gmra.mrb[0].mxu0 %v1245
  %v1342 = vpop.f32.mrb[0].mxu0
  %v1343 = vadd.f32 0.0, %v1342
  %v1344 = vpop.f32.mrb[0].mxu0
  %v1345 = vpop.f32.mrb[0].mxu0
  %v1346 = vadd.f32 0.0, %v1345
  %v1347 = vpop.f32.mrb[0].mxu0
  %1348 = vmatprep.mubr.bf16.mxu0 0
  %1349 = vmatmul.mubr.bf16.gmra.mrb[0].mxu0 %v1248
  %v1350 = vpop.f32.mrb[0].mxu0
  %v1351 = vadd.f32 0.0, %v1350
  %v1352 = vpop.f32.mrb[0].mxu0
  %v1353 = vpop.f32.mrb[0].mxu0
  %v1354 = vadd.f32 0.0, %v1353
  %v1355 = vpop.f32.mrb[0].mxu0
  %1356 = vmatprep.mubr.bf16.mxu0 0
  %1357 = vmatmul.mubr.bf16.gmra.mrb[0].mxu0 %v1251
  %v1358 = vpop.f32.mrb[0].mxu0
  %v1359 = vadd.f32 0.0, %v1358
  %v1360 = vpop.f32.mrb[0].mxu0
  %v1361 = vpop.f32.mrb[0].mxu0
  %v1362 = vadd.f32 0.0, %v1361
  %v1363 = vpop.f32.mrb[0].mxu0
  %1364 = vmatprep.mubr.bf16.mxu0 0
  %1365 = vmatmul.mubr.bf16.gmra.mrb[0].mxu0 %v1254
  %v1366 = vpop.f32.mrb[0].mxu0
  %v1367 = vadd.f32 0.0, %v1366
  %v1368 = vpop.f32.mrb[0].mxu0
  %v1369 = vpop.f32.mrb[0].mxu0
  %v1370 = vadd.f32 0.0, %v1369
  %v1371 = vpop.f32.mrb[0].mxu0
  %1372 = vmatprep.mubr.bf16.mxu0 0
  %1373 = vmatmul.mubr.bf16.gmra.mrb[0].mxu0 %v1257
  %v1374 = vpop.f32.mrb[0].mxu0
  %v1375 = vadd.f32 0.0, %v1374
  %v1376 = vpop.f32.mrb[0].mxu0
  %v1377 = vpop.f32.mrb[0].mxu0
  %v1378 = vadd.f32 0.0, %v1377
  %v1379 = vpop.f32.mrb[0].mxu0
  %1380 = vmatprep.mubr.bf16.mxu0 0
  %1381 = vmatmul.mubr.bf16.gmra.mrb[0].mxu0 %v1260
  %v1382 = vpop.f32.mrb[0].mxu0
  %v1383 = vadd.f32 0.0, %v1382
  %v1384 = vpop.f32.mrb[0].mxu0
  %v1385 = vpop.f32.mrb[0].mxu0
  %v1386 = vadd.f32 0.0, %v1385
  %v1387 = vpop.f32.mrb[0].mxu0
  %1388 = vmatprep.mubr.bf16.mxu0 0
  %1389 = vmatmul.mubr.bf16.gmra.mrb[0].mxu0 %v1263
  %v1390 = vpop.f32.mrb[0].mxu0
  %v1391 = vadd.f32 0.0, %v1390
  %v1392 = vpop.f32.mrb[0].mxu0
  %v1393 = vpop.f32.mrb[0].mxu0
  %v1394 = vadd.f32 0.0, %v1393
  %v1395 = vpop.f32.mrb[0].mxu0
  %1396 = vmatprep.mubr.bf16.mxu0 0
  %1397 = vmatmul.mubr.bf16.gmra.mrb[0].mxu0 %v1266
  %v1398 = vpop.f32.mrb[0].mxu0
  %v1399 = vadd.f32 0.0, %v1398
  %v1400 = vpop.f32.mrb[0].mxu0
  %v1401 = vpop.f32.mrb[0].mxu0
  %v1402 = vadd.f32 0.0, %v1401
  %v1403 = vpop.f32.mrb[0].mxu0
  %1404 = vmatprep.mubr.bf16.mxu0 0
  %1405 = vmatmul.mubr.bf16.gmra.mrb[0].mxu0 %v1269
  %v1406 = vpop.f32.mrb[0].mxu0
  %v1407 = vadd.f32 0.0, %v1406
  %v1408 = vpop.f32.mrb[0].mxu0
  %v1409 = vpop.f32.mrb[0].mxu0
  %v1410 = vadd.f32 0.0, %v1409
  %v1411 = vpop.f32.mrb[0].mxu0
  %1412 = vmatprep.mubr.bf16.mxu0 0
  %1413 = vmatmul.mubr.bf16.gmra.mrb[0].mxu0 %v1272
  %v1414 = vpop.f32.mrb[0].mxu0
  %v1415 = vadd.f32 0.0, %v1414
  %v1416 = vpop.f32.mrb[0].mxu0
  %v1417 = vpop.f32.mrb[0].mxu0
  %v1418 = vadd.f32 0.0, %v1417
  %v1419 = vpop.f32.mrb[0].mxu0
  %1420 = vmatprep.mubr.bf16.mxu0 0
  %1421 = vmatmul.mubr.bf16.gmra.mrb[0].mxu0 %v1275
  %v1422 = vpop.f32.mrb[0].mxu0
  %v1423 = vadd.f32 0.0, %v1422
  %v1424 = vpop.f32.mrb[0].mxu0
  %v1425 = vpop.f32.mrb[0].mxu0
  %v1426 = vadd.f32 0.0, %v1425
  %v1427 = vpop.f32.mrb[0].mxu0
  %1428 = vmatprep.mubr.bf16.mxu0 0
  %1429 = vmatmul.mubr.bf16.gmra.mrb[0].mxu0 %v1278
  %v1430 = vpop.f32.mrb[0].mxu0
  %v1431 = vadd.f32 0.0, %v1430
  %v1432 = vpop.f32.mrb[0].mxu0
  %v1433 = vpop.f32.mrb[0].mxu0
  %v1434 = vadd.f32 0.0, %v1433
  %v1435 = vpop.f32.mrb[0].mxu0
  %1436 = vmatprep.mubr.bf16.mxu0 0
  %1437 = vmatmul.mubr.bf16.gmra.mrb[0].mxu0 %v1281
  %v1438 = vpop.f32.mrb[0].mxu0
  %v1439 = vadd.f32 0.0, %v1438
  %v1440 = vpop.f32.mrb[0].mxu0
  %v1441 = vpop.f32.mrb[0].mxu0
  %v1442 = vadd.f32 0.0, %v1441
  %v1443 = vpop.f32.mrb[0].mxu0
  %1444 = vmatprep.mubr.bf16.mxu0 0
  %1445 = vmatmul.mubr.bf16.gmra.mrb[0].mxu0 %v1284
  %v1446 = vpop.f32.mrb[0].mxu0
  %v1447 = vadd.f32 0.0, %v1446
  %v1448 = vpop.f32.mrb[0].mxu0
  %v1449 = vpop.f32.mrb[0].mxu0
  %v1450 = vadd.f32 0.0, %v1449
  %v1451 = vpop.f32.mrb[0].mxu0
  %1452 = vmatprep.mubr.bf16.mxu0 0
  %1453 = vmatmul.mubr.bf16.gmra.mrb[0].mxu0 %v1287
  %v1454 = vpop.f32.mrb[0].mxu0
  %v1455 = vadd.f32 0.0, %v1454
  %v1456 = vpop.f32.mrb[0].mxu0
  %v1457 = vpop.f32.mrb[0].mxu0
  %v1458 = vadd.f32 0.0, %v1457
  %v1459 = vpop.f32.mrb[0].mxu0
  %1460 = vmatprep.mubr.bf16.mxu0 0
  %1461 = vmatmul.mubr.bf16.gmra.mrb[0].mxu0 %v1290
  %v1462 = vpop.f32.mrb[0].mxu0
  %v1463 = vadd.f32 0.0, %v1462
  %v1464 = vpop.f32.mrb[0].mxu0
  %v1465 = vpop.f32.mrb[0].mxu0
  %v1466 = vadd.f32 0.0, %v1465
  %v1467 = vpop.f32.mrb[0].mxu0
  %1468 = vdwg.mxu0
  %v1469 = vmax.f32 %v256, %v613
  %v1470 = vmax.f32 %v259, %v616
  %v1471 = vmax.f32 %v264, %v621
  %v1472 = vmax.f32 %v267, %v624
  %v1473 = vmax.f32 %v272, %v629
  %v1474 = vmax.f32 %v275, %v632
  %v1475 = vmax.f32 %v280, %v637
  %v1476 = vmax.f32 %v283, %v640
  %v1477 = vmax.f32 %v288, %v645
  %v1478 = vmax.f32 %v291, %v648
  %v1479 = vmax.f32 %v296, %v653
  %v1480 = vmax.f32 %v299, %v656
  %v1481 = vmax.f32 %v304, %v661
  %v1482 = vmax.f32 %v307, %v664
  %v1483 = vmax.f32 %v312, %v669
  %v1484 = vmax.f32 %v315, %v672
  %v1485 = vmax.f32 %v320, %v677
  %v1486 = vmax.f32 %v323, %v680
  %v1487 = vmax.f32 %v328, %v685
  %v1488 = vmax.f32 %v331, %v688
  %v1489 = vmax.f32 %v336, %v693
  %v1490 = vmax.f32 %v339, %v696
  %v1491 = vmax.f32 %v344, %v701
  %v1492 = vmax.f32 %v347, %v704
  %v1493 = vmax.f32 %v352, %v709
  %v1494 = vmax.f32 %v355, %v712
  %v1495 = vmax.f32 %v360, %v717
  %v1496 = vmax.f32 %v363, %v720
  %v1497 = vmax.f32 %v368, %v725
  %v1498 = vmax.f32 %v371, %v728
  %v1499 = vmax.f32 %v376, %v733
  %v1500 = vmax.f32 %v379, %v736
  %v1501 = vmax.f32 %v384, %v741
  %v1502 = vmax.f32 %v387, %v744
  %v1503 = vmax.f32 %v392, %v749
  %v1504 = vmax.f32 %v395, %v752
  %v1505 = vmax.f32 %v970, %v1327
  %v1506 = vmax.f32 %v973, %v1330
  %v1507 = vmax.f32 %v978, %v1335
  %v1508 = vmax.f32 %v981, %v1338
  %v1509 = vmax.f32 %v986, %v1343
  %v1510 = vmax.f32 %v989, %v1346
  %v1511 = vmax.f32 %v994, %v1351
  %v1512 = vmax.f32 %v997, %v1354
  %v1513 = vmax.f32 %v1002, %v1359
  %v1514 = vmax.f32 %v1005, %v1362
  %v1515 = vmax.f32 %v1010, %v1367
  %v1516 = vmax.f32 %v1013, %v1370
  %v1517 = vmax.f32 %v1018, %v1375
  %v1518 = vmax.f32 %v1021, %v1378
  %v1519 = vmax.f32 %v1026, %v1383
  %v1520 = vmax.f32 %v1029, %v1386
  %v1521 = vmax.f32 %v1034, %v1391
  %v1522 = vmax.f32 %v1037, %v1394
  %v1523 = vmax.f32 %v1042, %v1399
  %v1524 = vmax.f32 %v1045, %v1402
  %v1525 = vmax.f32 %v1050, %v1407
  %v1526 = vmax.f32 %v1053, %v1410
  %v1527 = vmax.f32 %v1058, %v1415
  %v1528 = vmax.f32 %v1061, %v1418
  %v1529 = vmax.f32 %v1066, %v1423
  %v1530 = vmax.f32 %v1069, %v1426
  %v1531 = vmax.f32 %v1074, %v1431
  %v1532 = vmax.f32 %v1077, %v1434
  %v1533 = vmax.f32 %v1082, %v1439
  %v1534 = vmax.f32 %v1085, %v1442
  %v1535 = vmax.f32 %v1090, %v1447
  %v1536 = vmax.f32 %v1093, %v1450
  %v1537 = vmax.f32 %v1098, %v1455
  %v1538 = vmax.f32 %v1101, %v1458
  %v1539 = vmax.f32 %v1106, %v1463
  %v1540 = vmax.f32 %v1109, %v1466
  %v1541 = vmax.f32 %v1469, %v1505
  %v1542 = vmax.f32 %v1470, %v1506
  %v1543 = vmax.f32 %v1471, %v1507
  %v1544 = vmax.f32 %v1472, %v1508
  %v1545 = vmax.f32 %v1473, %v1509
  %v1546 = vmax.f32 %v1474, %v1510
  %v1547 = vmax.f32 %v1475, %v1511
  %v1548 = vmax.f32 %v1476, %v1512
  %v1549 = vmax.f32 %v1477, %v1513
  %v1550 = vmax.f32 %v1478, %v1514
  %v1551 = vmax.f32 %v1479, %v1515
  %v1552 = vmax.f32 %v1480, %v1516
  %v1553 = vmax.f32 %v1481, %v1517
  %v1554 = vmax.f32 %v1482, %v1518
  %v1555 = vmax.f32 %v1483, %v1519
  %v1556 = vmax.f32 %v1484, %v1520
  %v1557 = vmax.f32 %v1485, %v1521
  %v1558 = vmax.f32 %v1486, %v1522
  %v1559 = vmax.f32 %v1487, %v1523
  %v1560 = vmax.f32 %v1488, %v1524
  %v1561 = vmax.f32 %v1489, %v1525
  %v1562 = vmax.f32 %v1490, %v1526
  %v1563 = vmax.f32 %v1491, %v1527
  %v1564 = vmax.f32 %v1492, %v1528
  %v1565 = vmax.f32 %v1493, %v1529
  %v1566 = vmax.f32 %v1494, %v1530
  %v1567 = vmax.f32 %v1495, %v1531
  %v1568 = vmax.f32 %v1496, %v1532
  %v1569 = vmax.f32 %v1497, %v1533
  %v1570 = vmax.f32 %v1498, %v1534
  %v1571 = vmax.f32 %v1499, %v1535
  %v1572 = vmax.f32 %v1500, %v1536
  %v1573 = vmax.f32 %v1501, %v1537
  %v1574 = vmax.f32 %v1502, %v1538
  %v1575 = vmax.f32 %v1503, %v1539
  %v1576 = vmax.f32 %v1504, %v1540
  %v1577 = vld [vmem:[%s5] sm:$0x1]
  %v1579 = vlaneseq
  %v1580 = vshrl.u32 %v1579, 7
  %v1581 = vsub.s32 0, %v1580
  %v1582 = vrot.slane %v1577, %v1581
  %v1584 = vadd.f32 %v1541, %v1582
  %v1585 = vadd.f32 %v1542, %v1582
  %v1586 = vadd.f32 %v1543, %v1582
  %v1587 = vadd.f32 %v1544, %v1582
  %v1588 = vadd.f32 %v1545, %v1582
  %v1589 = vadd.f32 %v1546, %v1582
  %v1590 = vadd.f32 %v1547, %v1582
  %v1591 = vadd.f32 %v1548, %v1582
  %v1592 = vadd.f32 %v1549, %v1582
  %v1593 = vadd.f32 %v1550, %v1582
  %v1594 = vadd.f32 %v1551, %v1582
  %v1595 = vadd.f32 %v1552, %v1582
  %v1596 = vadd.f32 %v1553, %v1582
  %v1597 = vadd.f32 %v1554, %v1582
  %v1598 = vadd.f32 %v1555, %v1582
  %v1599 = vadd.f32 %v1556, %v1582
  %v1600 = vadd.f32 %v1557, %v1582
  %v1601 = vadd.f32 %v1558, %v1582
  %v1602 = vadd.f32 %v1559, %v1582
  %v1603 = vadd.f32 %v1560, %v1582
  %v1604 = vadd.f32 %v1561, %v1582
  %v1605 = vadd.f32 %v1562, %v1582
  %v1606 = vadd.f32 %v1563, %v1582
  %v1607 = vadd.f32 %v1564, %v1582
  %v1608 = vadd.f32 %v1565, %v1582
  %v1609 = vadd.f32 %v1566, %v1582
  %v1610 = vadd.f32 %v1567, %v1582
  %v1611 = vadd.f32 %v1568, %v1582
  %v1612 = vadd.f32 %v1569, %v1582
  %v1613 = vadd.f32 %v1570, %v1582
  %v1614 = vadd.f32 %v1571, %v1582
  %v1615 = vadd.f32 %v1572, %v1582
  %v1616 = vadd.f32 %v1573, %v1582
  %v1617 = vadd.f32 %v1574, %v1582
  %v1618 = vadd.f32 %v1575, %v1582
  %v1619 = vadd.f32 %v1576, %v1582
  %v1620 = vmax.f32 %v1584, 0.0
  %v1621 = vmax.f32 %v1585, 0.0
  %v1622 = vmax.f32 %v1586, 0.0
  %v1623 = vmax.f32 %v1587, 0.0
  %v1624 = vmax.f32 %v1588, 0.0
  %v1625 = vmax.f32 %v1589, 0.0
  %v1626 = vmax.f32 %v1590, 0.0
  %v1627 = vmax.f32 %v1591, 0.0
  %v1628 = vmax.f32 %v1592, 0.0
  %v1629 = vmax.f32 %v1593, 0.0
  %v1630 = vmax.f32 %v1594, 0.0
  %v1631 = vmax.f32 %v1595, 0.0
  %v1632 = vmax.f32 %v1596, 0.0
  %v1633 = vmax.f32 %v1597, 0.0
  %v1634 = vmax.f32 %v1598, 0.0
  %v1635 = vmax.f32 %v1599, 0.0
  %v1636 = vmax.f32 %v1600, 0.0
  %v1637 = vmax.f32 %v1601, 0.0
  %v1638 = vmax.f32 %v1602, 0.0
  %v1639 = vmax.f32 %v1603, 0.0
  %v1640 = vmax.f32 %v1604, 0.0
  %v1641 = vmax.f32 %v1605, 0.0
  %v1642 = vmax.f32 %v1606, 0.0
  %v1643 = vmax.f32 %v1607, 0.0
  %v1644 = vmax.f32 %v1608, 0.0
  %v1645 = vmax.f32 %v1609, 0.0
  %v1646 = vmax.f32 %v1610, 0.0
  %v1647 = vmax.f32 %v1611, 0.0
  %v1648 = vmax.f32 %v1612, 0.0
  %v1649 = vmax.f32 %v1613, 0.0
  %v1650 = vmax.f32 %v1614, 0.0
  %v1651 = vmax.f32 %v1615, 0.0
  %v1652 = vmax.f32 %v1616, 0.0
  %v1653 = vmax.f32 %v1617, 0.0
  %v1654 = vmax.f32 %v1618, 0.0
  %v1655 = vmax.f32 %v1619, 0.0
  %v1656 = vpack.c.bf16 %v1621, %v1620
  %v1657 = vpack.c.bf16 %v1623, %v1622
  %v1658 = vpack.c.bf16 %v1625, %v1624
  %v1659 = vpack.c.bf16 %v1627, %v1626
  %v1660 = vpack.c.bf16 %v1629, %v1628
  %v1661 = vpack.c.bf16 %v1631, %v1630
  %v1662 = vpack.c.bf16 %v1633, %v1632
  %v1663 = vpack.c.bf16 %v1635, %v1634
  %v1664 = vpack.c.bf16 %v1637, %v1636
  %v1665 = vpack.c.bf16 %v1639, %v1638
  %v1666 = vpack.c.bf16 %v1641, %v1640
  %v1667 = vpack.c.bf16 %v1643, %v1642
  %v1668 = vpack.c.bf16 %v1645, %v1644
  %v1669 = vpack.c.bf16 %v1647, %v1646
  %v1670 = vpack.c.bf16 %v1649, %v1648
  %v1671 = vpack.c.bf16 %v1651, %v1650
  %v1672 = vpack.c.bf16 %v1653, %v1652
  %v1673 = vpack.c.bf16 %v1655, %v1654
  %v1692 = vunpack.c.l.b16 %v1656
  %v1693 = vunpack.c.h.b16 %v1656
  %v1694 = vunpack.c.l.b16 %v1657
  %v1695 = vunpack.c.h.b16 %v1657
  %v1696 = vunpack.c.l.b16 %v1658
  %v1697 = vunpack.c.h.b16 %v1658
  %v1698 = vunpack.c.l.b16 %v1659
  %v1699 = vunpack.c.h.b16 %v1659
  %v1700 = vunpack.c.l.b16 %v1660
  %v1701 = vunpack.c.h.b16 %v1660
  %v1702 = vunpack.c.l.b16 %v1661
  %v1703 = vunpack.c.h.b16 %v1661
  %v1704 = vunpack.c.l.b16 %v1662
  %v1705 = vunpack.c.h.b16 %v1662
  %v1706 = vunpack.c.l.b16 %v1663
  %v1707 = vunpack.c.h.b16 %v1663
  %v1708 = vunpack.c.l.b16 %v1664
  %v1709 = vunpack.c.h.b16 %v1664
  %v1710 = vunpack.c.l.b16 %v1665
  %v1711 = vunpack.c.h.b16 %v1665
  %v1712 = vunpack.c.l.b16 %v1666
  %v1713 = vunpack.c.h.b16 %v1666
  %v1714 = vunpack.c.l.b16 %v1667
  %v1715 = vunpack.c.h.b16 %v1667
  %v1716 = vunpack.c.l.b16 %v1668
  %v1717 = vunpack.c.h.b16 %v1668
  %v1718 = vunpack.c.l.b16 %v1669
  %v1719 = vunpack.c.h.b16 %v1669
  %v1720 = vunpack.c.l.b16 %v1670
  %v1721 = vunpack.c.h.b16 %v1670
  %v1722 = vunpack.c.l.b16 %v1671
  %v1723 = vunpack.c.h.b16 %v1671
  %v1724 = vunpack.c.l.b16 %v1672
  %v1725 = vunpack.c.h.b16 %v1672
  %v1726 = vunpack.c.l.b16 %v1673
  %v1727 = vunpack.c.h.b16 %v1673
  %v1728 = vpack.c.b16 %v1692, %v1692
  %v1729 = vpack.c.b16 %v1693, %v1693
  %v1730 = vpack.c.b16 %v1694, %v1694
  %v1731 = vpack.c.b16 %v1695, %v1695
  %v1732 = vpack.c.b16 %v1696, %v1696
  %v1733 = vpack.c.b16 %v1697, %v1697
  %v1734 = vpack.c.b16 %v1698, %v1698
  %v1735 = vpack.c.b16 %v1699, %v1699
  %v1736 = vpack.c.b16 %v1700, %v1700
  %v1737 = vpack.c.b16 %v1701, %v1701
  %v1738 = vpack.c.b16 %v1702, %v1702
  %v1739 = vpack.c.b16 %v1703, %v1703
  %v1740 = vpack.c.b16 %v1704, %v1704
  %v1741 = vpack.c.b16 %v1705, %v1705
  %v1742 = vpack.c.b16 %v1706, %v1706
  %v1743 = vpack.c.b16 %v1707, %v1707
  %v1744 = vpack.c.b16 %v1708, %v1708
  %v1745 = vpack.c.b16 %v1709, %v1709
  %v1746 = vpack.c.b16 %v1710, %v1710
  %v1747 = vpack.c.b16 %v1711, %v1711
  %v1748 = vpack.c.b16 %v1712, %v1712
  %v1749 = vpack.c.b16 %v1713, %v1713
  %v1750 = vpack.c.b16 %v1714, %v1714
  %v1751 = vpack.c.b16 %v1715, %v1715
  %v1752 = vpack.c.b16 %v1716, %v1716
  %v1753 = vpack.c.b16 %v1717, %v1717
  %v1754 = vpack.c.b16 %v1718, %v1718
  %v1755 = vpack.c.b16 %v1719, %v1719
  %v1756 = vpack.c.b16 %v1720, %v1720
  %v1757 = vpack.c.b16 %v1721, %v1721
  %v1758 = vpack.c.b16 %v1722, %v1722
  %v1759 = vpack.c.b16 %v1723, %v1723
  %v1760 = vpack.c.b16 %v1724, %v1724
  %v1761 = vpack.c.b16 %v1725, %v1725
  %v1762 = vpack.c.b16 %v1726, %v1726
  %v1763 = vpack.c.b16 %v1727, %v1727
  %1800 = vst [vmem:[%s6] sm:$0xf] %v1728
  %1801 = vst [vmem:[%s6 + $0x4] sm:$0xf] %v1729
  %1802 = vst [vmem:[%s6 + $0x8] sm:$0xf] %v1730
  %1803 = vst [vmem:[%s6 + $0xc] sm:$0xf] %v1731
  %1804 = vst [vmem:[%s6 + $0x10] sm:$0xf] %v1732
  %1805 = vst [vmem:[%s6 + $0x14] sm:$0xf] %v1733
  %1806 = vst [vmem:[%s6 + $0x18] sm:$0xf] %v1734
  %1807 = vst [vmem:[%s6 + $0x1c] sm:$0xf] %v1735
  %1808 = vst [vmem:[%s6 + $0x20] sm:$0xf] %v1736
  %1809 = vst [vmem:[%s6 + $0x24] sm:$0xf] %v1737
  %1810 = vst [vmem:[%s6 + $0x28] sm:$0xf] %v1738
  %1811 = vst [vmem:[%s6 + $0x2c] sm:$0xf] %v1739
  %1812 = vst [vmem:[%s6 + $0x30] sm:$0xf] %v1740
  %1813 = vst [vmem:[%s6 + $0x34] sm:$0xf] %v1741
  %1814 = vst [vmem:[%s6 + $0x38] sm:$0xf] %v1742
  %1815 = vst [vmem:[%s6 + $0x3c] sm:$0xf] %v1743
  %1816 = vst [vmem:[%s6 + $0x40] sm:$0xf] %v1744
  %1817 = vst [vmem:[%s6 + $0x44] sm:$0xf] %v1745
  %1818 = vst [vmem:[%s6 + $0x48] sm:$0xf] %v1746
  %1819 = vst [vmem:[%s6 + $0x4c] sm:$0xf] %v1747
  %1820 = vst [vmem:[%s6 + $0x50] sm:$0xf] %v1748
  %1821 = vst [vmem:[%s6 + $0x54] sm:$0xf] %v1749
  %1822 = vst [vmem:[%s6 + $0x58] sm:$0xf] %v1750
  %1823 = vst [vmem:[%s6 + $0x5c] sm:$0xf] %v1751
  %1824 = vst [vmem:[%s6 + $0x60] sm:$0xf] %v1752
  %1825 = vst [vmem:[%s6 + $0x64] sm:$0xf] %v1753
  %1826 = vst [vmem:[%s6 + $0x68] sm:$0xf] %v1754
  %1827 = vst [vmem:[%s6 + $0x6c] sm:$0xf] %v1755
  %1828 = vst [vmem:[%s6 + $0x70] sm:$0xf] %v1756
  %1829 = vst [vmem:[%s6 + $0x74] sm:$0xf] %v1757
  %1830 = vst [vmem:[%s6 + $0x78] sm:$0xf] %v1758
  %1831 = vst [vmem:[%s6 + $0x7c] sm:$0xf] %v1759
  %1832 = vst [vmem:[%s6 + $0x80] sm:$0xf] %v1760
  %1833 = vst [vmem:[%s6 + $0x84] sm:$0xf] %v1761
  %1834 = vst [vmem:[%s6 + $0x88] sm:$0xf] %v1762
  %1835 = vst [vmem:[%s6 + $0x8c] sm:$0xf] %v1763
  // Predicated region
  $region26: #{lenet1_forward.3} parent=0 // pred_check
    _
  $region27: #{lenet1_forward.3} parent=0 // pred_check_branch
    %1837 = sbr.rel (0) target = $region29
  $region28: #{lenet1_forward.3} parent=0 // pred_region
    _
  $region29: #{lenet1_forward.3} parent=0 // pred_fallthru
    _
  // Predicated region
  $region30: #{lenet1_forward.3} parent=0 // pred_check
    _
  $region31: #{lenet1_forward.3} parent=0 // pred_check_branch
    %1839 = sbr.rel (0) target = $region33
  $region32: #{lenet1_forward.3} parent=0 // pred_region
    _
  $region33: #{lenet1_forward.3} parent=0 // pred_fallthru
    _

// kernel: lenet1_forward.4
$region0: #{lenet1_forward.4}
  #allocation0 [shape = 'u32[]', space=smem, size = 0x4, offset = 0x4, fixed_abs, tag = 'smem constant byte address 0x4 - core index']
  #allocation1 [shape = 'u32[144,128]{1,0:T(1,128)}', space=vmem, size = 0x12000, scoped, tag = 'internal scratch']
  %s0 = inlined_call_operand.vmem [shape: bf16[32,512], index: 0, kind: input, shape index: {}]
  %s1 = inlined_call_operand.vmem [shape: bf16[32,512], index: 1, kind: input, shape index: {}]
  %s2 = inlined_call_operand.vmem [shape: bf16[32,512], index: 2, kind: input, shape index: {}]
  %s3 = inlined_call_operand.vmem [shape: bf16[32,512], index: 3, kind: input, shape index: {}]
  %s4 = inlined_call_operand.vmem [shape: bf16[512,128], index: 4, kind: input, shape index: {}]
  %s5 = inlined_call_operand.vmem [shape: f32[1,128], index: 5, kind: input, shape index: {}]
  %s6 = inlined_call_operand.vmem [shape: bf16[32,128], index: 6, kind: output, shape index: {}]
  %s7 = sld [smem:[#allocation0]]
  $region34: #{lenet1_forward.4} parent=0
    _
  %s9 = ssub.s32 1, %s7
  %s10 = scalar_select 0, %s9, %s7
  // Predicated region
  $region2: #{lenet1_forward.4} parent=0 // pred_check
    _
  $region3: #{lenet1_forward.4} parent=0 // pred_check_branch
    %12 = sbr.rel (0) target = $region5
  $region4: #{lenet1_forward.4} parent=0 // pred_region
    _
  $region5: #{lenet1_forward.4} parent=0 // pred_fallthru
    _
  // Predicated region
  $region6: #{lenet1_forward.4} parent=0 // pred_check
    _
  $region7: #{lenet1_forward.4} parent=0 // pred_check_branch
    %14 = sbr.rel (0) target = $region9
  $region8: #{lenet1_forward.4} parent=0 // pred_region
    _
  $region9: #{lenet1_forward.4} parent=0 // pred_fallthru
    _
  // Predicated region
  $region10: #{lenet1_forward.4} parent=0 // pred_check
    _
  $region11: #{lenet1_forward.4} parent=0 // pred_check_branch
    %16 = sbr.rel (0) target = $region13
  $region12: #{lenet1_forward.4} parent=0 // pred_region
    _
  $region13: #{lenet1_forward.4} parent=0 // pred_fallthru
    _
  // Predicated region
  $region14: #{lenet1_forward.4} parent=0 // pred_check
    _
  $region15: #{lenet1_forward.4} parent=0 // pred_check_branch
    %18 = sbr.rel (0) target = $region17
  $region16: #{lenet1_forward.4} parent=0 // pred_region
    _
  $region17: #{lenet1_forward.4} parent=0 // pred_fallthru
    _
  // Predicated region
  $region18: #{lenet1_forward.4} parent=0 // pred_check
    _
  $region19: #{lenet1_forward.4} parent=0 // pred_check_branch
    %20 = sbr.rel (0) target = $region21
  $region20: #{lenet1_forward.4} parent=0 // pred_region
    _
  $region21: #{lenet1_forward.4} parent=0 // pred_fallthru
    _
  // Predicated region
  $region22: #{lenet1_forward.4} parent=0 // pred_check
    _
  $region23: #{lenet1_forward.4} parent=0 // pred_check_branch
    %22 = sbr.rel (0) target = $region25
  $region24: #{lenet1_forward.4} parent=0 // pred_region
    _
  $region25: #{lenet1_forward.4} parent=0 // pred_fallthru
    _
  %v24 = vld [vmem:[%s4] sm:$0xf]
  %v25 = vld [vmem:[%s4 + $0x4] sm:$0xf]
  %v26 = vld [vmem:[%s4 + $0x8] sm:$0xf]
  %v27 = vld [vmem:[%s4 + $0xc] sm:$0xf]
  %v28 = vld [vmem:[%s4 + $0x10] sm:$0xf]
  %v29 = vld [vmem:[%s4 + $0x14] sm:$0xf]
  %v30 = vld [vmem:[%s4 + $0x18] sm:$0xf]
  %v31 = vld [vmem:[%s4 + $0x1c] sm:$0xf]
  %v32 = vld [vmem:[%s4 + $0x20] sm:$0xf]
  %v33 = vld [vmem:[%s4 + $0x24] sm:$0xf]
  %v34 = vld [vmem:[%s4 + $0x28] sm:$0xf]
  %v35 = vld [vmem:[%s4 + $0x2c] sm:$0xf]
  %v36 = vld [vmem:[%s4 + $0x30] sm:$0xf]
  %v37 = vld [vmem:[%s4 + $0x34] sm:$0xf]
  %v38 = vld [vmem:[%s4 + $0x38] sm:$0xf]
  %v39 = vld [vmem:[%s4 + $0x3c] sm:$0xf]
  %v40 = vld [vmem:[%s4 + $0x40] sm:$0xf]
  %v41 = vld [vmem:[%s4 + $0x44] sm:$0xf]
  %v42 = vld [vmem:[%s4 + $0x48] sm:$0xf]
  %v43 = vld [vmem:[%s4 + $0x4c] sm:$0xf]
  %v44 = vld [vmem:[%s4 + $0x50] sm:$0xf]
  %v45 = vld [vmem:[%s4 + $0x54] sm:$0xf]
  %v46 = vld [vmem:[%s4 + $0x58] sm:$0xf]
  %v47 = vld [vmem:[%s4 + $0x5c] sm:$0xf]
  %v48 = vld [vmem:[%s4 + $0x60] sm:$0xf]
  %v49 = vld [vmem:[%s4 + $0x64] sm:$0xf]
  %v50 = vld [vmem:[%s4 + $0x68] sm:$0xf]
  %v51 = vld [vmem:[%s4 + $0x6c] sm:$0xf]
  %v52 = vld [vmem:[%s4 + $0x70] sm:$0xf]
  %v53 = vld [vmem:[%s4 + $0x74] sm:$0xf]
  %v54 = vld [vmem:[%s4 + $0x78] sm:$0xf]
  %v55 = vld [vmem:[%s4 + $0x7c] sm:$0xf]
  %v56 = vld [vmem:[%s4 + $0x80] sm:$0xf]
  %v57 = vld [vmem:[%s4 + $0x84] sm:$0xf]
  %v58 = vld [vmem:[%s4 + $0x88] sm:$0xf]
  %v59 = vld [vmem:[%s4 + $0x8c] sm:$0xf]
  %v60 = vld [vmem:[%s4 + $0x90] sm:$0xf]
  %v61 = vld [vmem:[%s4 + $0x94] sm:$0xf]
  %v62 = vld [vmem:[%s4 + $0x98] sm:$0xf]
  %v63 = vld [vmem:[%s4 + $0x9c] sm:$0xf]
  %v64 = vld [vmem:[%s4 + $0xa0] sm:$0xf]
  %v65 = vld [vmem:[%s4 + $0xa4] sm:$0xf]
  %v66 = vld [vmem:[%s4 + $0xa8] sm:$0xf]
  %v67 = vld [vmem:[%s4 + $0xac] sm:$0xf]
  %v68 = vld [vmem:[%s4 + $0xb0] sm:$0xf]
  %v69 = vld [vmem:[%s4 + $0xb4] sm:$0xf]
  %v70 = vld [vmem:[%s4 + $0xb8] sm:$0xf]
  %v71 = vld [vmem:[%s4 + $0xbc] sm:$0xf]
  %v72 = vld [vmem:[%s4 + $0xc0] sm:$0xf]
  %v73 = vld [vmem:[%s4 + $0xc4] sm:$0xf]
  %v74 = vld [vmem:[%s4 + $0xc8] sm:$0xf]
  %v75 = vld [vmem:[%s4 + $0xcc] sm:$0xf]
  %v76 = vld [vmem:[%s4 + $0xd0] sm:$0xf]
  %v77 = vld [vmem:[%s4 + $0xd4] sm:$0xf]
  %v78 = vld [vmem:[%s4 + $0xd8] sm:$0xf]
  %v79 = vld [vmem:[%s4 + $0xdc] sm:$0xf]
  %v80 = vld [vmem:[%s4 + $0xe0] sm:$0xf]
  %v81 = vld [vmem:[%s4 + $0xe4] sm:$0xf]
  %v82 = vld [vmem:[%s4 + $0xe8] sm:$0xf]
  %v83 = vld [vmem:[%s4 + $0xec] sm:$0xf]
  %v84 = vld [vmem:[%s4 + $0xf0] sm:$0xf]
  %v85 = vld [vmem:[%s4 + $0xf4] sm:$0xf]
  %v86 = vld [vmem:[%s4 + $0xf8] sm:$0xf]
  %v87 = vld [vmem:[%s4 + $0xfc] sm:$0xf]
  %v88 = vld [vmem:[%s0] sm:$0xff]
  %v89 = vld [vmem:[%s0 + $0x8] sm:$0xff]
  %v90 = vld [vmem:[%s0 + $0x10] sm:$0xff]
  %v91 = vld [vmem:[%s0 + $0x18] sm:$0xff]
  %v92 = vld [vmem:[%s0 + $0x20] sm:$0xff]
  %v93 = vld [vmem:[%s0 + $0x28] sm:$0xff]
  %v94 = vld [vmem:[%s0 + $0x30] sm:$0xff]
  %v95 = vld [vmem:[%s0 + $0x38] sm:$0xff]
  %v104 = vunpack.c.l.b16 %v88
  %v105 = vunpack.c.h.b16 %v88
  %v106 = vunpack.c.l.b16 %v89
  %v107 = vunpack.c.h.b16 %v89
  %v108 = vunpack.c.l.b16 %v90
  %v109 = vunpack.c.h.b16 %v90
  %v110 = vunpack.c.l.b16 %v91
  %v111 = vunpack.c.h.b16 %v91
  %v112 = vunpack.c.l.b16 %v92
  %v113 = vunpack.c.h.b16 %v92
  %v114 = vunpack.c.l.b16 %v93
  %v115 = vunpack.c.h.b16 %v93
  %v116 = vunpack.c.l.b16 %v94
  %v117 = vunpack.c.h.b16 %v94
  %v118 = vunpack.c.l.b16 %v95
  %v119 = vunpack.c.h.b16 %v95
  %v120 = vpack.c.b16 %v108, %v104
  %v121 = vpack.c.b16 %v109, %v105
  %v122 = vpack.c.b16 %v110, %v106
  %v123 = vpack.c.b16 %v111, %v107
  %v124 = vpack.c.b16 %v116, %v112
  %v125 = vpack.c.b16 %v117, %v113
  %v126 = vpack.c.b16 %v118, %v114
  %v127 = vpack.c.b16 %v119, %v115
  %v200 = vunpack.c.l.b16 %v24
  %v201 = vunpack.c.l.b16 %v25
  %v202 = vunpack.c.l.b16 %v26
  %v203 = vunpack.c.l.b16 %v27
  %v204 = vunpack.c.l.b16 %v28
  %v205 = vunpack.c.l.b16 %v29
  %v206 = vunpack.c.l.b16 %v30
  %v207 = vunpack.c.l.b16 %v31
  %v208 = vunpack.c.l.b16 %v32
  %v209 = vunpack.c.l.b16 %v33
  %v210 = vunpack.c.l.b16 %v34
  %v211 = vunpack.c.l.b16 %v35
  %v212 = vunpack.c.l.b16 %v36
  %v213 = vunpack.c.l.b16 %v37
  %v214 = vunpack.c.l.b16 %v38
  %v215 = vunpack.c.l.b16 %v39
  %v216 = vunpack.c.l.b16 %v40
  %v217 = vunpack.c.l.b16 %v41
  %v218 = vunpack.c.l.b16 %v42
  %v219 = vunpack.c.l.b16 %v43
  %v220 = vunpack.c.l.b16 %v44
  %v221 = vunpack.c.l.b16 %v45
  %v222 = vunpack.c.l.b16 %v46
  %v223 = vunpack.c.l.b16 %v47
  %v224 = vunpack.c.l.b16 %v48
  %v225 = vunpack.c.l.b16 %v49
  %v226 = vunpack.c.l.b16 %v50
  %v227 = vunpack.c.l.b16 %v51
  %v228 = vunpack.c.l.b16 %v52
  %v229 = vunpack.c.l.b16 %v53
  %v230 = vunpack.c.l.b16 %v54
  %v231 = vunpack.c.l.b16 %v55
  %v232 = vunpack.c.l.b16 %v56
  %v233 = vunpack.c.l.b16 %v57
  %v234 = vunpack.c.l.b16 %v58
  %v235 = vunpack.c.l.b16 %v59
  %v236 = vunpack.c.l.b16 %v60
  %v237 = vunpack.c.l.b16 %v61
  %v238 = vunpack.c.l.b16 %v62
  %v239 = vunpack.c.l.b16 %v63
  %v240 = vunpack.c.l.b16 %v64
  %v241 = vunpack.c.l.b16 %v65
  %v242 = vunpack.c.l.b16 %v66
  %v243 = vunpack.c.l.b16 %v67
  %v244 = vunpack.c.l.b16 %v68
  %v245 = vunpack.c.l.b16 %v69
  %v246 = vunpack.c.l.b16 %v70
  %v247 = vunpack.c.l.b16 %v71
  %v248 = vunpack.c.l.b16 %v72
  %v249 = vunpack.c.l.b16 %v73
  %v250 = vunpack.c.l.b16 %v74
  %v251 = vunpack.c.l.b16 %v75
  %v252 = vunpack.c.l.b16 %v76
  %v253 = vunpack.c.l.b16 %v77
  %v254 = vunpack.c.l.b16 %v78
  %v255 = vunpack.c.l.b16 %v79
  %v256 = vunpack.c.l.b16 %v80
  %v257 = vunpack.c.l.b16 %v81
  %v258 = vunpack.c.l.b16 %v82
  %v259 = vunpack.c.l.b16 %v83
  %v260 = vunpack.c.l.b16 %v84
  %v261 = vunpack.c.l.b16 %v85
  %v262 = vunpack.c.l.b16 %v86
  %v263 = vunpack.c.l.b16 %v87
  %v264 = vpack.c.b16 %v201, %v200
  %v265 = vpack.c.b16 %v203, %v202
  %v266 = vpack.c.b16 %v205, %v204
  %v267 = vpack.c.b16 %v207, %v206
  %v268 = vpack.c.b16 %v209, %v208
  %v269 = vpack.c.b16 %v211, %v210
  %v270 = vpack.c.b16 %v213, %v212
  %v271 = vpack.c.b16 %v215, %v214
  %v272 = vpack.c.b16 %v217, %v216
  %v273 = vpack.c.b16 %v219, %v218
  %v274 = vpack.c.b16 %v221, %v220
  %v275 = vpack.c.b16 %v223, %v222
  %v276 = vpack.c.b16 %v225, %v224
  %v277 = vpack.c.b16 %v227, %v226
  %v278 = vpack.c.b16 %v229, %v228
  %v279 = vpack.c.b16 %v231, %v230
  %v280 = vpack.c.b16 %v233, %v232
  %v281 = vpack.c.b16 %v235, %v234
  %v282 = vpack.c.b16 %v237, %v236
  %v283 = vpack.c.b16 %v239, %v238
  %v284 = vpack.c.b16 %v241, %v240
  %v285 = vpack.c.b16 %v243, %v242
  %v286 = vpack.c.b16 %v245, %v244
  %v287 = vpack.c.b16 %v247, %v246
  %v288 = vpack.c.b16 %v249, %v248
  %v289 = vpack.c.b16 %v251, %v250
  %v290 = vpack.c.b16 %v253, %v252
  %v291 = vpack.c.b16 %v255, %v254
  %v292 = vpack.c.b16 %v257, %v256
  %v293 = vpack.c.b16 %v259, %v258
  %v294 = vpack.c.b16 %v261, %v260
  %v295 = vpack.c.b16 %v263, %v262
  %328 = vmatprep.subr.bf16.mxu0 0
  %329 = vmatpush1.bf16.msra.mxu0 %v264
  %330 = vmatprep.subr.bf16.mxu0 0
  %331 = vmatpush1.bf16.msra.mxu0 %v265
  %332 = vmatprep.subr.bf16.mxu0 0
  %333 = vmatpush1.bf16.msra.mxu0 %v266
  %334 = vmatprep.subr.bf16.mxu0 0
  %335 = vmatpush1.bf16.msra.mxu0 %v267
  %336 = vmatprep.subr.bf16.mxu0 0
  %337 = vmatpush1.bf16.msra.mxu0 %v268
  %338 = vmatprep.subr.bf16.mxu0 0
  %339 = vmatpush1.bf16.msra.mxu0 %v269
  %340 = vmatprep.subr.bf16.mxu0 0
  %341 = vmatpush1.bf16.msra.mxu0 %v270
  %342 = vmatprep.subr.bf16.mxu0 0
  %343 = vmatpush1.bf16.msra.mxu0 %v271
  %344 = vmatprep.subr.bf16.mxu0 0
  %345 = vmatpush1.bf16.msra.mxu0 %v272
  %346 = vmatprep.subr.bf16.mxu0 0
  %347 = vmatpush1.bf16.msra.mxu0 %v273
  %348 = vmatprep.subr.bf16.mxu0 0
  %349 = vmatpush1.bf16.msra.mxu0 %v274
  %350 = vmatprep.subr.bf16.mxu0 0
  %351 = vmatpush1.bf16.msra.mxu0 %v275
  %352 = vmatprep.subr.bf16.mxu0 0
  %353 = vmatpush1.bf16.msra.mxu0 %v276
  %354 = vmatprep.subr.bf16.mxu0 0
  %355 = vmatpush1.bf16.msra.mxu0 %v277
  %356 = vmatprep.subr.bf16.mxu0 0
  %357 = vmatpush1.bf16.msra.mxu0 %v278
  %358 = vmatprep.subr.bf16.mxu0 0
  %359 = vmatpush1.bf16.msra.mxu0 %v279
  %360 = vmatprep.mubr.bf16.mxu0 %v121
  %361 = vmatmul.mubr.bf16.gmra.mrb[0].mxu0 %v120
  %v362 = vpop.f32.mrb[0].mxu0
  %v363 = vadd.f32 0.0, %v362
  %v364 = vpop.f32.mrb[0].mxu0
  %v365 = vpop.f32.mrb[0].mxu0
  %v366 = vadd.f32 0.0, %v365
  %v367 = vpop.f32.mrb[0].mxu0
  %368 = vmatprep.mubr.bf16.mxu0 %v125
  %369 = vmatmul.mubr.bf16.gmra.mrb[0].mxu0 %v124
  %v370 = vpop.f32.mrb[0].mxu0
  %v371 = vadd.f32 0.0, %v370
  %v372 = vpop.f32.mrb[0].mxu0
  %v373 = vpop.f32.mrb[0].mxu0
  %v374 = vadd.f32 0.0, %v373
  %v375 = vpop.f32.mrb[0].mxu0
  %376 = vdwg.mxu0
  %377 = vmatprep.subr.bf16.mxu0 0
  %378 = vmatpush1.bf16.msra.mxu0 %v280
  %379 = vmatprep.subr.bf16.mxu0 0
  %380 = vmatpush1.bf16.msra.mxu0 %v281
  %381 = vmatprep.subr.bf16.mxu0 0
  %382 = vmatpush1.bf16.msra.mxu0 %v282
  %383 = vmatprep.subr.bf16.mxu0 0
  %384 = vmatpush1.bf16.msra.mxu0 %v283
  %385 = vmatprep.subr.bf16.mxu0 0
  %386 = vmatpush1.bf16.msra.mxu0 %v284
  %387 = vmatprep.subr.bf16.mxu0 0
  %388 = vmatpush1.bf16.msra.mxu0 %v285
  %389 = vmatprep.subr.bf16.mxu0 0
  %390 = vmatpush1.bf16.msra.mxu0 %v286
  %391 = vmatprep.subr.bf16.mxu0 0
  %392 = vmatpush1.bf16.msra.mxu0 %v287
  %393 = vmatprep.subr.bf16.mxu0 0
  %394 = vmatpush1.bf16.msra.mxu0 %v288
  %395 = vmatprep.subr.bf16.mxu0 0
  %396 = vmatpush1.bf16.msra.mxu0 %v289
  %397 = vmatprep.subr.bf16.mxu0 0
  %398 = vmatpush1.bf16.msra.mxu0 %v290
  %399 = vmatprep.subr.bf16.mxu0 0
  %400 = vmatpush1.bf16.msra.mxu0 %v291
  %401 = vmatprep.subr.bf16.mxu0 0
  %402 = vmatpush1.bf16.msra.mxu0 %v292
  %403 = vmatprep.subr.bf16.mxu0 0
  %404 = vmatpush1.bf16.msra.mxu0 %v293
  %405 = vmatprep.subr.bf16.mxu0 0
  %406 = vmatpush1.bf16.msra.mxu0 %v294
  %407 = vmatprep.subr.bf16.mxu0 0
  %408 = vmatpush1.bf16.msra.mxu0 %v295
  %409 = vmatprep.mubr.bf16.mxu0 %v123
  %410 = vmatmul.mubr.bf16.gmra.mrb[0].mxu0 %v122
  %v411 = vpop.f32.mrb[0].mxu0
  %v412 = vadd.f32 %v363, %v411
  %v413 = vpop.f32.mrb[0].mxu0
  %v414 = vpop.f32.mrb[0].mxu0
  %v415 = vadd.f32 %v366, %v414
  %v416 = vpop.f32.mrb[0].mxu0
  %417 = vmatprep.mubr.bf16.mxu0 %v127
  %418 = vmatmul.mubr.bf16.gmra.mrb[0].mxu0 %v126
  %v419 = vpop.f32.mrb[0].mxu0
  %v420 = vadd.f32 %v371, %v419
  %v421 = vpop.f32.mrb[0].mxu0
  %v422 = vpop.f32.mrb[0].mxu0
  %v423 = vadd.f32 %v374, %v422
  %v424 = vpop.f32.mrb[0].mxu0
  %425 = vdwg.mxu0
  %v426 = vld [vmem:[%s1] sm:$0xff]
  %v427 = vld [vmem:[%s1 + $0x8] sm:$0xff]
  %v428 = vld [vmem:[%s1 + $0x10] sm:$0xff]
  %v429 = vld [vmem:[%s1 + $0x18] sm:$0xff]
  %v430 = vld [vmem:[%s1 + $0x20] sm:$0xff]
  %v431 = vld [vmem:[%s1 + $0x28] sm:$0xff]
  %v432 = vld [vmem:[%s1 + $0x30] sm:$0xff]
  %v433 = vld [vmem:[%s1 + $0x38] sm:$0xff]
  %v442 = vunpack.c.l.b16 %v426
  %v443 = vunpack.c.h.b16 %v426
  %v444 = vunpack.c.l.b16 %v427
  %v445 = vunpack.c.h.b16 %v427
  %v446 = vunpack.c.l.b16 %v428
  %v447 = vunpack.c.h.b16 %v428
  %v448 = vunpack.c.l.b16 %v429
  %v449 = vunpack.c.h.b16 %v429
  %v450 = vunpack.c.l.b16 %v430
  %v451 = vunpack.c.h.b16 %v430
  %v452 = vunpack.c.l.b16 %v431
  %v453 = vunpack.c.h.b16 %v431
  %v454 = vunpack.c.l.b16 %v432
  %v455 = vunpack.c.h.b16 %v432
  %v456 = vunpack.c.l.b16 %v433
  %v457 = vunpack.c.h.b16 %v433
  %v458 = vpack.c.b16 %v446, %v442
  %v459 = vpack.c.b16 %v447, %v443
  %v460 = vpack.c.b16 %v448, %v444
  %v461 = vpack.c.b16 %v449, %v445
  %v462 = vpack.c.b16 %v454, %v450
  %v463 = vpack.c.b16 %v455, %v451
  %v464 = vpack.c.b16 %v456, %v452
  %v465 = vpack.c.b16 %v457, %v453
  %474 = vmatprep.subr.bf16.mxu0 0
  %475 = vmatpush1.bf16.msra.mxu0 %v264
  %476 = vmatprep.subr.bf16.mxu0 0
  %477 = vmatpush1.bf16.msra.mxu0 %v265
  %478 = vmatprep.subr.bf16.mxu0 0
  %479 = vmatpush1.bf16.msra.mxu0 %v266
  %480 = vmatprep.subr.bf16.mxu0 0
  %481 = vmatpush1.bf16.msra.mxu0 %v267
  %482 = vmatprep.subr.bf16.mxu0 0
  %483 = vmatpush1.bf16.msra.mxu0 %v268
  %484 = vmatprep.subr.bf16.mxu0 0
  %485 = vmatpush1.bf16.msra.mxu0 %v269
  %486 = vmatprep.subr.bf16.mxu0 0
  %487 = vmatpush1.bf16.msra.mxu0 %v270
  %488 = vmatprep.subr.bf16.mxu0 0
  %489 = vmatpush1.bf16.msra.mxu0 %v271
  %490 = vmatprep.subr.bf16.mxu0 0
  %491 = vmatpush1.bf16.msra.mxu0 %v272
  %492 = vmatprep.subr.bf16.mxu0 0
  %493 = vmatpush1.bf16.msra.mxu0 %v273
  %494 = vmatprep.subr.bf16.mxu0 0
  %495 = vmatpush1.bf16.msra.mxu0 %v274
  %496 = vmatprep.subr.bf16.mxu0 0
  %497 = vmatpush1.bf16.msra.mxu0 %v275
  %498 = vmatprep.subr.bf16.mxu0 0
  %499 = vmatpush1.bf16.msra.mxu0 %v276
  %500 = vmatprep.subr.bf16.mxu0 0
  %501 = vmatpush1.bf16.msra.mxu0 %v277
  %502 = vmatprep.subr.bf16.mxu0 0
  %503 = vmatpush1.bf16.msra.mxu0 %v278
  %504 = vmatprep.subr.bf16.mxu0 0
  %505 = vmatpush1.bf16.msra.mxu0 %v279
  %506 = vmatprep.mubr.bf16.mxu0 %v459
  %507 = vmatmul.mubr.bf16.gmra.mrb[0].mxu0 %v458
  %v508 = vpop.f32.mrb[0].mxu0
  %v509 = vadd.f32 0.0, %v508
  %v510 = vpop.f32.mrb[0].mxu0
  %v511 = vpop.f32.mrb[0].mxu0
  %v512 = vadd.f32 0.0, %v511
  %v513 = vpop.f32.mrb[0].mxu0
  %514 = vmatprep.mubr.bf16.mxu0 %v463
  %515 = vmatmul.mubr.bf16.gmra.mrb[0].mxu0 %v462
  %v516 = vpop.f32.mrb[0].mxu0
  %v517 = vadd.f32 0.0, %v516
  %v518 = vpop.f32.mrb[0].mxu0
  %v519 = vpop.f32.mrb[0].mxu0
  %v520 = vadd.f32 0.0, %v519
  %v521 = vpop.f32.mrb[0].mxu0
  %522 = vdwg.mxu0
  %523 = vmatprep.subr.bf16.mxu0 0
  %524 = vmatpush1.bf16.msra.mxu0 %v280
  %525 = vmatprep.subr.bf16.mxu0 0
  %526 = vmatpush1.bf16.msra.mxu0 %v281
  %527 = vmatprep.subr.bf16.mxu0 0
  %528 = vmatpush1.bf16.msra.mxu0 %v282
  %529 = vmatprep.subr.bf16.mxu0 0
  %530 = vmatpush1.bf16.msra.mxu0 %v283
  %531 = vmatprep.subr.bf16.mxu0 0
  %532 = vmatpush1.bf16.msra.mxu0 %v284
  %533 = vmatprep.subr.bf16.mxu0 0
  %534 = vmatpush1.bf16.msra.mxu0 %v285
  %535 = vmatprep.subr.bf16.mxu0 0
  %536 = vmatpush1.bf16.msra.mxu0 %v286
  %537 = vmatprep.subr.bf16.mxu0 0
  %538 = vmatpush1.bf16.msra.mxu0 %v287
  %539 = vmatprep.subr.bf16.mxu0 0
  %540 = vmatpush1.bf16.msra.mxu0 %v288
  %541 = vmatprep.subr.bf16.mxu0 0
  %542 = vmatpush1.bf16.msra.mxu0 %v289
  %543 = vmatprep.subr.bf16.mxu0 0
  %544 = vmatpush1.bf16.msra.mxu0 %v290
  %545 = vmatprep.subr.bf16.mxu0 0
  %546 = vmatpush1.bf16.msra.mxu0 %v291
  %547 = vmatprep.subr.bf16.mxu0 0
  %548 = vmatpush1.bf16.msra.mxu0 %v292
  %549 = vmatprep.subr.bf16.mxu0 0
  %550 = vmatpush1.bf16.msra.mxu0 %v293
  %551 = vmatprep.subr.bf16.mxu0 0
  %552 = vmatpush1.bf16.msra.mxu0 %v294
  %553 = vmatprep.subr.bf16.mxu0 0
  %554 = vmatpush1.bf16.msra.mxu0 %v295
  %555 = vmatprep.mubr.bf16.mxu0 %v461
  %556 = vmatmul.mubr.bf16.gmra.mrb[0].mxu0 %v460
  %v557 = vpop.f32.mrb[0].mxu0
  %v558 = vadd.f32 %v509, %v557
  %v559 = vpop.f32.mrb[0].mxu0
  %v560 = vpop.f32.mrb[0].mxu0
  %v561 = vadd.f32 %v512, %v560
  %v562 = vpop.f32.mrb[0].mxu0
  %563 = vmatprep.mubr.bf16.mxu0 %v465
  %564 = vmatmul.mubr.bf16.gmra.mrb[0].mxu0 %v464
  %v565 = vpop.f32.mrb[0].mxu0
  %v566 = vadd.f32 %v517, %v565
  %v567 = vpop.f32.mrb[0].mxu0
  %v568 = vpop.f32.mrb[0].mxu0
  %v569 = vadd.f32 %v520, %v568
  %v570 = vpop.f32.mrb[0].mxu0
  %571 = vdwg.mxu0
  %v572 = vld [vmem:[%s2] sm:$0xff]
  %v573 = vld [vmem:[%s2 + $0x8] sm:$0xff]
  %v574 = vld [vmem:[%s2 + $0x10] sm:$0xff]
  %v575 = vld [vmem:[%s2 + $0x18] sm:$0xff]
  %v576 = vld [vmem:[%s2 + $0x20] sm:$0xff]
  %v577 = vld [vmem:[%s2 + $0x28] sm:$0xff]
  %v578 = vld [vmem:[%s2 + $0x30] sm:$0xff]
  %v579 = vld [vmem:[%s2 + $0x38] sm:$0xff]
  %v588 = vunpack.c.l.b16 %v572
  %v589 = vunpack.c.h.b16 %v572
  %v590 = vunpack.c.l.b16 %v573
  %v591 = vunpack.c.h.b16 %v573
  %v592 = vunpack.c.l.b16 %v574
  %v593 = vunpack.c.h.b16 %v574
  %v594 = vunpack.c.l.b16 %v575
  %v595 = vunpack.c.h.b16 %v575
  %v596 = vunpack.c.l.b16 %v576
  %v597 = vunpack.c.h.b16 %v576
  %v598 = vunpack.c.l.b16 %v577
  %v599 = vunpack.c.h.b16 %v577
  %v600 = vunpack.c.l.b16 %v578
  %v601 = vunpack.c.h.b16 %v578
  %v602 = vunpack.c.l.b16 %v579
  %v603 = vunpack.c.h.b16 %v579
  %v604 = vpack.c.b16 %v592, %v588
  %v605 = vpack.c.b16 %v593, %v589
  %v606 = vpack.c.b16 %v594, %v590
  %v607 = vpack.c.b16 %v595, %v591
  %v608 = vpack.c.b16 %v600, %v596
  %v609 = vpack.c.b16 %v601, %v597
  %v610 = vpack.c.b16 %v602, %v598
  %v611 = vpack.c.b16 %v603, %v599
  %620 = vmatprep.subr.bf16.mxu0 0
  %621 = vmatpush1.bf16.msra.mxu0 %v264
  %622 = vmatprep.subr.bf16.mxu0 0
  %623 = vmatpush1.bf16.msra.mxu0 %v265
  %624 = vmatprep.subr.bf16.mxu0 0
  %625 = vmatpush1.bf16.msra.mxu0 %v266
  %626 = vmatprep.subr.bf16.mxu0 0
  %627 = vmatpush1.bf16.msra.mxu0 %v267
  %628 = vmatprep.subr.bf16.mxu0 0
  %629 = vmatpush1.bf16.msra.mxu0 %v268
  %630 = vmatprep.subr.bf16.mxu0 0
  %631 = vmatpush1.bf16.msra.mxu0 %v269
  %632 = vmatprep.subr.bf16.mxu0 0
  %633 = vmatpush1.bf16.msra.mxu0 %v270
  %634 = vmatprep.subr.bf16.mxu0 0
  %635 = vmatpush1.bf16.msra.mxu0 %v271
  %636 = vmatprep.subr.bf16.mxu0 0
  %637 = vmatpush1.bf16.msra.mxu0 %v272
  %638 = vmatprep.subr.bf16.mxu0 0
  %639 = vmatpush1.bf16.msra.mxu0 %v273
  %640 = vmatprep.subr.bf16.mxu0 0
  %641 = vmatpush1.bf16.msra.mxu0 %v274
  %642 = vmatprep.subr.bf16.mxu0 0
  %643 = vmatpush1.bf16.msra.mxu0 %v275
  %644 = vmatprep.subr.bf16.mxu0 0
  %645 = vmatpush1.bf16.msra.mxu0 %v276
  %646 = vmatprep.subr.bf16.mxu0 0
  %647 = vmatpush1.bf16.msra.mxu0 %v277
  %648 = vmatprep.subr.bf16.mxu0 0
  %649 = vmatpush1.bf16.msra.mxu0 %v278
  %650 = vmatprep.subr.bf16.mxu0 0
  %651 = vmatpush1.bf16.msra.mxu0 %v279
  %652 = vmatprep.mubr.bf16.mxu0 %v605
  %653 = vmatmul.mubr.bf16.gmra.mrb[0].mxu0 %v604
  %v654 = vpop.f32.mrb[0].mxu0
  %v655 = vadd.f32 0.0, %v654
  %v656 = vpop.f32.mrb[0].mxu0
  %v657 = vpop.f32.mrb[0].mxu0
  %v658 = vadd.f32 0.0, %v657
  %v659 = vpop.f32.mrb[0].mxu0
  %660 = vmatprep.mubr.bf16.mxu0 %v609
  %661 = vmatmul.mubr.bf16.gmra.mrb[0].mxu0 %v608
  %v662 = vpop.f32.mrb[0].mxu0
  %v663 = vadd.f32 0.0, %v662
  %v664 = vpop.f32.mrb[0].mxu0
  %v665 = vpop.f32.mrb[0].mxu0
  %v666 = vadd.f32 0.0, %v665
  %v667 = vpop.f32.mrb[0].mxu0
  %668 = vdwg.mxu0
  %669 = vmatprep.subr.bf16.mxu0 0
  %670 = vmatpush1.bf16.msra.mxu0 %v280
  %671 = vmatprep.subr.bf16.mxu0 0
  %672 = vmatpush1.bf16.msra.mxu0 %v281
  %673 = vmatprep.subr.bf16.mxu0 0
  %674 = vmatpush1.bf16.msra.mxu0 %v282
  %675 = vmatprep.subr.bf16.mxu0 0
  %676 = vmatpush1.bf16.msra.mxu0 %v283
  %677 = vmatprep.subr.bf16.mxu0 0
  %678 = vmatpush1.bf16.msra.mxu0 %v284
  %679 = vmatprep.subr.bf16.mxu0 0
  %680 = vmatpush1.bf16.msra.mxu0 %v285
  %681 = vmatprep.subr.bf16.mxu0 0
  %682 = vmatpush1.bf16.msra.mxu0 %v286
  %683 = vmatprep.subr.bf16.mxu0 0
  %684 = vmatpush1.bf16.msra.mxu0 %v287
  %685 = vmatprep.subr.bf16.mxu0 0
  %686 = vmatpush1.bf16.msra.mxu0 %v288
  %687 = vmatprep.subr.bf16.mxu0 0
  %688 = vmatpush1.bf16.msra.mxu0 %v289
  %689 = vmatprep.subr.bf16.mxu0 0
  %690 = vmatpush1.bf16.msra.mxu0 %v290
  %691 = vmatprep.subr.bf16.mxu0 0
  %692 = vmatpush1.bf16.msra.mxu0 %v291
  %693 = vmatprep.subr.bf16.mxu0 0
  %694 = vmatpush1.bf16.msra.mxu0 %v292
  %695 = vmatprep.subr.bf16.mxu0 0
  %696 = vmatpush1.bf16.msra.mxu0 %v293
  %697 = vmatprep.subr.bf16.mxu0 0
  %698 = vmatpush1.bf16.msra.mxu0 %v294
  %699 = vmatprep.subr.bf16.mxu0 0
  %700 = vmatpush1.bf16.msra.mxu0 %v295
  %701 = vmatprep.mubr.bf16.mxu0 %v607
  %702 = vmatmul.mubr.bf16.gmra.mrb[0].mxu0 %v606
  %v703 = vpop.f32.mrb[0].mxu0
  %v704 = vadd.f32 %v655, %v703
  %v705 = vpop.f32.mrb[0].mxu0
  %v706 = vpop.f32.mrb[0].mxu0
  %v707 = vadd.f32 %v658, %v706
  %v708 = vpop.f32.mrb[0].mxu0
  %709 = vmatprep.mubr.bf16.mxu0 %v611
  %710 = vmatmul.mubr.bf16.gmra.mrb[0].mxu0 %v610
  %v711 = vpop.f32.mrb[0].mxu0
  %v712 = vadd.f32 %v663, %v711
  %v713 = vpop.f32.mrb[0].mxu0
  %v714 = vpop.f32.mrb[0].mxu0
  %v715 = vadd.f32 %v666, %v714
  %v716 = vpop.f32.mrb[0].mxu0
  %717 = vdwg.mxu0
  %v718 = vld [vmem:[%s3] sm:$0xff]
  %v719 = vld [vmem:[%s3 + $0x8] sm:$0xff]
  %v720 = vld [vmem:[%s3 + $0x10] sm:$0xff]
  %v721 = vld [vmem:[%s3 + $0x18] sm:$0xff]
  %v722 = vld [vmem:[%s3 + $0x20] sm:$0xff]
  %v723 = vld [vmem:[%s3 + $0x28] sm:$0xff]
  %v724 = vld [vmem:[%s3 + $0x30] sm:$0xff]
  %v725 = vld [vmem:[%s3 + $0x38] sm:$0xff]
  %v734 = vunpack.c.l.b16 %v718
  %v735 = vunpack.c.h.b16 %v718
  %v736 = vunpack.c.l.b16 %v719
  %v737 = vunpack.c.h.b16 %v719
  %v738 = vunpack.c.l.b16 %v720
  %v739 = vunpack.c.h.b16 %v720
  %v740 = vunpack.c.l.b16 %v721
  %v741 = vunpack.c.h.b16 %v721
  %v742 = vunpack.c.l.b16 %v722
  %v743 = vunpack.c.h.b16 %v722
  %v744 = vunpack.c.l.b16 %v723
  %v745 = vunpack.c.h.b16 %v723
  %v746 = vunpack.c.l.b16 %v724
  %v747 = vunpack.c.h.b16 %v724
  %v748 = vunpack.c.l.b16 %v725
  %v749 = vunpack.c.h.b16 %v725
  %v750 = vpack.c.b16 %v738, %v734
  %v751 = vpack.c.b16 %v739, %v735
  %v752 = vpack.c.b16 %v740, %v736
  %v753 = vpack.c.b16 %v741, %v737
  %v754 = vpack.c.b16 %v746, %v742
  %v755 = vpack.c.b16 %v747, %v743
  %v756 = vpack.c.b16 %v748, %v744
  %v757 = vpack.c.b16 %v749, %v745
  %766 = vmatprep.subr.bf16.mxu0 0
  %767 = vmatpush1.bf16.msra.mxu0 %v264
  %768 = vmatprep.subr.bf16.mxu0 0
  %769 = vmatpush1.bf16.msra.mxu0 %v265
  %770 = vmatprep.subr.bf16.mxu0 0
  %771 = vmatpush1.bf16.msra.mxu0 %v266
  %772 = vmatprep.subr.bf16.mxu0 0
  %773 = vmatpush1.bf16.msra.mxu0 %v267
  %774 = vmatprep.subr.bf16.mxu0 0
  %775 = vmatpush1.bf16.msra.mxu0 %v268
  %776 = vmatprep.subr.bf16.mxu0 0
  %777 = vmatpush1.bf16.msra.mxu0 %v269
  %778 = vmatprep.subr.bf16.mxu0 0
  %779 = vmatpush1.bf16.msra.mxu0 %v270
  %780 = vmatprep.subr.bf16.mxu0 0
  %781 = vmatpush1.bf16.msra.mxu0 %v271
  %782 = vmatprep.subr.bf16.mxu0 0
  %783 = vmatpush1.bf16.msra.mxu0 %v272
  %784 = vmatprep.subr.bf16.mxu0 0
  %785 = vmatpush1.bf16.msra.mxu0 %v273
  %786 = vmatprep.subr.bf16.mxu0 0
  %787 = vmatpush1.bf16.msra.mxu0 %v274
  %788 = vmatprep.subr.bf16.mxu0 0
  %789 = vmatpush1.bf16.msra.mxu0 %v275
  %790 = vmatprep.subr.bf16.mxu0 0
  %791 = vmatpush1.bf16.msra.mxu0 %v276
  %792 = vmatprep.subr.bf16.mxu0 0
  %793 = vmatpush1.bf16.msra.mxu0 %v277
  %794 = vmatprep.subr.bf16.mxu0 0
  %795 = vmatpush1.bf16.msra.mxu0 %v278
  %796 = vmatprep.subr.bf16.mxu0 0
  %797 = vmatpush1.bf16.msra.mxu0 %v279
  %798 = vmatprep.mubr.bf16.mxu0 %v751
  %799 = vmatmul.mubr.bf16.gmra.mrb[0].mxu0 %v750
  %v800 = vpop.f32.mrb[0].mxu0
  %v801 = vadd.f32 0.0, %v800
  %v802 = vpop.f32.mrb[0].mxu0
  %v803 = vpop.f32.mrb[0].mxu0
  %v804 = vadd.f32 0.0, %v803
  %v805 = vpop.f32.mrb[0].mxu0
  %806 = vmatprep.mubr.bf16.mxu0 %v755
  %807 = vmatmul.mubr.bf16.gmra.mrb[0].mxu0 %v754
  %v808 = vpop.f32.mrb[0].mxu0
  %v809 = vadd.f32 0.0, %v808
  %v810 = vpop.f32.mrb[0].mxu0
  %v811 = vpop.f32.mrb[0].mxu0
  %v812 = vadd.f32 0.0, %v811
  %v813 = vpop.f32.mrb[0].mxu0
  %814 = vdwg.mxu0
  %815 = vmatprep.subr.bf16.mxu0 0
  %816 = vmatpush1.bf16.msra.mxu0 %v280
  %817 = vmatprep.subr.bf16.mxu0 0
  %818 = vmatpush1.bf16.msra.mxu0 %v281
  %819 = vmatprep.subr.bf16.mxu0 0
  %820 = vmatpush1.bf16.msra.mxu0 %v282
  %821 = vmatprep.subr.bf16.mxu0 0
  %822 = vmatpush1.bf16.msra.mxu0 %v283
  %823 = vmatprep.subr.bf16.mxu0 0
  %824 = vmatpush1.bf16.msra.mxu0 %v284
  %825 = vmatprep.subr.bf16.mxu0 0
  %826 = vmatpush1.bf16.msra.mxu0 %v285
  %827 = vmatprep.subr.bf16.mxu0 0
  %828 = vmatpush1.bf16.msra.mxu0 %v286
  %829 = vmatprep.subr.bf16.mxu0 0
  %830 = vmatpush1.bf16.msra.mxu0 %v287
  %831 = vmatprep.subr.bf16.mxu0 0
  %832 = vmatpush1.bf16.msra.mxu0 %v288
  %833 = vmatprep.subr.bf16.mxu0 0
  %834 = vmatpush1.bf16.msra.mxu0 %v289
  %835 = vmatprep.subr.bf16.mxu0 0
  %836 = vmatpush1.bf16.msra.mxu0 %v290
  %837 = vmatprep.subr.bf16.mxu0 0
  %838 = vmatpush1.bf16.msra.mxu0 %v291
  %839 = vmatprep.subr.bf16.mxu0 0
  %840 = vmatpush1.bf16.msra.mxu0 %v292
  %841 = vmatprep.subr.bf16.mxu0 0
  %842 = vmatpush1.bf16.msra.mxu0 %v293
  %843 = vmatprep.subr.bf16.mxu0 0
  %844 = vmatpush1.bf16.msra.mxu0 %v294
  %845 = vmatprep.subr.bf16.mxu0 0
  %846 = vmatpush1.bf16.msra.mxu0 %v295
  %847 = vmatprep.mubr.bf16.mxu0 %v753
  %848 = vmatmul.mubr.bf16.gmra.mrb[0].mxu0 %v752
  %v849 = vpop.f32.mrb[0].mxu0
  %v850 = vadd.f32 %v801, %v849
  %v851 = vpop.f32.mrb[0].mxu0
  %v852 = vpop.f32.mrb[0].mxu0
  %v853 = vadd.f32 %v804, %v852
  %v854 = vpop.f32.mrb[0].mxu0
  %855 = vmatprep.mubr.bf16.mxu0 %v757
  %856 = vmatmul.mubr.bf16.gmra.mrb[0].mxu0 %v756
  %v857 = vpop.f32.mrb[0].mxu0
  %v858 = vadd.f32 %v809, %v857
  %v859 = vpop.f32.mrb[0].mxu0
  %v860 = vpop.f32.mrb[0].mxu0
  %v861 = vadd.f32 %v812, %v860
  %v862 = vpop.f32.mrb[0].mxu0
  %863 = vdwg.mxu0
  %v864 = vmax.f32 %v412, %v558
  %v865 = vmax.f32 %v415, %v561
  %v866 = vmax.f32 %v420, %v566
  %v867 = vmax.f32 %v423, %v569
  %v868 = vmax.f32 %v704, %v850
  %v869 = vmax.f32 %v707, %v853
  %v870 = vmax.f32 %v712, %v858
  %v871 = vmax.f32 %v715, %v861
  %v872 = vmax.f32 %v864, %v868
  %v873 = vmax.f32 %v865, %v869
  %v874 = vmax.f32 %v866, %v870
  %v875 = vmax.f32 %v867, %v871
  %v876 = vld [vmem:[%s5] sm:$0x1]
  %v878 = vlaneseq
  %v879 = vshrl.u32 %v878, 7
  %v880 = vsub.s32 0, %v879
  %v881 = vrot.slane %v876, %v880
  %v883 = vadd.f32 %v872, %v881
  %v884 = vadd.f32 %v873, %v881
  %v885 = vadd.f32 %v874, %v881
  %v886 = vadd.f32 %v875, %v881
  %v887 = vmax.f32 %v883, 0.0
  %v888 = vmax.f32 %v884, 0.0
  %v889 = vmax.f32 %v885, 0.0
  %v890 = vmax.f32 %v886, 0.0
  %v891 = vpack.c.bf16 %v888, %v887
  %v892 = vpack.c.bf16 %v890, %v889
  %v895 = vunpack.c.l.b16 %v891
  %v896 = vunpack.c.h.b16 %v891
  %v897 = vunpack.c.l.b16 %v892
  %v898 = vunpack.c.h.b16 %v892
  %v899 = vpack.c.b16 %v895, %v895
  %v900 = vpack.c.b16 %v896, %v896
  %v901 = vpack.c.b16 %v897, %v897
  %v902 = vpack.c.b16 %v898, %v898
  %907 = vst [vmem:[%s6] sm:$0xf] %v899
  %908 = vst [vmem:[%s6 + $0x4] sm:$0xf] %v900
  %909 = vst [vmem:[%s6 + $0x8] sm:$0xf] %v901
  %910 = vst [vmem:[%s6 + $0xc] sm:$0xf] %v902
  // Predicated region
  $region26: #{lenet1_forward.4} parent=0 // pred_check
    _
  $region27: #{lenet1_forward.4} parent=0 // pred_check_branch
    %912 = sbr.rel (0) target = $region29
  $region28: #{lenet1_forward.4} parent=0 // pred_region
    _
  $region29: #{lenet1_forward.4} parent=0 // pred_fallthru
    _
  // Predicated region
  $region30: #{lenet1_forward.4} parent=0 // pred_check
    _
  $region31: #{lenet1_forward.4} parent=0 // pred_check_branch
    %914 = sbr.rel (0) target = $region33
  $region32: #{lenet1_forward.4} parent=0 // pred_region
    _
  $region33: #{lenet1_forward.4} parent=0 // pred_fallthru
    _

// kernel: lenet1_forward.5
$region0: #{lenet1_forward.5}
  #allocation0 [shape = 'u32[]', space=smem, size = 0x4, offset = 0x4, fixed_abs, tag = 'smem constant byte address 0x4 - core index']
  #allocation1 [shape = 'u32[144,128]{1,0:T(1,128)}', space=vmem, size = 0x12000, scoped, tag = 'internal scratch']
  %s0 = inlined_call_operand.vmem [shape: bf16[32,2048], index: 0, kind: input, shape index: {}]
  %s1 = inlined_call_operand.vmem [shape: bf16[2048,512], index: 1, kind: input, shape index: {}]
  %s2 = inlined_call_operand.vmem [shape: f32[1,512], index: 2, kind: input, shape index: {}]
  %s3 = inlined_call_operand.vmem [shape: bf16[512,128], index: 3, kind: input, shape index: {}]
  %s4 = inlined_call_operand.vmem [shape: f32[1,128], index: 4, kind: input, shape index: {}]
  %s5 = inlined_call_operand.vmem [shape: f32[32,128], index: 5, kind: input, shape index: {}]
  %s6 = inlined_call_operand.vmem [shape: f32[32,128], index: 6, kind: output, shape index: {0}]
  %s7 = inlined_call_operand.hbm [shape: f32[1,1], index: 7, kind: output, shape index: {1}]
  %8 = xla_tuple %s6, %s7
  %s9 = sld [smem:[#allocation0]]
  $region46: #{lenet1_forward.5} parent=0
    _
  %s11 = ssub.s32 1, %s9
  %s12 = scalar_select 0, %s11, %s9
  $region1: #{lenet1_forward.5} parent=0
    #allocation2 [shape = 'u8[512]{0}', space=vmem, size = 0x400, scoped, tag = 'output window, operand 1, single buffered']
    #allocation3 [shape = 's32[1]{0}', space=sflag, size = 0x4, scoped, tag = 'scoped memory for lenet1_forward.5']
    %13 = vsyncpa [#allocation3], 0
    // Predicated region
    $region2: #{lenet1_forward.5} parent=1 // pred_check
      _
    $region3: #{lenet1_forward.5} parent=1 // pred_check_branch
      %15 = sbr.rel (0) target = $region5
    $region4: #{lenet1_forward.5} parent=1 // pred_region
      _
    $region5: #{lenet1_forward.5} parent=1 // pred_fallthru
      _
    // Predicated region
    $region6: #{lenet1_forward.5} parent=1 // pred_check
      _
    $region7: #{lenet1_forward.5} parent=1 // pred_check_branch
      %17 = sbr.rel (0) target = $region9
    $region8: #{lenet1_forward.5} parent=1 // pred_region
      _
    $region9: #{lenet1_forward.5} parent=1 // pred_fallthru
      _
    // Predicated region
    $region10: #{lenet1_forward.5} parent=1 // pred_check
      _
    $region11: #{lenet1_forward.5} parent=1 // pred_check_branch
      %19 = sbr.rel (0) target = $region13
    $region12: #{lenet1_forward.5} parent=1 // pred_region
      _
    $region13: #{lenet1_forward.5} parent=1 // pred_fallthru
      _
    // Predicated region
    $region14: #{lenet1_forward.5} parent=1 // pred_check
      _
    $region15: #{lenet1_forward.5} parent=1 // pred_check_branch
      %21 = sbr.rel (0) target = $region17
    $region16: #{lenet1_forward.5} parent=1 // pred_region
      _
    $region17: #{lenet1_forward.5} parent=1 // pred_fallthru
      _
    // Predicated region
    $region18: #{lenet1_forward.5} parent=1 // pred_check
      _
    $region19: #{lenet1_forward.5} parent=1 // pred_check_branch
      %23 = sbr.rel (0) target = $region21
    $region20: #{lenet1_forward.5} parent=1 // pred_region
      _
    $region21: #{lenet1_forward.5} parent=1 // pred_fallthru
      _
    // Predicated region
    $region22: #{lenet1_forward.5} parent=1 // pred_check
      _
    $region23: #{lenet1_forward.5} parent=1 // pred_check_branch
      %25 = sbr.rel (0) target = $region25
    $region24: #{lenet1_forward.5} parent=1 // pred_region
      _
    $region25: #{lenet1_forward.5} parent=1 // pred_fallthru
      _
    %v27 = vld [vmem:[%s0] sm:$0xff]
    %v28 = vld [vmem:[%s0 + $0x8] sm:$0xff]
    %v29 = vld [vmem:[%s0 + $0x10] sm:$0xff]
    %v30 = vld [vmem:[%s0 + $0x18] sm:$0xff]
    %v31 = vld [vmem:[%s0 + $0x20] sm:$0xff]
    %v32 = vld [vmem:[%s0 + $0x28] sm:$0xff]
    %v33 = vld [vmem:[%s0 + $0x30] sm:$0xff]
    %v34 = vld [vmem:[%s0 + $0x38] sm:$0xff]
    %v35 = vld [vmem:[%s0 + $0x40] sm:$0xff]
    %v36 = vld [vmem:[%s0 + $0x48] sm:$0xff]
    %v37 = vld [vmem:[%s0 + $0x50] sm:$0xff]
    %v38 = vld [vmem:[%s0 + $0x58] sm:$0xff]
    %v39 = vld [vmem:[%s0 + $0x60] sm:$0xff]
    %v40 = vld [vmem:[%s0 + $0x68] sm:$0xff]
    %v41 = vld [vmem:[%s0 + $0x70] sm:$0xff]
    %v42 = vld [vmem:[%s0 + $0x78] sm:$0xff]
    %v43 = vld [vmem:[%s0 + $0x80] sm:$0xff]
    %v44 = vld [vmem:[%s0 + $0x88] sm:$0xff]
    %v45 = vld [vmem:[%s0 + $0x90] sm:$0xff]
    %v46 = vld [vmem:[%s0 + $0x98] sm:$0xff]
    %v47 = vld [vmem:[%s0 + $0xa0] sm:$0xff]
    %v48 = vld [vmem:[%s0 + $0xa8] sm:$0xff]
    %v49 = vld [vmem:[%s0 + $0xb0] sm:$0xff]
    %v50 = vld [vmem:[%s0 + $0xb8] sm:$0xff]
    %v51 = vld [vmem:[%s0 + $0xc0] sm:$0xff]
    %v52 = vld [vmem:[%s0 + $0xc8] sm:$0xff]
    %v53 = vld [vmem:[%s0 + $0xd0] sm:$0xff]
    %v54 = vld [vmem:[%s0 + $0xd8] sm:$0xff]
    %v55 = vld [vmem:[%s0 + $0xe0] sm:$0xff]
    %v56 = vld [vmem:[%s0 + $0xe8] sm:$0xff]
    %v57 = vld [vmem:[%s0 + $0xf0] sm:$0xff]
    %v58 = vld [vmem:[%s0 + $0xf8] sm:$0xff]
    %v59 = vld [vmem:[%s1] sm:$0xff]
    %v60 = vld [vmem:[%s1 + $0x8] sm:$0xff]
    %v61 = vld [vmem:[%s1 + $0x10] sm:$0xff]
    %v62 = vld [vmem:[%s1 + $0x18] sm:$0xff]
    %v63 = vld [vmem:[%s1 + $0x20] sm:$0xff]
    %v64 = vld [vmem:[%s1 + $0x28] sm:$0xff]
    %v65 = vld [vmem:[%s1 + $0x30] sm:$0xff]
    %v66 = vld [vmem:[%s1 + $0x38] sm:$0xff]
    %v67 = vld [vmem:[%s1 + $0x40] sm:$0xff]
    %v68 = vld [vmem:[%s1 + $0x48] sm:$0xff]
    %v69 = vld [vmem:[%s1 + $0x50] sm:$0xff]
    %v70 = vld [vmem:[%s1 + $0x58] sm:$0xff]
    %v71 = vld [vmem:[%s1 + $0x60] sm:$0xff]
    %v72 = vld [vmem:[%s1 + $0x68] sm:$0xff]
    %v73 = vld [vmem:[%s1 + $0x70] sm:$0xff]
    %v74 = vld [vmem:[%s1 + $0x78] sm:$0xff]
    %v75 = vld [vmem:[%s1 + $0x80] sm:$0xff]
    %v76 = vld [vmem:[%s1 + $0x88] sm:$0xff]
    %v77 = vld [vmem:[%s1 + $0x90] sm:$0xff]
    %v78 = vld [vmem:[%s1 + $0x98] sm:$0xff]
    %v79 = vld [vmem:[%s1 + $0xa0] sm:$0xff]
    %v80 = vld [vmem:[%s1 + $0xa8] sm:$0xff]
    %v81 = vld [vmem:[%s1 + $0xb0] sm:$0xff]
    %v82 = vld [vmem:[%s1 + $0xb8] sm:$0xff]
    %v83 = vld [vmem:[%s1 + $0xc0] sm:$0xff]
    %v84 = vld [vmem:[%s1 + $0xc8] sm:$0xff]
    %v85 = vld [vmem:[%s1 + $0xd0] sm:$0xff]
    %v86 = vld [vmem:[%s1 + $0xd8] sm:$0xff]
    %v87 = vld [vmem:[%s1 + $0xe0] sm:$0xff]
    %v88 = vld [vmem:[%s1 + $0xe8] sm:$0xff]
    %v89 = vld [vmem:[%s1 + $0xf0] sm:$0xff]
    %v90 = vld [vmem:[%s1 + $0xf8] sm:$0xff]
    %v91 = vld [vmem:[%s1 + $0x100] sm:$0xff]
    %v92 = vld [vmem:[%s1 + $0x108] sm:$0xff]
    %v93 = vld [vmem:[%s1 + $0x110] sm:$0xff]
    %v94 = vld [vmem:[%s1 + $0x118] sm:$0xff]
    %v95 = vld [vmem:[%s1 + $0x120] sm:$0xff]
    %v96 = vld [vmem:[%s1 + $0x128] sm:$0xff]
    %v97 = vld [vmem:[%s1 + $0x130] sm:$0xff]
    %v98 = vld [vmem:[%s1 + $0x138] sm:$0xff]
    %v99 = vld [vmem:[%s1 + $0x140] sm:$0xff]
    %v100 = vld [vmem:[%s1 + $0x148] sm:$0xff]
    %v101 = vld [vmem:[%s1 + $0x150] sm:$0xff]
    %v102 = vld [vmem:[%s1 + $0x158] sm:$0xff]
    %v103 = vld [vmem:[%s1 + $0x160] sm:$0xff]
    %v104 = vld [vmem:[%s1 + $0x168] sm:$0xff]
    %v105 = vld [vmem:[%s1 + $0x170] sm:$0xff]
    %v106 = vld [vmem:[%s1 + $0x178] sm:$0xff]
    %v107 = vld [vmem:[%s1 + $0x180] sm:$0xff]
    %v108 = vld [vmem:[%s1 + $0x188] sm:$0xff]
    %v109 = vld [vmem:[%s1 + $0x190] sm:$0xff]
    %v110 = vld [vmem:[%s1 + $0x198] sm:$0xff]
    %v111 = vld [vmem:[%s1 + $0x1a0] sm:$0xff]
    %v112 = vld [vmem:[%s1 + $0x1a8] sm:$0xff]
    %v113 = vld [vmem:[%s1 + $0x1b0] sm:$0xff]
    %v114 = vld [vmem:[%s1 + $0x1b8] sm:$0xff]
    %v115 = vld [vmem:[%s1 + $0x1c0] sm:$0xff]
    %v116 = vld [vmem:[%s1 + $0x1c8] sm:$0xff]
    %v117 = vld [vmem:[%s1 + $0x1d0] sm:$0xff]
    %v118 = vld [vmem:[%s1 + $0x1d8] sm:$0xff]
    %v119 = vld [vmem:[%s1 + $0x1e0] sm:$0xff]
    %v120 = vld [vmem:[%s1 + $0x1e8] sm:$0xff]
    %v121 = vld [vmem:[%s1 + $0x1f0] sm:$0xff]
    %v122 = vld [vmem:[%s1 + $0x1f8] sm:$0xff]
    %v123 = vld [vmem:[%s1 + $0x200] sm:$0xff]
    %v124 = vld [vmem:[%s1 + $0x208] sm:$0xff]
    %v125 = vld [vmem:[%s1 + $0x210] sm:$0xff]
    %v126 = vld [vmem:[%s1 + $0x218] sm:$0xff]
    %v127 = vld [vmem:[%s1 + $0x220] sm:$0xff]
    %v128 = vld [vmem:[%s1 + $0x228] sm:$0xff]
    %v129 = vld [vmem:[%s1 + $0x230] sm:$0xff]
    %v130 = vld [vmem:[%s1 + $0x238] sm:$0xff]
    %v131 = vld [vmem:[%s1 + $0x240] sm:$0xff]
    %v132 = vld [vmem:[%s1 + $0x248] sm:$0xff]
    %v133 = vld [vmem:[%s1 + $0x250] sm:$0xff]
    %v134 = vld [vmem:[%s1 + $0x258] sm:$0xff]
    %v135 = vld [vmem:[%s1 + $0x260] sm:$0xff]
    %v136 = vld [vmem:[%s1 + $0x268] sm:$0xff]
    %v137 = vld [vmem:[%s1 + $0x270] sm:$0xff]
    %v138 = vld [vmem:[%s1 + $0x278] sm:$0xff]
    %v139 = vld [vmem:[%s1 + $0x280] sm:$0xff]
    %v140 = vld [vmem:[%s1 + $0x288] sm:$0xff]
    %v141 = vld [vmem:[%s1 + $0x290] sm:$0xff]
    %v142 = vld [vmem:[%s1 + $0x298] sm:$0xff]
    %v143 = vld [vmem:[%s1 + $0x2a0] sm:$0xff]
    %v144 = vld [vmem:[%s1 + $0x2a8] sm:$0xff]
    %v145 = vld [vmem:[%s1 + $0x2b0] sm:$0xff]
    %v146 = vld [vmem:[%s1 + $0x2b8] sm:$0xff]
    %v147 = vld [vmem:[%s1 + $0x2c0] sm:$0xff]
    %v148 = vld [vmem:[%s1 + $0x2c8] sm:$0xff]
    %v149 = vld [vmem:[%s1 + $0x2d0] sm:$0xff]
    %v150 = vld [vmem:[%s1 + $0x2d8] sm:$0xff]
    %v151 = vld [vmem:[%s1 + $0x2e0] sm:$0xff]
    %v152 = vld [vmem:[%s1 + $0x2e8] sm:$0xff]
    %v153 = vld [vmem:[%s1 + $0x2f0] sm:$0xff]
    %v154 = vld [vmem:[%s1 + $0x2f8] sm:$0xff]
    %v155 = vld [vmem:[%s1 + $0x300] sm:$0xff]
    %v156 = vld [vmem:[%s1 + $0x308] sm:$0xff]
    %v157 = vld [vmem:[%s1 + $0x310] sm:$0xff]
    %v158 = vld [vmem:[%s1 + $0x318] sm:$0xff]
    %v159 = vld [vmem:[%s1 + $0x320] sm:$0xff]
    %v160 = vld [vmem:[%s1 + $0x328] sm:$0xff]
    %v161 = vld [vmem:[%s1 + $0x330] sm:$0xff]
    %v162 = vld [vmem:[%s1 + $0x338] sm:$0xff]
    %v163 = vld [vmem:[%s1 + $0x340] sm:$0xff]
    %v164 = vld [vmem:[%s1 + $0x348] sm:$0xff]
    %v165 = vld [vmem:[%s1 + $0x350] sm:$0xff]
    %v166 = vld [vmem:[%s1 + $0x358] sm:$0xff]
    %v167 = vld [vmem:[%s1 + $0x360] sm:$0xff]
    %v168 = vld [vmem:[%s1 + $0x368] sm:$0xff]
    %v169 = vld [vmem:[%s1 + $0x370] sm:$0xff]
    %v170 = vld [vmem:[%s1 + $0x378] sm:$0xff]
    %v171 = vld [vmem:[%s1 + $0x380] sm:$0xff]
    %v172 = vld [vmem:[%s1 + $0x388] sm:$0xff]
    %v173 = vld [vmem:[%s1 + $0x390] sm:$0xff]
    %v174 = vld [vmem:[%s1 + $0x398] sm:$0xff]
    %v175 = vld [vmem:[%s1 + $0x3a0] sm:$0xff]
    %v176 = vld [vmem:[%s1 + $0x3a8] sm:$0xff]
    %v177 = vld [vmem:[%s1 + $0x3b0] sm:$0xff]
    %v178 = vld [vmem:[%s1 + $0x3b8] sm:$0xff]
    %v179 = vld [vmem:[%s1 + $0x3c0] sm:$0xff]
    %v180 = vld [vmem:[%s1 + $0x3c8] sm:$0xff]
    %v181 = vld [vmem:[%s1 + $0x3d0] sm:$0xff]
    %v182 = vld [vmem:[%s1 + $0x3d8] sm:$0xff]
    %v183 = vld [vmem:[%s1 + $0x3e0] sm:$0xff]
    %v184 = vld [vmem:[%s1 + $0x3e8] sm:$0xff]
    %v185 = vld [vmem:[%s1 + $0x3f0] sm:$0xff]
    %v186 = vld [vmem:[%s1 + $0x3f8] sm:$0xff]
    %v187 = vld [vmem:[%s1 + $0x400] sm:$0xff]
    %v188 = vld [vmem:[%s1 + $0x408] sm:$0xff]
    %v189 = vld [vmem:[%s1 + $0x410] sm:$0xff]
    %v190 = vld [vmem:[%s1 + $0x418] sm:$0xff]
    %v191 = vld [vmem:[%s1 + $0x420] sm:$0xff]
    %v192 = vld [vmem:[%s1 + $0x428] sm:$0xff]
    %v193 = vld [vmem:[%s1 + $0x430] sm:$0xff]
    %v194 = vld [vmem:[%s1 + $0x438] sm:$0xff]
    %v195 = vld [vmem:[%s1 + $0x440] sm:$0xff]
    %v196 = vld [vmem:[%s1 + $0x448] sm:$0xff]
    %v197 = vld [vmem:[%s1 + $0x450] sm:$0xff]
    %v198 = vld [vmem:[%s1 + $0x458] sm:$0xff]
    %v199 = vld [vmem:[%s1 + $0x460] sm:$0xff]
    %v200 = vld [vmem:[%s1 + $0x468] sm:$0xff]
    %v201 = vld [vmem:[%s1 + $0x470] sm:$0xff]
    %v202 = vld [vmem:[%s1 + $0x478] sm:$0xff]
    %v203 = vld [vmem:[%s1 + $0x480] sm:$0xff]
    %v204 = vld [vmem:[%s1 + $0x488] sm:$0xff]
    %v205 = vld [vmem:[%s1 + $0x490] sm:$0xff]
    %v206 = vld [vmem:[%s1 + $0x498] sm:$0xff]
    %v207 = vld [vmem:[%s1 + $0x4a0] sm:$0xff]
    %v208 = vld [vmem:[%s1 + $0x4a8] sm:$0xff]
    %v209 = vld [vmem:[%s1 + $0x4b0] sm:$0xff]
    %v210 = vld [vmem:[%s1 + $0x4b8] sm:$0xff]
    %v211 = vld [vmem:[%s1 + $0x4c0] sm:$0xff]
    %v212 = vld [vmem:[%s1 + $0x4c8] sm:$0xff]
    %v213 = vld [vmem:[%s1 + $0x4d0] sm:$0xff]
    %v214 = vld [vmem:[%s1 + $0x4d8] sm:$0xff]
    %v215 = vld [vmem:[%s1 + $0x4e0] sm:$0xff]
    %v216 = vld [vmem:[%s1 + $0x4e8] sm:$0xff]
    %v217 = vld [vmem:[%s1 + $0x4f0] sm:$0xff]
    %v218 = vld [vmem:[%s1 + $0x4f8] sm:$0xff]
    %v219 = vld [vmem:[%s1 + $0x500] sm:$0xff]
    %v220 = vld [vmem:[%s1 + $0x508] sm:$0xff]
    %v221 = vld [vmem:[%s1 + $0x510] sm:$0xff]
    %v222 = vld [vmem:[%s1 + $0x518] sm:$0xff]
    %v223 = vld [vmem:[%s1 + $0x520] sm:$0xff]
    %v224 = vld [vmem:[%s1 + $0x528] sm:$0xff]
    %v225 = vld [vmem:[%s1 + $0x530] sm:$0xff]
    %v226 = vld [vmem:[%s1 + $0x538] sm:$0xff]
    %v227 = vld [vmem:[%s1 + $0x540] sm:$0xff]
    %v228 = vld [vmem:[%s1 + $0x548] sm:$0xff]
    %v229 = vld [vmem:[%s1 + $0x550] sm:$0xff]
    %v230 = vld [vmem:[%s1 + $0x558] sm:$0xff]
    %v231 = vld [vmem:[%s1 + $0x560] sm:$0xff]
    %v232 = vld [vmem:[%s1 + $0x568] sm:$0xff]
    %v233 = vld [vmem:[%s1 + $0x570] sm:$0xff]
    %v234 = vld [vmem:[%s1 + $0x578] sm:$0xff]
    %v235 = vld [vmem:[%s1 + $0x580] sm:$0xff]
    %v236 = vld [vmem:[%s1 + $0x588] sm:$0xff]
    %v237 = vld [vmem:[%s1 + $0x590] sm:$0xff]
    %v238 = vld [vmem:[%s1 + $0x598] sm:$0xff]
    %v239 = vld [vmem:[%s1 + $0x5a0] sm:$0xff]
    %v240 = vld [vmem:[%s1 + $0x5a8] sm:$0xff]
    %v241 = vld [vmem:[%s1 + $0x5b0] sm:$0xff]
    %v242 = vld [vmem:[%s1 + $0x5b8] sm:$0xff]
    %v243 = vld [vmem:[%s1 + $0x5c0] sm:$0xff]
    %v244 = vld [vmem:[%s1 + $0x5c8] sm:$0xff]
    %v245 = vld [vmem:[%s1 + $0x5d0] sm:$0xff]
    %v246 = vld [vmem:[%s1 + $0x5d8] sm:$0xff]
    %v247 = vld [vmem:[%s1 + $0x5e0] sm:$0xff]
    %v248 = vld [vmem:[%s1 + $0x5e8] sm:$0xff]
    %v249 = vld [vmem:[%s1 + $0x5f0] sm:$0xff]
    %v250 = vld [vmem:[%s1 + $0x5f8] sm:$0xff]
    %v251 = vld [vmem:[%s1 + $0x600] sm:$0xff]
    %v252 = vld [vmem:[%s1 + $0x608] sm:$0xff]
    %v253 = vld [vmem:[%s1 + $0x610] sm:$0xff]
    %v254 = vld [vmem:[%s1 + $0x618] sm:$0xff]
    %v255 = vld [vmem:[%s1 + $0x620] sm:$0xff]
    %v256 = vld [vmem:[%s1 + $0x628] sm:$0xff]
    %v257 = vld [vmem:[%s1 + $0x630] sm:$0xff]
    %v258 = vld [vmem:[%s1 + $0x638] sm:$0xff]
    %v259 = vld [vmem:[%s1 + $0x640] sm:$0xff]
    %v260 = vld [vmem:[%s1 + $0x648] sm:$0xff]
    %v261 = vld [vmem:[%s1 + $0x650] sm:$0xff]
    %v262 = vld [vmem:[%s1 + $0x658] sm:$0xff]
    %v263 = vld [vmem:[%s1 + $0x660] sm:$0xff]
    %v264 = vld [vmem:[%s1 + $0x668] sm:$0xff]
    %v265 = vld [vmem:[%s1 + $0x670] sm:$0xff]
    %v266 = vld [vmem:[%s1 + $0x678] sm:$0xff]
    %v267 = vld [vmem:[%s1 + $0x680] sm:$0xff]
    %v268 = vld [vmem:[%s1 + $0x688] sm:$0xff]
    %v269 = vld [vmem:[%s1 + $0x690] sm:$0xff]
    %v270 = vld [vmem:[%s1 + $0x698] sm:$0xff]
    %v271 = vld [vmem:[%s1 + $0x6a0] sm:$0xff]
    %v272 = vld [vmem:[%s1 + $0x6a8] sm:$0xff]
    %v273 = vld [vmem:[%s1 + $0x6b0] sm:$0xff]
    %v274 = vld [vmem:[%s1 + $0x6b8] sm:$0xff]
    %v275 = vld [vmem:[%s1 + $0x6c0] sm:$0xff]
    %v276 = vld [vmem:[%s1 + $0x6c8] sm:$0xff]
    %v277 = vld [vmem:[%s1 + $0x6d0] sm:$0xff]
    %v278 = vld [vmem:[%s1 + $0x6d8] sm:$0xff]
    %v279 = vld [vmem:[%s1 + $0x6e0] sm:$0xff]
    %v280 = vld [vmem:[%s1 + $0x6e8] sm:$0xff]
    %v281 = vld [vmem:[%s1 + $0x6f0] sm:$0xff]
    %v282 = vld [vmem:[%s1 + $0x6f8] sm:$0xff]
    %v283 = vld [vmem:[%s1 + $0x700] sm:$0xff]
    %v284 = vld [vmem:[%s1 + $0x708] sm:$0xff]
    %v285 = vld [vmem:[%s1 + $0x710] sm:$0xff]
    %v286 = vld [vmem:[%s1 + $0x718] sm:$0xff]
    %v287 = vld [vmem:[%s1 + $0x720] sm:$0xff]
    %v288 = vld [vmem:[%s1 + $0x728] sm:$0xff]
    %v289 = vld [vmem:[%s1 + $0x730] sm:$0xff]
    %v290 = vld [vmem:[%s1 + $0x738] sm:$0xff]
    %v291 = vld [vmem:[%s1 + $0x740] sm:$0xff]
    %v292 = vld [vmem:[%s1 + $0x748] sm:$0xff]
    %v293 = vld [vmem:[%s1 + $0x750] sm:$0xff]
    %v294 = vld [vmem:[%s1 + $0x758] sm:$0xff]
    %v295 = vld [vmem:[%s1 + $0x760] sm:$0xff]
    %v296 = vld [vmem:[%s1 + $0x768] sm:$0xff]
    %v297 = vld [vmem:[%s1 + $0x770] sm:$0xff]
    %v298 = vld [vmem:[%s1 + $0x778] sm:$0xff]
    %v299 = vld [vmem:[%s1 + $0x780] sm:$0xff]
    %v300 = vld [vmem:[%s1 + $0x788] sm:$0xff]
    %v301 = vld [vmem:[%s1 + $0x790] sm:$0xff]
    %v302 = vld [vmem:[%s1 + $0x798] sm:$0xff]
    %v303 = vld [vmem:[%s1 + $0x7a0] sm:$0xff]
    %v304 = vld [vmem:[%s1 + $0x7a8] sm:$0xff]
    %v305 = vld [vmem:[%s1 + $0x7b0] sm:$0xff]
    %v306 = vld [vmem:[%s1 + $0x7b8] sm:$0xff]
    %v307 = vld [vmem:[%s1 + $0x7c0] sm:$0xff]
    %v308 = vld [vmem:[%s1 + $0x7c8] sm:$0xff]
    %v309 = vld [vmem:[%s1 + $0x7d0] sm:$0xff]
    %v310 = vld [vmem:[%s1 + $0x7d8] sm:$0xff]
    %v311 = vld [vmem:[%s1 + $0x7e0] sm:$0xff]
    %v312 = vld [vmem:[%s1 + $0x7e8] sm:$0xff]
    %v313 = vld [vmem:[%s1 + $0x7f0] sm:$0xff]
    %v314 = vld [vmem:[%s1 + $0x7f8] sm:$0xff]
    %v315 = vld [vmem:[%s1 + $0x800] sm:$0xff]
    %v316 = vld [vmem:[%s1 + $0x808] sm:$0xff]
    %v317 = vld [vmem:[%s1 + $0x810] sm:$0xff]
    %v318 = vld [vmem:[%s1 + $0x818] sm:$0xff]
    %v319 = vld [vmem:[%s1 + $0x820] sm:$0xff]
    %v320 = vld [vmem:[%s1 + $0x828] sm:$0xff]
    %v321 = vld [vmem:[%s1 + $0x830] sm:$0xff]
    %v322 = vld [vmem:[%s1 + $0x838] sm:$0xff]
    %v323 = vld [vmem:[%s1 + $0x840] sm:$0xff]
    %v324 = vld [vmem:[%s1 + $0x848] sm:$0xff]
    %v325 = vld [vmem:[%s1 + $0x850] sm:$0xff]
    %v326 = vld [vmem:[%s1 + $0x858] sm:$0xff]
    %v327 = vld [vmem:[%s1 + $0x860] sm:$0xff]
    %v328 = vld [vmem:[%s1 + $0x868] sm:$0xff]
    %v329 = vld [vmem:[%s1 + $0x870] sm:$0xff]
    %v330 = vld [vmem:[%s1 + $0x878] sm:$0xff]
    %v331 = vld [vmem:[%s1 + $0x880] sm:$0xff]
    %v332 = vld [vmem:[%s1 + $0x888] sm:$0xff]
    %v333 = vld [vmem:[%s1 + $0x890] sm:$0xff]
    %v334 = vld [vmem:[%s1 + $0x898] sm:$0xff]
    %v335 = vld [vmem:[%s1 + $0x8a0] sm:$0xff]
    %v336 = vld [vmem:[%s1 + $0x8a8] sm:$0xff]
    %v337 = vld [vmem:[%s1 + $0x8b0] sm:$0xff]
    %v338 = vld [vmem:[%s1 + $0x8b8] sm:$0xff]
    %v339 = vld [vmem:[%s1 + $0x8c0] sm:$0xff]
    %v340 = vld [vmem:[%s1 + $0x8c8] sm:$0xff]
    %v341 = vld [vmem:[%s1 + $0x8d0] sm:$0xff]
    %v342 = vld [vmem:[%s1 + $0x8d8] sm:$0xff]
    %v343 = vld [vmem:[%s1 + $0x8e0] sm:$0xff]
    %v344 = vld [vmem:[%s1 + $0x8e8] sm:$0xff]
    %v345 = vld [vmem:[%s1 + $0x8f0] sm:$0xff]
    %v346 = vld [vmem:[%s1 + $0x8f8] sm:$0xff]
    %v347 = vld [vmem:[%s1 + $0x900] sm:$0xff]
    %v348 = vld [vmem:[%s1 + $0x908] sm:$0xff]
    %v349 = vld [vmem:[%s1 + $0x910] sm:$0xff]
    %v350 = vld [vmem:[%s1 + $0x918] sm:$0xff]
    %v351 = vld [vmem:[%s1 + $0x920] sm:$0xff]
    %v352 = vld [vmem:[%s1 + $0x928] sm:$0xff]
    %v353 = vld [vmem:[%s1 + $0x930] sm:$0xff]
    %v354 = vld [vmem:[%s1 + $0x938] sm:$0xff]
    %v355 = vld [vmem:[%s1 + $0x940] sm:$0xff]
    %v356 = vld [vmem:[%s1 + $0x948] sm:$0xff]
    %v357 = vld [vmem:[%s1 + $0x950] sm:$0xff]
    %v358 = vld [vmem:[%s1 + $0x958] sm:$0xff]
    %v359 = vld [vmem:[%s1 + $0x960] sm:$0xff]
    %v360 = vld [vmem:[%s1 + $0x968] sm:$0xff]
    %v361 = vld [vmem:[%s1 + $0x970] sm:$0xff]
    %v362 = vld [vmem:[%s1 + $0x978] sm:$0xff]
    %v363 = vld [vmem:[%s1 + $0x980] sm:$0xff]
    %v364 = vld [vmem:[%s1 + $0x988] sm:$0xff]
    %v365 = vld [vmem:[%s1 + $0x990] sm:$0xff]
    %v366 = vld [vmem:[%s1 + $0x998] sm:$0xff]
    %v367 = vld [vmem:[%s1 + $0x9a0] sm:$0xff]
    %v368 = vld [vmem:[%s1 + $0x9a8] sm:$0xff]
    %v369 = vld [vmem:[%s1 + $0x9b0] sm:$0xff]
    %v370 = vld [vmem:[%s1 + $0x9b8] sm:$0xff]
    %v371 = vld [vmem:[%s1 + $0x9c0] sm:$0xff]
    %v372 = vld [vmem:[%s1 + $0x9c8] sm:$0xff]
    %v373 = vld [vmem:[%s1 + $0x9d0] sm:$0xff]
    %v374 = vld [vmem:[%s1 + $0x9d8] sm:$0xff]
    %v375 = vld [vmem:[%s1 + $0x9e0] sm:$0xff]
    %v376 = vld [vmem:[%s1 + $0x9e8] sm:$0xff]
    %v377 = vld [vmem:[%s1 + $0x9f0] sm:$0xff]
    %v378 = vld [vmem:[%s1 + $0x9f8] sm:$0xff]
    %v379 = vld [vmem:[%s1 + $0xa00] sm:$0xff]
    %v380 = vld [vmem:[%s1 + $0xa08] sm:$0xff]
    %v381 = vld [vmem:[%s1 + $0xa10] sm:$0xff]
    %v382 = vld [vmem:[%s1 + $0xa18] sm:$0xff]
    %v383 = vld [vmem:[%s1 + $0xa20] sm:$0xff]
    %v384 = vld [vmem:[%s1 + $0xa28] sm:$0xff]
    %v385 = vld [vmem:[%s1 + $0xa30] sm:$0xff]
    %v386 = vld [vmem:[%s1 + $0xa38] sm:$0xff]
    %v387 = vld [vmem:[%s1 + $0xa40] sm:$0xff]
    %v388 = vld [vmem:[%s1 + $0xa48] sm:$0xff]
    %v389 = vld [vmem:[%s1 + $0xa50] sm:$0xff]
    %v390 = vld [vmem:[%s1 + $0xa58] sm:$0xff]
    %v391 = vld [vmem:[%s1 + $0xa60] sm:$0xff]
    %v392 = vld [vmem:[%s1 + $0xa68] sm:$0xff]
    %v393 = vld [vmem:[%s1 + $0xa70] sm:$0xff]
    %v394 = vld [vmem:[%s1 + $0xa78] sm:$0xff]
    %v395 = vld [vmem:[%s1 + $0xa80] sm:$0xff]
    %v396 = vld [vmem:[%s1 + $0xa88] sm:$0xff]
    %v397 = vld [vmem:[%s1 + $0xa90] sm:$0xff]
    %v398 = vld [vmem:[%s1 + $0xa98] sm:$0xff]
    %v399 = vld [vmem:[%s1 + $0xaa0] sm:$0xff]
    %v400 = vld [vmem:[%s1 + $0xaa8] sm:$0xff]
    %v401 = vld [vmem:[%s1 + $0xab0] sm:$0xff]
    %v402 = vld [vmem:[%s1 + $0xab8] sm:$0xff]
    %v403 = vld [vmem:[%s1 + $0xac0] sm:$0xff]
    %v404 = vld [vmem:[%s1 + $0xac8] sm:$0xff]
    %v405 = vld [vmem:[%s1 + $0xad0] sm:$0xff]
    %v406 = vld [vmem:[%s1 + $0xad8] sm:$0xff]
    %v407 = vld [vmem:[%s1 + $0xae0] sm:$0xff]
    %v408 = vld [vmem:[%s1 + $0xae8] sm:$0xff]
    %v409 = vld [vmem:[%s1 + $0xaf0] sm:$0xff]
    %v410 = vld [vmem:[%s1 + $0xaf8] sm:$0xff]
    %v411 = vld [vmem:[%s1 + $0xb00] sm:$0xff]
    %v412 = vld [vmem:[%s1 + $0xb08] sm:$0xff]
    %v413 = vld [vmem:[%s1 + $0xb10] sm:$0xff]
    %v414 = vld [vmem:[%s1 + $0xb18] sm:$0xff]
    %v415 = vld [vmem:[%s1 + $0xb20] sm:$0xff]
    %v416 = vld [vmem:[%s1 + $0xb28] sm:$0xff]
    %v417 = vld [vmem:[%s1 + $0xb30] sm:$0xff]
    %v418 = vld [vmem:[%s1 + $0xb38] sm:$0xff]
    %v419 = vld [vmem:[%s1 + $0xb40] sm:$0xff]
    %v420 = vld [vmem:[%s1 + $0xb48] sm:$0xff]
    %v421 = vld [vmem:[%s1 + $0xb50] sm:$0xff]
    %v422 = vld [vmem:[%s1 + $0xb58] sm:$0xff]
    %v423 = vld [vmem:[%s1 + $0xb60] sm:$0xff]
    %v424 = vld [vmem:[%s1 + $0xb68] sm:$0xff]
    %v425 = vld [vmem:[%s1 + $0xb70] sm:$0xff]
    %v426 = vld [vmem:[%s1 + $0xb78] sm:$0xff]
    %v427 = vld [vmem:[%s1 + $0xb80] sm:$0xff]
    %v428 = vld [vmem:[%s1 + $0xb88] sm:$0xff]
    %v429 = vld [vmem:[%s1 + $0xb90] sm:$0xff]
    %v430 = vld [vmem:[%s1 + $0xb98] sm:$0xff]
    %v431 = vld [vmem:[%s1 + $0xba0] sm:$0xff]
    %v432 = vld [vmem:[%s1 + $0xba8] sm:$0xff]
    %v433 = vld [vmem:[%s1 + $0xbb0] sm:$0xff]
    %v434 = vld [vmem:[%s1 + $0xbb8] sm:$0xff]
    %v435 = vld [vmem:[%s1 + $0xbc0] sm:$0xff]
    %v436 = vld [vmem:[%s1 + $0xbc8] sm:$0xff]
    %v437 = vld [vmem:[%s1 + $0xbd0] sm:$0xff]
    %v438 = vld [vmem:[%s1 + $0xbd8] sm:$0xff]
    %v439 = vld [vmem:[%s1 + $0xbe0] sm:$0xff]
    %v440 = vld [vmem:[%s1 + $0xbe8] sm:$0xff]
    %v441 = vld [vmem:[%s1 + $0xbf0] sm:$0xff]
    %v442 = vld [vmem:[%s1 + $0xbf8] sm:$0xff]
    %v443 = vld [vmem:[%s1 + $0xc00] sm:$0xff]
    %v444 = vld [vmem:[%s1 + $0xc08] sm:$0xff]
    %v445 = vld [vmem:[%s1 + $0xc10] sm:$0xff]
    %v446 = vld [vmem:[%s1 + $0xc18] sm:$0xff]
    %v447 = vld [vmem:[%s1 + $0xc20] sm:$0xff]
    %v448 = vld [vmem:[%s1 + $0xc28] sm:$0xff]
    %v449 = vld [vmem:[%s1 + $0xc30] sm:$0xff]
    %v450 = vld [vmem:[%s1 + $0xc38] sm:$0xff]
    %v451 = vld [vmem:[%s1 + $0xc40] sm:$0xff]
    %v452 = vld [vmem:[%s1 + $0xc48] sm:$0xff]
    %v453 = vld [vmem:[%s1 + $0xc50] sm:$0xff]
    %v454 = vld [vmem:[%s1 + $0xc58] sm:$0xff]
    %v455 = vld [vmem:[%s1 + $0xc60] sm:$0xff]
    %v456 = vld [vmem:[%s1 + $0xc68] sm:$0xff]
    %v457 = vld [vmem:[%s1 + $0xc70] sm:$0xff]
    %v458 = vld [vmem:[%s1 + $0xc78] sm:$0xff]
    %v459 = vld [vmem:[%s1 + $0xc80] sm:$0xff]
    %v460 = vld [vmem:[%s1 + $0xc88] sm:$0xff]
    %v461 = vld [vmem:[%s1 + $0xc90] sm:$0xff]
    %v462 = vld [vmem:[%s1 + $0xc98] sm:$0xff]
    %v463 = vld [vmem:[%s1 + $0xca0] sm:$0xff]
    %v464 = vld [vmem:[%s1 + $0xca8] sm:$0xff]
    %v465 = vld [vmem:[%s1 + $0xcb0] sm:$0xff]
    %v466 = vld [vmem:[%s1 + $0xcb8] sm:$0xff]
    %v467 = vld [vmem:[%s1 + $0xcc0] sm:$0xff]
    %v468 = vld [vmem:[%s1 + $0xcc8] sm:$0xff]
    %v469 = vld [vmem:[%s1 + $0xcd0] sm:$0xff]
    %v470 = vld [vmem:[%s1 + $0xcd8] sm:$0xff]
    %v471 = vld [vmem:[%s1 + $0xce0] sm:$0xff]
    %v472 = vld [vmem:[%s1 + $0xce8] sm:$0xff]
    %v473 = vld [vmem:[%s1 + $0xcf0] sm:$0xff]
    %v474 = vld [vmem:[%s1 + $0xcf8] sm:$0xff]
    %v475 = vld [vmem:[%s1 + $0xd00] sm:$0xff]
    %v476 = vld [vmem:[%s1 + $0xd08] sm:$0xff]
    %v477 = vld [vmem:[%s1 + $0xd10] sm:$0xff]
    %v478 = vld [vmem:[%s1 + $0xd18] sm:$0xff]
    %v479 = vld [vmem:[%s1 + $0xd20] sm:$0xff]
    %v480 = vld [vmem:[%s1 + $0xd28] sm:$0xff]
    %v481 = vld [vmem:[%s1 + $0xd30] sm:$0xff]
    %v482 = vld [vmem:[%s1 + $0xd38] sm:$0xff]
    %v483 = vld [vmem:[%s1 + $0xd40] sm:$0xff]
    %v484 = vld [vmem:[%s1 + $0xd48] sm:$0xff]
    %v485 = vld [vmem:[%s1 + $0xd50] sm:$0xff]
    %v486 = vld [vmem:[%s1 + $0xd58] sm:$0xff]
    %v487 = vld [vmem:[%s1 + $0xd60] sm:$0xff]
    %v488 = vld [vmem:[%s1 + $0xd68] sm:$0xff]
    %v489 = vld [vmem:[%s1 + $0xd70] sm:$0xff]
    %v490 = vld [vmem:[%s1 + $0xd78] sm:$0xff]
    %v491 = vld [vmem:[%s1 + $0xd80] sm:$0xff]
    %v492 = vld [vmem:[%s1 + $0xd88] sm:$0xff]
    %v493 = vld [vmem:[%s1 + $0xd90] sm:$0xff]
    %v494 = vld [vmem:[%s1 + $0xd98] sm:$0xff]
    %v495 = vld [vmem:[%s1 + $0xda0] sm:$0xff]
    %v496 = vld [vmem:[%s1 + $0xda8] sm:$0xff]
    %v497 = vld [vmem:[%s1 + $0xdb0] sm:$0xff]
    %v498 = vld [vmem:[%s1 + $0xdb8] sm:$0xff]
    %v499 = vld [vmem:[%s1 + $0xdc0] sm:$0xff]
    %v500 = vld [vmem:[%s1 + $0xdc8] sm:$0xff]
    %v501 = vld [vmem:[%s1 + $0xdd0] sm:$0xff]
    %v502 = vld [vmem:[%s1 + $0xdd8] sm:$0xff]
    %v503 = vld [vmem:[%s1 + $0xde0] sm:$0xff]
    %v504 = vld [vmem:[%s1 + $0xde8] sm:$0xff]
    %v505 = vld [vmem:[%s1 + $0xdf0] sm:$0xff]
    %v506 = vld [vmem:[%s1 + $0xdf8] sm:$0xff]
    %v507 = vld [vmem:[%s1 + $0xe00] sm:$0xff]
    %v508 = vld [vmem:[%s1 + $0xe08] sm:$0xff]
    %v509 = vld [vmem:[%s1 + $0xe10] sm:$0xff]
    %v510 = vld [vmem:[%s1 + $0xe18] sm:$0xff]
    %v511 = vld [vmem:[%s1 + $0xe20] sm:$0xff]
    %v512 = vld [vmem:[%s1 + $0xe28] sm:$0xff]
    %v513 = vld [vmem:[%s1 + $0xe30] sm:$0xff]
    %v514 = vld [vmem:[%s1 + $0xe38] sm:$0xff]
    %v515 = vld [vmem:[%s1 + $0xe40] sm:$0xff]
    %v516 = vld [vmem:[%s1 + $0xe48] sm:$0xff]
    %v517 = vld [vmem:[%s1 + $0xe50] sm:$0xff]
    %v518 = vld [vmem:[%s1 + $0xe58] sm:$0xff]
    %v519 = vld [vmem:[%s1 + $0xe60] sm:$0xff]
    %v520 = vld [vmem:[%s1 + $0xe68] sm:$0xff]
    %v521 = vld [vmem:[%s1 + $0xe70] sm:$0xff]
    %v522 = vld [vmem:[%s1 + $0xe78] sm:$0xff]
    %v523 = vld [vmem:[%s1 + $0xe80] sm:$0xff]
    %v524 = vld [vmem:[%s1 + $0xe88] sm:$0xff]
    %v525 = vld [vmem:[%s1 + $0xe90] sm:$0xff]
    %v526 = vld [vmem:[%s1 + $0xe98] sm:$0xff]
    %v527 = vld [vmem:[%s1 + $0xea0] sm:$0xff]
    %v528 = vld [vmem:[%s1 + $0xea8] sm:$0xff]
    %v529 = vld [vmem:[%s1 + $0xeb0] sm:$0xff]
    %v530 = vld [vmem:[%s1 + $0xeb8] sm:$0xff]
    %v531 = vld [vmem:[%s1 + $0xec0] sm:$0xff]
    %v532 = vld [vmem:[%s1 + $0xec8] sm:$0xff]
    %v533 = vld [vmem:[%s1 + $0xed0] sm:$0xff]
    %v534 = vld [vmem:[%s1 + $0xed8] sm:$0xff]
    %v535 = vld [vmem:[%s1 + $0xee0] sm:$0xff]
    %v536 = vld [vmem:[%s1 + $0xee8] sm:$0xff]
    %v537 = vld [vmem:[%s1 + $0xef0] sm:$0xff]
    %v538 = vld [vmem:[%s1 + $0xef8] sm:$0xff]
    %v539 = vld [vmem:[%s1 + $0xf00] sm:$0xff]
    %v540 = vld [vmem:[%s1 + $0xf08] sm:$0xff]
    %v541 = vld [vmem:[%s1 + $0xf10] sm:$0xff]
    %v542 = vld [vmem:[%s1 + $0xf18] sm:$0xff]
    %v543 = vld [vmem:[%s1 + $0xf20] sm:$0xff]
    %v544 = vld [vmem:[%s1 + $0xf28] sm:$0xff]
    %v545 = vld [vmem:[%s1 + $0xf30] sm:$0xff]
    %v546 = vld [vmem:[%s1 + $0xf38] sm:$0xff]
    %v547 = vld [vmem:[%s1 + $0xf40] sm:$0xff]
    %v548 = vld [vmem:[%s1 + $0xf48] sm:$0xff]
    %v549 = vld [vmem:[%s1 + $0xf50] sm:$0xff]
    %v550 = vld [vmem:[%s1 + $0xf58] sm:$0xff]
    %v551 = vld [vmem:[%s1 + $0xf60] sm:$0xff]
    %v552 = vld [vmem:[%s1 + $0xf68] sm:$0xff]
    %v553 = vld [vmem:[%s1 + $0xf70] sm:$0xff]
    %v554 = vld [vmem:[%s1 + $0xf78] sm:$0xff]
    %v555 = vld [vmem:[%s1 + $0xf80] sm:$0xff]
    %v556 = vld [vmem:[%s1 + $0xf88] sm:$0xff]
    %v557 = vld [vmem:[%s1 + $0xf90] sm:$0xff]
    %v558 = vld [vmem:[%s1 + $0xf98] sm:$0xff]
    %v559 = vld [vmem:[%s1 + $0xfa0] sm:$0xff]
    %v560 = vld [vmem:[%s1 + $0xfa8] sm:$0xff]
    %v561 = vld [vmem:[%s1 + $0xfb0] sm:$0xff]
    %v562 = vld [vmem:[%s1 + $0xfb8] sm:$0xff]
    %v563 = vld [vmem:[%s1 + $0xfc0] sm:$0xff]
    %v564 = vld [vmem:[%s1 + $0xfc8] sm:$0xff]
    %v565 = vld [vmem:[%s1 + $0xfd0] sm:$0xff]
    %v566 = vld [vmem:[%s1 + $0xfd8] sm:$0xff]
    %v567 = vld [vmem:[%s1 + $0xfe0] sm:$0xff]
    %v568 = vld [vmem:[%s1 + $0xfe8] sm:$0xff]
    %v569 = vld [vmem:[%s1 + $0xff0] sm:$0xff]
    %v570 = vld [vmem:[%s1 + $0xff8] sm:$0xff]
    %v571 = vld [vmem:[%s2] sm:$0xf]
    %v573 = vlaneseq
    %v574 = vshrl.u32 %v573, 7
    %v575 = vsub.s32 0, %v574
    %v576 = vrot.slane %v571, %v575
    %v577 = vlaneseq
    %v578 = vshrl.u32 %v577, 7
    %v579 = vsub.s32 1, %v578
    %v580 = vrot.slane %v571, %v579
    %v581 = vlaneseq
    %v582 = vshrl.u32 %v581, 7
    %v583 = vsub.s32 2, %v582
    %v584 = vrot.slane %v571, %v583
    %v585 = vlaneseq
    %v586 = vshrl.u32 %v585, 7
    %v587 = vsub.s32 3, %v586
    %v588 = vrot.slane %v571, %v587
    %v625 = vunpack.c.l.b16 %v27
    %v626 = vunpack.c.h.b16 %v27
    %v627 = vunpack.c.l.b16 %v28
    %v628 = vunpack.c.h.b16 %v28
    %v629 = vunpack.c.l.b16 %v29
    %v630 = vunpack.c.h.b16 %v29
    %v631 = vunpack.c.l.b16 %v30
    %v632 = vunpack.c.h.b16 %v30
    %v633 = vunpack.c.l.b16 %v31
    %v634 = vunpack.c.h.b16 %v31
    %v635 = vunpack.c.l.b16 %v32
    %v636 = vunpack.c.h.b16 %v32
    %v637 = vunpack.c.l.b16 %v33
    %v638 = vunpack.c.h.b16 %v33
    %v639 = vunpack.c.l.b16 %v34
    %v640 = vunpack.c.h.b16 %v34
    %v641 = vunpack.c.l.b16 %v35
    %v642 = vunpack.c.h.b16 %v35
    %v643 = vunpack.c.l.b16 %v36
    %v644 = vunpack.c.h.b16 %v36
    %v645 = vunpack.c.l.b16 %v37
    %v646 = vunpack.c.h.b16 %v37
    %v647 = vunpack.c.l.b16 %v38
    %v648 = vunpack.c.h.b16 %v38
    %v649 = vunpack.c.l.b16 %v39
    %v650 = vunpack.c.h.b16 %v39
    %v651 = vunpack.c.l.b16 %v40
    %v652 = vunpack.c.h.b16 %v40
    %v653 = vunpack.c.l.b16 %v41
    %v654 = vunpack.c.h.b16 %v41
    %v655 = vunpack.c.l.b16 %v42
    %v656 = vunpack.c.h.b16 %v42
    %v657 = vunpack.c.l.b16 %v43
    %v658 = vunpack.c.h.b16 %v43
    %v659 = vunpack.c.l.b16 %v44
    %v660 = vunpack.c.h.b16 %v44
    %v661 = vunpack.c.l.b16 %v45
    %v662 = vunpack.c.h.b16 %v45
    %v663 = vunpack.c.l.b16 %v46
    %v664 = vunpack.c.h.b16 %v46
    %v665 = vunpack.c.l.b16 %v47
    %v666 = vunpack.c.h.b16 %v47
    %v667 = vunpack.c.l.b16 %v48
    %v668 = vunpack.c.h.b16 %v48
    %v669 = vunpack.c.l.b16 %v49
    %v670 = vunpack.c.h.b16 %v49
    %v671 = vunpack.c.l.b16 %v50
    %v672 = vunpack.c.h.b16 %v50
    %v673 = vunpack.c.l.b16 %v51
    %v674 = vunpack.c.h.b16 %v51
    %v675 = vunpack.c.l.b16 %v52
    %v676 = vunpack.c.h.b16 %v52
    %v677 = vunpack.c.l.b16 %v53
    %v678 = vunpack.c.h.b16 %v53
    %v679 = vunpack.c.l.b16 %v54
    %v680 = vunpack.c.h.b16 %v54
    %v681 = vunpack.c.l.b16 %v55
    %v682 = vunpack.c.h.b16 %v55
    %v683 = vunpack.c.l.b16 %v56
    %v684 = vunpack.c.h.b16 %v56
    %v685 = vunpack.c.l.b16 %v57
    %v686 = vunpack.c.h.b16 %v57
    %v687 = vunpack.c.l.b16 %v58
    %v688 = vunpack.c.h.b16 %v58
    %v689 = vpack.c.b16 %v641, %v625
    %v690 = vpack.c.b16 %v642, %v626
    %v691 = vpack.c.b16 %v643, %v627
    %v692 = vpack.c.b16 %v644, %v628
    %v693 = vpack.c.b16 %v645, %v629
    %v694 = vpack.c.b16 %v646, %v630
    %v695 = vpack.c.b16 %v647, %v631
    %v696 = vpack.c.b16 %v648, %v632
    %v697 = vpack.c.b16 %v649, %v633
    %v698 = vpack.c.b16 %v650, %v634
    %v699 = vpack.c.b16 %v651, %v635
    %v700 = vpack.c.b16 %v652, %v636
    %v701 = vpack.c.b16 %v653, %v637
    %v702 = vpack.c.b16 %v654, %v638
    %v703 = vpack.c.b16 %v655, %v639
    %v704 = vpack.c.b16 %v656, %v640
    %v705 = vpack.c.b16 %v673, %v657
    %v706 = vpack.c.b16 %v674, %v658
    %v707 = vpack.c.b16 %v675, %v659
    %v708 = vpack.c.b16 %v676, %v660
    %v709 = vpack.c.b16 %v677, %v661
    %v710 = vpack.c.b16 %v678, %v662
    %v711 = vpack.c.b16 %v679, %v663
    %v712 = vpack.c.b16 %v680, %v664
    %v713 = vpack.c.b16 %v681, %v665
    %v714 = vpack.c.b16 %v682, %v666
    %v715 = vpack.c.b16 %v683, %v667
    %v716 = vpack.c.b16 %v684, %v668
    %v717 = vpack.c.b16 %v685, %v669
    %v718 = vpack.c.b16 %v686, %v670
    %v719 = vpack.c.b16 %v687, %v671
    %v720 = vpack.c.b16 %v688, %v672
    %v1265 = vunpack.c.l.b16 %v59
    %v1266 = vunpack.c.h.b16 %v59
    %v1267 = vunpack.c.l.b16 %v60
    %v1268 = vunpack.c.h.b16 %v60
    %v1269 = vunpack.c.l.b16 %v61
    %v1270 = vunpack.c.h.b16 %v61
    %v1271 = vunpack.c.l.b16 %v62
    %v1272 = vunpack.c.h.b16 %v62
    %v1273 = vunpack.c.l.b16 %v63
    %v1274 = vunpack.c.h.b16 %v63
    %v1275 = vunpack.c.l.b16 %v64
    %v1276 = vunpack.c.h.b16 %v64
    %v1277 = vunpack.c.l.b16 %v65
    %v1278 = vunpack.c.h.b16 %v65
    %v1279 = vunpack.c.l.b16 %v66
    %v1280 = vunpack.c.h.b16 %v66
    %v1281 = vunpack.c.l.b16 %v67
    %v1282 = vunpack.c.h.b16 %v67
    %v1283 = vunpack.c.l.b16 %v68
    %v1284 = vunpack.c.h.b16 %v68
    %v1285 = vunpack.c.l.b16 %v69
    %v1286 = vunpack.c.h.b16 %v69
    %v1287 = vunpack.c.l.b16 %v70
    %v1288 = vunpack.c.h.b16 %v70
    %v1289 = vunpack.c.l.b16 %v71
    %v1290 = vunpack.c.h.b16 %v71
    %v1291 = vunpack.c.l.b16 %v72
    %v1292 = vunpack.c.h.b16 %v72
    %v1293 = vunpack.c.l.b16 %v73
    %v1294 = vunpack.c.h.b16 %v73
    %v1295 = vunpack.c.l.b16 %v74
    %v1296 = vunpack.c.h.b16 %v74
    %v1297 = vunpack.c.l.b16 %v75
    %v1298 = vunpack.c.h.b16 %v75
    %v1299 = vunpack.c.l.b16 %v76
    %v1300 = vunpack.c.h.b16 %v76
    %v1301 = vunpack.c.l.b16 %v77
    %v1302 = vunpack.c.h.b16 %v77
    %v1303 = vunpack.c.l.b16 %v78
    %v1304 = vunpack.c.h.b16 %v78
    %v1305 = vunpack.c.l.b16 %v79
    %v1306 = vunpack.c.h.b16 %v79
    %v1307 = vunpack.c.l.b16 %v80
    %v1308 = vunpack.c.h.b16 %v80
    %v1309 = vunpack.c.l.b16 %v81
    %v1310 = vunpack.c.h.b16 %v81
    %v1311 = vunpack.c.l.b16 %v82
    %v1312 = vunpack.c.h.b16 %v82
    %v1313 = vunpack.c.l.b16 %v83
    %v1314 = vunpack.c.h.b16 %v83
    %v1315 = vunpack.c.l.b16 %v84
    %v1316 = vunpack.c.h.b16 %v84
    %v1317 = vunpack.c.l.b16 %v85
    %v1318 = vunpack.c.h.b16 %v85
    %v1319 = vunpack.c.l.b16 %v86
    %v1320 = vunpack.c.h.b16 %v86
    %v1321 = vunpack.c.l.b16 %v87
    %v1322 = vunpack.c.h.b16 %v87
    %v1323 = vunpack.c.l.b16 %v88
    %v1324 = vunpack.c.h.b16 %v88
    %v1325 = vunpack.c.l.b16 %v89
    %v1326 = vunpack.c.h.b16 %v89
    %v1327 = vunpack.c.l.b16 %v90
    %v1328 = vunpack.c.h.b16 %v90
    %v1329 = vunpack.c.l.b16 %v91
    %v1330 = vunpack.c.h.b16 %v91
    %v1331 = vunpack.c.l.b16 %v92
    %v1332 = vunpack.c.h.b16 %v92
    %v1333 = vunpack.c.l.b16 %v93
    %v1334 = vunpack.c.h.b16 %v93
    %v1335 = vunpack.c.l.b16 %v94
    %v1336 = vunpack.c.h.b16 %v94
    %v1337 = vunpack.c.l.b16 %v95
    %v1338 = vunpack.c.h.b16 %v95
    %v1339 = vunpack.c.l.b16 %v96
    %v1340 = vunpack.c.h.b16 %v96
    %v1341 = vunpack.c.l.b16 %v97
    %v1342 = vunpack.c.h.b16 %v97
    %v1343 = vunpack.c.l.b16 %v98
    %v1344 = vunpack.c.h.b16 %v98
    %v1345 = vunpack.c.l.b16 %v99
    %v1346 = vunpack.c.h.b16 %v99
    %v1347 = vunpack.c.l.b16 %v100
    %v1348 = vunpack.c.h.b16 %v100
    %v1349 = vunpack.c.l.b16 %v101
    %v1350 = vunpack.c.h.b16 %v101
    %v1351 = vunpack.c.l.b16 %v102
    %v1352 = vunpack.c.h.b16 %v102
    %v1353 = vunpack.c.l.b16 %v103
    %v1354 = vunpack.c.h.b16 %v103
    %v1355 = vunpack.c.l.b16 %v104
    %v1356 = vunpack.c.h.b16 %v104
    %v1357 = vunpack.c.l.b16 %v105
    %v1358 = vunpack.c.h.b16 %v105
    %v1359 = vunpack.c.l.b16 %v106
    %v1360 = vunpack.c.h.b16 %v106
    %v1361 = vunpack.c.l.b16 %v107
    %v1362 = vunpack.c.h.b16 %v107
    %v1363 = vunpack.c.l.b16 %v108
    %v1364 = vunpack.c.h.b16 %v108
    %v1365 = vunpack.c.l.b16 %v109
    %v1366 = vunpack.c.h.b16 %v109
    %v1367 = vunpack.c.l.b16 %v110
    %v1368 = vunpack.c.h.b16 %v110
    %v1369 = vunpack.c.l.b16 %v111
    %v1370 = vunpack.c.h.b16 %v111
    %v1371 = vunpack.c.l.b16 %v112
    %v1372 = vunpack.c.h.b16 %v112
    %v1373 = vunpack.c.l.b16 %v113
    %v1374 = vunpack.c.h.b16 %v113
    %v1375 = vunpack.c.l.b16 %v114
    %v1376 = vunpack.c.h.b16 %v114
    %v1377 = vunpack.c.l.b16 %v115
    %v1378 = vunpack.c.h.b16 %v115
    %v1379 = vunpack.c.l.b16 %v116
    %v1380 = vunpack.c.h.b16 %v116
    %v1381 = vunpack.c.l.b16 %v117
    %v1382 = vunpack.c.h.b16 %v117
    %v1383 = vunpack.c.l.b16 %v118
    %v1384 = vunpack.c.h.b16 %v118
    %v1385 = vunpack.c.l.b16 %v119
    %v1386 = vunpack.c.h.b16 %v119
    %v1387 = vunpack.c.l.b16 %v120
    %v1388 = vunpack.c.h.b16 %v120
    %v1389 = vunpack.c.l.b16 %v121
    %v1390 = vunpack.c.h.b16 %v121
    %v1391 = vunpack.c.l.b16 %v122
    %v1392 = vunpack.c.h.b16 %v122
    %v1393 = vunpack.c.l.b16 %v123
    %v1394 = vunpack.c.h.b16 %v123
    %v1395 = vunpack.c.l.b16 %v124
    %v1396 = vunpack.c.h.b16 %v124
    %v1397 = vunpack.c.l.b16 %v125
    %v1398 = vunpack.c.h.b16 %v125
    %v1399 = vunpack.c.l.b16 %v126
    %v1400 = vunpack.c.h.b16 %v126
    %v1401 = vunpack.c.l.b16 %v127
    %v1402 = vunpack.c.h.b16 %v127
    %v1403 = vunpack.c.l.b16 %v128
    %v1404 = vunpack.c.h.b16 %v128
    %v1405 = vunpack.c.l.b16 %v129
    %v1406 = vunpack.c.h.b16 %v129
    %v1407 = vunpack.c.l.b16 %v130
    %v1408 = vunpack.c.h.b16 %v130
    %v1409 = vunpack.c.l.b16 %v131
    %v1410 = vunpack.c.h.b16 %v131
    %v1411 = vunpack.c.l.b16 %v132
    %v1412 = vunpack.c.h.b16 %v132
    %v1413 = vunpack.c.l.b16 %v133
    %v1414 = vunpack.c.h.b16 %v133
    %v1415 = vunpack.c.l.b16 %v134
    %v1416 = vunpack.c.h.b16 %v134
    %v1417 = vunpack.c.l.b16 %v135
    %v1418 = vunpack.c.h.b16 %v135
    %v1419 = vunpack.c.l.b16 %v136
    %v1420 = vunpack.c.h.b16 %v136
    %v1421 = vunpack.c.l.b16 %v137
    %v1422 = vunpack.c.h.b16 %v137
    %v1423 = vunpack.c.l.b16 %v138
    %v1424 = vunpack.c.h.b16 %v138
    %v1425 = vunpack.c.l.b16 %v139
    %v1426 = vunpack.c.h.b16 %v139
    %v1427 = vunpack.c.l.b16 %v140
    %v1428 = vunpack.c.h.b16 %v140
    %v1429 = vunpack.c.l.b16 %v141
    %v1430 = vunpack.c.h.b16 %v141
    %v1431 = vunpack.c.l.b16 %v142
    %v1432 = vunpack.c.h.b16 %v142
    %v1433 = vunpack.c.l.b16 %v143
    %v1434 = vunpack.c.h.b16 %v143
    %v1435 = vunpack.c.l.b16 %v144
    %v1436 = vunpack.c.h.b16 %v144
    %v1437 = vunpack.c.l.b16 %v145
    %v1438 = vunpack.c.h.b16 %v145
    %v1439 = vunpack.c.l.b16 %v146
    %v1440 = vunpack.c.h.b16 %v146
    %v1441 = vunpack.c.l.b16 %v147
    %v1442 = vunpack.c.h.b16 %v147
    %v1443 = vunpack.c.l.b16 %v148
    %v1444 = vunpack.c.h.b16 %v148
    %v1445 = vunpack.c.l.b16 %v149
    %v1446 = vunpack.c.h.b16 %v149
    %v1447 = vunpack.c.l.b16 %v150
    %v1448 = vunpack.c.h.b16 %v150
    %v1449 = vunpack.c.l.b16 %v151
    %v1450 = vunpack.c.h.b16 %v151
    %v1451 = vunpack.c.l.b16 %v152
    %v1452 = vunpack.c.h.b16 %v152
    %v1453 = vunpack.c.l.b16 %v153
    %v1454 = vunpack.c.h.b16 %v153
    %v1455 = vunpack.c.l.b16 %v154
    %v1456 = vunpack.c.h.b16 %v154
    %v1457 = vunpack.c.l.b16 %v155
    %v1458 = vunpack.c.h.b16 %v155
    %v1459 = vunpack.c.l.b16 %v156
    %v1460 = vunpack.c.h.b16 %v156
    %v1461 = vunpack.c.l.b16 %v157
    %v1462 = vunpack.c.h.b16 %v157
    %v1463 = vunpack.c.l.b16 %v158
    %v1464 = vunpack.c.h.b16 %v158
    %v1465 = vunpack.c.l.b16 %v159
    %v1466 = vunpack.c.h.b16 %v159
    %v1467 = vunpack.c.l.b16 %v160
    %v1468 = vunpack.c.h.b16 %v160
    %v1469 = vunpack.c.l.b16 %v161
    %v1470 = vunpack.c.h.b16 %v161
    %v1471 = vunpack.c.l.b16 %v162
    %v1472 = vunpack.c.h.b16 %v162
    %v1473 = vunpack.c.l.b16 %v163
    %v1474 = vunpack.c.h.b16 %v163
    %v1475 = vunpack.c.l.b16 %v164
    %v1476 = vunpack.c.h.b16 %v164
    %v1477 = vunpack.c.l.b16 %v165
    %v1478 = vunpack.c.h.b16 %v165
    %v1479 = vunpack.c.l.b16 %v166
    %v1480 = vunpack.c.h.b16 %v166
    %v1481 = vunpack.c.l.b16 %v167
    %v1482 = vunpack.c.h.b16 %v167
    %v1483 = vunpack.c.l.b16 %v168
    %v1484 = vunpack.c.h.b16 %v168
    %v1485 = vunpack.c.l.b16 %v169
    %v1486 = vunpack.c.h.b16 %v169
    %v1487 = vunpack.c.l.b16 %v170
    %v1488 = vunpack.c.h.b16 %v170
    %v1489 = vunpack.c.l.b16 %v171
    %v1490 = vunpack.c.h.b16 %v171
    %v1491 = vunpack.c.l.b16 %v172
    %v1492 = vunpack.c.h.b16 %v172
    %v1493 = vunpack.c.l.b16 %v173
    %v1494 = vunpack.c.h.b16 %v173
    %v1495 = vunpack.c.l.b16 %v174
    %v1496 = vunpack.c.h.b16 %v174
    %v1497 = vunpack.c.l.b16 %v175
    %v1498 = vunpack.c.h.b16 %v175
    %v1499 = vunpack.c.l.b16 %v176
    %v1500 = vunpack.c.h.b16 %v176
    %v1501 = vunpack.c.l.b16 %v177
    %v1502 = vunpack.c.h.b16 %v177
    %v1503 = vunpack.c.l.b16 %v178
    %v1504 = vunpack.c.h.b16 %v178
    %v1505 = vunpack.c.l.b16 %v179
    %v1506 = vunpack.c.h.b16 %v179
    %v1507 = vunpack.c.l.b16 %v180
    %v1508 = vunpack.c.h.b16 %v180
    %v1509 = vunpack.c.l.b16 %v181
    %v1510 = vunpack.c.h.b16 %v181
    %v1511 = vunpack.c.l.b16 %v182
    %v1512 = vunpack.c.h.b16 %v182
    %v1513 = vunpack.c.l.b16 %v183
    %v1514 = vunpack.c.h.b16 %v183
    %v1515 = vunpack.c.l.b16 %v184
    %v1516 = vunpack.c.h.b16 %v184
    %v1517 = vunpack.c.l.b16 %v185
    %v1518 = vunpack.c.h.b16 %v185
    %v1519 = vunpack.c.l.b16 %v186
    %v1520 = vunpack.c.h.b16 %v186
    %v1521 = vunpack.c.l.b16 %v187
    %v1522 = vunpack.c.h.b16 %v187
    %v1523 = vunpack.c.l.b16 %v188
    %v1524 = vunpack.c.h.b16 %v188
    %v1525 = vunpack.c.l.b16 %v189
    %v1526 = vunpack.c.h.b16 %v189
    %v1527 = vunpack.c.l.b16 %v190
    %v1528 = vunpack.c.h.b16 %v190
    %v1529 = vunpack.c.l.b16 %v191
    %v1530 = vunpack.c.h.b16 %v191
    %v1531 = vunpack.c.l.b16 %v192
    %v1532 = vunpack.c.h.b16 %v192
    %v1533 = vunpack.c.l.b16 %v193
    %v1534 = vunpack.c.h.b16 %v193
    %v1535 = vunpack.c.l.b16 %v194
    %v1536 = vunpack.c.h.b16 %v194
    %v1537 = vunpack.c.l.b16 %v195
    %v1538 = vunpack.c.h.b16 %v195
    %v1539 = vunpack.c.l.b16 %v196
    %v1540 = vunpack.c.h.b16 %v196
    %v1541 = vunpack.c.l.b16 %v197
    %v1542 = vunpack.c.h.b16 %v197
    %v1543 = vunpack.c.l.b16 %v198
    %v1544 = vunpack.c.h.b16 %v198
    %v1545 = vunpack.c.l.b16 %v199
    %v1546 = vunpack.c.h.b16 %v199
    %v1547 = vunpack.c.l.b16 %v200
    %v1548 = vunpack.c.h.b16 %v200
    %v1549 = vunpack.c.l.b16 %v201
    %v1550 = vunpack.c.h.b16 %v201
    %v1551 = vunpack.c.l.b16 %v202
    %v1552 = vunpack.c.h.b16 %v202
    %v1553 = vunpack.c.l.b16 %v203
    %v1554 = vunpack.c.h.b16 %v203
    %v1555 = vunpack.c.l.b16 %v204
    %v1556 = vunpack.c.h.b16 %v204
    %v1557 = vunpack.c.l.b16 %v205
    %v1558 = vunpack.c.h.b16 %v205
    %v1559 = vunpack.c.l.b16 %v206
    %v1560 = vunpack.c.h.b16 %v206
    %v1561 = vunpack.c.l.b16 %v207
    %v1562 = vunpack.c.h.b16 %v207
    %v1563 = vunpack.c.l.b16 %v208
    %v1564 = vunpack.c.h.b16 %v208
    %v1565 = vunpack.c.l.b16 %v209
    %v1566 = vunpack.c.h.b16 %v209
    %v1567 = vunpack.c.l.b16 %v210
    %v1568 = vunpack.c.h.b16 %v210
    %v1569 = vunpack.c.l.b16 %v211
    %v1570 = vunpack.c.h.b16 %v211
    %v1571 = vunpack.c.l.b16 %v212
    %v1572 = vunpack.c.h.b16 %v212
    %v1573 = vunpack.c.l.b16 %v213
    %v1574 = vunpack.c.h.b16 %v213
    %v1575 = vunpack.c.l.b16 %v214
    %v1576 = vunpack.c.h.b16 %v214
    %v1577 = vunpack.c.l.b16 %v215
    %v1578 = vunpack.c.h.b16 %v215
    %v1579 = vunpack.c.l.b16 %v216
    %v1580 = vunpack.c.h.b16 %v216
    %v1581 = vunpack.c.l.b16 %v217
    %v1582 = vunpack.c.h.b16 %v217
    %v1583 = vunpack.c.l.b16 %v218
    %v1584 = vunpack.c.h.b16 %v218
    %v1585 = vunpack.c.l.b16 %v219
    %v1586 = vunpack.c.h.b16 %v219
    %v1587 = vunpack.c.l.b16 %v220
    %v1588 = vunpack.c.h.b16 %v220
    %v1589 = vunpack.c.l.b16 %v221
    %v1590 = vunpack.c.h.b16 %v221
    %v1591 = vunpack.c.l.b16 %v222
    %v1592 = vunpack.c.h.b16 %v222
    %v1593 = vunpack.c.l.b16 %v223
    %v1594 = vunpack.c.h.b16 %v223
    %v1595 = vunpack.c.l.b16 %v224
    %v1596 = vunpack.c.h.b16 %v224
    %v1597 = vunpack.c.l.b16 %v225
    %v1598 = vunpack.c.h.b16 %v225
    %v1599 = vunpack.c.l.b16 %v226
    %v1600 = vunpack.c.h.b16 %v226
    %v1601 = vunpack.c.l.b16 %v227
    %v1602 = vunpack.c.h.b16 %v227
    %v1603 = vunpack.c.l.b16 %v228
    %v1604 = vunpack.c.h.b16 %v228
    %v1605 = vunpack.c.l.b16 %v229
    %v1606 = vunpack.c.h.b16 %v229
    %v1607 = vunpack.c.l.b16 %v230
    %v1608 = vunpack.c.h.b16 %v230
    %v1609 = vunpack.c.l.b16 %v231
    %v1610 = vunpack.c.h.b16 %v231
    %v1611 = vunpack.c.l.b16 %v232
    %v1612 = vunpack.c.h.b16 %v232
    %v1613 = vunpack.c.l.b16 %v233
    %v1614 = vunpack.c.h.b16 %v233
    %v1615 = vunpack.c.l.b16 %v234
    %v1616 = vunpack.c.h.b16 %v234
    %v1617 = vunpack.c.l.b16 %v235
    %v1618 = vunpack.c.h.b16 %v235
    %v1619 = vunpack.c.l.b16 %v236
    %v1620 = vunpack.c.h.b16 %v236
    %v1621 = vunpack.c.l.b16 %v237
    %v1622 = vunpack.c.h.b16 %v237
    %v1623 = vunpack.c.l.b16 %v238
    %v1624 = vunpack.c.h.b16 %v238
    %v1625 = vunpack.c.l.b16 %v239
    %v1626 = vunpack.c.h.b16 %v239
    %v1627 = vunpack.c.l.b16 %v240
    %v1628 = vunpack.c.h.b16 %v240
    %v1629 = vunpack.c.l.b16 %v241
    %v1630 = vunpack.c.h.b16 %v241
    %v1631 = vunpack.c.l.b16 %v242
    %v1632 = vunpack.c.h.b16 %v242
    %v1633 = vunpack.c.l.b16 %v243
    %v1634 = vunpack.c.h.b16 %v243
    %v1635 = vunpack.c.l.b16 %v244
    %v1636 = vunpack.c.h.b16 %v244
    %v1637 = vunpack.c.l.b16 %v245
    %v1638 = vunpack.c.h.b16 %v245
    %v1639 = vunpack.c.l.b16 %v246
    %v1640 = vunpack.c.h.b16 %v246
    %v1641 = vunpack.c.l.b16 %v247
    %v1642 = vunpack.c.h.b16 %v247
    %v1643 = vunpack.c.l.b16 %v248
    %v1644 = vunpack.c.h.b16 %v248
    %v1645 = vunpack.c.l.b16 %v249
    %v1646 = vunpack.c.h.b16 %v249
    %v1647 = vunpack.c.l.b16 %v250
    %v1648 = vunpack.c.h.b16 %v250
    %v1649 = vunpack.c.l.b16 %v251
    %v1650 = vunpack.c.h.b16 %v251
    %v1651 = vunpack.c.l.b16 %v252
    %v1652 = vunpack.c.h.b16 %v252
    %v1653 = vunpack.c.l.b16 %v253
    %v1654 = vunpack.c.h.b16 %v253
    %v1655 = vunpack.c.l.b16 %v254
    %v1656 = vunpack.c.h.b16 %v254
    %v1657 = vunpack.c.l.b16 %v255
    %v1658 = vunpack.c.h.b16 %v255
    %v1659 = vunpack.c.l.b16 %v256
    %v1660 = vunpack.c.h.b16 %v256
    %v1661 = vunpack.c.l.b16 %v257
    %v1662 = vunpack.c.h.b16 %v257
    %v1663 = vunpack.c.l.b16 %v258
    %v1664 = vunpack.c.h.b16 %v258
    %v1665 = vunpack.c.l.b16 %v259
    %v1666 = vunpack.c.h.b16 %v259
    %v1667 = vunpack.c.l.b16 %v260
    %v1668 = vunpack.c.h.b16 %v260
    %v1669 = vunpack.c.l.b16 %v261
    %v1670 = vunpack.c.h.b16 %v261
    %v1671 = vunpack.c.l.b16 %v262
    %v1672 = vunpack.c.h.b16 %v262
    %v1673 = vunpack.c.l.b16 %v263
    %v1674 = vunpack.c.h.b16 %v263
    %v1675 = vunpack.c.l.b16 %v264
    %v1676 = vunpack.c.h.b16 %v264
    %v1677 = vunpack.c.l.b16 %v265
    %v1678 = vunpack.c.h.b16 %v265
    %v1679 = vunpack.c.l.b16 %v266
    %v1680 = vunpack.c.h.b16 %v266
    %v1681 = vunpack.c.l.b16 %v267
    %v1682 = vunpack.c.h.b16 %v267
    %v1683 = vunpack.c.l.b16 %v268
    %v1684 = vunpack.c.h.b16 %v268
    %v1685 = vunpack.c.l.b16 %v269
    %v1686 = vunpack.c.h.b16 %v269
    %v1687 = vunpack.c.l.b16 %v270
    %v1688 = vunpack.c.h.b16 %v270
    %v1689 = vunpack.c.l.b16 %v271
    %v1690 = vunpack.c.h.b16 %v271
    %v1691 = vunpack.c.l.b16 %v272
    %v1692 = vunpack.c.h.b16 %v272
    %v1693 = vunpack.c.l.b16 %v273
    %v1694 = vunpack.c.h.b16 %v273
    %v1695 = vunpack.c.l.b16 %v274
    %v1696 = vunpack.c.h.b16 %v274
    %v1697 = vunpack.c.l.b16 %v275
    %v1698 = vunpack.c.h.b16 %v275
    %v1699 = vunpack.c.l.b16 %v276
    %v1700 = vunpack.c.h.b16 %v276
    %v1701 = vunpack.c.l.b16 %v277
    %v1702 = vunpack.c.h.b16 %v277
    %v1703 = vunpack.c.l.b16 %v278
    %v1704 = vunpack.c.h.b16 %v278
    %v1705 = vunpack.c.l.b16 %v279
    %v1706 = vunpack.c.h.b16 %v279
    %v1707 = vunpack.c.l.b16 %v280
    %v1708 = vunpack.c.h.b16 %v280
    %v1709 = vunpack.c.l.b16 %v281
    %v1710 = vunpack.c.h.b16 %v281
    %v1711 = vunpack.c.l.b16 %v282
    %v1712 = vunpack.c.h.b16 %v282
    %v1713 = vunpack.c.l.b16 %v283
    %v1714 = vunpack.c.h.b16 %v283
    %v1715 = vunpack.c.l.b16 %v284
    %v1716 = vunpack.c.h.b16 %v284
    %v1717 = vunpack.c.l.b16 %v285
    %v1718 = vunpack.c.h.b16 %v285
    %v1719 = vunpack.c.l.b16 %v286
    %v1720 = vunpack.c.h.b16 %v286
    %v1721 = vunpack.c.l.b16 %v287
    %v1722 = vunpack.c.h.b16 %v287
    %v1723 = vunpack.c.l.b16 %v288
    %v1724 = vunpack.c.h.b16 %v288
    %v1725 = vunpack.c.l.b16 %v289
    %v1726 = vunpack.c.h.b16 %v289
    %v1727 = vunpack.c.l.b16 %v290
    %v1728 = vunpack.c.h.b16 %v290
    %v1729 = vunpack.c.l.b16 %v291
    %v1730 = vunpack.c.h.b16 %v291
    %v1731 = vunpack.c.l.b16 %v292
    %v1732 = vunpack.c.h.b16 %v292
    %v1733 = vunpack.c.l.b16 %v293
    %v1734 = vunpack.c.h.b16 %v293
    %v1735 = vunpack.c.l.b16 %v294
    %v1736 = vunpack.c.h.b16 %v294
    %v1737 = vunpack.c.l.b16 %v295
    %v1738 = vunpack.c.h.b16 %v295
    %v1739 = vunpack.c.l.b16 %v296
    %v1740 = vunpack.c.h.b16 %v296
    %v1741 = vunpack.c.l.b16 %v297
    %v1742 = vunpack.c.h.b16 %v297
    %v1743 = vunpack.c.l.b16 %v298
    %v1744 = vunpack.c.h.b16 %v298
    %v1745 = vunpack.c.l.b16 %v299
    %v1746 = vunpack.c.h.b16 %v299
    %v1747 = vunpack.c.l.b16 %v300
    %v1748 = vunpack.c.h.b16 %v300
    %v1749 = vunpack.c.l.b16 %v301
    %v1750 = vunpack.c.h.b16 %v301
    %v1751 = vunpack.c.l.b16 %v302
    %v1752 = vunpack.c.h.b16 %v302
    %v1753 = vunpack.c.l.b16 %v303
    %v1754 = vunpack.c.h.b16 %v303
    %v1755 = vunpack.c.l.b16 %v304
    %v1756 = vunpack.c.h.b16 %v304
    %v1757 = vunpack.c.l.b16 %v305
    %v1758 = vunpack.c.h.b16 %v305
    %v1759 = vunpack.c.l.b16 %v306
    %v1760 = vunpack.c.h.b16 %v306
    %v1761 = vunpack.c.l.b16 %v307
    %v1762 = vunpack.c.h.b16 %v307
    %v1763 = vunpack.c.l.b16 %v308
    %v1764 = vunpack.c.h.b16 %v308
    %v1765 = vunpack.c.l.b16 %v309
    %v1766 = vunpack.c.h.b16 %v309
    %v1767 = vunpack.c.l.b16 %v310
    %v1768 = vunpack.c.h.b16 %v310
    %v1769 = vunpack.c.l.b16 %v311
    %v1770 = vunpack.c.h.b16 %v311
    %v1771 = vunpack.c.l.b16 %v312
    %v1772 = vunpack.c.h.b16 %v312
    %v1773 = vunpack.c.l.b16 %v313
    %v1774 = vunpack.c.h.b16 %v313
    %v1775 = vunpack.c.l.b16 %v314
    %v1776 = vunpack.c.h.b16 %v314
    %v1777 = vunpack.c.l.b16 %v315
    %v1778 = vunpack.c.h.b16 %v315
    %v1779 = vunpack.c.l.b16 %v316
    %v1780 = vunpack.c.h.b16 %v316
    %v1781 = vunpack.c.l.b16 %v317
    %v1782 = vunpack.c.h.b16 %v317
    %v1783 = vunpack.c.l.b16 %v318
    %v1784 = vunpack.c.h.b16 %v318
    %v1785 = vunpack.c.l.b16 %v319
    %v1786 = vunpack.c.h.b16 %v319
    %v1787 = vunpack.c.l.b16 %v320
    %v1788 = vunpack.c.h.b16 %v320
    %v1789 = vunpack.c.l.b16 %v321
    %v1790 = vunpack.c.h.b16 %v321
    %v1791 = vunpack.c.l.b16 %v322
    %v1792 = vunpack.c.h.b16 %v322
    %v1793 = vunpack.c.l.b16 %v323
    %v1794 = vunpack.c.h.b16 %v323
    %v1795 = vunpack.c.l.b16 %v324
    %v1796 = vunpack.c.h.b16 %v324
    %v1797 = vunpack.c.l.b16 %v325
    %v1798 = vunpack.c.h.b16 %v325
    %v1799 = vunpack.c.l.b16 %v326
    %v1800 = vunpack.c.h.b16 %v326
    %v1801 = vunpack.c.l.b16 %v327
    %v1802 = vunpack.c.h.b16 %v327
    %v1803 = vunpack.c.l.b16 %v328
    %v1804 = vunpack.c.h.b16 %v328
    %v1805 = vunpack.c.l.b16 %v329
    %v1806 = vunpack.c.h.b16 %v329
    %v1807 = vunpack.c.l.b16 %v330
    %v1808 = vunpack.c.h.b16 %v330
    %v1809 = vunpack.c.l.b16 %v331
    %v1810 = vunpack.c.h.b16 %v331
    %v1811 = vunpack.c.l.b16 %v332
    %v1812 = vunpack.c.h.b16 %v332
    %v1813 = vunpack.c.l.b16 %v333
    %v1814 = vunpack.c.h.b16 %v333
    %v1815 = vunpack.c.l.b16 %v334
    %v1816 = vunpack.c.h.b16 %v334
    %v1817 = vunpack.c.l.b16 %v335
    %v1818 = vunpack.c.h.b16 %v335
    %v1819 = vunpack.c.l.b16 %v336
    %v1820 = vunpack.c.h.b16 %v336
    %v1821 = vunpack.c.l.b16 %v337
    %v1822 = vunpack.c.h.b16 %v337
    %v1823 = vunpack.c.l.b16 %v338
    %v1824 = vunpack.c.h.b16 %v338
    %v1825 = vunpack.c.l.b16 %v339
    %v1826 = vunpack.c.h.b16 %v339
    %v1827 = vunpack.c.l.b16 %v340
    %v1828 = vunpack.c.h.b16 %v340
    %v1829 = vunpack.c.l.b16 %v341
    %v1830 = vunpack.c.h.b16 %v341
    %v1831 = vunpack.c.l.b16 %v342
    %v1832 = vunpack.c.h.b16 %v342
    %v1833 = vunpack.c.l.b16 %v343
    %v1834 = vunpack.c.h.b16 %v343
    %v1835 = vunpack.c.l.b16 %v344
    %v1836 = vunpack.c.h.b16 %v344
    %v1837 = vunpack.c.l.b16 %v345
    %v1838 = vunpack.c.h.b16 %v345
    %v1839 = vunpack.c.l.b16 %v346
    %v1840 = vunpack.c.h.b16 %v346
    %v1841 = vunpack.c.l.b16 %v347
    %v1842 = vunpack.c.h.b16 %v347
    %v1843 = vunpack.c.l.b16 %v348
    %v1844 = vunpack.c.h.b16 %v348
    %v1845 = vunpack.c.l.b16 %v349
    %v1846 = vunpack.c.h.b16 %v349
    %v1847 = vunpack.c.l.b16 %v350
    %v1848 = vunpack.c.h.b16 %v350
    %v1849 = vunpack.c.l.b16 %v351
    %v1850 = vunpack.c.h.b16 %v351
    %v1851 = vunpack.c.l.b16 %v352
    %v1852 = vunpack.c.h.b16 %v352
    %v1853 = vunpack.c.l.b16 %v353
    %v1854 = vunpack.c.h.b16 %v353
    %v1855 = vunpack.c.l.b16 %v354
    %v1856 = vunpack.c.h.b16 %v354
    %v1857 = vunpack.c.l.b16 %v355
    %v1858 = vunpack.c.h.b16 %v355
    %v1859 = vunpack.c.l.b16 %v356
    %v1860 = vunpack.c.h.b16 %v356
    %v1861 = vunpack.c.l.b16 %v357
    %v1862 = vunpack.c.h.b16 %v357
    %v1863 = vunpack.c.l.b16 %v358
    %v1864 = vunpack.c.h.b16 %v358
    %v1865 = vunpack.c.l.b16 %v359
    %v1866 = vunpack.c.h.b16 %v359
    %v1867 = vunpack.c.l.b16 %v360
    %v1868 = vunpack.c.h.b16 %v360
    %v1869 = vunpack.c.l.b16 %v361
    %v1870 = vunpack.c.h.b16 %v361
    %v1871 = vunpack.c.l.b16 %v362
    %v1872 = vunpack.c.h.b16 %v362
    %v1873 = vunpack.c.l.b16 %v363
    %v1874 = vunpack.c.h.b16 %v363
    %v1875 = vunpack.c.l.b16 %v364
    %v1876 = vunpack.c.h.b16 %v364
    %v1877 = vunpack.c.l.b16 %v365
    %v1878 = vunpack.c.h.b16 %v365
    %v1879 = vunpack.c.l.b16 %v366
    %v1880 = vunpack.c.h.b16 %v366
    %v1881 = vunpack.c.l.b16 %v367
    %v1882 = vunpack.c.h.b16 %v367
    %v1883 = vunpack.c.l.b16 %v368
    %v1884 = vunpack.c.h.b16 %v368
    %v1885 = vunpack.c.l.b16 %v369
    %v1886 = vunpack.c.h.b16 %v369
    %v1887 = vunpack.c.l.b16 %v370
    %v1888 = vunpack.c.h.b16 %v370
    %v1889 = vunpack.c.l.b16 %v371
    %v1890 = vunpack.c.h.b16 %v371
    %v1891 = vunpack.c.l.b16 %v372
    %v1892 = vunpack.c.h.b16 %v372
    %v1893 = vunpack.c.l.b16 %v373
    %v1894 = vunpack.c.h.b16 %v373
    %v1895 = vunpack.c.l.b16 %v374
    %v1896 = vunpack.c.h.b16 %v374
    %v1897 = vunpack.c.l.b16 %v375
    %v1898 = vunpack.c.h.b16 %v375
    %v1899 = vunpack.c.l.b16 %v376
    %v1900 = vunpack.c.h.b16 %v376
    %v1901 = vunpack.c.l.b16 %v377
    %v1902 = vunpack.c.h.b16 %v377
    %v1903 = vunpack.c.l.b16 %v378
    %v1904 = vunpack.c.h.b16 %v378
    %v1905 = vunpack.c.l.b16 %v379
    %v1906 = vunpack.c.h.b16 %v379
    %v1907 = vunpack.c.l.b16 %v380
    %v1908 = vunpack.c.h.b16 %v380
    %v1909 = vunpack.c.l.b16 %v381
    %v1910 = vunpack.c.h.b16 %v381
    %v1911 = vunpack.c.l.b16 %v382
    %v1912 = vunpack.c.h.b16 %v382
    %v1913 = vunpack.c.l.b16 %v383
    %v1914 = vunpack.c.h.b16 %v383
    %v1915 = vunpack.c.l.b16 %v384
    %v1916 = vunpack.c.h.b16 %v384
    %v1917 = vunpack.c.l.b16 %v385
    %v1918 = vunpack.c.h.b16 %v385
    %v1919 = vunpack.c.l.b16 %v386
    %v1920 = vunpack.c.h.b16 %v386
    %v1921 = vunpack.c.l.b16 %v387
    %v1922 = vunpack.c.h.b16 %v387
    %v1923 = vunpack.c.l.b16 %v388
    %v1924 = vunpack.c.h.b16 %v388
    %v1925 = vunpack.c.l.b16 %v389
    %v1926 = vunpack.c.h.b16 %v389
    %v1927 = vunpack.c.l.b16 %v390
    %v1928 = vunpack.c.h.b16 %v390
    %v1929 = vunpack.c.l.b16 %v391
    %v1930 = vunpack.c.h.b16 %v391
    %v1931 = vunpack.c.l.b16 %v392
    %v1932 = vunpack.c.h.b16 %v392
    %v1933 = vunpack.c.l.b16 %v393
    %v1934 = vunpack.c.h.b16 %v393
    %v1935 = vunpack.c.l.b16 %v394
    %v1936 = vunpack.c.h.b16 %v394
    %v1937 = vunpack.c.l.b16 %v395
    %v1938 = vunpack.c.h.b16 %v395
    %v1939 = vunpack.c.l.b16 %v396
    %v1940 = vunpack.c.h.b16 %v396
    %v1941 = vunpack.c.l.b16 %v397
    %v1942 = vunpack.c.h.b16 %v397
    %v1943 = vunpack.c.l.b16 %v398
    %v1944 = vunpack.c.h.b16 %v398
    %v1945 = vunpack.c.l.b16 %v399
    %v1946 = vunpack.c.h.b16 %v399
    %v1947 = vunpack.c.l.b16 %v400
    %v1948 = vunpack.c.h.b16 %v400
    %v1949 = vunpack.c.l.b16 %v401
    %v1950 = vunpack.c.h.b16 %v401
    %v1951 = vunpack.c.l.b16 %v402
    %v1952 = vunpack.c.h.b16 %v402
    %v1953 = vunpack.c.l.b16 %v403
    %v1954 = vunpack.c.h.b16 %v403
    %v1955 = vunpack.c.l.b16 %v404
    %v1956 = vunpack.c.h.b16 %v404
    %v1957 = vunpack.c.l.b16 %v405
    %v1958 = vunpack.c.h.b16 %v405
    %v1959 = vunpack.c.l.b16 %v406
    %v1960 = vunpack.c.h.b16 %v406
    %v1961 = vunpack.c.l.b16 %v407
    %v1962 = vunpack.c.h.b16 %v407
    %v1963 = vunpack.c.l.b16 %v408
    %v1964 = vunpack.c.h.b16 %v408
    %v1965 = vunpack.c.l.b16 %v409
    %v1966 = vunpack.c.h.b16 %v409
    %v1967 = vunpack.c.l.b16 %v410
    %v1968 = vunpack.c.h.b16 %v410
    %v1969 = vunpack.c.l.b16 %v411
    %v1970 = vunpack.c.h.b16 %v411
    %v1971 = vunpack.c.l.b16 %v412
    %v1972 = vunpack.c.h.b16 %v412
    %v1973 = vunpack.c.l.b16 %v413
    %v1974 = vunpack.c.h.b16 %v413
    %v1975 = vunpack.c.l.b16 %v414
    %v1976 = vunpack.c.h.b16 %v414
    %v1977 = vunpack.c.l.b16 %v415
    %v1978 = vunpack.c.h.b16 %v415
    %v1979 = vunpack.c.l.b16 %v416
    %v1980 = vunpack.c.h.b16 %v416
    %v1981 = vunpack.c.l.b16 %v417
    %v1982 = vunpack.c.h.b16 %v417
    %v1983 = vunpack.c.l.b16 %v418
    %v1984 = vunpack.c.h.b16 %v418
    %v1985 = vunpack.c.l.b16 %v419
    %v1986 = vunpack.c.h.b16 %v419
    %v1987 = vunpack.c.l.b16 %v420
    %v1988 = vunpack.c.h.b16 %v420
    %v1989 = vunpack.c.l.b16 %v421
    %v1990 = vunpack.c.h.b16 %v421
    %v1991 = vunpack.c.l.b16 %v422
    %v1992 = vunpack.c.h.b16 %v422
    %v1993 = vunpack.c.l.b16 %v423
    %v1994 = vunpack.c.h.b16 %v423
    %v1995 = vunpack.c.l.b16 %v424
    %v1996 = vunpack.c.h.b16 %v424
    %v1997 = vunpack.c.l.b16 %v425
    %v1998 = vunpack.c.h.b16 %v425
    %v1999 = vunpack.c.l.b16 %v426
    %v2000 = vunpack.c.h.b16 %v426
    %v2001 = vunpack.c.l.b16 %v427
    %v2002 = vunpack.c.h.b16 %v427
    %v2003 = vunpack.c.l.b16 %v428
    %v2004 = vunpack.c.h.b16 %v428
    %v2005 = vunpack.c.l.b16 %v429
    %v2006 = vunpack.c.h.b16 %v429
    %v2007 = vunpack.c.l.b16 %v430
    %v2008 = vunpack.c.h.b16 %v430
    %v2009 = vunpack.c.l.b16 %v431
    %v2010 = vunpack.c.h.b16 %v431
    %v2011 = vunpack.c.l.b16 %v432
    %v2012 = vunpack.c.h.b16 %v432
    %v2013 = vunpack.c.l.b16 %v433
    %v2014 = vunpack.c.h.b16 %v433
    %v2015 = vunpack.c.l.b16 %v434
    %v2016 = vunpack.c.h.b16 %v434
    %v2017 = vunpack.c.l.b16 %v435
    %v2018 = vunpack.c.h.b16 %v435
    %v2019 = vunpack.c.l.b16 %v436
    %v2020 = vunpack.c.h.b16 %v436
    %v2021 = vunpack.c.l.b16 %v437
    %v2022 = vunpack.c.h.b16 %v437
    %v2023 = vunpack.c.l.b16 %v438
    %v2024 = vunpack.c.h.b16 %v438
    %v2025 = vunpack.c.l.b16 %v439
    %v2026 = vunpack.c.h.b16 %v439
    %v2027 = vunpack.c.l.b16 %v440
    %v2028 = vunpack.c.h.b16 %v440
    %v2029 = vunpack.c.l.b16 %v441
    %v2030 = vunpack.c.h.b16 %v441
    %v2031 = vunpack.c.l.b16 %v442
    %v2032 = vunpack.c.h.b16 %v442
    %v2033 = vunpack.c.l.b16 %v443
    %v2034 = vunpack.c.h.b16 %v443
    %v2035 = vunpack.c.l.b16 %v444
    %v2036 = vunpack.c.h.b16 %v444
    %v2037 = vunpack.c.l.b16 %v445
    %v2038 = vunpack.c.h.b16 %v445
    %v2039 = vunpack.c.l.b16 %v446
    %v2040 = vunpack.c.h.b16 %v446
    %v2041 = vunpack.c.l.b16 %v447
    %v2042 = vunpack.c.h.b16 %v447
    %v2043 = vunpack.c.l.b16 %v448
    %v2044 = vunpack.c.h.b16 %v448
    %v2045 = vunpack.c.l.b16 %v449
    %v2046 = vunpack.c.h.b16 %v449
    %v2047 = vunpack.c.l.b16 %v450
    %v2048 = vunpack.c.h.b16 %v450
    %v2049 = vunpack.c.l.b16 %v451
    %v2050 = vunpack.c.h.b16 %v451
    %v2051 = vunpack.c.l.b16 %v452
    %v2052 = vunpack.c.h.b16 %v452
    %v2053 = vunpack.c.l.b16 %v453
    %v2054 = vunpack.c.h.b16 %v453
    %v2055 = vunpack.c.l.b16 %v454
    %v2056 = vunpack.c.h.b16 %v454
    %v2057 = vunpack.c.l.b16 %v455
    %v2058 = vunpack.c.h.b16 %v455
    %v2059 = vunpack.c.l.b16 %v456
    %v2060 = vunpack.c.h.b16 %v456
    %v2061 = vunpack.c.l.b16 %v457
    %v2062 = vunpack.c.h.b16 %v457
    %v2063 = vunpack.c.l.b16 %v458
    %v2064 = vunpack.c.h.b16 %v458
    %v2065 = vunpack.c.l.b16 %v459
    %v2066 = vunpack.c.h.b16 %v459
    %v2067 = vunpack.c.l.b16 %v460
    %v2068 = vunpack.c.h.b16 %v460
    %v2069 = vunpack.c.l.b16 %v461
    %v2070 = vunpack.c.h.b16 %v461
    %v2071 = vunpack.c.l.b16 %v462
    %v2072 = vunpack.c.h.b16 %v462
    %v2073 = vunpack.c.l.b16 %v463
    %v2074 = vunpack.c.h.b16 %v463
    %v2075 = vunpack.c.l.b16 %v464
    %v2076 = vunpack.c.h.b16 %v464
    %v2077 = vunpack.c.l.b16 %v465
    %v2078 = vunpack.c.h.b16 %v465
    %v2079 = vunpack.c.l.b16 %v466
    %v2080 = vunpack.c.h.b16 %v466
    %v2081 = vunpack.c.l.b16 %v467
    %v2082 = vunpack.c.h.b16 %v467
    %v2083 = vunpack.c.l.b16 %v468
    %v2084 = vunpack.c.h.b16 %v468
    %v2085 = vunpack.c.l.b16 %v469
    %v2086 = vunpack.c.h.b16 %v469
    %v2087 = vunpack.c.l.b16 %v470
    %v2088 = vunpack.c.h.b16 %v470
    %v2089 = vunpack.c.l.b16 %v471
    %v2090 = vunpack.c.h.b16 %v471
    %v2091 = vunpack.c.l.b16 %v472
    %v2092 = vunpack.c.h.b16 %v472
    %v2093 = vunpack.c.l.b16 %v473
    %v2094 = vunpack.c.h.b16 %v473
    %v2095 = vunpack.c.l.b16 %v474
    %v2096 = vunpack.c.h.b16 %v474
    %v2097 = vunpack.c.l.b16 %v475
    %v2098 = vunpack.c.h.b16 %v475
    %v2099 = vunpack.c.l.b16 %v476
    %v2100 = vunpack.c.h.b16 %v476
    %v2101 = vunpack.c.l.b16 %v477
    %v2102 = vunpack.c.h.b16 %v477
    %v2103 = vunpack.c.l.b16 %v478
    %v2104 = vunpack.c.h.b16 %v478
    %v2105 = vunpack.c.l.b16 %v479
    %v2106 = vunpack.c.h.b16 %v479
    %v2107 = vunpack.c.l.b16 %v480
    %v2108 = vunpack.c.h.b16 %v480
    %v2109 = vunpack.c.l.b16 %v481
    %v2110 = vunpack.c.h.b16 %v481
    %v2111 = vunpack.c.l.b16 %v482
    %v2112 = vunpack.c.h.b16 %v482
    %v2113 = vunpack.c.l.b16 %v483
    %v2114 = vunpack.c.h.b16 %v483
    %v2115 = vunpack.c.l.b16 %v484
    %v2116 = vunpack.c.h.b16 %v484
    %v2117 = vunpack.c.l.b16 %v485
    %v2118 = vunpack.c.h.b16 %v485
    %v2119 = vunpack.c.l.b16 %v486
    %v2120 = vunpack.c.h.b16 %v486
    %v2121 = vunpack.c.l.b16 %v487
    %v2122 = vunpack.c.h.b16 %v487
    %v2123 = vunpack.c.l.b16 %v488
    %v2124 = vunpack.c.h.b16 %v488
    %v2125 = vunpack.c.l.b16 %v489
    %v2126 = vunpack.c.h.b16 %v489
    %v2127 = vunpack.c.l.b16 %v490
    %v2128 = vunpack.c.h.b16 %v490
    %v2129 = vunpack.c.l.b16 %v491
    %v2130 = vunpack.c.h.b16 %v491
    %v2131 = vunpack.c.l.b16 %v492
    %v2132 = vunpack.c.h.b16 %v492
    %v2133 = vunpack.c.l.b16 %v493
    %v2134 = vunpack.c.h.b16 %v493
    %v2135 = vunpack.c.l.b16 %v494
    %v2136 = vunpack.c.h.b16 %v494
    %v2137 = vunpack.c.l.b16 %v495
    %v2138 = vunpack.c.h.b16 %v495
    %v2139 = vunpack.c.l.b16 %v496
    %v2140 = vunpack.c.h.b16 %v496
    %v2141 = vunpack.c.l.b16 %v497
    %v2142 = vunpack.c.h.b16 %v497
    %v2143 = vunpack.c.l.b16 %v498
    %v2144 = vunpack.c.h.b16 %v498
    %v2145 = vunpack.c.l.b16 %v499
    %v2146 = vunpack.c.h.b16 %v499
    %v2147 = vunpack.c.l.b16 %v500
    %v2148 = vunpack.c.h.b16 %v500
    %v2149 = vunpack.c.l.b16 %v501
    %v2150 = vunpack.c.h.b16 %v501
    %v2151 = vunpack.c.l.b16 %v502
    %v2152 = vunpack.c.h.b16 %v502
    %v2153 = vunpack.c.l.b16 %v503
    %v2154 = vunpack.c.h.b16 %v503
    %v2155 = vunpack.c.l.b16 %v504
    %v2156 = vunpack.c.h.b16 %v504
    %v2157 = vunpack.c.l.b16 %v505
    %v2158 = vunpack.c.h.b16 %v505
    %v2159 = vunpack.c.l.b16 %v506
    %v2160 = vunpack.c.h.b16 %v506
    %v2161 = vunpack.c.l.b16 %v507
    %v2162 = vunpack.c.h.b16 %v507
    %v2163 = vunpack.c.l.b16 %v508
    %v2164 = vunpack.c.h.b16 %v508
    %v2165 = vunpack.c.l.b16 %v509
    %v2166 = vunpack.c.h.b16 %v509
    %v2167 = vunpack.c.l.b16 %v510
    %v2168 = vunpack.c.h.b16 %v510
    %v2169 = vunpack.c.l.b16 %v511
    %v2170 = vunpack.c.h.b16 %v511
    %v2171 = vunpack.c.l.b16 %v512
    %v2172 = vunpack.c.h.b16 %v512
    %v2173 = vunpack.c.l.b16 %v513
    %v2174 = vunpack.c.h.b16 %v513
    %v2175 = vunpack.c.l.b16 %v514
    %v2176 = vunpack.c.h.b16 %v514
    %v2177 = vunpack.c.l.b16 %v515
    %v2178 = vunpack.c.h.b16 %v515
    %v2179 = vunpack.c.l.b16 %v516
    %v2180 = vunpack.c.h.b16 %v516
    %v2181 = vunpack.c.l.b16 %v517
    %v2182 = vunpack.c.h.b16 %v517
    %v2183 = vunpack.c.l.b16 %v518
    %v2184 = vunpack.c.h.b16 %v518
    %v2185 = vunpack.c.l.b16 %v519
    %v2186 = vunpack.c.h.b16 %v519
    %v2187 = vunpack.c.l.b16 %v520
    %v2188 = vunpack.c.h.b16 %v520
    %v2189 = vunpack.c.l.b16 %v521
    %v2190 = vunpack.c.h.b16 %v521
    %v2191 = vunpack.c.l.b16 %v522
    %v2192 = vunpack.c.h.b16 %v522
    %v2193 = vunpack.c.l.b16 %v523
    %v2194 = vunpack.c.h.b16 %v523
    %v2195 = vunpack.c.l.b16 %v524
    %v2196 = vunpack.c.h.b16 %v524
    %v2197 = vunpack.c.l.b16 %v525
    %v2198 = vunpack.c.h.b16 %v525
    %v2199 = vunpack.c.l.b16 %v526
    %v2200 = vunpack.c.h.b16 %v526
    %v2201 = vunpack.c.l.b16 %v527
    %v2202 = vunpack.c.h.b16 %v527
    %v2203 = vunpack.c.l.b16 %v528
    %v2204 = vunpack.c.h.b16 %v528
    %v2205 = vunpack.c.l.b16 %v529
    %v2206 = vunpack.c.h.b16 %v529
    %v2207 = vunpack.c.l.b16 %v530
    %v2208 = vunpack.c.h.b16 %v530
    %v2209 = vunpack.c.l.b16 %v531
    %v2210 = vunpack.c.h.b16 %v531
    %v2211 = vunpack.c.l.b16 %v532
    %v2212 = vunpack.c.h.b16 %v532
    %v2213 = vunpack.c.l.b16 %v533
    %v2214 = vunpack.c.h.b16 %v533
    %v2215 = vunpack.c.l.b16 %v534
    %v2216 = vunpack.c.h.b16 %v534
    %v2217 = vunpack.c.l.b16 %v535
    %v2218 = vunpack.c.h.b16 %v535
    %v2219 = vunpack.c.l.b16 %v536
    %v2220 = vunpack.c.h.b16 %v536
    %v2221 = vunpack.c.l.b16 %v537
    %v2222 = vunpack.c.h.b16 %v537
    %v2223 = vunpack.c.l.b16 %v538
    %v2224 = vunpack.c.h.b16 %v538
    %v2225 = vunpack.c.l.b16 %v539
    %v2226 = vunpack.c.h.b16 %v539
    %v2227 = vunpack.c.l.b16 %v540
    %v2228 = vunpack.c.h.b16 %v540
    %v2229 = vunpack.c.l.b16 %v541
    %v2230 = vunpack.c.h.b16 %v541
    %v2231 = vunpack.c.l.b16 %v542
    %v2232 = vunpack.c.h.b16 %v542
    %v2233 = vunpack.c.l.b16 %v543
    %v2234 = vunpack.c.h.b16 %v543
    %v2235 = vunpack.c.l.b16 %v544
    %v2236 = vunpack.c.h.b16 %v544
    %v2237 = vunpack.c.l.b16 %v545
    %v2238 = vunpack.c.h.b16 %v545
    %v2239 = vunpack.c.l.b16 %v546
    %v2240 = vunpack.c.h.b16 %v546
    %v2241 = vunpack.c.l.b16 %v547
    %v2242 = vunpack.c.h.b16 %v547
    %v2243 = vunpack.c.l.b16 %v548
    %v2244 = vunpack.c.h.b16 %v548
    %v2245 = vunpack.c.l.b16 %v549
    %v2246 = vunpack.c.h.b16 %v549
    %v2247 = vunpack.c.l.b16 %v550
    %v2248 = vunpack.c.h.b16 %v550
    %v2249 = vunpack.c.l.b16 %v551
    %v2250 = vunpack.c.h.b16 %v551
    %v2251 = vunpack.c.l.b16 %v552
    %v2252 = vunpack.c.h.b16 %v552
    %v2253 = vunpack.c.l.b16 %v553
    %v2254 = vunpack.c.h.b16 %v553
    %v2255 = vunpack.c.l.b16 %v554
    %v2256 = vunpack.c.h.b16 %v554
    %v2257 = vunpack.c.l.b16 %v555
    %v2258 = vunpack.c.h.b16 %v555
    %v2259 = vunpack.c.l.b16 %v556
    %v2260 = vunpack.c.h.b16 %v556
    %v2261 = vunpack.c.l.b16 %v557
    %v2262 = vunpack.c.h.b16 %v557
    %v2263 = vunpack.c.l.b16 %v558
    %v2264 = vunpack.c.h.b16 %v558
    %v2265 = vunpack.c.l.b16 %v559
    %v2266 = vunpack.c.h.b16 %v559
    %v2267 = vunpack.c.l.b16 %v560
    %v2268 = vunpack.c.h.b16 %v560
    %v2269 = vunpack.c.l.b16 %v561
    %v2270 = vunpack.c.h.b16 %v561
    %v2271 = vunpack.c.l.b16 %v562
    %v2272 = vunpack.c.h.b16 %v562
    %v2273 = vunpack.c.l.b16 %v563
    %v2274 = vunpack.c.h.b16 %v563
    %v2275 = vunpack.c.l.b16 %v564
    %v2276 = vunpack.c.h.b16 %v564
    %v2277 = vunpack.c.l.b16 %v565
    %v2278 = vunpack.c.h.b16 %v565
    %v2279 = vunpack.c.l.b16 %v566
    %v2280 = vunpack.c.h.b16 %v566
    %v2281 = vunpack.c.l.b16 %v567
    %v2282 = vunpack.c.h.b16 %v567
    %v2283 = vunpack.c.l.b16 %v568
    %v2284 = vunpack.c.h.b16 %v568
    %v2285 = vunpack.c.l.b16 %v569
    %v2286 = vunpack.c.h.b16 %v569
    %v2287 = vunpack.c.l.b16 %v570
    %v2288 = vunpack.c.h.b16 %v570
    %v2289 = vpack.c.b16 %v1269, %v1265
    %v2290 = vpack.c.b16 %v1270, %v1266
    %v2291 = vpack.c.b16 %v1271, %v1267
    %v2292 = vpack.c.b16 %v1272, %v1268
    %v2293 = vpack.c.b16 %v1277, %v1273
    %v2294 = vpack.c.b16 %v1278, %v1274
    %v2295 = vpack.c.b16 %v1279, %v1275
    %v2296 = vpack.c.b16 %v1280, %v1276
    %v2297 = vpack.c.b16 %v1285, %v1281
    %v2298 = vpack.c.b16 %v1286, %v1282
    %v2299 = vpack.c.b16 %v1287, %v1283
    %v2300 = vpack.c.b16 %v1288, %v1284
    %v2301 = vpack.c.b16 %v1293, %v1289
    %v2302 = vpack.c.b16 %v1294, %v1290
    %v2303 = vpack.c.b16 %v1295, %v1291
    %v2304 = vpack.c.b16 %v1296, %v1292
    %v2305 = vpack.c.b16 %v1301, %v1297
    %v2306 = vpack.c.b16 %v1302, %v1298
    %v2307 = vpack.c.b16 %v1303, %v1299
    %v2308 = vpack.c.b16 %v1304, %v1300
    %v2309 = vpack.c.b16 %v1309, %v1305
    %v2310 = vpack.c.b16 %v1310, %v1306
    %v2311 = vpack.c.b16 %v1311, %v1307
    %v2312 = vpack.c.b16 %v1312, %v1308
    %v2313 = vpack.c.b16 %v1317, %v1313
    %v2314 = vpack.c.b16 %v1318, %v1314
    %v2315 = vpack.c.b16 %v1319, %v1315
    %v2316 = vpack.c.b16 %v1320, %v1316
    %v2317 = vpack.c.b16 %v1325, %v1321
    %v2318 = vpack.c.b16 %v1326, %v1322
    %v2319 = vpack.c.b16 %v1327, %v1323
    %v2320 = vpack.c.b16 %v1328, %v1324
    %v2321 = vpack.c.b16 %v1333, %v1329
    %v2322 = vpack.c.b16 %v1334, %v1330
    %v2323 = vpack.c.b16 %v1335, %v1331
    %v2324 = vpack.c.b16 %v1336, %v1332
    %v2325 = vpack.c.b16 %v1341, %v1337
    %v2326 = vpack.c.b16 %v1342, %v1338
    %v2327 = vpack.c.b16 %v1343, %v1339
    %v2328 = vpack.c.b16 %v1344, %v1340
    %v2329 = vpack.c.b16 %v1349, %v1345
    %v2330 = vpack.c.b16 %v1350, %v1346
    %v2331 = vpack.c.b16 %v1351, %v1347
    %v2332 = vpack.c.b16 %v1352, %v1348
    %v2333 = vpack.c.b16 %v1357, %v1353
    %v2334 = vpack.c.b16 %v1358, %v1354
    %v2335 = vpack.c.b16 %v1359, %v1355
    %v2336 = vpack.c.b16 %v1360, %v1356
    %v2337 = vpack.c.b16 %v1365, %v1361
    %v2338 = vpack.c.b16 %v1366, %v1362
    %v2339 = vpack.c.b16 %v1367, %v1363
    %v2340 = vpack.c.b16 %v1368, %v1364
    %v2341 = vpack.c.b16 %v1373, %v1369
    %v2342 = vpack.c.b16 %v1374, %v1370
    %v2343 = vpack.c.b16 %v1375, %v1371
    %v2344 = vpack.c.b16 %v1376, %v1372
    %v2345 = vpack.c.b16 %v1381, %v1377
    %v2346 = vpack.c.b16 %v1382, %v1378
    %v2347 = vpack.c.b16 %v1383, %v1379
    %v2348 = vpack.c.b16 %v1384, %v1380
    %v2349 = vpack.c.b16 %v1389, %v1385
    %v2350 = vpack.c.b16 %v1390, %v1386
    %v2351 = vpack.c.b16 %v1391, %v1387
    %v2352 = vpack.c.b16 %v1392, %v1388
    %v2353 = vpack.c.b16 %v1397, %v1393
    %v2354 = vpack.c.b16 %v1398, %v1394
    %v2355 = vpack.c.b16 %v1399, %v1395
    %v2356 = vpack.c.b16 %v1400, %v1396
    %v2357 = vpack.c.b16 %v1405, %v1401
    %v2358 = vpack.c.b16 %v1406, %v1402
    %v2359 = vpack.c.b16 %v1407, %v1403
    %v2360 = vpack.c.b16 %v1408, %v1404
    %v2361 = vpack.c.b16 %v1413, %v1409
    %v2362 = vpack.c.b16 %v1414, %v1410
    %v2363 = vpack.c.b16 %v1415, %v1411
    %v2364 = vpack.c.b16 %v1416, %v1412
    %v2365 = vpack.c.b16 %v1421, %v1417
    %v2366 = vpack.c.b16 %v1422, %v1418
    %v2367 = vpack.c.b16 %v1423, %v1419
    %v2368 = vpack.c.b16 %v1424, %v1420
    %v2369 = vpack.c.b16 %v1429, %v1425
    %v2370 = vpack.c.b16 %v1430, %v1426
    %v2371 = vpack.c.b16 %v1431, %v1427
    %v2372 = vpack.c.b16 %v1432, %v1428
    %v2373 = vpack.c.b16 %v1437, %v1433
    %v2374 = vpack.c.b16 %v1438, %v1434
    %v2375 = vpack.c.b16 %v1439, %v1435
    %v2376 = vpack.c.b16 %v1440, %v1436
    %v2377 = vpack.c.b16 %v1445, %v1441
    %v2378 = vpack.c.b16 %v1446, %v1442
    %v2379 = vpack.c.b16 %v1447, %v1443
    %v2380 = vpack.c.b16 %v1448, %v1444
    %v2381 = vpack.c.b16 %v1453, %v1449
    %v2382 = vpack.c.b16 %v1454, %v1450
    %v2383 = vpack.c.b16 %v1455, %v1451
    %v2384 = vpack.c.b16 %v1456, %v1452
    %v2385 = vpack.c.b16 %v1461, %v1457
    %v2386 = vpack.c.b16 %v1462, %v1458
    %v2387 = vpack.c.b16 %v1463, %v1459
    %v2388 = vpack.c.b16 %v1464, %v1460
    %v2389 = vpack.c.b16 %v1469, %v1465
    %v2390 = vpack.c.b16 %v1470, %v1466
    %v2391 = vpack.c.b16 %v1471, %v1467
    %v2392 = vpack.c.b16 %v1472, %v1468
    %v2393 = vpack.c.b16 %v1477, %v1473
    %v2394 = vpack.c.b16 %v1478, %v1474
    %v2395 = vpack.c.b16 %v1479, %v1475
    %v2396 = vpack.c.b16 %v1480, %v1476
    %v2397 = vpack.c.b16 %v1485, %v1481
    %v2398 = vpack.c.b16 %v1486, %v1482
    %v2399 = vpack.c.b16 %v1487, %v1483
    %v2400 = vpack.c.b16 %v1488, %v1484
    %v2401 = vpack.c.b16 %v1493, %v1489
    %v2402 = vpack.c.b16 %v1494, %v1490
    %v2403 = vpack.c.b16 %v1495, %v1491
    %v2404 = vpack.c.b16 %v1496, %v1492
    %v2405 = vpack.c.b16 %v1501, %v1497
    %v2406 = vpack.c.b16 %v1502, %v1498
    %v2407 = vpack.c.b16 %v1503, %v1499
    %v2408 = vpack.c.b16 %v1504, %v1500
    %v2409 = vpack.c.b16 %v1509, %v1505
    %v2410 = vpack.c.b16 %v1510, %v1506
    %v2411 = vpack.c.b16 %v1511, %v1507
    %v2412 = vpack.c.b16 %v1512, %v1508
    %v2413 = vpack.c.b16 %v1517, %v1513
    %v2414 = vpack.c.b16 %v1518, %v1514
    %v2415 = vpack.c.b16 %v1519, %v1515
    %v2416 = vpack.c.b16 %v1520, %v1516
    %v2417 = vpack.c.b16 %v1525, %v1521
    %v2418 = vpack.c.b16 %v1526, %v1522
    %v2419 = vpack.c.b16 %v1527, %v1523
    %v2420 = vpack.c.b16 %v1528, %v1524
    %v2421 = vpack.c.b16 %v1533, %v1529
    %v2422 = vpack.c.b16 %v1534, %v1530
    %v2423 = vpack.c.b16 %v1535, %v1531
    %v2424 = vpack.c.b16 %v1536, %v1532
    %v2425 = vpack.c.b16 %v1541, %v1537
    %v2426 = vpack.c.b16 %v1542, %v1538
    %v2427 = vpack.c.b16 %v1543, %v1539
    %v2428 = vpack.c.b16 %v1544, %v1540
    %v2429 = vpack.c.b16 %v1549, %v1545
    %v2430 = vpack.c.b16 %v1550, %v1546
    %v2431 = vpack.c.b16 %v1551, %v1547
    %v2432 = vpack.c.b16 %v1552, %v1548
    %v2433 = vpack.c.b16 %v1557, %v1553
    %v2434 = vpack.c.b16 %v1558, %v1554
    %v2435 = vpack.c.b16 %v1559, %v1555
    %v2436 = vpack.c.b16 %v1560, %v1556
    %v2437 = vpack.c.b16 %v1565, %v1561
    %v2438 = vpack.c.b16 %v1566, %v1562
    %v2439 = vpack.c.b16 %v1567, %v1563
    %v2440 = vpack.c.b16 %v1568, %v1564
    %v2441 = vpack.c.b16 %v1573, %v1569
    %v2442 = vpack.c.b16 %v1574, %v1570
    %v2443 = vpack.c.b16 %v1575, %v1571
    %v2444 = vpack.c.b16 %v1576, %v1572
    %v2445 = vpack.c.b16 %v1581, %v1577
    %v2446 = vpack.c.b16 %v1582, %v1578
    %v2447 = vpack.c.b16 %v1583, %v1579
    %v2448 = vpack.c.b16 %v1584, %v1580
    %v2449 = vpack.c.b16 %v1589, %v1585
    %v2450 = vpack.c.b16 %v1590, %v1586
    %v2451 = vpack.c.b16 %v1591, %v1587
    %v2452 = vpack.c.b16 %v1592, %v1588
    %v2453 = vpack.c.b16 %v1597, %v1593
    %v2454 = vpack.c.b16 %v1598, %v1594
    %v2455 = vpack.c.b16 %v1599, %v1595
    %v2456 = vpack.c.b16 %v1600, %v1596
    %v2457 = vpack.c.b16 %v1605, %v1601
    %v2458 = vpack.c.b16 %v1606, %v1602
    %v2459 = vpack.c.b16 %v1607, %v1603
    %v2460 = vpack.c.b16 %v1608, %v1604
    %v2461 = vpack.c.b16 %v1613, %v1609
    %v2462 = vpack.c.b16 %v1614, %v1610
    %v2463 = vpack.c.b16 %v1615, %v1611
    %v2464 = vpack.c.b16 %v1616, %v1612
    %v2465 = vpack.c.b16 %v1621, %v1617
    %v2466 = vpack.c.b16 %v1622, %v1618
    %v2467 = vpack.c.b16 %v1623, %v1619
    %v2468 = vpack.c.b16 %v1624, %v1620
    %v2469 = vpack.c.b16 %v1629, %v1625
    %v2470 = vpack.c.b16 %v1630, %v1626
    %v2471 = vpack.c.b16 %v1631, %v1627
    %v2472 = vpack.c.b16 %v1632, %v1628
    %v2473 = vpack.c.b16 %v1637, %v1633
    %v2474 = vpack.c.b16 %v1638, %v1634
    %v2475 = vpack.c.b16 %v1639, %v1635
    %v2476 = vpack.c.b16 %v1640, %v1636
    %v2477 = vpack.c.b16 %v1645, %v1641
    %v2478 = vpack.c.b16 %v1646, %v1642
    %v2479 = vpack.c.b16 %v1647, %v1643
    %v2480 = vpack.c.b16 %v1648, %v1644
    %v2481 = vpack.c.b16 %v1653, %v1649
    %v2482 = vpack.c.b16 %v1654, %v1650
    %v2483 = vpack.c.b16 %v1655, %v1651
    %v2484 = vpack.c.b16 %v1656, %v1652
    %v2485 = vpack.c.b16 %v1661, %v1657
    %v2486 = vpack.c.b16 %v1662, %v1658
    %v2487 = vpack.c.b16 %v1663, %v1659
    %v2488 = vpack.c.b16 %v1664, %v1660
    %v2489 = vpack.c.b16 %v1669, %v1665
    %v2490 = vpack.c.b16 %v1670, %v1666
    %v2491 = vpack.c.b16 %v1671, %v1667
    %v2492 = vpack.c.b16 %v1672, %v1668
    %v2493 = vpack.c.b16 %v1677, %v1673
    %v2494 = vpack.c.b16 %v1678, %v1674
    %v2495 = vpack.c.b16 %v1679, %v1675
    %v2496 = vpack.c.b16 %v1680, %v1676
    %v2497 = vpack.c.b16 %v1685, %v1681
    %v2498 = vpack.c.b16 %v1686, %v1682
    %v2499 = vpack.c.b16 %v1687, %v1683
    %v2500 = vpack.c.b16 %v1688, %v1684
    %v2501 = vpack.c.b16 %v1693, %v1689
    %v2502 = vpack.c.b16 %v1694, %v1690
    %v2503 = vpack.c.b16 %v1695, %v1691
    %v2504 = vpack.c.b16 %v1696, %v1692
    %v2505 = vpack.c.b16 %v1701, %v1697
    %v2506 = vpack.c.b16 %v1702, %v1698
    %v2507 = vpack.c.b16 %v1703, %v1699
    %v2508 = vpack.c.b16 %v1704, %v1700
    %v2509 = vpack.c.b16 %v1709, %v1705
    %v2510 = vpack.c.b16 %v1710, %v1706
    %v2511 = vpack.c.b16 %v1711, %v1707
    %v2512 = vpack.c.b16 %v1712, %v1708
    %v2513 = vpack.c.b16 %v1717, %v1713
    %v2514 = vpack.c.b16 %v1718, %v1714
    %v2515 = vpack.c.b16 %v1719, %v1715
    %v2516 = vpack.c.b16 %v1720, %v1716
    %v2517 = vpack.c.b16 %v1725, %v1721
    %v2518 = vpack.c.b16 %v1726, %v1722
    %v2519 = vpack.c.b16 %v1727, %v1723
    %v2520 = vpack.c.b16 %v1728, %v1724
    %v2521 = vpack.c.b16 %v1733, %v1729
    %v2522 = vpack.c.b16 %v1734, %v1730
    %v2523 = vpack.c.b16 %v1735, %v1731
    %v2524 = vpack.c.b16 %v1736, %v1732
    %v2525 = vpack.c.b16 %v1741, %v1737
    %v2526 = vpack.c.b16 %v1742, %v1738
    %v2527 = vpack.c.b16 %v1743, %v1739
    %v2528 = vpack.c.b16 %v1744, %v1740
    %v2529 = vpack.c.b16 %v1749, %v1745
    %v2530 = vpack.c.b16 %v1750, %v1746
    %v2531 = vpack.c.b16 %v1751, %v1747
    %v2532 = vpack.c.b16 %v1752, %v1748
    %v2533 = vpack.c.b16 %v1757, %v1753
    %v2534 = vpack.c.b16 %v1758, %v1754
    %v2535 = vpack.c.b16 %v1759, %v1755
    %v2536 = vpack.c.b16 %v1760, %v1756
    %v2537 = vpack.c.b16 %v1765, %v1761
    %v2538 = vpack.c.b16 %v1766, %v1762
    %v2539 = vpack.c.b16 %v1767, %v1763
    %v2540 = vpack.c.b16 %v1768, %v1764
    %v2541 = vpack.c.b16 %v1773, %v1769
    %v2542 = vpack.c.b16 %v1774, %v1770
    %v2543 = vpack.c.b16 %v1775, %v1771
    %v2544 = vpack.c.b16 %v1776, %v1772
    %v2545 = vpack.c.b16 %v1781, %v1777
    %v2546 = vpack.c.b16 %v1782, %v1778
    %v2547 = vpack.c.b16 %v1783, %v1779
    %v2548 = vpack.c.b16 %v1784, %v1780
    %v2549 = vpack.c.b16 %v1789, %v1785
    %v2550 = vpack.c.b16 %v1790, %v1786
    %v2551 = vpack.c.b16 %v1791, %v1787
    %v2552 = vpack.c.b16 %v1792, %v1788
    %v2553 = vpack.c.b16 %v1797, %v1793
    %v2554 = vpack.c.b16 %v1798, %v1794
    %v2555 = vpack.c.b16 %v1799, %v1795
    %v2556 = vpack.c.b16 %v1800, %v1796
    %v2557 = vpack.c.b16 %v1805, %v1801
    %v2558 = vpack.c.b16 %v1806, %v1802
    %v2559 = vpack.c.b16 %v1807, %v1803
    %v2560 = vpack.c.b16 %v1808, %v1804
    %v2561 = vpack.c.b16 %v1813, %v1809
    %v2562 = vpack.c.b16 %v1814, %v1810
    %v2563 = vpack.c.b16 %v1815, %v1811
    %v2564 = vpack.c.b16 %v1816, %v1812
    %v2565 = vpack.c.b16 %v1821, %v1817
    %v2566 = vpack.c.b16 %v1822, %v1818
    %v2567 = vpack.c.b16 %v1823, %v1819
    %v2568 = vpack.c.b16 %v1824, %v1820
    %v2569 = vpack.c.b16 %v1829, %v1825
    %v2570 = vpack.c.b16 %v1830, %v1826
    %v2571 = vpack.c.b16 %v1831, %v1827
    %v2572 = vpack.c.b16 %v1832, %v1828
    %v2573 = vpack.c.b16 %v1837, %v1833
    %v2574 = vpack.c.b16 %v1838, %v1834
    %v2575 = vpack.c.b16 %v1839, %v1835
    %v2576 = vpack.c.b16 %v1840, %v1836
    %v2577 = vpack.c.b16 %v1845, %v1841
    %v2578 = vpack.c.b16 %v1846, %v1842
    %v2579 = vpack.c.b16 %v1847, %v1843
    %v2580 = vpack.c.b16 %v1848, %v1844
    %v2581 = vpack.c.b16 %v1853, %v1849
    %v2582 = vpack.c.b16 %v1854, %v1850
    %v2583 = vpack.c.b16 %v1855, %v1851
    %v2584 = vpack.c.b16 %v1856, %v1852
    %v2585 = vpack.c.b16 %v1861, %v1857
    %v2586 = vpack.c.b16 %v1862, %v1858
    %v2587 = vpack.c.b16 %v1863, %v1859
    %v2588 = vpack.c.b16 %v1864, %v1860
    %v2589 = vpack.c.b16 %v1869, %v1865
    %v2590 = vpack.c.b16 %v1870, %v1866
    %v2591 = vpack.c.b16 %v1871, %v1867
    %v2592 = vpack.c.b16 %v1872, %v1868
    %v2593 = vpack.c.b16 %v1877, %v1873
    %v2594 = vpack.c.b16 %v1878, %v1874
    %v2595 = vpack.c.b16 %v1879, %v1875
    %v2596 = vpack.c.b16 %v1880, %v1876
    %v2597 = vpack.c.b16 %v1885, %v1881
    %v2598 = vpack.c.b16 %v1886, %v1882
    %v2599 = vpack.c.b16 %v1887, %v1883
    %v2600 = vpack.c.b16 %v1888, %v1884
    %v2601 = vpack.c.b16 %v1893, %v1889
    %v2602 = vpack.c.b16 %v1894, %v1890
    %v2603 = vpack.c.b16 %v1895, %v1891
    %v2604 = vpack.c.b16 %v1896, %v1892
    %v2605 = vpack.c.b16 %v1901, %v1897
    %v2606 = vpack.c.b16 %v1902, %v1898
    %v2607 = vpack.c.b16 %v1903, %v1899
    %v2608 = vpack.c.b16 %v1904, %v1900
    %v2609 = vpack.c.b16 %v1909, %v1905
    %v2610 = vpack.c.b16 %v1910, %v1906
    %v2611 = vpack.c.b16 %v1911, %v1907
    %v2612 = vpack.c.b16 %v1912, %v1908
    %v2613 = vpack.c.b16 %v1917, %v1913
    %v2614 = vpack.c.b16 %v1918, %v1914
    %v2615 = vpack.c.b16 %v1919, %v1915
    %v2616 = vpack.c.b16 %v1920, %v1916
    %v2617 = vpack.c.b16 %v1925, %v1921
    %v2618 = vpack.c.b16 %v1926, %v1922
    %v2619 = vpack.c.b16 %v1927, %v1923
    %v2620 = vpack.c.b16 %v1928, %v1924
    %v2621 = vpack.c.b16 %v1933, %v1929
    %v2622 = vpack.c.b16 %v1934, %v1930
    %v2623 = vpack.c.b16 %v1935, %v1931
    %v2624 = vpack.c.b16 %v1936, %v1932
    %v2625 = vpack.c.b16 %v1941, %v1937
    %v2626 = vpack.c.b16 %v1942, %v1938
    %v2627 = vpack.c.b16 %v1943, %v1939
    %v2628 = vpack.c.b16 %v1944, %v1940
    %v2629 = vpack.c.b16 %v1949, %v1945
    %v2630 = vpack.c.b16 %v1950, %v1946
    %v2631 = vpack.c.b16 %v1951, %v1947
    %v2632 = vpack.c.b16 %v1952, %v1948
    %v2633 = vpack.c.b16 %v1957, %v1953
    %v2634 = vpack.c.b16 %v1958, %v1954
    %v2635 = vpack.c.b16 %v1959, %v1955
    %v2636 = vpack.c.b16 %v1960, %v1956
    %v2637 = vpack.c.b16 %v1965, %v1961
    %v2638 = vpack.c.b16 %v1966, %v1962
    %v2639 = vpack.c.b16 %v1967, %v1963
    %v2640 = vpack.c.b16 %v1968, %v1964
    %v2641 = vpack.c.b16 %v1973, %v1969
    %v2642 = vpack.c.b16 %v1974, %v1970
    %v2643 = vpack.c.b16 %v1975, %v1971
    %v2644 = vpack.c.b16 %v1976, %v1972
    %v2645 = vpack.c.b16 %v1981, %v1977
    %v2646 = vpack.c.b16 %v1982, %v1978
    %v2647 = vpack.c.b16 %v1983, %v1979
    %v2648 = vpack.c.b16 %v1984, %v1980
    %v2649 = vpack.c.b16 %v1989, %v1985
    %v2650 = vpack.c.b16 %v1990, %v1986
    %v2651 = vpack.c.b16 %v1991, %v1987
    %v2652 = vpack.c.b16 %v1992, %v1988
    %v2653 = vpack.c.b16 %v1997, %v1993
    %v2654 = vpack.c.b16 %v1998, %v1994
    %v2655 = vpack.c.b16 %v1999, %v1995
    %v2656 = vpack.c.b16 %v2000, %v1996
    %v2657 = vpack.c.b16 %v2005, %v2001
    %v2658 = vpack.c.b16 %v2006, %v2002
    %v2659 = vpack.c.b16 %v2007, %v2003
    %v2660 = vpack.c.b16 %v2008, %v2004
    %v2661 = vpack.c.b16 %v2013, %v2009
    %v2662 = vpack.c.b16 %v2014, %v2010
    %v2663 = vpack.c.b16 %v2015, %v2011
    %v2664 = vpack.c.b16 %v2016, %v2012
    %v2665 = vpack.c.b16 %v2021, %v2017
    %v2666 = vpack.c.b16 %v2022, %v2018
    %v2667 = vpack.c.b16 %v2023, %v2019
    %v2668 = vpack.c.b16 %v2024, %v2020
    %v2669 = vpack.c.b16 %v2029, %v2025
    %v2670 = vpack.c.b16 %v2030, %v2026
    %v2671 = vpack.c.b16 %v2031, %v2027
    %v2672 = vpack.c.b16 %v2032, %v2028
    %v2673 = vpack.c.b16 %v2037, %v2033
    %v2674 = vpack.c.b16 %v2038, %v2034
    %v2675 = vpack.c.b16 %v2039, %v2035
    %v2676 = vpack.c.b16 %v2040, %v2036
    %v2677 = vpack.c.b16 %v2045, %v2041
    %v2678 = vpack.c.b16 %v2046, %v2042
    %v2679 = vpack.c.b16 %v2047, %v2043
    %v2680 = vpack.c.b16 %v2048, %v2044
    %v2681 = vpack.c.b16 %v2053, %v2049
    %v2682 = vpack.c.b16 %v2054, %v2050
    %v2683 = vpack.c.b16 %v2055, %v2051
    %v2684 = vpack.c.b16 %v2056, %v2052
    %v2685 = vpack.c.b16 %v2061, %v2057
    %v2686 = vpack.c.b16 %v2062, %v2058
    %v2687 = vpack.c.b16 %v2063, %v2059
    %v2688 = vpack.c.b16 %v2064, %v2060
    %v2689 = vpack.c.b16 %v2069, %v2065
    %v2690 = vpack.c.b16 %v2070, %v2066
    %v2691 = vpack.c.b16 %v2071, %v2067
    %v2692 = vpack.c.b16 %v2072, %v2068
    %v2693 = vpack.c.b16 %v2077, %v2073
    %v2694 = vpack.c.b16 %v2078, %v2074
    %v2695 = vpack.c.b16 %v2079, %v2075
    %v2696 = vpack.c.b16 %v2080, %v2076
    %v2697 = vpack.c.b16 %v2085, %v2081
    %v2698 = vpack.c.b16 %v2086, %v2082
    %v2699 = vpack.c.b16 %v2087, %v2083
    %v2700 = vpack.c.b16 %v2088, %v2084
    %v2701 = vpack.c.b16 %v2093, %v2089
    %v2702 = vpack.c.b16 %v2094, %v2090
    %v2703 = vpack.c.b16 %v2095, %v2091
    %v2704 = vpack.c.b16 %v2096, %v2092
    %v2705 = vpack.c.b16 %v2101, %v2097
    %v2706 = vpack.c.b16 %v2102, %v2098
    %v2707 = vpack.c.b16 %v2103, %v2099
    %v2708 = vpack.c.b16 %v2104, %v2100
    %v2709 = vpack.c.b16 %v2109, %v2105
    %v2710 = vpack.c.b16 %v2110, %v2106
    %v2711 = vpack.c.b16 %v2111, %v2107
    %v2712 = vpack.c.b16 %v2112, %v2108
    %v2713 = vpack.c.b16 %v2117, %v2113
    %v2714 = vpack.c.b16 %v2118, %v2114
    %v2715 = vpack.c.b16 %v2119, %v2115
    %v2716 = vpack.c.b16 %v2120, %v2116
    %v2717 = vpack.c.b16 %v2125, %v2121
    %v2718 = vpack.c.b16 %v2126, %v2122
    %v2719 = vpack.c.b16 %v2127, %v2123
    %v2720 = vpack.c.b16 %v2128, %v2124
    %v2721 = vpack.c.b16 %v2133, %v2129
    %v2722 = vpack.c.b16 %v2134, %v2130
    %v2723 = vpack.c.b16 %v2135, %v2131
    %v2724 = vpack.c.b16 %v2136, %v2132
    %v2725 = vpack.c.b16 %v2141, %v2137
    %v2726 = vpack.c.b16 %v2142, %v2138
    %v2727 = vpack.c.b16 %v2143, %v2139
    %v2728 = vpack.c.b16 %v2144, %v2140
    %v2729 = vpack.c.b16 %v2149, %v2145
    %v2730 = vpack.c.b16 %v2150, %v2146
    %v2731 = vpack.c.b16 %v2151, %v2147
    %v2732 = vpack.c.b16 %v2152, %v2148
    %v2733 = vpack.c.b16 %v2157, %v2153
    %v2734 = vpack.c.b16 %v2158, %v2154
    %v2735 = vpack.c.b16 %v2159, %v2155
    %v2736 = vpack.c.b16 %v2160, %v2156
    %v2737 = vpack.c.b16 %v2165, %v2161
    %v2738 = vpack.c.b16 %v2166, %v2162
    %v2739 = vpack.c.b16 %v2167, %v2163
    %v2740 = vpack.c.b16 %v2168, %v2164
    %v2741 = vpack.c.b16 %v2173, %v2169
    %v2742 = vpack.c.b16 %v2174, %v2170
    %v2743 = vpack.c.b16 %v2175, %v2171
    %v2744 = vpack.c.b16 %v2176, %v2172
    %v2745 = vpack.c.b16 %v2181, %v2177
    %v2746 = vpack.c.b16 %v2182, %v2178
    %v2747 = vpack.c.b16 %v2183, %v2179
    %v2748 = vpack.c.b16 %v2184, %v2180
    %v2749 = vpack.c.b16 %v2189, %v2185
    %v2750 = vpack.c.b16 %v2190, %v2186
    %v2751 = vpack.c.b16 %v2191, %v2187
    %v2752 = vpack.c.b16 %v2192, %v2188
    %v2753 = vpack.c.b16 %v2197, %v2193
    %v2754 = vpack.c.b16 %v2198, %v2194
    %v2755 = vpack.c.b16 %v2199, %v2195
    %v2756 = vpack.c.b16 %v2200, %v2196
    %v2757 = vpack.c.b16 %v2205, %v2201
    %v2758 = vpack.c.b16 %v2206, %v2202
    %v2759 = vpack.c.b16 %v2207, %v2203
    %v2760 = vpack.c.b16 %v2208, %v2204
    %v2761 = vpack.c.b16 %v2213, %v2209
    %v2762 = vpack.c.b16 %v2214, %v2210
    %v2763 = vpack.c.b16 %v2215, %v2211
    %v2764 = vpack.c.b16 %v2216, %v2212
    %v2765 = vpack.c.b16 %v2221, %v2217
    %v2766 = vpack.c.b16 %v2222, %v2218
    %v2767 = vpack.c.b16 %v2223, %v2219
    %v2768 = vpack.c.b16 %v2224, %v2220
    %v2769 = vpack.c.b16 %v2229, %v2225
    %v2770 = vpack.c.b16 %v2230, %v2226
    %v2771 = vpack.c.b16 %v2231, %v2227
    %v2772 = vpack.c.b16 %v2232, %v2228
    %v2773 = vpack.c.b16 %v2237, %v2233
    %v2774 = vpack.c.b16 %v2238, %v2234
    %v2775 = vpack.c.b16 %v2239, %v2235
    %v2776 = vpack.c.b16 %v2240, %v2236
    %v2777 = vpack.c.b16 %v2245, %v2241
    %v2778 = vpack.c.b16 %v2246, %v2242
    %v2779 = vpack.c.b16 %v2247, %v2243
    %v2780 = vpack.c.b16 %v2248, %v2244
    %v2781 = vpack.c.b16 %v2253, %v2249
    %v2782 = vpack.c.b16 %v2254, %v2250
    %v2783 = vpack.c.b16 %v2255, %v2251
    %v2784 = vpack.c.b16 %v2256, %v2252
    %v2785 = vpack.c.b16 %v2261, %v2257
    %v2786 = vpack.c.b16 %v2262, %v2258
    %v2787 = vpack.c.b16 %v2263, %v2259
    %v2788 = vpack.c.b16 %v2264, %v2260
    %v2789 = vpack.c.b16 %v2269, %v2265
    %v2790 = vpack.c.b16 %v2270, %v2266
    %v2791 = vpack.c.b16 %v2271, %v2267
    %v2792 = vpack.c.b16 %v2272, %v2268
    %v2793 = vpack.c.b16 %v2277, %v2273
    %v2794 = vpack.c.b16 %v2278, %v2274
    %v2795 = vpack.c.b16 %v2279, %v2275
    %v2796 = vpack.c.b16 %v2280, %v2276
    %v2797 = vpack.c.b16 %v2285, %v2281
    %v2798 = vpack.c.b16 %v2286, %v2282
    %v2799 = vpack.c.b16 %v2287, %v2283
    %v2800 = vpack.c.b16 %v2288, %v2284
    %3313 = vmatprep.subr.bf16.mxu0 %v2290
    %3314 = vmatpush1.bf16.msra.mxu0 %v2289
    %3315 = vmatprep.subr.bf16.mxu0 %v2294
    %3316 = vmatpush1.bf16.msra.mxu0 %v2293
    %3317 = vmatprep.subr.bf16.mxu0 %v2298
    %3318 = vmatpush1.bf16.msra.mxu0 %v2297
    %3319 = vmatprep.subr.bf16.mxu0 %v2302
    %3320 = vmatpush1.bf16.msra.mxu0 %v2301
    %3321 = vmatprep.subr.bf16.mxu0 %v2306
    %3322 = vmatpush1.bf16.msra.mxu0 %v2305
    %3323 = vmatprep.subr.bf16.mxu0 %v2310
    %3324 = vmatpush1.bf16.msra.mxu0 %v2309
    %3325 = vmatprep.subr.bf16.mxu0 %v2314
    %3326 = vmatpush1.bf16.msra.mxu0 %v2313
    %3327 = vmatprep.subr.bf16.mxu0 %v2318
    %3328 = vmatpush1.bf16.msra.mxu0 %v2317
    %3329 = vmatprep.subr.bf16.mxu0 %v2322
    %3330 = vmatpush1.bf16.msra.mxu0 %v2321
    %3331 = vmatprep.subr.bf16.mxu0 %v2326
    %3332 = vmatpush1.bf16.msra.mxu0 %v2325
    %3333 = vmatprep.subr.bf16.mxu0 %v2330
    %3334 = vmatpush1.bf16.msra.mxu0 %v2329
    %3335 = vmatprep.subr.bf16.mxu0 %v2334
    %3336 = vmatpush1.bf16.msra.mxu0 %v2333
    %3337 = vmatprep.subr.bf16.mxu0 %v2338
    %3338 = vmatpush1.bf16.msra.mxu0 %v2337
    %3339 = vmatprep.subr.bf16.mxu0 %v2342
    %3340 = vmatpush1.bf16.msra.mxu0 %v2341
    %3341 = vmatprep.subr.bf16.mxu0 %v2346
    %3342 = vmatpush1.bf16.msra.mxu0 %v2345
    %3343 = vmatprep.subr.bf16.mxu0 %v2350
    %3344 = vmatpush1.bf16.msra.mxu0 %v2349
    %3345 = vmatprep.mubr.bf16.mxu0 %v690
    %3346 = vmatmul.mubr.bf16.gmra.mrb[0].mxu0 %v689
    %v3347 = vpop.f32.mrb[0].mxu0
    %v3348 = vadd.f32 %v576, %v3347
    %v3349 = vpop.f32.mrb[0].mxu0
    %v3350 = vadd.f32 %v580, %v3349
    %v3351 = vpop.f32.mrb[0].mxu0
    %v3352 = vadd.f32 %v576, %v3351
    %v3353 = vpop.f32.mrb[0].mxu0
    %v3354 = vadd.f32 %v580, %v3353
    %3355 = vmatprep.mubr.bf16.mxu0 %v706
    %3356 = vmatmul.mubr.bf16.gmra.mrb[0].mxu0 %v705
    %v3357 = vpop.f32.mrb[0].mxu0
    %v3358 = vadd.f32 %v576, %v3357
    %v3359 = vpop.f32.mrb[0].mxu0
    %v3360 = vadd.f32 %v580, %v3359
    %v3361 = vpop.f32.mrb[0].mxu0
    %v3362 = vadd.f32 %v576, %v3361
    %v3363 = vpop.f32.mrb[0].mxu0
    %v3364 = vadd.f32 %v580, %v3363
    %3365 = vdwg.mxu0
    %3366 = vmatprep.subr.bf16.mxu0 %v2354
    %3367 = vmatpush1.bf16.msra.mxu0 %v2353
    %3368 = vmatprep.subr.bf16.mxu0 %v2358
    %3369 = vmatpush1.bf16.msra.mxu0 %v2357
    %3370 = vmatprep.subr.bf16.mxu0 %v2362
    %3371 = vmatpush1.bf16.msra.mxu0 %v2361
    %3372 = vmatprep.subr.bf16.mxu0 %v2366
    %3373 = vmatpush1.bf16.msra.mxu0 %v2365
    %3374 = vmatprep.subr.bf16.mxu0 %v2370
    %3375 = vmatpush1.bf16.msra.mxu0 %v2369
    %3376 = vmatprep.subr.bf16.mxu0 %v2374
    %3377 = vmatpush1.bf16.msra.mxu0 %v2373
    %3378 = vmatprep.subr.bf16.mxu0 %v2378
    %3379 = vmatpush1.bf16.msra.mxu0 %v2377
    %3380 = vmatprep.subr.bf16.mxu0 %v2382
    %3381 = vmatpush1.bf16.msra.mxu0 %v2381
    %3382 = vmatprep.subr.bf16.mxu0 %v2386
    %3383 = vmatpush1.bf16.msra.mxu0 %v2385
    %3384 = vmatprep.subr.bf16.mxu0 %v2390
    %3385 = vmatpush1.bf16.msra.mxu0 %v2389
    %3386 = vmatprep.subr.bf16.mxu0 %v2394
    %3387 = vmatpush1.bf16.msra.mxu0 %v2393
    %3388 = vmatprep.subr.bf16.mxu0 %v2398
    %3389 = vmatpush1.bf16.msra.mxu0 %v2397
    %3390 = vmatprep.subr.bf16.mxu0 %v2402
    %3391 = vmatpush1.bf16.msra.mxu0 %v2401
    %3392 = vmatprep.subr.bf16.mxu0 %v2406
    %3393 = vmatpush1.bf16.msra.mxu0 %v2405
    %3394 = vmatprep.subr.bf16.mxu0 %v2410
    %3395 = vmatpush1.bf16.msra.mxu0 %v2409
    %3396 = vmatprep.subr.bf16.mxu0 %v2414
    %3397 = vmatpush1.bf16.msra.mxu0 %v2413
    %3398 = vmatprep.mubr.bf16.mxu0 %v692
    %3399 = vmatmul.mubr.bf16.gmra.mrb[0].mxu0 %v691
    %v3400 = vpop.f32.mrb[0].mxu0
    %v3401 = vadd.f32 %v3348, %v3400
    %v3402 = vpop.f32.mrb[0].mxu0
    %v3403 = vadd.f32 %v3350, %v3402
    %v3404 = vpop.f32.mrb[0].mxu0
    %v3405 = vadd.f32 %v3352, %v3404
    %v3406 = vpop.f32.mrb[0].mxu0
    %v3407 = vadd.f32 %v3354, %v3406
    %3408 = vmatprep.mubr.bf16.mxu0 %v708
    %3409 = vmatmul.mubr.bf16.gmra.mrb[0].mxu0 %v707
    %v3410 = vpop.f32.mrb[0].mxu0
    %v3411 = vadd.f32 %v3358, %v3410
    %v3412 = vpop.f32.mrb[0].mxu0
    %v3413 = vadd.f32 %v3360, %v3412
    %v3414 = vpop.f32.mrb[0].mxu0
    %v3415 = vadd.f32 %v3362, %v3414
    %v3416 = vpop.f32.mrb[0].mxu0
    %v3417 = vadd.f32 %v3364, %v3416
    %3418 = vdwg.mxu0
    %3419 = vmatprep.subr.bf16.mxu0 %v2418
    %3420 = vmatpush1.bf16.msra.mxu0 %v2417
    %3421 = vmatprep.subr.bf16.mxu0 %v2422
    %3422 = vmatpush1.bf16.msra.mxu0 %v2421
    %3423 = vmatprep.subr.bf16.mxu0 %v2426
    %3424 = vmatpush1.bf16.msra.mxu0 %v2425
    %3425 = vmatprep.subr.bf16.mxu0 %v2430
    %3426 = vmatpush1.bf16.msra.mxu0 %v2429
    %3427 = vmatprep.subr.bf16.mxu0 %v2434
    %3428 = vmatpush1.bf16.msra.mxu0 %v2433
    %3429 = vmatprep.subr.bf16.mxu0 %v2438
    %3430 = vmatpush1.bf16.msra.mxu0 %v2437
    %3431 = vmatprep.subr.bf16.mxu0 %v2442
    %3432 = vmatpush1.bf16.msra.mxu0 %v2441
    %3433 = vmatprep.subr.bf16.mxu0 %v2446
    %3434 = vmatpush1.bf16.msra.mxu0 %v2445
    %3435 = vmatprep.subr.bf16.mxu0 %v2450
    %3436 = vmatpush1.bf16.msra.mxu0 %v2449
    %3437 = vmatprep.subr.bf16.mxu0 %v2454
    %3438 = vmatpush1.bf16.msra.mxu0 %v2453
    %3439 = vmatprep.subr.bf16.mxu0 %v2458
    %3440 = vmatpush1.bf16.msra.mxu0 %v2457
    %3441 = vmatprep.subr.bf16.mxu0 %v2462
    %3442 = vmatpush1.bf16.msra.mxu0 %v2461
    %3443 = vmatprep.subr.bf16.mxu0 %v2466
    %3444 = vmatpush1.bf16.msra.mxu0 %v2465
    %3445 = vmatprep.subr.bf16.mxu0 %v2470
    %3446 = vmatpush1.bf16.msra.mxu0 %v2469
    %3447 = vmatprep.subr.bf16.mxu0 %v2474
    %3448 = vmatpush1.bf16.msra.mxu0 %v2473
    %3449 = vmatprep.subr.bf16.mxu0 %v2478
    %3450 = vmatpush1.bf16.msra.mxu0 %v2477
    %3451 = vmatprep.mubr.bf16.mxu0 %v694
    %3452 = vmatmul.mubr.bf16.gmra.mrb[0].mxu0 %v693
    %v3453 = vpop.f32.mrb[0].mxu0
    %v3454 = vadd.f32 %v3401, %v3453
    %v3455 = vpop.f32.mrb[0].mxu0
    %v3456 = vadd.f32 %v3403, %v3455
    %v3457 = vpop.f32.mrb[0].mxu0
    %v3458 = vadd.f32 %v3405, %v3457
    %v3459 = vpop.f32.mrb[0].mxu0
    %v3460 = vadd.f32 %v3407, %v3459
    %3461 = vmatprep.mubr.bf16.mxu0 %v710
    %3462 = vmatmul.mubr.bf16.gmra.mrb[0].mxu0 %v709
    %v3463 = vpop.f32.mrb[0].mxu0
    %v3464 = vadd.f32 %v3411, %v3463
    %v3465 = vpop.f32.mrb[0].mxu0
    %v3466 = vadd.f32 %v3413, %v3465
    %v3467 = vpop.f32.mrb[0].mxu0
    %v3468 = vadd.f32 %v3415, %v3467
    %v3469 = vpop.f32.mrb[0].mxu0
    %v3470 = vadd.f32 %v3417, %v3469
    %3471 = vdwg.mxu0
    %3472 = vmatprep.subr.bf16.mxu0 %v2482
    %3473 = vmatpush1.bf16.msra.mxu0 %v2481
    %3474 = vmatprep.subr.bf16.mxu0 %v2486
    %3475 = vmatpush1.bf16.msra.mxu0 %v2485
    %3476 = vmatprep.subr.bf16.mxu0 %v2490
    %3477 = vmatpush1.bf16.msra.mxu0 %v2489
    %3478 = vmatprep.subr.bf16.mxu0 %v2494
    %3479 = vmatpush1.bf16.msra.mxu0 %v2493
    %3480 = vmatprep.subr.bf16.mxu0 %v2498
    %3481 = vmatpush1.bf16.msra.mxu0 %v2497
    %3482 = vmatprep.subr.bf16.mxu0 %v2502
    %3483 = vmatpush1.bf16.msra.mxu0 %v2501
    %3484 = vmatprep.subr.bf16.mxu0 %v2506
    %3485 = vmatpush1.bf16.msra.mxu0 %v2505
    %3486 = vmatprep.subr.bf16.mxu0 %v2510
    %3487 = vmatpush1.bf16.msra.mxu0 %v2509
    %3488 = vmatprep.subr.bf16.mxu0 %v2514
    %3489 = vmatpush1.bf16.msra.mxu0 %v2513
    %3490 = vmatprep.subr.bf16.mxu0 %v2518
    %3491 = vmatpush1.bf16.msra.mxu0 %v2517
    %3492 = vmatprep.subr.bf16.mxu0 %v2522
    %3493 = vmatpush1.bf16.msra.mxu0 %v2521
    %3494 = vmatprep.subr.bf16.mxu0 %v2526
    %3495 = vmatpush1.bf16.msra.mxu0 %v2525
    %3496 = vmatprep.subr.bf16.mxu0 %v2530
    %3497 = vmatpush1.bf16.msra.mxu0 %v2529
    %3498 = vmatprep.subr.bf16.mxu0 %v2534
    %3499 = vmatpush1.bf16.msra.mxu0 %v2533
    %3500 = vmatprep.subr.bf16.mxu0 %v2538
    %3501 = vmatpush1.bf16.msra.mxu0 %v2537
    %3502 = vmatprep.subr.bf16.mxu0 %v2542
    %3503 = vmatpush1.bf16.msra.mxu0 %v2541
    %3504 = vmatprep.mubr.bf16.mxu0 %v696
    %3505 = vmatmul.mubr.bf16.gmra.mrb[0].mxu0 %v695
    %v3506 = vpop.f32.mrb[0].mxu0
    %v3507 = vadd.f32 %v3454, %v3506
    %v3508 = vpop.f32.mrb[0].mxu0
    %v3509 = vadd.f32 %v3456, %v3508
    %v3510 = vpop.f32.mrb[0].mxu0
    %v3511 = vadd.f32 %v3458, %v3510
    %v3512 = vpop.f32.mrb[0].mxu0
    %v3513 = vadd.f32 %v3460, %v3512
    %3514 = vmatprep.mubr.bf16.mxu0 %v712
    %3515 = vmatmul.mubr.bf16.gmra.mrb[0].mxu0 %v711
    %v3516 = vpop.f32.mrb[0].mxu0
    %v3517 = vadd.f32 %v3464, %v3516
    %v3518 = vpop.f32.mrb[0].mxu0
    %v3519 = vadd.f32 %v3466, %v3518
    %v3520 = vpop.f32.mrb[0].mxu0
    %v3521 = vadd.f32 %v3468, %v3520
    %v3522 = vpop.f32.mrb[0].mxu0
    %v3523 = vadd.f32 %v3470, %v3522
    %3524 = vdwg.mxu0
    %3525 = vmatprep.subr.bf16.mxu0 %v2546
    %3526 = vmatpush1.bf16.msra.mxu0 %v2545
    %3527 = vmatprep.subr.bf16.mxu0 %v2550
    %3528 = vmatpush1.bf16.msra.mxu0 %v2549
    %3529 = vmatprep.subr.bf16.mxu0 %v2554
    %3530 = vmatpush1.bf16.msra.mxu0 %v2553
    %3531 = vmatprep.subr.bf16.mxu0 %v2558
    %3532 = vmatpush1.bf16.msra.mxu0 %v2557
    %3533 = vmatprep.subr.bf16.mxu0 %v2562
    %3534 = vmatpush1.bf16.msra.mxu0 %v2561
    %3535 = vmatprep.subr.bf16.mxu0 %v2566
    %3536 = vmatpush1.bf16.msra.mxu0 %v2565
    %3537 = vmatprep.subr.bf16.mxu0 %v2570
    %3538 = vmatpush1.bf16.msra.mxu0 %v2569
    %3539 = vmatprep.subr.bf16.mxu0 %v2574
    %3540 = vmatpush1.bf16.msra.mxu0 %v2573
    %3541 = vmatprep.subr.bf16.mxu0 %v2578
    %3542 = vmatpush1.bf16.msra.mxu0 %v2577
    %3543 = vmatprep.subr.bf16.mxu0 %v2582
    %3544 = vmatpush1.bf16.msra.mxu0 %v2581
    %3545 = vmatprep.subr.bf16.mxu0 %v2586
    %3546 = vmatpush1.bf16.msra.mxu0 %v2585
    %3547 = vmatprep.subr.bf16.mxu0 %v2590
    %3548 = vmatpush1.bf16.msra.mxu0 %v2589
    %3549 = vmatprep.subr.bf16.mxu0 %v2594
    %3550 = vmatpush1.bf16.msra.mxu0 %v2593
    %3551 = vmatprep.subr.bf16.mxu0 %v2598
    %3552 = vmatpush1.bf16.msra.mxu0 %v2597
    %3553 = vmatprep.subr.bf16.mxu0 %v2602
    %3554 = vmatpush1.bf16.msra.mxu0 %v2601
    %3555 = vmatprep.subr.bf16.mxu0 %v2606
    %3556 = vmatpush1.bf16.msra.mxu0 %v2605
    %3557 = vmatprep.mubr.bf16.mxu0 %v698
    %3558 = vmatmul.mubr.bf16.gmra.mrb[0].mxu0 %v697
    %v3559 = vpop.f32.mrb[0].mxu0
    %v3560 = vadd.f32 %v3507, %v3559
    %v3561 = vpop.f32.mrb[0].mxu0
    %v3562 = vadd.f32 %v3509, %v3561
    %v3563 = vpop.f32.mrb[0].mxu0
    %v3564 = vadd.f32 %v3511, %v3563
    %v3565 = vpop.f32.mrb[0].mxu0
    %v3566 = vadd.f32 %v3513, %v3565
    %3567 = vmatprep.mubr.bf16.mxu0 %v714
    %3568 = vmatmul.mubr.bf16.gmra.mrb[0].mxu0 %v713
    %v3569 = vpop.f32.mrb[0].mxu0
    %v3570 = vadd.f32 %v3517, %v3569
    %v3571 = vpop.f32.mrb[0].mxu0
    %v3572 = vadd.f32 %v3519, %v3571
    %v3573 = vpop.f32.mrb[0].mxu0
    %v3574 = vadd.f32 %v3521, %v3573
    %v3575 = vpop.f32.mrb[0].mxu0
    %v3576 = vadd.f32 %v3523, %v3575
    %3577 = vdwg.mxu0
    %3578 = vmatprep.subr.bf16.mxu0 %v2610
    %3579 = vmatpush1.bf16.msra.mxu0 %v2609
    %3580 = vmatprep.subr.bf16.mxu0 %v2614
    %3581 = vmatpush1.bf16.msra.mxu0 %v2613
    %3582 = vmatprep.subr.bf16.mxu0 %v2618
    %3583 = vmatpush1.bf16.msra.mxu0 %v2617
    %3584 = vmatprep.subr.bf16.mxu0 %v2622
    %3585 = vmatpush1.bf16.msra.mxu0 %v2621
    %3586 = vmatprep.subr.bf16.mxu0 %v2626
    %3587 = vmatpush1.bf16.msra.mxu0 %v2625
    %3588 = vmatprep.subr.bf16.mxu0 %v2630
    %3589 = vmatpush1.bf16.msra.mxu0 %v2629
    %3590 = vmatprep.subr.bf16.mxu0 %v2634
    %3591 = vmatpush1.bf16.msra.mxu0 %v2633
    %3592 = vmatprep.subr.bf16.mxu0 %v2638
    %3593 = vmatpush1.bf16.msra.mxu0 %v2637
    %3594 = vmatprep.subr.bf16.mxu0 %v2642
    %3595 = vmatpush1.bf16.msra.mxu0 %v2641
    %3596 = vmatprep.subr.bf16.mxu0 %v2646
    %3597 = vmatpush1.bf16.msra.mxu0 %v2645
    %3598 = vmatprep.subr.bf16.mxu0 %v2650
    %3599 = vmatpush1.bf16.msra.mxu0 %v2649
    %3600 = vmatprep.subr.bf16.mxu0 %v2654
    %3601 = vmatpush1.bf16.msra.mxu0 %v2653
    %3602 = vmatprep.subr.bf16.mxu0 %v2658
    %3603 = vmatpush1.bf16.msra.mxu0 %v2657
    %3604 = vmatprep.subr.bf16.mxu0 %v2662
    %3605 = vmatpush1.bf16.msra.mxu0 %v2661
    %3606 = vmatprep.subr.bf16.mxu0 %v2666
    %3607 = vmatpush1.bf16.msra.mxu0 %v2665
    %3608 = vmatprep.subr.bf16.mxu0 %v2670
    %3609 = vmatpush1.bf16.msra.mxu0 %v2669
    %3610 = vmatprep.mubr.bf16.mxu0 %v700
    %3611 = vmatmul.mubr.bf16.gmra.mrb[0].mxu0 %v699
    %v3612 = vpop.f32.mrb[0].mxu0
    %v3613 = vadd.f32 %v3560, %v3612
    %v3614 = vpop.f32.mrb[0].mxu0
    %v3615 = vadd.f32 %v3562, %v3614
    %v3616 = vpop.f32.mrb[0].mxu0
    %v3617 = vadd.f32 %v3564, %v3616
    %v3618 = vpop.f32.mrb[0].mxu0
    %v3619 = vadd.f32 %v3566, %v3618
    %3620 = vmatprep.mubr.bf16.mxu0 %v716
    %3621 = vmatmul.mubr.bf16.gmra.mrb[0].mxu0 %v715
    %v3622 = vpop.f32.mrb[0].mxu0
    %v3623 = vadd.f32 %v3570, %v3622
    %v3624 = vpop.f32.mrb[0].mxu0
    %v3625 = vadd.f32 %v3572, %v3624
    %v3626 = vpop.f32.mrb[0].mxu0
    %v3627 = vadd.f32 %v3574, %v3626
    %v3628 = vpop.f32.mrb[0].mxu0
    %v3629 = vadd.f32 %v3576, %v3628
    %3630 = vdwg.mxu0
    %3631 = vmatprep.subr.bf16.mxu0 %v2674
    %3632 = vmatpush1.bf16.msra.mxu0 %v2673
    %3633 = vmatprep.subr.bf16.mxu0 %v2678
    %3634 = vmatpush1.bf16.msra.mxu0 %v2677
    %3635 = vmatprep.subr.bf16.mxu0 %v2682
    %3636 = vmatpush1.bf16.msra.mxu0 %v2681
    %3637 = vmatprep.subr.bf16.mxu0 %v2686
    %3638 = vmatpush1.bf16.msra.mxu0 %v2685
    %3639 = vmatprep.subr.bf16.mxu0 %v2690
    %3640 = vmatpush1.bf16.msra.mxu0 %v2689
    %3641 = vmatprep.subr.bf16.mxu0 %v2694
    %3642 = vmatpush1.bf16.msra.mxu0 %v2693
    %3643 = vmatprep.subr.bf16.mxu0 %v2698
    %3644 = vmatpush1.bf16.msra.mxu0 %v2697
    %3645 = vmatprep.subr.bf16.mxu0 %v2702
    %3646 = vmatpush1.bf16.msra.mxu0 %v2701
    %3647 = vmatprep.subr.bf16.mxu0 %v2706
    %3648 = vmatpush1.bf16.msra.mxu0 %v2705
    %3649 = vmatprep.subr.bf16.mxu0 %v2710
    %3650 = vmatpush1.bf16.msra.mxu0 %v2709
    %3651 = vmatprep.subr.bf16.mxu0 %v2714
    %3652 = vmatpush1.bf16.msra.mxu0 %v2713
    %3653 = vmatprep.subr.bf16.mxu0 %v2718
    %3654 = vmatpush1.bf16.msra.mxu0 %v2717
    %3655 = vmatprep.subr.bf16.mxu0 %v2722
    %3656 = vmatpush1.bf16.msra.mxu0 %v2721
    %3657 = vmatprep.subr.bf16.mxu0 %v2726
    %3658 = vmatpush1.bf16.msra.mxu0 %v2725
    %3659 = vmatprep.subr.bf16.mxu0 %v2730
    %3660 = vmatpush1.bf16.msra.mxu0 %v2729
    %3661 = vmatprep.subr.bf16.mxu0 %v2734
    %3662 = vmatpush1.bf16.msra.mxu0 %v2733
    %3663 = vmatprep.mubr.bf16.mxu0 %v702
    %3664 = vmatmul.mubr.bf16.gmra.mrb[0].mxu0 %v701
    %v3665 = vpop.f32.mrb[0].mxu0
    %v3666 = vadd.f32 %v3613, %v3665
    %v3667 = vpop.f32.mrb[0].mxu0
    %v3668 = vadd.f32 %v3615, %v3667
    %v3669 = vpop.f32.mrb[0].mxu0
    %v3670 = vadd.f32 %v3617, %v3669
    %v3671 = vpop.f32.mrb[0].mxu0
    %v3672 = vadd.f32 %v3619, %v3671
    %3673 = vmatprep.mubr.bf16.mxu0 %v718
    %3674 = vmatmul.mubr.bf16.gmra.mrb[0].mxu0 %v717
    %v3675 = vpop.f32.mrb[0].mxu0
    %v3676 = vadd.f32 %v3623, %v3675
    %v3677 = vpop.f32.mrb[0].mxu0
    %v3678 = vadd.f32 %v3625, %v3677
    %v3679 = vpop.f32.mrb[0].mxu0
    %v3680 = vadd.f32 %v3627, %v3679
    %v3681 = vpop.f32.mrb[0].mxu0
    %v3682 = vadd.f32 %v3629, %v3681
    %3683 = vdwg.mxu0
    %3684 = vmatprep.subr.bf16.mxu0 %v2738
    %3685 = vmatpush1.bf16.msra.mxu0 %v2737
    %3686 = vmatprep.subr.bf16.mxu0 %v2742
    %3687 = vmatpush1.bf16.msra.mxu0 %v2741
    %3688 = vmatprep.subr.bf16.mxu0 %v2746
    %3689 = vmatpush1.bf16.msra.mxu0 %v2745
    %3690 = vmatprep.subr.bf16.mxu0 %v2750
    %3691 = vmatpush1.bf16.msra.mxu0 %v2749
    %3692 = vmatprep.subr.bf16.mxu0 %v2754
    %3693 = vmatpush1.bf16.msra.mxu0 %v2753
    %3694 = vmatprep.subr.bf16.mxu0 %v2758
    %3695 = vmatpush1.bf16.msra.mxu0 %v2757
    %3696 = vmatprep.subr.bf16.mxu0 %v2762
    %3697 = vmatpush1.bf16.msra.mxu0 %v2761
    %3698 = vmatprep.subr.bf16.mxu0 %v2766
    %3699 = vmatpush1.bf16.msra.mxu0 %v2765
    %3700 = vmatprep.subr.bf16.mxu0 %v2770
    %3701 = vmatpush1.bf16.msra.mxu0 %v2769
    %3702 = vmatprep.subr.bf16.mxu0 %v2774
    %3703 = vmatpush1.bf16.msra.mxu0 %v2773
    %3704 = vmatprep.subr.bf16.mxu0 %v2778
    %3705 = vmatpush1.bf16.msra.mxu0 %v2777
    %3706 = vmatprep.subr.bf16.mxu0 %v2782
    %3707 = vmatpush1.bf16.msra.mxu0 %v2781
    %3708 = vmatprep.subr.bf16.mxu0 %v2786
    %3709 = vmatpush1.bf16.msra.mxu0 %v2785
    %3710 = vmatprep.subr.bf16.mxu0 %v2790
    %3711 = vmatpush1.bf16.msra.mxu0 %v2789
    %3712 = vmatprep.subr.bf16.mxu0 %v2794
    %3713 = vmatpush1.bf16.msra.mxu0 %v2793
    %3714 = vmatprep.subr.bf16.mxu0 %v2798
    %3715 = vmatpush1.bf16.msra.mxu0 %v2797
    %3716 = vmatprep.mubr.bf16.mxu0 %v704
    %3717 = vmatmul.mubr.bf16.gmra.mrb[0].mxu0 %v703
    %v3718 = vpop.f32.mrb[0].mxu0
    %v3719 = vadd.f32 %v3666, %v3718
    %v3720 = vpop.f32.mrb[0].mxu0
    %v3721 = vadd.f32 %v3668, %v3720
    %v3722 = vpop.f32.mrb[0].mxu0
    %v3723 = vadd.f32 %v3670, %v3722
    %v3724 = vpop.f32.mrb[0].mxu0
    %v3725 = vadd.f32 %v3672, %v3724
    %3726 = vmatprep.mubr.bf16.mxu0 %v720
    %3727 = vmatmul.mubr.bf16.gmra.mrb[0].mxu0 %v719
    %v3728 = vpop.f32.mrb[0].mxu0
    %v3729 = vadd.f32 %v3676, %v3728
    %v3730 = vpop.f32.mrb[0].mxu0
    %v3731 = vadd.f32 %v3678, %v3730
    %v3732 = vpop.f32.mrb[0].mxu0
    %v3733 = vadd.f32 %v3680, %v3732
    %v3734 = vpop.f32.mrb[0].mxu0
    %v3735 = vadd.f32 %v3682, %v3734
    %3736 = vdwg.mxu0
    %3737 = vmatprep.subr.bf16.mxu0 %v2292
    %3738 = vmatpush1.bf16.msra.mxu0 %v2291
    %3739 = vmatprep.subr.bf16.mxu0 %v2296
    %3740 = vmatpush1.bf16.msra.mxu0 %v2295
    %3741 = vmatprep.subr.bf16.mxu0 %v2300
    %3742 = vmatpush1.bf16.msra.mxu0 %v2299
    %3743 = vmatprep.subr.bf16.mxu0 %v2304
    %3744 = vmatpush1.bf16.msra.mxu0 %v2303
    %3745 = vmatprep.subr.bf16.mxu0 %v2308
    %3746 = vmatpush1.bf16.msra.mxu0 %v2307
    %3747 = vmatprep.subr.bf16.mxu0 %v2312
    %3748 = vmatpush1.bf16.msra.mxu0 %v2311
    %3749 = vmatprep.subr.bf16.mxu0 %v2316
    %3750 = vmatpush1.bf16.msra.mxu0 %v2315
    %3751 = vmatprep.subr.bf16.mxu0 %v2320
    %3752 = vmatpush1.bf16.msra.mxu0 %v2319
    %3753 = vmatprep.subr.bf16.mxu0 %v2324
    %3754 = vmatpush1.bf16.msra.mxu0 %v2323
    %3755 = vmatprep.subr.bf16.mxu0 %v2328
    %3756 = vmatpush1.bf16.msra.mxu0 %v2327
    %3757 = vmatprep.subr.bf16.mxu0 %v2332
    %3758 = vmatpush1.bf16.msra.mxu0 %v2331
    %3759 = vmatprep.subr.bf16.mxu0 %v2336
    %3760 = vmatpush1.bf16.msra.mxu0 %v2335
    %3761 = vmatprep.subr.bf16.mxu0 %v2340
    %3762 = vmatpush1.bf16.msra.mxu0 %v2339
    %3763 = vmatprep.subr.bf16.mxu0 %v2344
    %3764 = vmatpush1.bf16.msra.mxu0 %v2343
    %3765 = vmatprep.subr.bf16.mxu0 %v2348
    %3766 = vmatpush1.bf16.msra.mxu0 %v2347
    %3767 = vmatprep.subr.bf16.mxu0 %v2352
    %3768 = vmatpush1.bf16.msra.mxu0 %v2351
    %3769 = vmatprep.mubr.bf16.mxu0 %v690
    %3770 = vmatmul.mubr.bf16.gmra.mrb[0].mxu0 %v689
    %v3771 = vpop.f32.mrb[0].mxu0
    %v3772 = vadd.f32 %v584, %v3771
    %v3773 = vpop.f32.mrb[0].mxu0
    %v3774 = vadd.f32 %v588, %v3773
    %v3775 = vpop.f32.mrb[0].mxu0
    %v3776 = vadd.f32 %v584, %v3775
    %v3777 = vpop.f32.mrb[0].mxu0
    %v3778 = vadd.f32 %v588, %v3777
    %3779 = vmatprep.mubr.bf16.mxu0 %v706
    %3780 = vmatmul.mubr.bf16.gmra.mrb[0].mxu0 %v705
    %v3781 = vpop.f32.mrb[0].mxu0
    %v3782 = vadd.f32 %v584, %v3781
    %v3783 = vpop.f32.mrb[0].mxu0
    %v3784 = vadd.f32 %v588, %v3783
    %v3785 = vpop.f32.mrb[0].mxu0
    %v3786 = vadd.f32 %v584, %v3785
    %v3787 = vpop.f32.mrb[0].mxu0
    %v3788 = vadd.f32 %v588, %v3787
    %3789 = vdwg.mxu0
    %3790 = vmatprep.subr.bf16.mxu0 %v2356
    %3791 = vmatpush1.bf16.msra.mxu0 %v2355
    %3792 = vmatprep.subr.bf16.mxu0 %v2360
    %3793 = vmatpush1.bf16.msra.mxu0 %v2359
    %3794 = vmatprep.subr.bf16.mxu0 %v2364
    %3795 = vmatpush1.bf16.msra.mxu0 %v2363
    %3796 = vmatprep.subr.bf16.mxu0 %v2368
    %3797 = vmatpush1.bf16.msra.mxu0 %v2367
    %3798 = vmatprep.subr.bf16.mxu0 %v2372
    %3799 = vmatpush1.bf16.msra.mxu0 %v2371
    %3800 = vmatprep.subr.bf16.mxu0 %v2376
    %3801 = vmatpush1.bf16.msra.mxu0 %v2375
    %3802 = vmatprep.subr.bf16.mxu0 %v2380
    %3803 = vmatpush1.bf16.msra.mxu0 %v2379
    %3804 = vmatprep.subr.bf16.mxu0 %v2384
    %3805 = vmatpush1.bf16.msra.mxu0 %v2383
    %3806 = vmatprep.subr.bf16.mxu0 %v2388
    %3807 = vmatpush1.bf16.msra.mxu0 %v2387
    %3808 = vmatprep.subr.bf16.mxu0 %v2392
    %3809 = vmatpush1.bf16.msra.mxu0 %v2391
    %3810 = vmatprep.subr.bf16.mxu0 %v2396
    %3811 = vmatpush1.bf16.msra.mxu0 %v2395
    %3812 = vmatprep.subr.bf16.mxu0 %v2400
    %3813 = vmatpush1.bf16.msra.mxu0 %v2399
    %3814 = vmatprep.subr.bf16.mxu0 %v2404
    %3815 = vmatpush1.bf16.msra.mxu0 %v2403
    %3816 = vmatprep.subr.bf16.mxu0 %v2408
    %3817 = vmatpush1.bf16.msra.mxu0 %v2407
    %3818 = vmatprep.subr.bf16.mxu0 %v2412
    %3819 = vmatpush1.bf16.msra.mxu0 %v2411
    %3820 = vmatprep.subr.bf16.mxu0 %v2416
    %3821 = vmatpush1.bf16.msra.mxu0 %v2415
    %3822 = vmatprep.mubr.bf16.mxu0 %v692
    %3823 = vmatmul.mubr.bf16.gmra.mrb[0].mxu0 %v691
    %v3824 = vpop.f32.mrb[0].mxu0
    %v3825 = vadd.f32 %v3772, %v3824
    %v3826 = vpop.f32.mrb[0].mxu0
    %v3827 = vadd.f32 %v3774, %v3826
    %v3828 = vpop.f32.mrb[0].mxu0
    %v3829 = vadd.f32 %v3776, %v3828
    %v3830 = vpop.f32.mrb[0].mxu0
    %v3831 = vadd.f32 %v3778, %v3830
    %3832 = vmatprep.mubr.bf16.mxu0 %v708
    %3833 = vmatmul.mubr.bf16.gmra.mrb[0].mxu0 %v707
    %v3834 = vpop.f32.mrb[0].mxu0
    %v3835 = vadd.f32 %v3782, %v3834
    %v3836 = vpop.f32.mrb[0].mxu0
    %v3837 = vadd.f32 %v3784, %v3836
    %v3838 = vpop.f32.mrb[0].mxu0
    %v3839 = vadd.f32 %v3786, %v3838
    %v3840 = vpop.f32.mrb[0].mxu0
    %v3841 = vadd.f32 %v3788, %v3840
    %3842 = vdwg.mxu0
    %3843 = vmatprep.subr.bf16.mxu0 %v2420
    %3844 = vmatpush1.bf16.msra.mxu0 %v2419
    %3845 = vmatprep.subr.bf16.mxu0 %v2424
    %3846 = vmatpush1.bf16.msra.mxu0 %v2423
    %3847 = vmatprep.subr.bf16.mxu0 %v2428
    %3848 = vmatpush1.bf16.msra.mxu0 %v2427
    %3849 = vmatprep.subr.bf16.mxu0 %v2432
    %3850 = vmatpush1.bf16.msra.mxu0 %v2431
    %3851 = vmatprep.subr.bf16.mxu0 %v2436
    %3852 = vmatpush1.bf16.msra.mxu0 %v2435
    %3853 = vmatprep.subr.bf16.mxu0 %v2440
    %3854 = vmatpush1.bf16.msra.mxu0 %v2439
    %3855 = vmatprep.subr.bf16.mxu0 %v2444
    %3856 = vmatpush1.bf16.msra.mxu0 %v2443
    %3857 = vmatprep.subr.bf16.mxu0 %v2448
    %3858 = vmatpush1.bf16.msra.mxu0 %v2447
    %3859 = vmatprep.subr.bf16.mxu0 %v2452
    %3860 = vmatpush1.bf16.msra.mxu0 %v2451
    %3861 = vmatprep.subr.bf16.mxu0 %v2456
    %3862 = vmatpush1.bf16.msra.mxu0 %v2455
    %3863 = vmatprep.subr.bf16.mxu0 %v2460
    %3864 = vmatpush1.bf16.msra.mxu0 %v2459
    %3865 = vmatprep.subr.bf16.mxu0 %v2464
    %3866 = vmatpush1.bf16.msra.mxu0 %v2463
    %3867 = vmatprep.subr.bf16.mxu0 %v2468
    %3868 = vmatpush1.bf16.msra.mxu0 %v2467
    %3869 = vmatprep.subr.bf16.mxu0 %v2472
    %3870 = vmatpush1.bf16.msra.mxu0 %v2471
    %3871 = vmatprep.subr.bf16.mxu0 %v2476
    %3872 = vmatpush1.bf16.msra.mxu0 %v2475
    %3873 = vmatprep.subr.bf16.mxu0 %v2480
    %3874 = vmatpush1.bf16.msra.mxu0 %v2479
    %3875 = vmatprep.mubr.bf16.mxu0 %v694
    %3876 = vmatmul.mubr.bf16.gmra.mrb[0].mxu0 %v693
    %v3877 = vpop.f32.mrb[0].mxu0
    %v3878 = vadd.f32 %v3825, %v3877
    %v3879 = vpop.f32.mrb[0].mxu0
    %v3880 = vadd.f32 %v3827, %v3879
    %v3881 = vpop.f32.mrb[0].mxu0
    %v3882 = vadd.f32 %v3829, %v3881
    %v3883 = vpop.f32.mrb[0].mxu0
    %v3884 = vadd.f32 %v3831, %v3883
    %3885 = vmatprep.mubr.bf16.mxu0 %v710
    %3886 = vmatmul.mubr.bf16.gmra.mrb[0].mxu0 %v709
    %v3887 = vpop.f32.mrb[0].mxu0
    %v3888 = vadd.f32 %v3835, %v3887
    %v3889 = vpop.f32.mrb[0].mxu0
    %v3890 = vadd.f32 %v3837, %v3889
    %v3891 = vpop.f32.mrb[0].mxu0
    %v3892 = vadd.f32 %v3839, %v3891
    %v3893 = vpop.f32.mrb[0].mxu0
    %v3894 = vadd.f32 %v3841, %v3893
    %3895 = vdwg.mxu0
    %3896 = vmatprep.subr.bf16.mxu0 %v2484
    %3897 = vmatpush1.bf16.msra.mxu0 %v2483
    %3898 = vmatprep.subr.bf16.mxu0 %v2488
    %3899 = vmatpush1.bf16.msra.mxu0 %v2487
    %3900 = vmatprep.subr.bf16.mxu0 %v2492
    %3901 = vmatpush1.bf16.msra.mxu0 %v2491
    %3902 = vmatprep.subr.bf16.mxu0 %v2496
    %3903 = vmatpush1.bf16.msra.mxu0 %v2495
    %3904 = vmatprep.subr.bf16.mxu0 %v2500
    %3905 = vmatpush1.bf16.msra.mxu0 %v2499
    %3906 = vmatprep.subr.bf16.mxu0 %v2504
    %3907 = vmatpush1.bf16.msra.mxu0 %v2503
    %3908 = vmatprep.subr.bf16.mxu0 %v2508
    %3909 = vmatpush1.bf16.msra.mxu0 %v2507
    %3910 = vmatprep.subr.bf16.mxu0 %v2512
    %3911 = vmatpush1.bf16.msra.mxu0 %v2511
    %3912 = vmatprep.subr.bf16.mxu0 %v2516
    %3913 = vmatpush1.bf16.msra.mxu0 %v2515
    %3914 = vmatprep.subr.bf16.mxu0 %v2520
    %3915 = vmatpush1.bf16.msra.mxu0 %v2519
    %3916 = vmatprep.subr.bf16.mxu0 %v2524
    %3917 = vmatpush1.bf16.msra.mxu0 %v2523
    %3918 = vmatprep.subr.bf16.mxu0 %v2528
    %3919 = vmatpush1.bf16.msra.mxu0 %v2527
    %3920 = vmatprep.subr.bf16.mxu0 %v2532
    %3921 = vmatpush1.bf16.msra.mxu0 %v2531
    %3922 = vmatprep.subr.bf16.mxu0 %v2536
    %3923 = vmatpush1.bf16.msra.mxu0 %v2535
    %3924 = vmatprep.subr.bf16.mxu0 %v2540
    %3925 = vmatpush1.bf16.msra.mxu0 %v2539
    %3926 = vmatprep.subr.bf16.mxu0 %v2544
    %3927 = vmatpush1.bf16.msra.mxu0 %v2543
    %3928 = vmatprep.mubr.bf16.mxu0 %v696
    %3929 = vmatmul.mubr.bf16.gmra.mrb[0].mxu0 %v695
    %v3930 = vpop.f32.mrb[0].mxu0
    %v3931 = vadd.f32 %v3878, %v3930
    %v3932 = vpop.f32.mrb[0].mxu0
    %v3933 = vadd.f32 %v3880, %v3932
    %v3934 = vpop.f32.mrb[0].mxu0
    %v3935 = vadd.f32 %v3882, %v3934
    %v3936 = vpop.f32.mrb[0].mxu0
    %v3937 = vadd.f32 %v3884, %v3936
    %3938 = vmatprep.mubr.bf16.mxu0 %v712
    %3939 = vmatmul.mubr.bf16.gmra.mrb[0].mxu0 %v711
    %v3940 = vpop.f32.mrb[0].mxu0
    %v3941 = vadd.f32 %v3888, %v3940
    %v3942 = vpop.f32.mrb[0].mxu0
    %v3943 = vadd.f32 %v3890, %v3942
    %v3944 = vpop.f32.mrb[0].mxu0
    %v3945 = vadd.f32 %v3892, %v3944
    %v3946 = vpop.f32.mrb[0].mxu0
    %v3947 = vadd.f32 %v3894, %v3946
    %3948 = vdwg.mxu0
    %3949 = vmatprep.subr.bf16.mxu0 %v2548
    %3950 = vmatpush1.bf16.msra.mxu0 %v2547
    %3951 = vmatprep.subr.bf16.mxu0 %v2552
    %3952 = vmatpush1.bf16.msra.mxu0 %v2551
    %3953 = vmatprep.subr.bf16.mxu0 %v2556
    %3954 = vmatpush1.bf16.msra.mxu0 %v2555
    %3955 = vmatprep.subr.bf16.mxu0 %v2560
    %3956 = vmatpush1.bf16.msra.mxu0 %v2559
    %3957 = vmatprep.subr.bf16.mxu0 %v2564
    %3958 = vmatpush1.bf16.msra.mxu0 %v2563
    %3959 = vmatprep.subr.bf16.mxu0 %v2568
    %3960 = vmatpush1.bf16.msra.mxu0 %v2567
    %3961 = vmatprep.subr.bf16.mxu0 %v2572
    %3962 = vmatpush1.bf16.msra.mxu0 %v2571
    %3963 = vmatprep.subr.bf16.mxu0 %v2576
    %3964 = vmatpush1.bf16.msra.mxu0 %v2575
    %3965 = vmatprep.subr.bf16.mxu0 %v2580
    %3966 = vmatpush1.bf16.msra.mxu0 %v2579
    %3967 = vmatprep.subr.bf16.mxu0 %v2584
    %3968 = vmatpush1.bf16.msra.mxu0 %v2583
    %3969 = vmatprep.subr.bf16.mxu0 %v2588
    %3970 = vmatpush1.bf16.msra.mxu0 %v2587
    %3971 = vmatprep.subr.bf16.mxu0 %v2592
    %3972 = vmatpush1.bf16.msra.mxu0 %v2591
    %3973 = vmatprep.subr.bf16.mxu0 %v2596
    %3974 = vmatpush1.bf16.msra.mxu0 %v2595
    %3975 = vmatprep.subr.bf16.mxu0 %v2600
    %3976 = vmatpush1.bf16.msra.mxu0 %v2599
    %3977 = vmatprep.subr.bf16.mxu0 %v2604
    %3978 = vmatpush1.bf16.msra.mxu0 %v2603
    %3979 = vmatprep.subr.bf16.mxu0 %v2608
    %3980 = vmatpush1.bf16.msra.mxu0 %v2607
    %3981 = vmatprep.mubr.bf16.mxu0 %v698
    %3982 = vmatmul.mubr.bf16.gmra.mrb[0].mxu0 %v697
    %v3983 = vpop.f32.mrb[0].mxu0
    %v3984 = vadd.f32 %v3931, %v3983
    %v3985 = vpop.f32.mrb[0].mxu0
    %v3986 = vadd.f32 %v3933, %v3985
    %v3987 = vpop.f32.mrb[0].mxu0
    %v3988 = vadd.f32 %v3935, %v3987
    %v3989 = vpop.f32.mrb[0].mxu0
    %v3990 = vadd.f32 %v3937, %v3989
    %3991 = vmatprep.mubr.bf16.mxu0 %v714
    %3992 = vmatmul.mubr.bf16.gmra.mrb[0].mxu0 %v713
    %v3993 = vpop.f32.mrb[0].mxu0
    %v3994 = vadd.f32 %v3941, %v3993
    %v3995 = vpop.f32.mrb[0].mxu0
    %v3996 = vadd.f32 %v3943, %v3995
    %v3997 = vpop.f32.mrb[0].mxu0
    %v3998 = vadd.f32 %v3945, %v3997
    %v3999 = vpop.f32.mrb[0].mxu0
    %v4000 = vadd.f32 %v3947, %v3999
    %4001 = vdwg.mxu0
    %4002 = vmatprep.subr.bf16.mxu0 %v2612
    %4003 = vmatpush1.bf16.msra.mxu0 %v2611
    %4004 = vmatprep.subr.bf16.mxu0 %v2616
    %4005 = vmatpush1.bf16.msra.mxu0 %v2615
    %4006 = vmatprep.subr.bf16.mxu0 %v2620
    %4007 = vmatpush1.bf16.msra.mxu0 %v2619
    %4008 = vmatprep.subr.bf16.mxu0 %v2624
    %4009 = vmatpush1.bf16.msra.mxu0 %v2623
    %4010 = vmatprep.subr.bf16.mxu0 %v2628
    %4011 = vmatpush1.bf16.msra.mxu0 %v2627
    %4012 = vmatprep.subr.bf16.mxu0 %v2632
    %4013 = vmatpush1.bf16.msra.mxu0 %v2631
    %4014 = vmatprep.subr.bf16.mxu0 %v2636
    %4015 = vmatpush1.bf16.msra.mxu0 %v2635
    %4016 = vmatprep.subr.bf16.mxu0 %v2640
    %4017 = vmatpush1.bf16.msra.mxu0 %v2639
    %4018 = vmatprep.subr.bf16.mxu0 %v2644
    %4019 = vmatpush1.bf16.msra.mxu0 %v2643
    %4020 = vmatprep.subr.bf16.mxu0 %v2648
    %4021 = vmatpush1.bf16.msra.mxu0 %v2647
    %4022 = vmatprep.subr.bf16.mxu0 %v2652
    %4023 = vmatpush1.bf16.msra.mxu0 %v2651
    %4024 = vmatprep.subr.bf16.mxu0 %v2656
    %4025 = vmatpush1.bf16.msra.mxu0 %v2655
    %4026 = vmatprep.subr.bf16.mxu0 %v2660
    %4027 = vmatpush1.bf16.msra.mxu0 %v2659
    %4028 = vmatprep.subr.bf16.mxu0 %v2664
    %4029 = vmatpush1.bf16.msra.mxu0 %v2663
    %4030 = vmatprep.subr.bf16.mxu0 %v2668
    %4031 = vmatpush1.bf16.msra.mxu0 %v2667
    %4032 = vmatprep.subr.bf16.mxu0 %v2672
    %4033 = vmatpush1.bf16.msra.mxu0 %v2671
    %4034 = vmatprep.mubr.bf16.mxu0 %v700
    %4035 = vmatmul.mubr.bf16.gmra.mrb[0].mxu0 %v699
    %v4036 = vpop.f32.mrb[0].mxu0
    %v4037 = vadd.f32 %v3984, %v4036
    %v4038 = vpop.f32.mrb[0].mxu0
    %v4039 = vadd.f32 %v3986, %v4038
    %v4040 = vpop.f32.mrb[0].mxu0
    %v4041 = vadd.f32 %v3988, %v4040
    %v4042 = vpop.f32.mrb[0].mxu0
    %v4043 = vadd.f32 %v3990, %v4042
    %4044 = vmatprep.mubr.bf16.mxu0 %v716
    %4045 = vmatmul.mubr.bf16.gmra.mrb[0].mxu0 %v715
    %v4046 = vpop.f32.mrb[0].mxu0
    %v4047 = vadd.f32 %v3994, %v4046
    %v4048 = vpop.f32.mrb[0].mxu0
    %v4049 = vadd.f32 %v3996, %v4048
    %v4050 = vpop.f32.mrb[0].mxu0
    %v4051 = vadd.f32 %v3998, %v4050
    %v4052 = vpop.f32.mrb[0].mxu0
    %v4053 = vadd.f32 %v4000, %v4052
    %4054 = vdwg.mxu0
    %4055 = vmatprep.subr.bf16.mxu0 %v2676
    %4056 = vmatpush1.bf16.msra.mxu0 %v2675
    %4057 = vmatprep.subr.bf16.mxu0 %v2680
    %4058 = vmatpush1.bf16.msra.mxu0 %v2679
    %4059 = vmatprep.subr.bf16.mxu0 %v2684
    %4060 = vmatpush1.bf16.msra.mxu0 %v2683
    %4061 = vmatprep.subr.bf16.mxu0 %v2688
    %4062 = vmatpush1.bf16.msra.mxu0 %v2687
    %4063 = vmatprep.subr.bf16.mxu0 %v2692
    %4064 = vmatpush1.bf16.msra.mxu0 %v2691
    %4065 = vmatprep.subr.bf16.mxu0 %v2696
    %4066 = vmatpush1.bf16.msra.mxu0 %v2695
    %4067 = vmatprep.subr.bf16.mxu0 %v2700
    %4068 = vmatpush1.bf16.msra.mxu0 %v2699
    %4069 = vmatprep.subr.bf16.mxu0 %v2704
    %4070 = vmatpush1.bf16.msra.mxu0 %v2703
    %4071 = vmatprep.subr.bf16.mxu0 %v2708
    %4072 = vmatpush1.bf16.msra.mxu0 %v2707
    %4073 = vmatprep.subr.bf16.mxu0 %v2712
    %4074 = vmatpush1.bf16.msra.mxu0 %v2711
    %4075 = vmatprep.subr.bf16.mxu0 %v2716
    %4076 = vmatpush1.bf16.msra.mxu0 %v2715
    %4077 = vmatprep.subr.bf16.mxu0 %v2720
    %4078 = vmatpush1.bf16.msra.mxu0 %v2719
    %4079 = vmatprep.subr.bf16.mxu0 %v2724
    %4080 = vmatpush1.bf16.msra.mxu0 %v2723
    %4081 = vmatprep.subr.bf16.mxu0 %v2728
    %4082 = vmatpush1.bf16.msra.mxu0 %v2727
    %4083 = vmatprep.subr.bf16.mxu0 %v2732
    %4084 = vmatpush1.bf16.msra.mxu0 %v2731
    %4085 = vmatprep.subr.bf16.mxu0 %v2736
    %4086 = vmatpush1.bf16.msra.mxu0 %v2735
    %4087 = vmatprep.mubr.bf16.mxu0 %v702
    %4088 = vmatmul.mubr.bf16.gmra.mrb[0].mxu0 %v701
    %v4089 = vpop.f32.mrb[0].mxu0
    %v4090 = vadd.f32 %v4037, %v4089
    %v4091 = vpop.f32.mrb[0].mxu0
    %v4092 = vadd.f32 %v4039, %v4091
    %v4093 = vpop.f32.mrb[0].mxu0
    %v4094 = vadd.f32 %v4041, %v4093
    %v4095 = vpop.f32.mrb[0].mxu0
    %v4096 = vadd.f32 %v4043, %v4095
    %4097 = vmatprep.mubr.bf16.mxu0 %v718
    %4098 = vmatmul.mubr.bf16.gmra.mrb[0].mxu0 %v717
    %v4099 = vpop.f32.mrb[0].mxu0
    %v4100 = vadd.f32 %v4047, %v4099
    %v4101 = vpop.f32.mrb[0].mxu0
    %v4102 = vadd.f32 %v4049, %v4101
    %v4103 = vpop.f32.mrb[0].mxu0
    %v4104 = vadd.f32 %v4051, %v4103
    %v4105 = vpop.f32.mrb[0].mxu0
    %v4106 = vadd.f32 %v4053, %v4105
    %4107 = vdwg.mxu0
    %4108 = vmatprep.subr.bf16.mxu0 %v2740
    %4109 = vmatpush1.bf16.msra.mxu0 %v2739
    %4110 = vmatprep.subr.bf16.mxu0 %v2744
    %4111 = vmatpush1.bf16.msra.mxu0 %v2743
    %4112 = vmatprep.subr.bf16.mxu0 %v2748
    %4113 = vmatpush1.bf16.msra.mxu0 %v2747
    %4114 = vmatprep.subr.bf16.mxu0 %v2752
    %4115 = vmatpush1.bf16.msra.mxu0 %v2751
    %4116 = vmatprep.subr.bf16.mxu0 %v2756
    %4117 = vmatpush1.bf16.msra.mxu0 %v2755
    %4118 = vmatprep.subr.bf16.mxu0 %v2760
    %4119 = vmatpush1.bf16.msra.mxu0 %v2759
    %4120 = vmatprep.subr.bf16.mxu0 %v2764
    %4121 = vmatpush1.bf16.msra.mxu0 %v2763
    %4122 = vmatprep.subr.bf16.mxu0 %v2768
    %4123 = vmatpush1.bf16.msra.mxu0 %v2767
    %4124 = vmatprep.subr.bf16.mxu0 %v2772
    %4125 = vmatpush1.bf16.msra.mxu0 %v2771
    %4126 = vmatprep.subr.bf16.mxu0 %v2776
    %4127 = vmatpush1.bf16.msra.mxu0 %v2775
    %4128 = vmatprep.subr.bf16.mxu0 %v2780
    %4129 = vmatpush1.bf16.msra.mxu0 %v2779
    %4130 = vmatprep.subr.bf16.mxu0 %v2784
    %4131 = vmatpush1.bf16.msra.mxu0 %v2783
    %4132 = vmatprep.subr.bf16.mxu0 %v2788
    %4133 = vmatpush1.bf16.msra.mxu0 %v2787
    %4134 = vmatprep.subr.bf16.mxu0 %v2792
    %4135 = vmatpush1.bf16.msra.mxu0 %v2791
    %4136 = vmatprep.subr.bf16.mxu0 %v2796
    %4137 = vmatpush1.bf16.msra.mxu0 %v2795
    %4138 = vmatprep.subr.bf16.mxu0 %v2800
    %4139 = vmatpush1.bf16.msra.mxu0 %v2799
    %4140 = vmatprep.mubr.bf16.mxu0 %v704
    %4141 = vmatmul.mubr.bf16.gmra.mrb[0].mxu0 %v703
    %v4142 = vpop.f32.mrb[0].mxu0
    %v4143 = vadd.f32 %v4090, %v4142
    %v4144 = vpop.f32.mrb[0].mxu0
    %v4145 = vadd.f32 %v4092, %v4144
    %v4146 = vpop.f32.mrb[0].mxu0
    %v4147 = vadd.f32 %v4094, %v4146
    %v4148 = vpop.f32.mrb[0].mxu0
    %v4149 = vadd.f32 %v4096, %v4148
    %4150 = vmatprep.mubr.bf16.mxu0 %v720
    %4151 = vmatmul.mubr.bf16.gmra.mrb[0].mxu0 %v719
    %v4152 = vpop.f32.mrb[0].mxu0
    %v4153 = vadd.f32 %v4100, %v4152
    %v4154 = vpop.f32.mrb[0].mxu0
    %v4155 = vadd.f32 %v4102, %v4154
    %v4156 = vpop.f32.mrb[0].mxu0
    %v4157 = vadd.f32 %v4104, %v4156
    %v4158 = vpop.f32.mrb[0].mxu0
    %v4159 = vadd.f32 %v4106, %v4158
    %4160 = vdwg.mxu0
    %v4161 = vpack.c.bf16 %v3723, %v3719
    %v4162 = vpack.c.bf16 %v3725, %v3721
    %v4163 = vpack.c.bf16 %v4147, %v4143
    %v4164 = vpack.c.bf16 %v4149, %v4145
    %v4165 = vpack.c.bf16 %v3733, %v3729
    %v4166 = vpack.c.bf16 %v3735, %v3731
    %v4167 = vpack.c.bf16 %v4157, %v4153
    %v4168 = vpack.c.bf16 %v4159, %v4155
    %v4169 = vld [vmem:[%s3] sm:$0xf]
    %v4170 = vld [vmem:[%s3 + $0x4] sm:$0xf]
    %v4171 = vld [vmem:[%s3 + $0x8] sm:$0xf]
    %v4172 = vld [vmem:[%s3 + $0xc] sm:$0xf]
    %v4173 = vld [vmem:[%s3 + $0x10] sm:$0xf]
    %v4174 = vld [vmem:[%s3 + $0x14] sm:$0xf]
    %v4175 = vld [vmem:[%s3 + $0x18] sm:$0xf]
    %v4176 = vld [vmem:[%s3 + $0x1c] sm:$0xf]
    %v4177 = vld [vmem:[%s3 + $0x20] sm:$0xf]
    %v4178 = vld [vmem:[%s3 + $0x24] sm:$0xf]
    %v4179 = vld [vmem:[%s3 + $0x28] sm:$0xf]
    %v4180 = vld [vmem:[%s3 + $0x2c] sm:$0xf]
    %v4181 = vld [vmem:[%s3 + $0x30] sm:$0xf]
    %v4182 = vld [vmem:[%s3 + $0x34] sm:$0xf]
    %v4183 = vld [vmem:[%s3 + $0x38] sm:$0xf]
    %v4184 = vld [vmem:[%s3 + $0x3c] sm:$0xf]
    %v4185 = vld [vmem:[%s3 + $0x40] sm:$0xf]
    %v4186 = vld [vmem:[%s3 + $0x44] sm:$0xf]
    %v4187 = vld [vmem:[%s3 + $0x48] sm:$0xf]
    %v4188 = vld [vmem:[%s3 + $0x4c] sm:$0xf]
    %v4189 = vld [vmem:[%s3 + $0x50] sm:$0xf]
    %v4190 = vld [vmem:[%s3 + $0x54] sm:$0xf]
    %v4191 = vld [vmem:[%s3 + $0x58] sm:$0xf]
    %v4192 = vld [vmem:[%s3 + $0x5c] sm:$0xf]
    %v4193 = vld [vmem:[%s3 + $0x60] sm:$0xf]
    %v4194 = vld [vmem:[%s3 + $0x64] sm:$0xf]
    %v4195 = vld [vmem:[%s3 + $0x68] sm:$0xf]
    %v4196 = vld [vmem:[%s3 + $0x6c] sm:$0xf]
    %v4197 = vld [vmem:[%s3 + $0x70] sm:$0xf]
    %v4198 = vld [vmem:[%s3 + $0x74] sm:$0xf]
    %v4199 = vld [vmem:[%s3 + $0x78] sm:$0xf]
    %v4200 = vld [vmem:[%s3 + $0x7c] sm:$0xf]
    %v4201 = vld [vmem:[%s3 + $0x80] sm:$0xf]
    %v4202 = vld [vmem:[%s3 + $0x84] sm:$0xf]
    %v4203 = vld [vmem:[%s3 + $0x88] sm:$0xf]
    %v4204 = vld [vmem:[%s3 + $0x8c] sm:$0xf]
    %v4205 = vld [vmem:[%s3 + $0x90] sm:$0xf]
    %v4206 = vld [vmem:[%s3 + $0x94] sm:$0xf]
    %v4207 = vld [vmem:[%s3 + $0x98] sm:$0xf]
    %v4208 = vld [vmem:[%s3 + $0x9c] sm:$0xf]
    %v4209 = vld [vmem:[%s3 + $0xa0] sm:$0xf]
    %v4210 = vld [vmem:[%s3 + $0xa4] sm:$0xf]
    %v4211 = vld [vmem:[%s3 + $0xa8] sm:$0xf]
    %v4212 = vld [vmem:[%s3 + $0xac] sm:$0xf]
    %v4213 = vld [vmem:[%s3 + $0xb0] sm:$0xf]
    %v4214 = vld [vmem:[%s3 + $0xb4] sm:$0xf]
    %v4215 = vld [vmem:[%s3 + $0xb8] sm:$0xf]
    %v4216 = vld [vmem:[%s3 + $0xbc] sm:$0xf]
    %v4217 = vld [vmem:[%s3 + $0xc0] sm:$0xf]
    %v4218 = vld [vmem:[%s3 + $0xc4] sm:$0xf]
    %v4219 = vld [vmem:[%s3 + $0xc8] sm:$0xf]
    %v4220 = vld [vmem:[%s3 + $0xcc] sm:$0xf]
    %v4221 = vld [vmem:[%s3 + $0xd0] sm:$0xf]
    %v4222 = vld [vmem:[%s3 + $0xd4] sm:$0xf]
    %v4223 = vld [vmem:[%s3 + $0xd8] sm:$0xf]
    %v4224 = vld [vmem:[%s3 + $0xdc] sm:$0xf]
    %v4225 = vld [vmem:[%s3 + $0xe0] sm:$0xf]
    %v4226 = vld [vmem:[%s3 + $0xe4] sm:$0xf]
    %v4227 = vld [vmem:[%s3 + $0xe8] sm:$0xf]
    %v4228 = vld [vmem:[%s3 + $0xec] sm:$0xf]
    %v4229 = vld [vmem:[%s3 + $0xf0] sm:$0xf]
    %v4230 = vld [vmem:[%s3 + $0xf4] sm:$0xf]
    %v4231 = vld [vmem:[%s3 + $0xf8] sm:$0xf]
    %v4232 = vld [vmem:[%s3 + $0xfc] sm:$0xf]
    %v4233 = vld [vmem:[%s4] sm:$0x1]
    %v4235 = vlaneseq
    %v4236 = vshrl.u32 %v4235, 7
    %v4237 = vsub.s32 0, %v4236
    %v4238 = vrot.slane %v4233, %v4237
    %v4304 = vunpack.c.l.b16 %v4169
    %v4305 = vunpack.c.l.b16 %v4170
    %v4306 = vunpack.c.l.b16 %v4171
    %v4307 = vunpack.c.l.b16 %v4172
    %v4308 = vunpack.c.l.b16 %v4173
    %v4309 = vunpack.c.l.b16 %v4174
    %v4310 = vunpack.c.l.b16 %v4175
    %v4311 = vunpack.c.l.b16 %v4176
    %v4312 = vunpack.c.l.b16 %v4177
    %v4313 = vunpack.c.l.b16 %v4178
    %v4314 = vunpack.c.l.b16 %v4179
    %v4315 = vunpack.c.l.b16 %v4180
    %v4316 = vunpack.c.l.b16 %v4181
    %v4317 = vunpack.c.l.b16 %v4182
    %v4318 = vunpack.c.l.b16 %v4183
    %v4319 = vunpack.c.l.b16 %v4184
    %v4320 = vunpack.c.l.b16 %v4185
    %v4321 = vunpack.c.l.b16 %v4186
    %v4322 = vunpack.c.l.b16 %v4187
    %v4323 = vunpack.c.l.b16 %v4188
    %v4324 = vunpack.c.l.b16 %v4189
    %v4325 = vunpack.c.l.b16 %v4190
    %v4326 = vunpack.c.l.b16 %v4191
    %v4327 = vunpack.c.l.b16 %v4192
    %v4328 = vunpack.c.l.b16 %v4193
    %v4329 = vunpack.c.l.b16 %v4194
    %v4330 = vunpack.c.l.b16 %v4195
    %v4331 = vunpack.c.l.b16 %v4196
    %v4332 = vunpack.c.l.b16 %v4197
    %v4333 = vunpack.c.l.b16 %v4198
    %v4334 = vunpack.c.l.b16 %v4199
    %v4335 = vunpack.c.l.b16 %v4200
    %v4336 = vunpack.c.l.b16 %v4201
    %v4337 = vunpack.c.l.b16 %v4202
    %v4338 = vunpack.c.l.b16 %v4203
    %v4339 = vunpack.c.l.b16 %v4204
    %v4340 = vunpack.c.l.b16 %v4205
    %v4341 = vunpack.c.l.b16 %v4206
    %v4342 = vunpack.c.l.b16 %v4207
    %v4343 = vunpack.c.l.b16 %v4208
    %v4344 = vunpack.c.l.b16 %v4209
    %v4345 = vunpack.c.l.b16 %v4210
    %v4346 = vunpack.c.l.b16 %v4211
    %v4347 = vunpack.c.l.b16 %v4212
    %v4348 = vunpack.c.l.b16 %v4213
    %v4349 = vunpack.c.l.b16 %v4214
    %v4350 = vunpack.c.l.b16 %v4215
    %v4351 = vunpack.c.l.b16 %v4216
    %v4352 = vunpack.c.l.b16 %v4217
    %v4353 = vunpack.c.l.b16 %v4218
    %v4354 = vunpack.c.l.b16 %v4219
    %v4355 = vunpack.c.l.b16 %v4220
    %v4356 = vunpack.c.l.b16 %v4221
    %v4357 = vunpack.c.l.b16 %v4222
    %v4358 = vunpack.c.l.b16 %v4223
    %v4359 = vunpack.c.l.b16 %v4224
    %v4360 = vunpack.c.l.b16 %v4225
    %v4361 = vunpack.c.l.b16 %v4226
    %v4362 = vunpack.c.l.b16 %v4227
    %v4363 = vunpack.c.l.b16 %v4228
    %v4364 = vunpack.c.l.b16 %v4229
    %v4365 = vunpack.c.l.b16 %v4230
    %v4366 = vunpack.c.l.b16 %v4231
    %v4367 = vunpack.c.l.b16 %v4232
    %v4368 = vpack.c.b16 %v4305, %v4304
    %v4369 = vpack.c.b16 %v4307, %v4306
    %v4370 = vpack.c.b16 %v4309, %v4308
    %v4371 = vpack.c.b16 %v4311, %v4310
    %v4372 = vpack.c.b16 %v4313, %v4312
    %v4373 = vpack.c.b16 %v4315, %v4314
    %v4374 = vpack.c.b16 %v4317, %v4316
    %v4375 = vpack.c.b16 %v4319, %v4318
    %v4376 = vpack.c.b16 %v4321, %v4320
    %v4377 = vpack.c.b16 %v4323, %v4322
    %v4378 = vpack.c.b16 %v4325, %v4324
    %v4379 = vpack.c.b16 %v4327, %v4326
    %v4380 = vpack.c.b16 %v4329, %v4328
    %v4381 = vpack.c.b16 %v4331, %v4330
    %v4382 = vpack.c.b16 %v4333, %v4332
    %v4383 = vpack.c.b16 %v4335, %v4334
    %v4384 = vpack.c.b16 %v4337, %v4336
    %v4385 = vpack.c.b16 %v4339, %v4338
    %v4386 = vpack.c.b16 %v4341, %v4340
    %v4387 = vpack.c.b16 %v4343, %v4342
    %v4388 = vpack.c.b16 %v4345, %v4344
    %v4389 = vpack.c.b16 %v4347, %v4346
    %v4390 = vpack.c.b16 %v4349, %v4348
    %v4391 = vpack.c.b16 %v4351, %v4350
    %v4392 = vpack.c.b16 %v4353, %v4352
    %v4393 = vpack.c.b16 %v4355, %v4354
    %v4394 = vpack.c.b16 %v4357, %v4356
    %v4395 = vpack.c.b16 %v4359, %v4358
    %v4396 = vpack.c.b16 %v4361, %v4360
    %v4397 = vpack.c.b16 %v4363, %v4362
    %v4398 = vpack.c.b16 %v4365, %v4364
    %v4399 = vpack.c.b16 %v4367, %v4366
    %4432 = vmatprep.subr.bf16.mxu0 0
    %4433 = vmatpush1.bf16.msra.mxu0 %v4368
    %4434 = vmatprep.subr.bf16.mxu0 0
    %4435 = vmatpush1.bf16.msra.mxu0 %v4369
    %4436 = vmatprep.subr.bf16.mxu0 0
    %4437 = vmatpush1.bf16.msra.mxu0 %v4370
    %4438 = vmatprep.subr.bf16.mxu0 0
    %4439 = vmatpush1.bf16.msra.mxu0 %v4371
    %4440 = vmatprep.subr.bf16.mxu0 0
    %4441 = vmatpush1.bf16.msra.mxu0 %v4372
    %4442 = vmatprep.subr.bf16.mxu0 0
    %4443 = vmatpush1.bf16.msra.mxu0 %v4373
    %4444 = vmatprep.subr.bf16.mxu0 0
    %4445 = vmatpush1.bf16.msra.mxu0 %v4374
    %4446 = vmatprep.subr.bf16.mxu0 0
    %4447 = vmatpush1.bf16.msra.mxu0 %v4375
    %4448 = vmatprep.subr.bf16.mxu0 0
    %4449 = vmatpush1.bf16.msra.mxu0 %v4376
    %4450 = vmatprep.subr.bf16.mxu0 0
    %4451 = vmatpush1.bf16.msra.mxu0 %v4377
    %4452 = vmatprep.subr.bf16.mxu0 0
    %4453 = vmatpush1.bf16.msra.mxu0 %v4378
    %4454 = vmatprep.subr.bf16.mxu0 0
    %4455 = vmatpush1.bf16.msra.mxu0 %v4379
    %4456 = vmatprep.subr.bf16.mxu0 0
    %4457 = vmatpush1.bf16.msra.mxu0 %v4380
    %4458 = vmatprep.subr.bf16.mxu0 0
    %4459 = vmatpush1.bf16.msra.mxu0 %v4381
    %4460 = vmatprep.subr.bf16.mxu0 0
    %4461 = vmatpush1.bf16.msra.mxu0 %v4382
    %4462 = vmatprep.subr.bf16.mxu0 0
    %4463 = vmatpush1.bf16.msra.mxu0 %v4383
    %4464 = vmatprep.mubr.bf16.mxu0 %v4162
    %4465 = vmatmul.mubr.bf16.gmra.mrb[0].mxu0 %v4161
    %v4466 = vpop.f32.mrb[0].mxu0
    %v4467 = vadd.f32 %v4238, %v4466
    %v4468 = vpop.f32.mrb[0].mxu0
    %v4469 = vpop.f32.mrb[0].mxu0
    %v4470 = vadd.f32 %v4238, %v4469
    %v4471 = vpop.f32.mrb[0].mxu0
    %4472 = vmatprep.mubr.bf16.mxu0 %v4166
    %4473 = vmatmul.mubr.bf16.gmra.mrb[0].mxu0 %v4165
    %v4474 = vpop.f32.mrb[0].mxu0
    %v4475 = vadd.f32 %v4238, %v4474
    %v4476 = vpop.f32.mrb[0].mxu0
    %v4477 = vpop.f32.mrb[0].mxu0
    %v4478 = vadd.f32 %v4238, %v4477
    %v4479 = vpop.f32.mrb[0].mxu0
    %4480 = vdwg.mxu0
    %4481 = vmatprep.subr.bf16.mxu0 0
    %4482 = vmatpush1.bf16.msra.mxu0 %v4384
    %4483 = vmatprep.subr.bf16.mxu0 0
    %4484 = vmatpush1.bf16.msra.mxu0 %v4385
    %4485 = vmatprep.subr.bf16.mxu0 0
    %4486 = vmatpush1.bf16.msra.mxu0 %v4386
    %4487 = vmatprep.subr.bf16.mxu0 0
    %4488 = vmatpush1.bf16.msra.mxu0 %v4387
    %4489 = vmatprep.subr.bf16.mxu0 0
    %4490 = vmatpush1.bf16.msra.mxu0 %v4388
    %4491 = vmatprep.subr.bf16.mxu0 0
    %4492 = vmatpush1.bf16.msra.mxu0 %v4389
    %4493 = vmatprep.subr.bf16.mxu0 0
    %4494 = vmatpush1.bf16.msra.mxu0 %v4390
    %4495 = vmatprep.subr.bf16.mxu0 0
    %4496 = vmatpush1.bf16.msra.mxu0 %v4391
    %4497 = vmatprep.subr.bf16.mxu0 0
    %4498 = vmatpush1.bf16.msra.mxu0 %v4392
    %4499 = vmatprep.subr.bf16.mxu0 0
    %4500 = vmatpush1.bf16.msra.mxu0 %v4393
    %4501 = vmatprep.subr.bf16.mxu0 0
    %4502 = vmatpush1.bf16.msra.mxu0 %v4394
    %4503 = vmatprep.subr.bf16.mxu0 0
    %4504 = vmatpush1.bf16.msra.mxu0 %v4395
    %4505 = vmatprep.subr.bf16.mxu0 0
    %4506 = vmatpush1.bf16.msra.mxu0 %v4396
    %4507 = vmatprep.subr.bf16.mxu0 0
    %4508 = vmatpush1.bf16.msra.mxu0 %v4397
    %4509 = vmatprep.subr.bf16.mxu0 0
    %4510 = vmatpush1.bf16.msra.mxu0 %v4398
    %4511 = vmatprep.subr.bf16.mxu0 0
    %4512 = vmatpush1.bf16.msra.mxu0 %v4399
    %4513 = vmatprep.mubr.bf16.mxu0 %v4164
    %4514 = vmatmul.mubr.bf16.gmra.mrb[0].mxu0 %v4163
    %v4515 = vpop.f32.mrb[0].mxu0
    %v4516 = vadd.f32 %v4467, %v4515
    %v4517 = vpop.f32.mrb[0].mxu0
    %v4518 = vpop.f32.mrb[0].mxu0
    %v4519 = vadd.f32 %v4470, %v4518
    %v4520 = vpop.f32.mrb[0].mxu0
    %4521 = vmatprep.mubr.bf16.mxu0 %v4168
    %4522 = vmatmul.mubr.bf16.gmra.mrb[0].mxu0 %v4167
    %v4523 = vpop.f32.mrb[0].mxu0
    %v4524 = vadd.f32 %v4475, %v4523
    %v4525 = vpop.f32.mrb[0].mxu0
    %v4526 = vpop.f32.mrb[0].mxu0
    %v4527 = vadd.f32 %v4478, %v4526
    %v4528 = vpop.f32.mrb[0].mxu0
    %4529 = vdwg.mxu0
    %4530 = vst [vmem:[%s6] sm:$0xff] %v4516
    %4531 = vst [vmem:[%s6 + $0x8] sm:$0xff] %v4519
    %4532 = vst [vmem:[%s6 + $0x10] sm:$0xff] %v4524
    %4533 = vst [vmem:[%s6 + $0x18] sm:$0xff] %v4527
    %v4534 = vlaneseq
    %v4535 = vand.u32 %v4534, 127
    %vm4536 = vcmp.lt.s32.totalorder %v4535, 10
    %v4537 = vsel %vm4536, %v4516, -1e+30
    %v4538 = vsel %vm4536, %v4519, -1e+30
    %v4539 = vsel %vm4536, %v4524, -1e+30
    %v4540 = vsel %vm4536, %v4527, -1e+30
    %4541 = vmax.xlane.f32.xlu0 %v4537
    %v4542 = vpop.xlane.xlu0 %4541
    %4543 = vmax.xlane.f32.xlu0 %v4538
    %v4544 = vpop.xlane.xlu0 %4543
    %4545 = vmax.xlane.f32.xlu0 %v4539
    %v4546 = vpop.xlane.xlu0 %4545
    %4547 = vmax.xlane.f32.xlu0 %v4540
    %v4548 = vpop.xlane.xlu0 %4547
    %v4549 = vsub.f32 %v4537, %v4542
    %v4550 = vsub.f32 %v4538, %v4544
    %v4551 = vsub.f32 %v4539, %v4546
    %v4552 = vsub.f32 %v4540, %v4548
    %v4553 = vmul.f32 %v4549, 1.442695
    %v4554 = vpow.pop %v4553
    %v4555 = vmul.f32 %v4550, 1.442695
    %v4556 = vpow.pop %v4555
    %v4557 = vmul.f32 %v4551, 1.442695
    %v4558 = vpow.pop %v4557
    %v4559 = vmul.f32 %v4552, 1.442695
    %v4560 = vpow.pop %v4559
    %4561 = vadd.xlane.f32.xlu0 %v4554
    %v4562 = vpop.xlane.xlu0 %4561
    %4563 = vadd.xlane.f32.xlu0 %v4556
    %v4564 = vpop.xlane.xlu0 %4563
    %4565 = vadd.xlane.f32.xlu0 %v4558
    %v4566 = vpop.xlane.xlu0 %4565
    %4567 = vadd.xlane.f32.xlu0 %v4560
    %v4568 = vpop.xlane.xlu0 %4567
    %v4569 = vlog2.pop %v4562
    %v4570 = vmul.f32 %v4569, 0.6931472
    %v4571 = vlog2.pop %v4564
    %v4572 = vmul.f32 %v4571, 0.6931472
    %v4573 = vlog2.pop %v4566
    %v4574 = vmul.f32 %v4573, 0.6931472
    %v4575 = vlog2.pop %v4568
    %v4576 = vmul.f32 %v4575, 0.6931472
    %v4577 = vadd.f32 %v4542, %v4570
    %v4578 = vadd.f32 %v4544, %v4572
    %v4579 = vadd.f32 %v4546, %v4574
    %v4580 = vadd.f32 %v4548, %v4576
    %v4581 = vld [vmem:[%s5] sm:$0xff]
    %v4582 = vld [vmem:[%s5 + $0x8] sm:$0xff]
    %v4583 = vld [vmem:[%s5 + $0x10] sm:$0xff]
    %v4584 = vld [vmem:[%s5 + $0x18] sm:$0xff]
    %v4585 = vmul.f32 %v4516, %v4581
    %v4586 = vmul.f32 %v4519, %v4582
    %v4587 = vmul.f32 %v4524, %v4583
    %v4588 = vmul.f32 %v4527, %v4584
    %4589 = vadd.xlane.f32.xlu0 %v4585
    %v4590 = vpop.xlane.xlu0 %4589
    %4591 = vadd.xlane.f32.xlu0 %v4586
    %v4592 = vpop.xlane.xlu0 %4591
    %4593 = vadd.xlane.f32.xlu0 %v4587
    %v4594 = vpop.xlane.xlu0 %4593
    %4595 = vadd.xlane.f32.xlu0 %v4588
    %v4596 = vpop.xlane.xlu0 %4595
    %4597 = vadd.xlane.f32.xlu0 %v4581
    %v4598 = vpop.xlane.xlu0 %4597
    %4599 = vadd.xlane.f32.xlu0 %v4582
    %v4600 = vpop.xlane.xlu0 %4599
    %4601 = vadd.xlane.f32.xlu0 %v4583
    %v4602 = vpop.xlane.xlu0 %4601
    %4603 = vadd.xlane.f32.xlu0 %v4584
    %v4604 = vpop.xlane.xlu0 %4603
    %v4605 = vsub.f32 %v4577, %v4590
    %v4606 = vsub.f32 %v4578, %v4592
    %v4607 = vsub.f32 %v4579, %v4594
    %v4608 = vsub.f32 %v4580, %v4596
    %v4609 = vmul.f32 %v4605, %v4598
    %v4610 = vmul.f32 %v4606, %v4600
    %v4611 = vmul.f32 %v4607, %v4602
    %v4612 = vmul.f32 %v4608, %v4604
    %vm4613 = vcmask 7168
    %v4614 = vsel %vm4613, %v4609, 0.0
    %v4615 = vsel %vm4613, %v4610, 0.0
    %v4616 = vadd.f32 %v4614, %v4615
    %v4617 = vsel %vm4613, %v4611, 0.0
    %v4618 = vadd.f32 %v4616, %v4617
    %v4619 = vsel %vm4613, %v4612, 0.0
    %v4620 = vadd.f32 %v4618, %v4619
    %4621 = vadd.xlane.f32.xlu0 %v4620
    %v4622 = vpop.xlane.xlu0 %4621
    %v4623 = vrot.slane %v4622, 4
    %v4624 = vadd.f32 %v4622, %v4623
    %v4625 = vrot.slane %v4624, 2
    %v4626 = vadd.f32 %v4624, %v4625
    %v4627 = vrot.slane %v4626, 1
    %v4628 = vadd.f32 %v4626, %v4627
    %s4629 = vtos %v4628
    %v4630 = vstv %s4629
    %v4631 = vrcp.pop 2.0
    %v4632 = vmul.f32 %v4630, %v4631
    %p4633 = scmp.eq.s32.totalorder 0, 0
    // Predicated region
    $region26: #{lenet1_forward.5} parent=1 // pred_check
      %p4634 = pneg %p4633
    $region27: #{lenet1_forward.5} parent=1 // pred_check_branch
      %4636 = sbr.rel (%p4634) target = $region29
    $region28: #{lenet1_forward.5} parent=1 // pred_region
      %vm4637 = vcmask 0
      %4638 = vst.msk [vmem:[#allocation2] sm:$0x1] %vm4637, 0.0
    $region29: #{lenet1_forward.5} parent=1 // pred_fallthru
      _
    %v4639 = vld [vmem:[#allocation2] sm:$0x1]
    %v4640 = vadd.f32 %v4639, %v4632
    %vm4641 = vcmask 0
    %4642 = vst.msk [vmem:[#allocation2] sm:$0x1] %vm4641, %v4640
    // Predicated region
    $region30: #{lenet1_forward.5} parent=1 // pred_check
      _
    $region31: #{lenet1_forward.5} parent=1 // pred_check_branch
      %4644 = sbr.rel (0) target = $region33
    $region32: #{lenet1_forward.5} parent=1 // pred_region
      _
    $region33: #{lenet1_forward.5} parent=1 // pred_fallthru
      _
    // Predicated region
    $region34: #{lenet1_forward.5} parent=1 // pred_check
      _
    $region35: #{lenet1_forward.5} parent=1 // pred_check_branch
      %4646 = sbr.rel (0) target = $region37
    $region36: #{lenet1_forward.5} parent=1 // pred_region
      %s4648 = ssub.s32 16, 16
      %4649 = vsyncadd [#allocation3], %s4648
      %s4651 = sshll.u32 [#allocation2], 4
      %s4652 = int_to_ptr.vmem [resolvable:$true] %s4651
      %4654 = dma.vmem_to_hbm [thread:$0]  %s4652, 16, %s7, [#allocation3]
    $region37: #{lenet1_forward.5} parent=1 // pred_fallthru
      _
    // Predicated region
    $region38: #{lenet1_forward.5} parent=1 // pred_check
      _
    $region39: #{lenet1_forward.5} parent=1 // pred_check_branch
      %4656 = sbr.rel (0) target = $region41
    $region40: #{lenet1_forward.5} parent=1 // pred_region
      _
    $region41: #{lenet1_forward.5} parent=1 // pred_fallthru
      _
    // Predicated region
    $region42: #{lenet1_forward.5} parent=1 // pred_check
      _
    $region43: #{lenet1_forward.5} parent=1 // pred_check_branch
      %4658 = sbr.rel (0) target = $region45
    $region44: #{lenet1_forward.5} parent=1 // pred_region
      %4659 = dma.done [#allocation3], 16
    $region45: #{lenet1_forward.5} parent=1 // pred_fallthru
      _
    %4660 = vsyncpa [#allocation3], 1

</llo_original>
